<compile_context>
chip_gen: v5e
topology: v5e:2x2
jax: 0.10.0
libtpu: 0.0.40
codegen_flags: <defaults>
</compile_context>

<pallas_src>
import jax
import jax.numpy as jnp
from jax import lax
from jax.experimental import pallas as pl
from jax.experimental.pallas import tpu as pltpu

# ----------------------------- model dims (small) ----------------------------
# Real Tacotron2 Postnet uses n_mel=80, postnet_embedding_dim=512; shrunk to
# small lane-friendly sizes for this test.
BATCH = 2
N_MEL = 32           # n_mel_channels
EMBED = 128          # postnet_embedding_dim (one vreg lane width)
SEQ = 256            # time frames per batch element (256-row MXU tiles)
KSIZE = 5            # conv kernel size
PAD = (KSIZE - 1) // 2
N_LAYERS = 5
LAYER_DIMS = [(N_MEL, EMBED)] + [(EMBED, EMBED)] * 3 + [(EMBED, N_MEL)]


# ------------------------------ fused kernel ---------------------------------
def _conv_bn_layer(h, w_ref, b_ref, t_iota, apply_tanh):
    """One Conv1d(k=5,pad=2)+BN(folded) layer as a sum of K shifted matmuls.

    h:      [T, Cin]  f32 activations (channels-last, one batch element).
    w_ref:  [K, Cin, Cout] bf16 (BN folded), aligned [Cin, Cout] tap slices.
    b_ref:  [1, Cout] f32 folded bias.
    """
    K = w_ref.shape[0]
    pad = (K - 1) // 2
    T = h.shape[0]

    # Center tap: no shift, no mask.
    acc = jnp.dot(h.astype(jnp.bfloat16), w_ref[pad],
                  preferred_element_type=jnp.float32)

    for k in range(K):
        if k == pad:
            continue
        d = k - pad                                   # time offset of this tap
        # shifted[t] = h[t + d]; roll is cyclic, so mask the |d| wrapped rows.
        shifted = pltpu.roll(h, shift=(pad - k) % T, axis=0)
        valid = (t_iota + d >= 0) & (t_iota + d < T)  # [T, 1] edge mask
        shifted = jnp.where(valid, shifted, 0.0)      # zero-pad rows (f32 VPU)
        acc = acc + jnp.dot(shifted.astype(jnp.bfloat16), w_ref[k],
                            preferred_element_type=jnp.float32)

    out = acc + b_ref[...]                            # [T, Cout] + [1, Cout]
    return jnp.tanh(out) if apply_tanh else out


def _postnet_kernel(x_ref,
                    w0_ref, b0_ref, w1_ref, b1_ref, w2_ref, b2_ref,
                    w3_ref, b3_ref, w4_ref, b4_ref,
                    o_ref):
    """x_ref/o_ref: [T, N_MEL] channels-last rows of ONE batch element."""
    T = x_ref.shape[0]
    t_iota = lax.broadcasted_iota(jnp.int32, (T, 1), 0)

    wbs = [(w0_ref, b0_ref), (w1_ref, b1_ref), (w2_ref, b2_ref),
           (w3_ref, b3_ref), (w4_ref, b4_ref)]

    h = x_ref[...]                                    # [T, N_MEL] f32
    for li, (w_ref, b_ref) in enumerate(wbs):
        h = _conv_bn_layer(h, w_ref, b_ref, t_iota,
                           apply_tanh=(li < len(wbs) - 1))

    # Residual: mel + postnet(mel). Dropout(eval) is identity. Re-read x_ref
    # here instead of keeping the input live across all layers.
    o_ref[...] = (x_ref[...] + h).astype(o_ref.dtype)


def postnet_forward(params, mel_bct):
    """mel_bct: [B, n_mel, T] (PyTorch NCT). Returns [B, n_mel, T]."""
    B, C, T = mel_bct.shape
    # Channels-last, batch flattened into one [B*T, C] row slab.
    x_rows = jnp.transpose(mel_bct, (0, 2, 1)).reshape(B * T, C)

    weight_args = []
    # Activations: one T-row chunk (== one batch element) per grid step.
    in_specs = [pl.BlockSpec((T, C), lambda i: (i, 0))]
    for i, (cin, cout) in enumerate(LAYER_DIMS):
        weight_args += [params[f"w{i}"], params[f"b{i}"]]
        # Constant index_map -> weights DMA'd once, resident across grid steps.
        in_specs += [pl.BlockSpec((KSIZE, cin, cout), lambda i: (0, 0, 0)),
                     pl.BlockSpec((1, cout), lambda i: (0, 0))]

    out_rows = pl.pallas_call(
        _postnet_kernel,
        out_shape=jax.ShapeDtypeStruct((B * T, C), mel_bct.dtype),
        grid=(B,),
        in_specs=in_specs,
        out_specs=pl.BlockSpec((T, C), lambda i: (i, 0)),
        # Per-step work ~1 us -> keep single-core ("arbitrary"); switch to
        # "parallel" for production-sized T so v7x's 2 TCs split the chunks.
        compiler_params=pltpu.CompilerParams(
            dimension_semantics=("arbitrary",)),
    )(x_rows, *weight_args)

    return jnp.transpose(out_rows.reshape(B, T, C), (0, 2, 1))     # back to NCT


# --------------------------- deterministic params ----------------------------
def make_params(key):
    """Random Conv1d + BatchNorm1d (eval) params, BN folded into conv w/b.

    Stored kernel-side as w{i}: [K, Cin, Cout] bf16, b{i}: [1, Cout] f32.
    """
    p = {}
    keys = jax.random.split(key, 6 * N_LAYERS)
    for i, (cin, cout) in enumerate(LAYER_DIMS):
        k = keys[6 * i: 6 * i + 6]
        w = 0.1 * jax.random.normal(k[0], (cout, cin, KSIZE), jnp.float32)
        b = 0.01 * jax.random.normal(k[1], (cout,), jnp.float32)
        gamma = 1.0 + 0.1 * jax.random.normal(k[2], (cout,), jnp.float32)
        beta = 0.01 * jax.random.normal(k[3], (cout,), jnp.float32)
        mean = 0.01 * jax.random.normal(k[4], (cout,), jnp.float32)
        var = 1.0 + 0.1 * jax.random.uniform(k[5], (cout,), jnp.float32)
        # Fold eval-mode BatchNorm1d into the conv weights / bias.
        scale = gamma * lax.rsqrt(var + 1e-5)
        w_f = w * scale[:, None, None]                       # [Cout, Cin, K]
        b_f = (b - mean) * scale + beta                      # [Cout]
        # K-tap layout [K, Cin, Cout] so w[k] is an aligned [Cin, Cout] slice.
        p[f"w{i}"] = jnp.transpose(w_f, (2, 1, 0)).astype(jnp.bfloat16)
        p[f"b{i}"] = b_f.reshape(1, cout).astype(jnp.float32)
    return p


# ----------------------------- pure-JAX reference ----------------------------
def postnet_ref(params, mel_bct):
    """Reference with the SAME bf16-rounded weights/activations as the kernel,
    so only f32 accumulation order / transcendental impl can differ."""
    x = mel_bct
    for i in range(N_LAYERS):
        w = jnp.transpose(params[f"w{i}"].astype(jnp.float32), (2, 1, 0))
        b = params[f"b{i}"].reshape(-1)
        x_q = x.astype(jnp.bfloat16).astype(jnp.float32)     # match kernel cast
        y = lax.conv_general_dilated(
            x_q, w, window_strides=(1,), padding=((PAD, PAD),),
            dimension_numbers=("NCH", "OIH", "NCH"),
            precision=lax.Precision.HIGHEST)
        y = y + b[None, :, None]
        x = jnp.tanh(y) if i < N_LAYERS - 1 else y
    return mel_bct + x


# ---------------------------------- main --------------------------------------
if __name__ == "__main__":
    key = jax.random.PRNGKey(0)
    params = make_params(key)

    mel_key, _ = jax.random.split(key)
    mel_outputs = jax.random.normal(mel_key, (BATCH, N_MEL, SEQ), jnp.float32)

    out = jax.jit(postnet_forward)(params, mel_outputs)
    jax.block_until_ready(out)
    assert out.shape == (BATCH, N_MEL, SEQ)

    # Tighter tolerance than before: both paths use identical bf16-rounded
    # weights/activations with f32 accumulation, so residual mismatch is only
    # accumulation order + tanh implementation (expected ~1e-4).
    ref = postnet_ref(params, mel_outputs)
    max_err = float(jnp.max(jnp.abs(out - ref)))
    assert jnp.allclose(out, ref, atol=2e-2, rtol=2e-2), f"max_err={max_err}"

    print("KERNEL_OK")
</pallas_src>

<mosaic_0001>
module attributes {stable_mosaic.version = 11 : i64} {
  func.func @_postnet_kernel(%arg0: i32, %arg1: memref<256x32xf32, #tpu.memory_space<vmem>>, %arg2: memref<5x32x128xbf16, #tpu.memory_space<vmem>>, %arg3: memref<1x128xf32, #tpu.memory_space<vmem>>, %arg4: memref<5x128x128xbf16, #tpu.memory_space<vmem>>, %arg5: memref<1x128xf32, #tpu.memory_space<vmem>>, %arg6: memref<5x128x128xbf16, #tpu.memory_space<vmem>>, %arg7: memref<1x128xf32, #tpu.memory_space<vmem>>, %arg8: memref<5x128x128xbf16, #tpu.memory_space<vmem>>, %arg9: memref<1x128xf32, #tpu.memory_space<vmem>>, %arg10: memref<5x128x32xbf16, #tpu.memory_space<vmem>>, %arg11: memref<1x32xf32, #tpu.memory_space<vmem>>, %arg12: memref<256x32xf32, #tpu.memory_space<vmem>>) attributes {dimension_semantics = [#tpu.dimension_semantics<arbitrary>], iteration_bounds = array<i64: 2>, scalar_prefetch = 0 : i64, scratch_operands = 0 : i64, tpu.core_type = #tpu.core_type<tc>, window_params = [{transform_indices = @transform_0, window_bounds = array<i64: 256, 32>}, {pipeline_mode = #tpu.pipeline_mode<synchronous>, transform_indices = @transform_1, window_bounds = array<i64: 5, 32, 128>}, {pipeline_mode = #tpu.pipeline_mode<synchronous>, transform_indices = @transform_2, window_bounds = array<i64: 1, 128>}, {pipeline_mode = #tpu.pipeline_mode<synchronous>, transform_indices = @transform_3, window_bounds = array<i64: 5, 128, 128>}, {pipeline_mode = #tpu.pipeline_mode<synchronous>, transform_indices = @transform_4, window_bounds = array<i64: 1, 128>}, {pipeline_mode = #tpu.pipeline_mode<synchronous>, transform_indices = @transform_5, window_bounds = array<i64: 5, 128, 128>}, {pipeline_mode = #tpu.pipeline_mode<synchronous>, transform_indices = @transform_6, window_bounds = array<i64: 1, 128>}, {pipeline_mode = #tpu.pipeline_mode<synchronous>, transform_indices = @transform_7, window_bounds = array<i64: 5, 128, 128>}, {pipeline_mode = #tpu.pipeline_mode<synchronous>, transform_indices = @transform_8, window_bounds = array<i64: 1, 128>}, {pipeline_mode = #tpu.pipeline_mode<synchronous>, transform_indices = @transform_9, window_bounds = array<i64: 5, 128, 32>}, {pipeline_mode = #tpu.pipeline_mode<synchronous>, transform_indices = @transform_10, window_bounds = array<i64: 1, 32>}, {transform_indices = @transform_11, window_bounds = array<i64: 256, 32>}]} {
    %0 = tpu.iota {dimensions = array<i32: 0>} : vector<256x1xi32>
    %c0 = arith.constant 0 : index
    %c0_0 = arith.constant 0 : index
    %1 = vector.load %arg1[%c0, %c0_0] : memref<256x32xf32, #tpu.memory_space<vmem>>, vector<256x32xf32>
    %2 = arith.truncf %1 : vector<256x32xf32> to vector<256x32xbf16>
    %c2 = arith.constant 2 : index
    %c0_1 = arith.constant 0 : index
    %c0_2 = arith.constant 0 : index
    %3 = vector.load %arg2[%c2, %c0_1, %c0_2] : memref<5x32x128xbf16, #tpu.memory_space<vmem>>, vector<1x32x128xbf16>
    %4 = vector.shape_cast %3 : vector<1x32x128xbf16> to vector<32x128xbf16>
    %cst = arith.constant dense<0.000000e+00> : vector<256x128xf32>
    %5 = tpu.matmul %2, %4, %cst {dimension_numbers = #tpu.dot_dimension_numbers<[1], [0], [0], [1], [0, 0, 1, 1], [], []>} : vector<256x32xbf16>, vector<32x128xbf16>, vector<256x128xf32> -> vector<256x128xf32>
    %c2_i32 = arith.constant 2 : i32
    %6 = tpu.dynamic_rotate %1 by %c2_i32 dim 0 : vector<256x32xf32>, i32 -> vector<256x32xf32>
    %c-2_i32 = arith.constant -2 : i32
    %7 = vector.broadcast %c-2_i32 : i32 to vector<256x1xi32>
    %8 = arith.addi %0, %7 : vector<256x1xi32>
    %c0_i32 = arith.constant 0 : i32
    %9 = vector.broadcast %c0_i32 : i32 to vector<256x1xi32>
    %10 = arith.cmpi sge, %8, %9 : vector<256x1xi32>
    %c-2_i32_3 = arith.constant -2 : i32
    %11 = vector.broadcast %c-2_i32_3 : i32 to vector<256x1xi32>
    %12 = arith.addi %0, %11 : vector<256x1xi32>
    %c256_i32 = arith.constant 256 : i32
    %13 = vector.broadcast %c256_i32 : i32 to vector<256x1xi32>
    %14 = arith.cmpi slt, %12, %13 : vector<256x1xi32>
    %15 = arith.andi %10, %14 : vector<256x1xi1>
    %cst_4 = arith.constant 0.000000e+00 : f32
    %16 = vector.shape_cast %15 : vector<256x1xi1> to vector<256x1xi1>
    %17 = vector.broadcast %16 : vector<256x1xi1> to vector<256x32xi1>
    %18 = vector.broadcast %cst_4 : f32 to vector<256x32xf32>
    %19 = arith.select %17, %6, %18 : vector<256x32xi1>, vector<256x32xf32>
    %20 = arith.truncf %19 : vector<256x32xf32> to vector<256x32xbf16>
    %c0_5 = arith.constant 0 : index
    %c0_6 = arith.constant 0 : index
    %c0_7 = arith.constant 0 : index
    %21 = vector.load %arg2[%c0_5, %c0_6, %c0_7] : memref<5x32x128xbf16, #tpu.memory_space<vmem>>, vector<1x32x128xbf16>
    %22 = vector.shape_cast %21 : vector<1x32x128xbf16> to vector<32x128xbf16>
    %cst_8 = arith.constant dense<0.000000e+00> : vector<256x128xf32>
    %23 = tpu.matmul %20, %22, %cst_8 {dimension_numbers = #tpu.dot_dimension_numbers<[1], [0], [0], [1], [0, 0, 1, 1], [], []>} : vector<256x32xbf16>, vector<32x128xbf16>, vector<256x128xf32> -> vector<256x128xf32>
    %24 = arith.addf %5, %23 : vector<256x128xf32>
    %c1_i32 = arith.constant 1 : i32
    %25 = tpu.dynamic_rotate %1 by %c1_i32 dim 0 : vector<256x32xf32>, i32 -> vector<256x32xf32>
    %c-1_i32 = arith.constant -1 : i32
    %26 = vector.broadcast %c-1_i32 : i32 to vector<256x1xi32>
    %27 = arith.addi %0, %26 : vector<256x1xi32>
    %c0_i32_9 = arith.constant 0 : i32
    %28 = vector.broadcast %c0_i32_9 : i32 to vector<256x1xi32>
    %29 = arith.cmpi sge, %27, %28 : vector<256x1xi32>
    %c-1_i32_10 = arith.constant -1 : i32
    %30 = vector.broadcast %c-1_i32_10 : i32 to vector<256x1xi32>
    %31 = arith.addi %0, %30 : vector<256x1xi32>
    %c256_i32_11 = arith.constant 256 : i32
    %32 = vector.broadcast %c256_i32_11 : i32 to vector<256x1xi32>
    %33 = arith.cmpi slt, %31, %32 : vector<256x1xi32>
    %34 = arith.andi %29, %33 : vector<256x1xi1>
    %cst_12 = arith.constant 0.000000e+00 : f32
    %35 = vector.shape_cast %34 : vector<256x1xi1> to vector<256x1xi1>
    %36 = vector.broadcast %35 : vector<256x1xi1> to vector<256x32xi1>
    %37 = vector.broadcast %cst_12 : f32 to vector<256x32xf32>
    %38 = arith.select %36, %25, %37 : vector<256x32xi1>, vector<256x32xf32>
    %39 = arith.truncf %38 : vector<256x32xf32> to vector<256x32xbf16>
    %c1 = arith.constant 1 : index
    %c0_13 = arith.constant 0 : index
    %c0_14 = arith.constant 0 : index
    %40 = vector.load %arg2[%c1, %c0_13, %c0_14] : memref<5x32x128xbf16, #tpu.memory_space<vmem>>, vector<1x32x128xbf16>
    %41 = vector.shape_cast %40 : vector<1x32x128xbf16> to vector<32x128xbf16>
    %cst_15 = arith.constant dense<0.000000e+00> : vector<256x128xf32>
    %42 = tpu.matmul %39, %41, %cst_15 {dimension_numbers = #tpu.dot_dimension_numbers<[1], [0], [0], [1], [0, 0, 1, 1], [], []>} : vector<256x32xbf16>, vector<32x128xbf16>, vector<256x128xf32> -> vector<256x128xf32>
    %43 = arith.addf %24, %42 : vector<256x128xf32>
    %c255_i32 = arith.constant 255 : i32
    %44 = tpu.dynamic_rotate %1 by %c255_i32 dim 0 : vector<256x32xf32>, i32 -> vector<256x32xf32>
    %c1_i32_16 = arith.constant 1 : i32
    %45 = vector.broadcast %c1_i32_16 : i32 to vector<256x1xi32>
    %46 = arith.addi %0, %45 : vector<256x1xi32>
    %c0_i32_17 = arith.constant 0 : i32
    %47 = vector.broadcast %c0_i32_17 : i32 to vector<256x1xi32>
    %48 = arith.cmpi sge, %46, %47 : vector<256x1xi32>
    %c1_i32_18 = arith.constant 1 : i32
    %49 = vector.broadcast %c1_i32_18 : i32 to vector<256x1xi32>
    %50 = arith.addi %0, %49 : vector<256x1xi32>
    %c256_i32_19 = arith.constant 256 : i32
    %51 = vector.broadcast %c256_i32_19 : i32 to vector<256x1xi32>
    %52 = arith.cmpi slt, %50, %51 : vector<256x1xi32>
    %53 = arith.andi %48, %52 : vector<256x1xi1>
    %cst_20 = arith.constant 0.000000e+00 : f32
    %54 = vector.shape_cast %53 : vector<256x1xi1> to vector<256x1xi1>
    %55 = vector.broadcast %54 : vector<256x1xi1> to vector<256x32xi1>
    %56 = vector.broadcast %cst_20 : f32 to vector<256x32xf32>
    %57 = arith.select %55, %44, %56 : vector<256x32xi1>, vector<256x32xf32>
    %58 = arith.truncf %57 : vector<256x32xf32> to vector<256x32xbf16>
    %c3 = arith.constant 3 : index
    %c0_21 = arith.constant 0 : index
    %c0_22 = arith.constant 0 : index
    %59 = vector.load %arg2[%c3, %c0_21, %c0_22] : memref<5x32x128xbf16, #tpu.memory_space<vmem>>, vector<1x32x128xbf16>
    %60 = vector.shape_cast %59 : vector<1x32x128xbf16> to vector<32x128xbf16>
    %cst_23 = arith.constant dense<0.000000e+00> : vector<256x128xf32>
    %61 = tpu.matmul %58, %60, %cst_23 {dimension_numbers = #tpu.dot_dimension_numbers<[1], [0], [0], [1], [0, 0, 1, 1], [], []>} : vector<256x32xbf16>, vector<32x128xbf16>, vector<256x128xf32> -> vector<256x128xf32>
    %62 = arith.addf %43, %61 : vector<256x128xf32>
    %c254_i32 = arith.constant 254 : i32
    %63 = tpu.dynamic_rotate %1 by %c254_i32 dim 0 : vector<256x32xf32>, i32 -> vector<256x32xf32>
    %c2_i32_24 = arith.constant 2 : i32
    %64 = vector.broadcast %c2_i32_24 : i32 to vector<256x1xi32>
    %65 = arith.addi %0, %64 : vector<256x1xi32>
    %c0_i32_25 = arith.constant 0 : i32
    %66 = vector.broadcast %c0_i32_25 : i32 to vector<256x1xi32>
    %67 = arith.cmpi sge, %65, %66 : vector<256x1xi32>
    %c2_i32_26 = arith.constant 2 : i32
    %68 = vector.broadcast %c2_i32_26 : i32 to vector<256x1xi32>
    %69 = arith.addi %0, %68 : vector<256x1xi32>
    %c256_i32_27 = arith.constant 256 : i32
    %70 = vector.broadcast %c256_i32_27 : i32 to vector<256x1xi32>
    %71 = arith.cmpi slt, %69, %70 : vector<256x1xi32>
    %72 = arith.andi %67, %71 : vector<256x1xi1>
    %cst_28 = arith.constant 0.000000e+00 : f32
    %73 = vector.shape_cast %72 : vector<256x1xi1> to vector<256x1xi1>
    %74 = vector.broadcast %73 : vector<256x1xi1> to vector<256x32xi1>
    %75 = vector.broadcast %cst_28 : f32 to vector<256x32xf32>
    %76 = arith.select %74, %63, %75 : vector<256x32xi1>, vector<256x32xf32>
    %77 = arith.truncf %76 : vector<256x32xf32> to vector<256x32xbf16>
    %c4 = arith.constant 4 : index
    %c0_29 = arith.constant 0 : index
    %c0_30 = arith.constant 0 : index
    %78 = vector.load %arg2[%c4, %c0_29, %c0_30] : memref<5x32x128xbf16, #tpu.memory_space<vmem>>, vector<1x32x128xbf16>
    %79 = vector.shape_cast %78 : vector<1x32x128xbf16> to vector<32x128xbf16>
    %cst_31 = arith.constant dense<0.000000e+00> : vector<256x128xf32>
    %80 = tpu.matmul %77, %79, %cst_31 {dimension_numbers = #tpu.dot_dimension_numbers<[1], [0], [0], [1], [0, 0, 1, 1], [], []>} : vector<256x32xbf16>, vector<32x128xbf16>, vector<256x128xf32> -> vector<256x128xf32>
    %81 = arith.addf %62, %80 : vector<256x128xf32>
    %c0_32 = arith.constant 0 : index
    %c0_33 = arith.constant 0 : index
    %82 = vector.load %arg3[%c0_32, %c0_33] : memref<1x128xf32, #tpu.memory_space<vmem>>, vector<1x128xf32>
    %83 = vector.broadcast %82 : vector<1x128xf32> to vector<256x128xf32>
    %84 = arith.addf %81, %83 : vector<256x128xf32>
    %85 = math.tanh %84 : vector<256x128xf32>
    %86 = arith.truncf %85 : vector<256x128xf32> to vector<256x128xbf16>
    %c2_34 = arith.constant 2 : index
    %c0_35 = arith.constant 0 : index
    %c0_36 = arith.constant 0 : index
    %87 = vector.load %arg4[%c2_34, %c0_35, %c0_36] : memref<5x128x128xbf16, #tpu.memory_space<vmem>>, vector<1x128x128xbf16>
    %88 = vector.shape_cast %87 : vector<1x128x128xbf16> to vector<128x128xbf16>
    %cst_37 = arith.constant dense<0.000000e+00> : vector<256x128xf32>
    %89 = tpu.matmul %86, %88, %cst_37 {dimension_numbers = #tpu.dot_dimension_numbers<[1], [0], [0], [1], [0, 0, 1, 1], [], []>} : vector<256x128xbf16>, vector<128x128xbf16>, vector<256x128xf32> -> vector<256x128xf32>
    %c2_i32_38 = arith.constant 2 : i32
    %90 = tpu.dynamic_rotate %85 by %c2_i32_38 dim 0 : vector<256x128xf32>, i32 -> vector<256x128xf32>
    %c-2_i32_39 = arith.constant -2 : i32
    %91 = vector.broadcast %c-2_i32_39 : i32 to vector<256x1xi32>
    %92 = arith.addi %0, %91 : vector<256x1xi32>
    %c0_i32_40 = arith.constant 0 : i32
    %93 = vector.broadcast %c0_i32_40 : i32 to vector<256x1xi32>
    %94 = arith.cmpi sge, %92, %93 : vector<256x1xi32>
    %c-2_i32_41 = arith.constant -2 : i32
    %95 = vector.broadcast %c-2_i32_41 : i32 to vector<256x1xi32>
    %96 = arith.addi %0, %95 : vector<256x1xi32>
    %c256_i32_42 = arith.constant 256 : i32
    %97 = vector.broadcast %c256_i32_42 : i32 to vector<256x1xi32>
    %98 = arith.cmpi slt, %96, %97 : vector<256x1xi32>
    %99 = arith.andi %94, %98 : vector<256x1xi1>
    %cst_43 = arith.constant 0.000000e+00 : f32
    %100 = vector.shape_cast %99 : vector<256x1xi1> to vector<256x1xi1>
    %101 = vector.broadcast %100 : vector<256x1xi1> to vector<256x128xi1>
    %102 = vector.broadcast %cst_43 : f32 to vector<256x128xf32>
    %103 = arith.select %101, %90, %102 : vector<256x128xi1>, vector<256x128xf32>
    %104 = arith.truncf %103 : vector<256x128xf32> to vector<256x128xbf16>
    %c0_44 = arith.constant 0 : index
    %c0_45 = arith.constant 0 : index
    %c0_46 = arith.constant 0 : index
    %105 = vector.load %arg4[%c0_44, %c0_45, %c0_46] : memref<5x128x128xbf16, #tpu.memory_space<vmem>>, vector<1x128x128xbf16>
    %106 = vector.shape_cast %105 : vector<1x128x128xbf16> to vector<128x128xbf16>
    %cst_47 = arith.constant dense<0.000000e+00> : vector<256x128xf32>
    %107 = tpu.matmul %104, %106, %cst_47 {dimension_numbers = #tpu.dot_dimension_numbers<[1], [0], [0], [1], [0, 0, 1, 1], [], []>} : vector<256x128xbf16>, vector<128x128xbf16>, vector<256x128xf32> -> vector<256x128xf32>
    %108 = arith.addf %89, %107 : vector<256x128xf32>
    %c1_i32_48 = arith.constant 1 : i32
    %109 = tpu.dynamic_rotate %85 by %c1_i32_48 dim 0 : vector<256x128xf32>, i32 -> vector<256x128xf32>
    %c-1_i32_49 = arith.constant -1 : i32
    %110 = vector.broadcast %c-1_i32_49 : i32 to vector<256x1xi32>
    %111 = arith.addi %0, %110 : vector<256x1xi32>
    %c0_i32_50 = arith.constant 0 : i32
    %112 = vector.broadcast %c0_i32_50 : i32 to vector<256x1xi32>
    %113 = arith.cmpi sge, %111, %112 : vector<256x1xi32>
    %c-1_i32_51 = arith.constant -1 : i32
    %114 = vector.broadcast %c-1_i32_51 : i32 to vector<256x1xi32>
    %115 = arith.addi %0, %114 : vector<256x1xi32>
    %c256_i32_52 = arith.constant 256 : i32
    %116 = vector.broadcast %c256_i32_52 : i32 to vector<256x1xi32>
    %117 = arith.cmpi slt, %115, %116 : vector<256x1xi32>
    %118 = arith.andi %113, %117 : vector<256x1xi1>
    %cst_53 = arith.constant 0.000000e+00 : f32
    %119 = vector.shape_cast %118 : vector<256x1xi1> to vector<256x1xi1>
    %120 = vector.broadcast %119 : vector<256x1xi1> to vector<256x128xi1>
    %121 = vector.broadcast %cst_53 : f32 to vector<256x128xf32>
    %122 = arith.select %120, %109, %121 : vector<256x128xi1>, vector<256x128xf32>
    %123 = arith.truncf %122 : vector<256x128xf32> to vector<256x128xbf16>
    %c1_54 = arith.constant 1 : index
    %c0_55 = arith.constant 0 : index
    %c0_56 = arith.constant 0 : index
    %124 = vector.load %arg4[%c1_54, %c0_55, %c0_56] : memref<5x128x128xbf16, #tpu.memory_space<vmem>>, vector<1x128x128xbf16>
    %125 = vector.shape_cast %124 : vector<1x128x128xbf16> to vector<128x128xbf16>
    %cst_57 = arith.constant dense<0.000000e+00> : vector<256x128xf32>
    %126 = tpu.matmul %123, %125, %cst_57 {dimension_numbers = #tpu.dot_dimension_numbers<[1], [0], [0], [1], [0, 0, 1, 1], [], []>} : vector<256x128xbf16>, vector<128x128xbf16>, vector<256x128xf32> -> vector<256x128xf32>
    %127 = arith.addf %108, %126 : vector<256x128xf32>
    %c255_i32_58 = arith.constant 255 : i32
    %128 = tpu.dynamic_rotate %85 by %c255_i32_58 dim 0 : vector<256x128xf32>, i32 -> vector<256x128xf32>
    %c1_i32_59 = arith.constant 1 : i32
    %129 = vector.broadcast %c1_i32_59 : i32 to vector<256x1xi32>
    %130 = arith.addi %0, %129 : vector<256x1xi32>
    %c0_i32_60 = arith.constant 0 : i32
    %131 = vector.broadcast %c0_i32_60 : i32 to vector<256x1xi32>
    %132 = arith.cmpi sge, %130, %131 : vector<256x1xi32>
    %c1_i32_61 = arith.constant 1 : i32
    %133 = vector.broadcast %c1_i32_61 : i32 to vector<256x1xi32>
    %134 = arith.addi %0, %133 : vector<256x1xi32>
    %c256_i32_62 = arith.constant 256 : i32
    %135 = vector.broadcast %c256_i32_62 : i32 to vector<256x1xi32>
    %136 = arith.cmpi slt, %134, %135 : vector<256x1xi32>
    %137 = arith.andi %132, %136 : vector<256x1xi1>
    %cst_63 = arith.constant 0.000000e+00 : f32
    %138 = vector.shape_cast %137 : vector<256x1xi1> to vector<256x1xi1>
    %139 = vector.broadcast %138 : vector<256x1xi1> to vector<256x128xi1>
    %140 = vector.broadcast %cst_63 : f32 to vector<256x128xf32>
    %141 = arith.select %139, %128, %140 : vector<256x128xi1>, vector<256x128xf32>
    %142 = arith.truncf %141 : vector<256x128xf32> to vector<256x128xbf16>
    %c3_64 = arith.constant 3 : index
    %c0_65 = arith.constant 0 : index
    %c0_66 = arith.constant 0 : index
    %143 = vector.load %arg4[%c3_64, %c0_65, %c0_66] : memref<5x128x128xbf16, #tpu.memory_space<vmem>>, vector<1x128x128xbf16>
    %144 = vector.shape_cast %143 : vector<1x128x128xbf16> to vector<128x128xbf16>
    %cst_67 = arith.constant dense<0.000000e+00> : vector<256x128xf32>
    %145 = tpu.matmul %142, %144, %cst_67 {dimension_numbers = #tpu.dot_dimension_numbers<[1], [0], [0], [1], [0, 0, 1, 1], [], []>} : vector<256x128xbf16>, vector<128x128xbf16>, vector<256x128xf32> -> vector<256x128xf32>
    %146 = arith.addf %127, %145 : vector<256x128xf32>
    %c254_i32_68 = arith.constant 254 : i32
    %147 = tpu.dynamic_rotate %85 by %c254_i32_68 dim 0 : vector<256x128xf32>, i32 -> vector<256x128xf32>
    %c2_i32_69 = arith.constant 2 : i32
    %148 = vector.broadcast %c2_i32_69 : i32 to vector<256x1xi32>
    %149 = arith.addi %0, %148 : vector<256x1xi32>
    %c0_i32_70 = arith.constant 0 : i32
    %150 = vector.broadcast %c0_i32_70 : i32 to vector<256x1xi32>
    %151 = arith.cmpi sge, %149, %150 : vector<256x1xi32>
    %c2_i32_71 = arith.constant 2 : i32
    %152 = vector.broadcast %c2_i32_71 : i32 to vector<256x1xi32>
    %153 = arith.addi %0, %152 : vector<256x1xi32>
    %c256_i32_72 = arith.constant 256 : i32
    %154 = vector.broadcast %c256_i32_72 : i32 to vector<256x1xi32>
    %155 = arith.cmpi slt, %153, %154 : vector<256x1xi32>
    %156 = arith.andi %151, %155 : vector<256x1xi1>
    %cst_73 = arith.constant 0.000000e+00 : f32
    %157 = vector.shape_cast %156 : vector<256x1xi1> to vector<256x1xi1>
    %158 = vector.broadcast %157 : vector<256x1xi1> to vector<256x128xi1>
    %159 = vector.broadcast %cst_73 : f32 to vector<256x128xf32>
    %160 = arith.select %158, %147, %159 : vector<256x128xi1>, vector<256x128xf32>
    %161 = arith.truncf %160 : vector<256x128xf32> to vector<256x128xbf16>
    %c4_74 = arith.constant 4 : index
    %c0_75 = arith.constant 0 : index
    %c0_76 = arith.constant 0 : index
    %162 = vector.load %arg4[%c4_74, %c0_75, %c0_76] : memref<5x128x128xbf16, #tpu.memory_space<vmem>>, vector<1x128x128xbf16>
    %163 = vector.shape_cast %162 : vector<1x128x128xbf16> to vector<128x128xbf16>
    %cst_77 = arith.constant dense<0.000000e+00> : vector<256x128xf32>
    %164 = tpu.matmul %161, %163, %cst_77 {dimension_numbers = #tpu.dot_dimension_numbers<[1], [0], [0], [1], [0, 0, 1, 1], [], []>} : vector<256x128xbf16>, vector<128x128xbf16>, vector<256x128xf32> -> vector<256x128xf32>
    %165 = arith.addf %146, %164 : vector<256x128xf32>
    %c0_78 = arith.constant 0 : index
    %c0_79 = arith.constant 0 : index
    %166 = vector.load %arg5[%c0_78, %c0_79] : memref<1x128xf32, #tpu.memory_space<vmem>>, vector<1x128xf32>
    %167 = vector.broadcast %166 : vector<1x128xf32> to vector<256x128xf32>
    %168 = arith.addf %165, %167 : vector<256x128xf32>
    %169 = math.tanh %168 : vector<256x128xf32>
    %170 = arith.truncf %169 : vector<256x128xf32> to vector<256x128xbf16>
    %c2_80 = arith.constant 2 : index
    %c0_81 = arith.constant 0 : index
    %c0_82 = arith.constant 0 : index
    %171 = vector.load %arg6[%c2_80, %c0_81, %c0_82] : memref<5x128x128xbf16, #tpu.memory_space<vmem>>, vector<1x128x128xbf16>
    %172 = vector.shape_cast %171 : vector<1x128x128xbf16> to vector<128x128xbf16>
    %cst_83 = arith.constant dense<0.000000e+00> : vector<256x128xf32>
    %173 = tpu.matmul %170, %172, %cst_83 {dimension_numbers = #tpu.dot_dimension_numbers<[1], [0], [0], [1], [0, 0, 1, 1], [], []>} : vector<256x128xbf16>, vector<128x128xbf16>, vector<256x128xf32> -> vector<256x128xf32>
    %c2_i32_84 = arith.constant 2 : i32
    %174 = tpu.dynamic_rotate %169 by %c2_i32_84 dim 0 : vector<256x128xf32>, i32 -> vector<256x128xf32>
    %c-2_i32_85 = arith.constant -2 : i32
    %175 = vector.broadcast %c-2_i32_85 : i32 to vector<256x1xi32>
    %176 = arith.addi %0, %175 : vector<256x1xi32>
    %c0_i32_86 = arith.constant 0 : i32
    %177 = vector.broadcast %c0_i32_86 : i32 to vector<256x1xi32>
    %178 = arith.cmpi sge, %176, %177 : vector<256x1xi32>
    %c-2_i32_87 = arith.constant -2 : i32
    %179 = vector.broadcast %c-2_i32_87 : i32 to vector<256x1xi32>
    %180 = arith.addi %0, %179 : vector<256x1xi32>
    %c256_i32_88 = arith.constant 256 : i32
    %181 = vector.broadcast %c256_i32_88 : i32 to vector<256x1xi32>
    %182 = arith.cmpi slt, %180, %181 : vector<256x1xi32>
    %183 = arith.andi %178, %182 : vector<256x1xi1>
    %cst_89 = arith.constant 0.000000e+00 : f32
    %184 = vector.shape_cast %183 : vector<256x1xi1> to vector<256x1xi1>
    %185 = vector.broadcast %184 : vector<256x1xi1> to vector<256x128xi1>
    %186 = vector.broadcast %cst_89 : f32 to vector<256x128xf32>
    %187 = arith.select %185, %174, %186 : vector<256x128xi1>, vector<256x128xf32>
    %188 = arith.truncf %187 : vector<256x128xf32> to vector<256x128xbf16>
    %c0_90 = arith.constant 0 : index
    %c0_91 = arith.constant 0 : index
    %c0_92 = arith.constant 0 : index
    %189 = vector.load %arg6[%c0_90, %c0_91, %c0_92] : memref<5x128x128xbf16, #tpu.memory_space<vmem>>, vector<1x128x128xbf16>
    %190 = vector.shape_cast %189 : vector<1x128x128xbf16> to vector<128x128xbf16>
    %cst_93 = arith.constant dense<0.000000e+00> : vector<256x128xf32>
    %191 = tpu.matmul %188, %190, %cst_93 {dimension_numbers = #tpu.dot_dimension_numbers<[1], [0], [0], [1], [0, 0, 1, 1], [], []>} : vector<256x128xbf16>, vector<128x128xbf16>, vector<256x128xf32> -> vector<256x128xf32>
    %192 = arith.addf %173, %191 : vector<256x128xf32>
    %c1_i32_94 = arith.constant 1 : i32
    %193 = tpu.dynamic_rotate %169 by %c1_i32_94 dim 0 : vector<256x128xf32>, i32 -> vector<256x128xf32>
    %c-1_i32_95 = arith.constant -1 : i32
    %194 = vector.broadcast %c-1_i32_95 : i32 to vector<256x1xi32>
    %195 = arith.addi %0, %194 : vector<256x1xi32>
    %c0_i32_96 = arith.constant 0 : i32
    %196 = vector.broadcast %c0_i32_96 : i32 to vector<256x1xi32>
    %197 = arith.cmpi sge, %195, %196 : vector<256x1xi32>
    %c-1_i32_97 = arith.constant -1 : i32
    %198 = vector.broadcast %c-1_i32_97 : i32 to vector<256x1xi32>
    %199 = arith.addi %0, %198 : vector<256x1xi32>
    %c256_i32_98 = arith.constant 256 : i32
    %200 = vector.broadcast %c256_i32_98 : i32 to vector<256x1xi32>
    %201 = arith.cmpi slt, %199, %200 : vector<256x1xi32>
    %202 = arith.andi %197, %201 : vector<256x1xi1>
    %cst_99 = arith.constant 0.000000e+00 : f32
    %203 = vector.shape_cast %202 : vector<256x1xi1> to vector<256x1xi1>
    %204 = vector.broadcast %203 : vector<256x1xi1> to vector<256x128xi1>
    %205 = vector.broadcast %cst_99 : f32 to vector<256x128xf32>
    %206 = arith.select %204, %193, %205 : vector<256x128xi1>, vector<256x128xf32>
    %207 = arith.truncf %206 : vector<256x128xf32> to vector<256x128xbf16>
    %c1_100 = arith.constant 1 : index
    %c0_101 = arith.constant 0 : index
    %c0_102 = arith.constant 0 : index
    %208 = vector.load %arg6[%c1_100, %c0_101, %c0_102] : memref<5x128x128xbf16, #tpu.memory_space<vmem>>, vector<1x128x128xbf16>
    %209 = vector.shape_cast %208 : vector<1x128x128xbf16> to vector<128x128xbf16>
    %cst_103 = arith.constant dense<0.000000e+00> : vector<256x128xf32>
    %210 = tpu.matmul %207, %209, %cst_103 {dimension_numbers = #tpu.dot_dimension_numbers<[1], [0], [0], [1], [0, 0, 1, 1], [], []>} : vector<256x128xbf16>, vector<128x128xbf16>, vector<256x128xf32> -> vector<256x128xf32>
    %211 = arith.addf %192, %210 : vector<256x128xf32>
    %c255_i32_104 = arith.constant 255 : i32
    %212 = tpu.dynamic_rotate %169 by %c255_i32_104 dim 0 : vector<256x128xf32>, i32 -> vector<256x128xf32>
    %c1_i32_105 = arith.constant 1 : i32
    %213 = vector.broadcast %c1_i32_105 : i32 to vector<256x1xi32>
    %214 = arith.addi %0, %213 : vector<256x1xi32>
    %c0_i32_106 = arith.constant 0 : i32
    %215 = vector.broadcast %c0_i32_106 : i32 to vector<256x1xi32>
    %216 = arith.cmpi sge, %214, %215 : vector<256x1xi32>
    %c1_i32_107 = arith.constant 1 : i32
    %217 = vector.broadcast %c1_i32_107 : i32 to vector<256x1xi32>
    %218 = arith.addi %0, %217 : vector<256x1xi32>
    %c256_i32_108 = arith.constant 256 : i32
    %219 = vector.broadcast %c256_i32_108 : i32 to vector<256x1xi32>
    %220 = arith.cmpi slt, %218, %219 : vector<256x1xi32>
    %221 = arith.andi %216, %220 : vector<256x1xi1>
    %cst_109 = arith.constant 0.000000e+00 : f32
    %222 = vector.shape_cast %221 : vector<256x1xi1> to vector<256x1xi1>
    %223 = vector.broadcast %222 : vector<256x1xi1> to vector<256x128xi1>
    %224 = vector.broadcast %cst_109 : f32 to vector<256x128xf32>
    %225 = arith.select %223, %212, %224 : vector<256x128xi1>, vector<256x128xf32>
    %226 = arith.truncf %225 : vector<256x128xf32> to vector<256x128xbf16>
    %c3_110 = arith.constant 3 : index
    %c0_111 = arith.constant 0 : index
    %c0_112 = arith.constant 0 : index
    %227 = vector.load %arg6[%c3_110, %c0_111, %c0_112] : memref<5x128x128xbf16, #tpu.memory_space<vmem>>, vector<1x128x128xbf16>
    %228 = vector.shape_cast %227 : vector<1x128x128xbf16> to vector<128x128xbf16>
    %cst_113 = arith.constant dense<0.000000e+00> : vector<256x128xf32>
    %229 = tpu.matmul %226, %228, %cst_113 {dimension_numbers = #tpu.dot_dimension_numbers<[1], [0], [0], [1], [0, 0, 1, 1], [], []>} : vector<256x128xbf16>, vector<128x128xbf16>, vector<256x128xf32> -> vector<256x128xf32>
    %230 = arith.addf %211, %229 : vector<256x128xf32>
    %c254_i32_114 = arith.constant 254 : i32
    %231 = tpu.dynamic_rotate %169 by %c254_i32_114 dim 0 : vector<256x128xf32>, i32 -> vector<256x128xf32>
    %c2_i32_115 = arith.constant 2 : i32
    %232 = vector.broadcast %c2_i32_115 : i32 to vector<256x1xi32>
    %233 = arith.addi %0, %232 : vector<256x1xi32>
    %c0_i32_116 = arith.constant 0 : i32
    %234 = vector.broadcast %c0_i32_116 : i32 to vector<256x1xi32>
    %235 = arith.cmpi sge, %233, %234 : vector<256x1xi32>
    %c2_i32_117 = arith.constant 2 : i32
    %236 = vector.broadcast %c2_i32_117 : i32 to vector<256x1xi32>
    %237 = arith.addi %0, %236 : vector<256x1xi32>
    %c256_i32_118 = arith.constant 256 : i32
    %238 = vector.broadcast %c256_i32_118 : i32 to vector<256x1xi32>
    %239 = arith.cmpi slt, %237, %238 : vector<256x1xi32>
    %240 = arith.andi %235, %239 : vector<256x1xi1>
    %cst_119 = arith.constant 0.000000e+00 : f32
    %241 = vector.shape_cast %240 : vector<256x1xi1> to vector<256x1xi1>
    %242 = vector.broadcast %241 : vector<256x1xi1> to vector<256x128xi1>
    %243 = vector.broadcast %cst_119 : f32 to vector<256x128xf32>
    %244 = arith.select %242, %231, %243 : vector<256x128xi1>, vector<256x128xf32>
    %245 = arith.truncf %244 : vector<256x128xf32> to vector<256x128xbf16>
    %c4_120 = arith.constant 4 : index
    %c0_121 = arith.constant 0 : index
    %c0_122 = arith.constant 0 : index
    %246 = vector.load %arg6[%c4_120, %c0_121, %c0_122] : memref<5x128x128xbf16, #tpu.memory_space<vmem>>, vector<1x128x128xbf16>
    %247 = vector.shape_cast %246 : vector<1x128x128xbf16> to vector<128x128xbf16>
    %cst_123 = arith.constant dense<0.000000e+00> : vector<256x128xf32>
    %248 = tpu.matmul %245, %247, %cst_123 {dimension_numbers = #tpu.dot_dimension_numbers<[1], [0], [0], [1], [0, 0, 1, 1], [], []>} : vector<256x128xbf16>, vector<128x128xbf16>, vector<256x128xf32> -> vector<256x128xf32>
    %249 = arith.addf %230, %248 : vector<256x128xf32>
    %c0_124 = arith.constant 0 : index
    %c0_125 = arith.constant 0 : index
    %250 = vector.load %arg7[%c0_124, %c0_125] : memref<1x128xf32, #tpu.memory_space<vmem>>, vector<1x128xf32>
    %251 = vector.broadcast %250 : vector<1x128xf32> to vector<256x128xf32>
    %252 = arith.addf %249, %251 : vector<256x128xf32>
    %253 = math.tanh %252 : vector<256x128xf32>
    %254 = arith.truncf %253 : vector<256x128xf32> to vector<256x128xbf16>
    %c2_126 = arith.constant 2 : index
    %c0_127 = arith.constant 0 : index
    %c0_128 = arith.constant 0 : index
    %255 = vector.load %arg8[%c2_126, %c0_127, %c0_128] : memref<5x128x128xbf16, #tpu.memory_space<vmem>>, vector<1x128x128xbf16>
    %256 = vector.shape_cast %255 : vector<1x128x128xbf16> to vector<128x128xbf16>
    %cst_129 = arith.constant dense<0.000000e+00> : vector<256x128xf32>
    %257 = tpu.matmul %254, %256, %cst_129 {dimension_numbers = #tpu.dot_dimension_numbers<[1], [0], [0], [1], [0, 0, 1, 1], [], []>} : vector<256x128xbf16>, vector<128x128xbf16>, vector<256x128xf32> -> vector<256x128xf32>
    %c2_i32_130 = arith.constant 2 : i32
    %258 = tpu.dynamic_rotate %253 by %c2_i32_130 dim 0 : vector<256x128xf32>, i32 -> vector<256x128xf32>
    %c-2_i32_131 = arith.constant -2 : i32
    %259 = vector.broadcast %c-2_i32_131 : i32 to vector<256x1xi32>
    %260 = arith.addi %0, %259 : vector<256x1xi32>
    %c0_i32_132 = arith.constant 0 : i32
    %261 = vector.broadcast %c0_i32_132 : i32 to vector<256x1xi32>
    %262 = arith.cmpi sge, %260, %261 : vector<256x1xi32>
    %c-2_i32_133 = arith.constant -2 : i32
    %263 = vector.broadcast %c-2_i32_133 : i32 to vector<256x1xi32>
    %264 = arith.addi %0, %263 : vector<256x1xi32>
    %c256_i32_134 = arith.constant 256 : i32
    %265 = vector.broadcast %c256_i32_134 : i32 to vector<256x1xi32>
    %266 = arith.cmpi slt, %264, %265 : vector<256x1xi32>
    %267 = arith.andi %262, %266 : vector<256x1xi1>
    %cst_135 = arith.constant 0.000000e+00 : f32
    %268 = vector.shape_cast %267 : vector<256x1xi1> to vector<256x1xi1>
    %269 = vector.broadcast %268 : vector<256x1xi1> to vector<256x128xi1>
    %270 = vector.broadcast %cst_135 : f32 to vector<256x128xf32>
    %271 = arith.select %269, %258, %270 : vector<256x128xi1>, vector<256x128xf32>
    %272 = arith.truncf %271 : vector<256x128xf32> to vector<256x128xbf16>
    %c0_136 = arith.constant 0 : index
    %c0_137 = arith.constant 0 : index
    %c0_138 = arith.constant 0 : index
    %273 = vector.load %arg8[%c0_136, %c0_137, %c0_138] : memref<5x128x128xbf16, #tpu.memory_space<vmem>>, vector<1x128x128xbf16>
    %274 = vector.shape_cast %273 : vector<1x128x128xbf16> to vector<128x128xbf16>
    %cst_139 = arith.constant dense<0.000000e+00> : vector<256x128xf32>
    %275 = tpu.matmul %272, %274, %cst_139 {dimension_numbers = #tpu.dot_dimension_numbers<[1], [0], [0], [1], [0, 0, 1, 1], [], []>} : vector<256x128xbf16>, vector<128x128xbf16>, vector<256x128xf32> -> vector<256x128xf32>
    %276 = arith.addf %257, %275 : vector<256x128xf32>
    %c1_i32_140 = arith.constant 1 : i32
    %277 = tpu.dynamic_rotate %253 by %c1_i32_140 dim 0 : vector<256x128xf32>, i32 -> vector<256x128xf32>
    %c-1_i32_141 = arith.constant -1 : i32
    %278 = vector.broadcast %c-1_i32_141 : i32 to vector<256x1xi32>
    %279 = arith.addi %0, %278 : vector<256x1xi32>
    %c0_i32_142 = arith.constant 0 : i32
    %280 = vector.broadcast %c0_i32_142 : i32 to vector<256x1xi32>
    %281 = arith.cmpi sge, %279, %280 : vector<256x1xi32>
    %c-1_i32_143 = arith.constant -1 : i32
    %282 = vector.broadcast %c-1_i32_143 : i32 to vector<256x1xi32>
    %283 = arith.addi %0, %282 : vector<256x1xi32>
    %c256_i32_144 = arith.constant 256 : i32
    %284 = vector.broadcast %c256_i32_144 : i32 to vector<256x1xi32>
    %285 = arith.cmpi slt, %283, %284 : vector<256x1xi32>
    %286 = arith.andi %281, %285 : vector<256x1xi1>
    %cst_145 = arith.constant 0.000000e+00 : f32
    %287 = vector.shape_cast %286 : vector<256x1xi1> to vector<256x1xi1>
    %288 = vector.broadcast %287 : vector<256x1xi1> to vector<256x128xi1>
    %289 = vector.broadcast %cst_145 : f32 to vector<256x128xf32>
    %290 = arith.select %288, %277, %289 : vector<256x128xi1>, vector<256x128xf32>
    %291 = arith.truncf %290 : vector<256x128xf32> to vector<256x128xbf16>
    %c1_146 = arith.constant 1 : index
    %c0_147 = arith.constant 0 : index
    %c0_148 = arith.constant 0 : index
    %292 = vector.load %arg8[%c1_146, %c0_147, %c0_148] : memref<5x128x128xbf16, #tpu.memory_space<vmem>>, vector<1x128x128xbf16>
    %293 = vector.shape_cast %292 : vector<1x128x128xbf16> to vector<128x128xbf16>
    %cst_149 = arith.constant dense<0.000000e+00> : vector<256x128xf32>
    %294 = tpu.matmul %291, %293, %cst_149 {dimension_numbers = #tpu.dot_dimension_numbers<[1], [0], [0], [1], [0, 0, 1, 1], [], []>} : vector<256x128xbf16>, vector<128x128xbf16>, vector<256x128xf32> -> vector<256x128xf32>
    %295 = arith.addf %276, %294 : vector<256x128xf32>
    %c255_i32_150 = arith.constant 255 : i32
    %296 = tpu.dynamic_rotate %253 by %c255_i32_150 dim 0 : vector<256x128xf32>, i32 -> vector<256x128xf32>
    %c1_i32_151 = arith.constant 1 : i32
    %297 = vector.broadcast %c1_i32_151 : i32 to vector<256x1xi32>
    %298 = arith.addi %0, %297 : vector<256x1xi32>
    %c0_i32_152 = arith.constant 0 : i32
    %299 = vector.broadcast %c0_i32_152 : i32 to vector<256x1xi32>
    %300 = arith.cmpi sge, %298, %299 : vector<256x1xi32>
    %c1_i32_153 = arith.constant 1 : i32
    %301 = vector.broadcast %c1_i32_153 : i32 to vector<256x1xi32>
    %302 = arith.addi %0, %301 : vector<256x1xi32>
    %c256_i32_154 = arith.constant 256 : i32
    %303 = vector.broadcast %c256_i32_154 : i32 to vector<256x1xi32>
    %304 = arith.cmpi slt, %302, %303 : vector<256x1xi32>
    %305 = arith.andi %300, %304 : vector<256x1xi1>
    %cst_155 = arith.constant 0.000000e+00 : f32
    %306 = vector.shape_cast %305 : vector<256x1xi1> to vector<256x1xi1>
    %307 = vector.broadcast %306 : vector<256x1xi1> to vector<256x128xi1>
    %308 = vector.broadcast %cst_155 : f32 to vector<256x128xf32>
    %309 = arith.select %307, %296, %308 : vector<256x128xi1>, vector<256x128xf32>
    %310 = arith.truncf %309 : vector<256x128xf32> to vector<256x128xbf16>
    %c3_156 = arith.constant 3 : index
    %c0_157 = arith.constant 0 : index
    %c0_158 = arith.constant 0 : index
    %311 = vector.load %arg8[%c3_156, %c0_157, %c0_158] : memref<5x128x128xbf16, #tpu.memory_space<vmem>>, vector<1x128x128xbf16>
    %312 = vector.shape_cast %311 : vector<1x128x128xbf16> to vector<128x128xbf16>
    %cst_159 = arith.constant dense<0.000000e+00> : vector<256x128xf32>
    %313 = tpu.matmul %310, %312, %cst_159 {dimension_numbers = #tpu.dot_dimension_numbers<[1], [0], [0], [1], [0, 0, 1, 1], [], []>} : vector<256x128xbf16>, vector<128x128xbf16>, vector<256x128xf32> -> vector<256x128xf32>
    %314 = arith.addf %295, %313 : vector<256x128xf32>
    %c254_i32_160 = arith.constant 254 : i32
    %315 = tpu.dynamic_rotate %253 by %c254_i32_160 dim 0 : vector<256x128xf32>, i32 -> vector<256x128xf32>
    %c2_i32_161 = arith.constant 2 : i32
    %316 = vector.broadcast %c2_i32_161 : i32 to vector<256x1xi32>
    %317 = arith.addi %0, %316 : vector<256x1xi32>
    %c0_i32_162 = arith.constant 0 : i32
    %318 = vector.broadcast %c0_i32_162 : i32 to vector<256x1xi32>
    %319 = arith.cmpi sge, %317, %318 : vector<256x1xi32>
    %c2_i32_163 = arith.constant 2 : i32
    %320 = vector.broadcast %c2_i32_163 : i32 to vector<256x1xi32>
    %321 = arith.addi %0, %320 : vector<256x1xi32>
    %c256_i32_164 = arith.constant 256 : i32
    %322 = vector.broadcast %c256_i32_164 : i32 to vector<256x1xi32>
    %323 = arith.cmpi slt, %321, %322 : vector<256x1xi32>
    %324 = arith.andi %319, %323 : vector<256x1xi1>
    %cst_165 = arith.constant 0.000000e+00 : f32
    %325 = vector.shape_cast %324 : vector<256x1xi1> to vector<256x1xi1>
    %326 = vector.broadcast %325 : vector<256x1xi1> to vector<256x128xi1>
    %327 = vector.broadcast %cst_165 : f32 to vector<256x128xf32>
    %328 = arith.select %326, %315, %327 : vector<256x128xi1>, vector<256x128xf32>
    %329 = arith.truncf %328 : vector<256x128xf32> to vector<256x128xbf16>
    %c4_166 = arith.constant 4 : index
    %c0_167 = arith.constant 0 : index
    %c0_168 = arith.constant 0 : index
    %330 = vector.load %arg8[%c4_166, %c0_167, %c0_168] : memref<5x128x128xbf16, #tpu.memory_space<vmem>>, vector<1x128x128xbf16>
    %331 = vector.shape_cast %330 : vector<1x128x128xbf16> to vector<128x128xbf16>
    %cst_169 = arith.constant dense<0.000000e+00> : vector<256x128xf32>
    %332 = tpu.matmul %329, %331, %cst_169 {dimension_numbers = #tpu.dot_dimension_numbers<[1], [0], [0], [1], [0, 0, 1, 1], [], []>} : vector<256x128xbf16>, vector<128x128xbf16>, vector<256x128xf32> -> vector<256x128xf32>
    %333 = arith.addf %314, %332 : vector<256x128xf32>
    %c0_170 = arith.constant 0 : index
    %c0_171 = arith.constant 0 : index
    %334 = vector.load %arg9[%c0_170, %c0_171] : memref<1x128xf32, #tpu.memory_space<vmem>>, vector<1x128xf32>
    %335 = vector.broadcast %334 : vector<1x128xf32> to vector<256x128xf32>
    %336 = arith.addf %333, %335 : vector<256x128xf32>
    %337 = math.tanh %336 : vector<256x128xf32>
    %338 = arith.truncf %337 : vector<256x128xf32> to vector<256x128xbf16>
    %c2_172 = arith.constant 2 : index
    %c0_173 = arith.constant 0 : index
    %c0_174 = arith.constant 0 : index
    %339 = vector.load %arg10[%c2_172, %c0_173, %c0_174] : memref<5x128x32xbf16, #tpu.memory_space<vmem>>, vector<1x128x32xbf16>
    %340 = vector.shape_cast %339 : vector<1x128x32xbf16> to vector<128x32xbf16>
    %cst_175 = arith.constant dense<0.000000e+00> : vector<256x32xf32>
    %341 = tpu.matmul %338, %340, %cst_175 {dimension_numbers = #tpu.dot_dimension_numbers<[1], [0], [0], [1], [0, 0, 1, 1], [], []>} : vector<256x128xbf16>, vector<128x32xbf16>, vector<256x32xf32> -> vector<256x32xf32>
    %c2_i32_176 = arith.constant 2 : i32
    %342 = tpu.dynamic_rotate %337 by %c2_i32_176 dim 0 : vector<256x128xf32>, i32 -> vector<256x128xf32>
    %c-2_i32_177 = arith.constant -2 : i32
    %343 = vector.broadcast %c-2_i32_177 : i32 to vector<256x1xi32>
    %344 = arith.addi %0, %343 : vector<256x1xi32>
    %c0_i32_178 = arith.constant 0 : i32
    %345 = vector.broadcast %c0_i32_178 : i32 to vector<256x1xi32>
    %346 = arith.cmpi sge, %344, %345 : vector<256x1xi32>
    %c-2_i32_179 = arith.constant -2 : i32
    %347 = vector.broadcast %c-2_i32_179 : i32 to vector<256x1xi32>
    %348 = arith.addi %0, %347 : vector<256x1xi32>
    %c256_i32_180 = arith.constant 256 : i32
    %349 = vector.broadcast %c256_i32_180 : i32 to vector<256x1xi32>
    %350 = arith.cmpi slt, %348, %349 : vector<256x1xi32>
    %351 = arith.andi %346, %350 : vector<256x1xi1>
    %cst_181 = arith.constant 0.000000e+00 : f32
    %352 = vector.shape_cast %351 : vector<256x1xi1> to vector<256x1xi1>
    %353 = vector.broadcast %352 : vector<256x1xi1> to vector<256x128xi1>
    %354 = vector.broadcast %cst_181 : f32 to vector<256x128xf32>
    %355 = arith.select %353, %342, %354 : vector<256x128xi1>, vector<256x128xf32>
    %356 = arith.truncf %355 : vector<256x128xf32> to vector<256x128xbf16>
    %c0_182 = arith.constant 0 : index
    %c0_183 = arith.constant 0 : index
    %c0_184 = arith.constant 0 : index
    %357 = vector.load %arg10[%c0_182, %c0_183, %c0_184] : memref<5x128x32xbf16, #tpu.memory_space<vmem>>, vector<1x128x32xbf16>
    %358 = vector.shape_cast %357 : vector<1x128x32xbf16> to vector<128x32xbf16>
    %cst_185 = arith.constant dense<0.000000e+00> : vector<256x32xf32>
    %359 = tpu.matmul %356, %358, %cst_185 {dimension_numbers = #tpu.dot_dimension_numbers<[1], [0], [0], [1], [0, 0, 1, 1], [], []>} : vector<256x128xbf16>, vector<128x32xbf16>, vector<256x32xf32> -> vector<256x32xf32>
    %360 = arith.addf %341, %359 : vector<256x32xf32>
    %c1_i32_186 = arith.constant 1 : i32
    %361 = tpu.dynamic_rotate %337 by %c1_i32_186 dim 0 : vector<256x128xf32>, i32 -> vector<256x128xf32>
    %c-1_i32_187 = arith.constant -1 : i32
    %362 = vector.broadcast %c-1_i32_187 : i32 to vector<256x1xi32>
    %363 = arith.addi %0, %362 : vector<256x1xi32>
    %c0_i32_188 = arith.constant 0 : i32
    %364 = vector.broadcast %c0_i32_188 : i32 to vector<256x1xi32>
    %365 = arith.cmpi sge, %363, %364 : vector<256x1xi32>
    %c-1_i32_189 = arith.constant -1 : i32
    %366 = vector.broadcast %c-1_i32_189 : i32 to vector<256x1xi32>
    %367 = arith.addi %0, %366 : vector<256x1xi32>
    %c256_i32_190 = arith.constant 256 : i32
    %368 = vector.broadcast %c256_i32_190 : i32 to vector<256x1xi32>
    %369 = arith.cmpi slt, %367, %368 : vector<256x1xi32>
    %370 = arith.andi %365, %369 : vector<256x1xi1>
    %cst_191 = arith.constant 0.000000e+00 : f32
    %371 = vector.shape_cast %370 : vector<256x1xi1> to vector<256x1xi1>
    %372 = vector.broadcast %371 : vector<256x1xi1> to vector<256x128xi1>
    %373 = vector.broadcast %cst_191 : f32 to vector<256x128xf32>
    %374 = arith.select %372, %361, %373 : vector<256x128xi1>, vector<256x128xf32>
    %375 = arith.truncf %374 : vector<256x128xf32> to vector<256x128xbf16>
    %c1_192 = arith.constant 1 : index
    %c0_193 = arith.constant 0 : index
    %c0_194 = arith.constant 0 : index
    %376 = vector.load %arg10[%c1_192, %c0_193, %c0_194] : memref<5x128x32xbf16, #tpu.memory_space<vmem>>, vector<1x128x32xbf16>
    %377 = vector.shape_cast %376 : vector<1x128x32xbf16> to vector<128x32xbf16>
    %cst_195 = arith.constant dense<0.000000e+00> : vector<256x32xf32>
    %378 = tpu.matmul %375, %377, %cst_195 {dimension_numbers = #tpu.dot_dimension_numbers<[1], [0], [0], [1], [0, 0, 1, 1], [], []>} : vector<256x128xbf16>, vector<128x32xbf16>, vector<256x32xf32> -> vector<256x32xf32>
    %379 = arith.addf %360, %378 : vector<256x32xf32>
    %c255_i32_196 = arith.constant 255 : i32
    %380 = tpu.dynamic_rotate %337 by %c255_i32_196 dim 0 : vector<256x128xf32>, i32 -> vector<256x128xf32>
    %c1_i32_197 = arith.constant 1 : i32
    %381 = vector.broadcast %c1_i32_197 : i32 to vector<256x1xi32>
    %382 = arith.addi %0, %381 : vector<256x1xi32>
    %c0_i32_198 = arith.constant 0 : i32
    %383 = vector.broadcast %c0_i32_198 : i32 to vector<256x1xi32>
    %384 = arith.cmpi sge, %382, %383 : vector<256x1xi32>
    %c1_i32_199 = arith.constant 1 : i32
    %385 = vector.broadcast %c1_i32_199 : i32 to vector<256x1xi32>
    %386 = arith.addi %0, %385 : vector<256x1xi32>
    %c256_i32_200 = arith.constant 256 : i32
    %387 = vector.broadcast %c256_i32_200 : i32 to vector<256x1xi32>
    %388 = arith.cmpi slt, %386, %387 : vector<256x1xi32>
    %389 = arith.andi %384, %388 : vector<256x1xi1>
    %cst_201 = arith.constant 0.000000e+00 : f32
    %390 = vector.shape_cast %389 : vector<256x1xi1> to vector<256x1xi1>
    %391 = vector.broadcast %390 : vector<256x1xi1> to vector<256x128xi1>
    %392 = vector.broadcast %cst_201 : f32 to vector<256x128xf32>
    %393 = arith.select %391, %380, %392 : vector<256x128xi1>, vector<256x128xf32>
    %394 = arith.truncf %393 : vector<256x128xf32> to vector<256x128xbf16>
    %c3_202 = arith.constant 3 : index
    %c0_203 = arith.constant 0 : index
    %c0_204 = arith.constant 0 : index
    %395 = vector.load %arg10[%c3_202, %c0_203, %c0_204] : memref<5x128x32xbf16, #tpu.memory_space<vmem>>, vector<1x128x32xbf16>
    %396 = vector.shape_cast %395 : vector<1x128x32xbf16> to vector<128x32xbf16>
    %cst_205 = arith.constant dense<0.000000e+00> : vector<256x32xf32>
    %397 = tpu.matmul %394, %396, %cst_205 {dimension_numbers = #tpu.dot_dimension_numbers<[1], [0], [0], [1], [0, 0, 1, 1], [], []>} : vector<256x128xbf16>, vector<128x32xbf16>, vector<256x32xf32> -> vector<256x32xf32>
    %398 = arith.addf %379, %397 : vector<256x32xf32>
    %c254_i32_206 = arith.constant 254 : i32
    %399 = tpu.dynamic_rotate %337 by %c254_i32_206 dim 0 : vector<256x128xf32>, i32 -> vector<256x128xf32>
    %c2_i32_207 = arith.constant 2 : i32
    %400 = vector.broadcast %c2_i32_207 : i32 to vector<256x1xi32>
    %401 = arith.addi %0, %400 : vector<256x1xi32>
    %c0_i32_208 = arith.constant 0 : i32
    %402 = vector.broadcast %c0_i32_208 : i32 to vector<256x1xi32>
    %403 = arith.cmpi sge, %401, %402 : vector<256x1xi32>
    %c2_i32_209 = arith.constant 2 : i32
    %404 = vector.broadcast %c2_i32_209 : i32 to vector<256x1xi32>
    %405 = arith.addi %0, %404 : vector<256x1xi32>
    %c256_i32_210 = arith.constant 256 : i32
    %406 = vector.broadcast %c256_i32_210 : i32 to vector<256x1xi32>
    %407 = arith.cmpi slt, %405, %406 : vector<256x1xi32>
    %408 = arith.andi %403, %407 : vector<256x1xi1>
    %cst_211 = arith.constant 0.000000e+00 : f32
    %409 = vector.shape_cast %408 : vector<256x1xi1> to vector<256x1xi1>
    %410 = vector.broadcast %409 : vector<256x1xi1> to vector<256x128xi1>
    %411 = vector.broadcast %cst_211 : f32 to vector<256x128xf32>
    %412 = arith.select %410, %399, %411 : vector<256x128xi1>, vector<256x128xf32>
    %413 = arith.truncf %412 : vector<256x128xf32> to vector<256x128xbf16>
    %c4_212 = arith.constant 4 : index
    %c0_213 = arith.constant 0 : index
    %c0_214 = arith.constant 0 : index
    %414 = vector.load %arg10[%c4_212, %c0_213, %c0_214] : memref<5x128x32xbf16, #tpu.memory_space<vmem>>, vector<1x128x32xbf16>
    %415 = vector.shape_cast %414 : vector<1x128x32xbf16> to vector<128x32xbf16>
    %cst_215 = arith.constant dense<0.000000e+00> : vector<256x32xf32>
    %416 = tpu.matmul %413, %415, %cst_215 {dimension_numbers = #tpu.dot_dimension_numbers<[1], [0], [0], [1], [0, 0, 1, 1], [], []>} : vector<256x128xbf16>, vector<128x32xbf16>, vector<256x32xf32> -> vector<256x32xf32>
    %417 = arith.addf %398, %416 : vector<256x32xf32>
    %c0_216 = arith.constant 0 : index
    %c0_217 = arith.constant 0 : index
    %418 = vector.load %arg11[%c0_216, %c0_217] : memref<1x32xf32, #tpu.memory_space<vmem>>, vector<1x32xf32>
    %419 = vector.broadcast %418 : vector<1x32xf32> to vector<256x32xf32>
    %420 = arith.addf %417, %419 : vector<256x32xf32>
    %c0_218 = arith.constant 0 : index
    %c0_219 = arith.constant 0 : index
    %421 = vector.load %arg1[%c0_218, %c0_219] : memref<256x32xf32, #tpu.memory_space<vmem>>, vector<256x32xf32>
    %422 = arith.addf %421, %420 : vector<256x32xf32>
    %c0_220 = arith.constant 0 : index
    %c0_221 = arith.constant 0 : index
    %423 = vector.load %arg12[%c0_220, %c0_221] : memref<256x32xf32, #tpu.memory_space<vmem>>, vector<256x32xf32>
    tpu.vector_store %arg12[%c0_220, %c0_221], %422 {strides = array<i32>} : memref<256x32xf32, #tpu.memory_space<vmem>>, vector<256x32xf32>,
    return
  }
  func.func @transform_0(%arg0: i32) -> (i32, i32) {
    %c0_i32 = arith.constant 0 : i32
    %c0_i32_0 = arith.constant 0 : i32
    return %arg0, %c0_i32 : i32, i32
  }
  func.func @transform_1(%arg0: i32) -> (i32, i32, i32) {
    %c0_i32 = arith.constant 0 : i32
    %c0_i32_0 = arith.constant 0 : i32
    %c0_i32_1 = arith.constant 0 : i32
    %c0_i32_2 = arith.constant 0 : i32
    return %c0_i32, %c0_i32_0, %c0_i32_1 : i32, i32, i32
  }
  func.func @transform_2(%arg0: i32) -> (i32, i32) {
    %c0_i32 = arith.constant 0 : i32
    %c0_i32_0 = arith.constant 0 : i32
    %c0_i32_1 = arith.constant 0 : i32
    return %c0_i32, %c0_i32_0 : i32, i32
  }
  func.func @transform_3(%arg0: i32) -> (i32, i32, i32) {
    %c0_i32 = arith.constant 0 : i32
    %c0_i32_0 = arith.constant 0 : i32
    %c0_i32_1 = arith.constant 0 : i32
    %c0_i32_2 = arith.constant 0 : i32
    return %c0_i32, %c0_i32_0, %c0_i32_1 : i32, i32, i32
  }
  func.func @transform_4(%arg0: i32) -> (i32, i32) {
    %c0_i32 = arith.constant 0 : i32
    %c0_i32_0 = arith.constant 0 : i32
    %c0_i32_1 = arith.constant 0 : i32
    return %c0_i32, %c0_i32_0 : i32, i32
  }
  func.func @transform_5(%arg0: i32) -> (i32, i32, i32) {
    %c0_i32 = arith.constant 0 : i32
    %c0_i32_0 = arith.constant 0 : i32
    %c0_i32_1 = arith.constant 0 : i32
    %c0_i32_2 = arith.constant 0 : i32
    return %c0_i32, %c0_i32_0, %c0_i32_1 : i32, i32, i32
  }
  func.func @transform_6(%arg0: i32) -> (i32, i32) {
    %c0_i32 = arith.constant 0 : i32
    %c0_i32_0 = arith.constant 0 : i32
    %c0_i32_1 = arith.constant 0 : i32
    return %c0_i32, %c0_i32_0 : i32, i32
  }
  func.func @transform_7(%arg0: i32) -> (i32, i32, i32) {
    %c0_i32 = arith.constant 0 : i32
    %c0_i32_0 = arith.constant 0 : i32
    %c0_i32_1 = arith.constant 0 : i32
    %c0_i32_2 = arith.constant 0 : i32
    return %c0_i32, %c0_i32_0, %c0_i32_1 : i32, i32, i32
  }
  func.func @transform_8(%arg0: i32) -> (i32, i32) {
    %c0_i32 = arith.constant 0 : i32
    %c0_i32_0 = arith.constant 0 : i32
    %c0_i32_1 = arith.constant 0 : i32
    return %c0_i32, %c0_i32_0 : i32, i32
  }
  func.func @transform_9(%arg0: i32) -> (i32, i32, i32) {
    %c0_i32 = arith.constant 0 : i32
    %c0_i32_0 = arith.constant 0 : i32
    %c0_i32_1 = arith.constant 0 : i32
    %c0_i32_2 = arith.constant 0 : i32
    return %c0_i32, %c0_i32_0, %c0_i32_1 : i32, i32, i32
  }
  func.func @transform_10(%arg0: i32) -> (i32, i32) {
    %c0_i32 = arith.constant 0 : i32
    %c0_i32_0 = arith.constant 0 : i32
    %c0_i32_1 = arith.constant 0 : i32
    return %c0_i32, %c0_i32_0 : i32, i32
  }
  func.func @transform_11(%arg0: i32) -> (i32, i32) {
    %c0_i32 = arith.constant 0 : i32
    %c0_i32_0 = arith.constant 0 : i32
    return %arg0, %c0_i32 : i32, i32
  }
}

</mosaic_0001>

<llo_original>
// kernel: postnet_forward.1
$region0: #{postnet_forward.1}
  #allocation0 [shape = 'u32[]', space=smem, size = 0x4, offset = 0x4, fixed_abs, tag = 'smem constant byte address 0x4 - core index']
  #allocation1 [shape = 'u32[72,128]{1,0:T(1,128)}', space=vmem, size = 0x9000, scoped, tag = 'internal scratch']
  %s0 = inlined_call_operand.vmem [shape: f32[512,32], index: 0, kind: input, shape index: {}]
  %s1 = inlined_call_operand.vmem [shape: bf16[5,32,128], index: 1, kind: input, shape index: {}]
  %s2 = inlined_call_operand.vmem [shape: f32[1,128], index: 2, kind: input, shape index: {}]
  %s3 = inlined_call_operand.vmem [shape: bf16[5,128,128], index: 3, kind: input, shape index: {}]
  %s4 = inlined_call_operand.vmem [shape: f32[1,128], index: 4, kind: input, shape index: {}]
  %s5 = inlined_call_operand.vmem [shape: bf16[5,128,128], index: 5, kind: input, shape index: {}]
  %s6 = inlined_call_operand.vmem [shape: f32[1,128], index: 6, kind: input, shape index: {}]
  %s7 = inlined_call_operand.hbm [shape: bf16[5,128,128], index: 7, kind: input, shape index: {}]
  %s8 = inlined_call_operand.vmem [shape: f32[1,128], index: 8, kind: input, shape index: {}]
  %s9 = inlined_call_operand.vmem [shape: bf16[5,128,32], index: 9, kind: input, shape index: {}]
  %s10 = inlined_call_operand.vmem [shape: f32[1,32], index: 10, kind: input, shape index: {}]
  %s11 = inlined_call_operand.vmem [shape: f32[512,32], index: 11, kind: output, shape index: {}]
  %s12 = sld [smem:[#allocation0]]
  $region81: #{postnet_forward.1} parent=0
    _
  %s14 = ssub.s32 1, %s12
  %s15 = scalar_select 0, %s14, %s12
  $region1: #{postnet_forward.1} parent=0
    #allocation2 [shape = 'u8[163840]{0}', space=vmem, size = 0x28000, scoped, tag = 'input window, operand 7, single buffered']
    #allocation3 [shape = 's32[2]{0}', space=sflag, size = 0x8, scoped, tag = 'scoped memory for postnet_forward.1']
    %16 = vsyncpa [#allocation3], 0
    loop: start=0, step=1, limit=4
    $region2: #{postnet_forward.1} parent=1 // loop_pre_header
      _
    $region3: #{postnet_forward.1} parent=1 // loop_header
      %s18 = sphi 0, %s22
      %p19 = scmp.ge.s32.totalorder %s18, 4
      %s28 = sphi 0, %s30
      %s31 = sphi 0, %s28
      %s32 = sphi 0, %s31
      %s48 = sphi 0, %s32
      %s52 = sphi 0, %s52
      %s54 = sphi 0, %s52
      %s55 = sphi 0, %s54
      %s69 = sphi 0, %s55
      %s73 = sphi 0, %s73
      %s75 = sphi 0, %s73
      %s76 = sphi 0, %s75
      %s90 = sphi 0, %s76
      %s94 = sphi 0, %s94
      %s96 = sphi 0, %s94
      %s97 = sphi 0, %s96
      %s111 = sphi 0, %s97
      %s115 = sphi 0, %s115
      %s117 = sphi 0, %s115
      %s118 = sphi 0, %s117
      %s132 = sphi 0, %s118
      %s136 = sphi 0, %s136
      %s138 = sphi 0, %s136
      %s139 = sphi 0, %s138
      %s153 = sphi 0, %s139
      %s157 = sphi 0, %s157
      %s159 = sphi 0, %s157
      %s160 = sphi 0, %s159
      %s174 = sphi 0, %s160
      %s178 = sphi 0, %s178
      %s180 = sphi 0, %s178
      %s181 = sphi 0, %s180
      %s195 = sphi 0, %s181
      %s199 = sphi 0, %s199
      %s201 = sphi 0, %s199
      %s202 = sphi 0, %s201
      %s216 = sphi 0, %s202
      %s220 = sphi 0, %s220
      %s222 = sphi 0, %s220
      %s223 = sphi 0, %s222
      %s237 = sphi 0, %s223
      %s241 = sphi 0, %s241
      %s243 = sphi 0, %s241
      %s244 = sphi 0, %s243
      %s258 = sphi 0, %s244
      %s264 = sphi 0, %s266
      %s267 = sphi 0, %s264
      %s268 = sphi 0, %s267
      %s284 = sphi 0, %s268
    $region4: #{postnet_forward.1} parent=1 // loop_header_branch
      %21 = sbr.rel (%p19) target = $region8
    $region5: #{postnet_forward.1} parent=1 // loop_body
      %s23 = ssub.s32 %s18, 1
      %s24 = ssub.s32 %s18, 2
      %s25 = sadd.s32 %s18, 1
      %s26 = ssub.s32 %s18, %s25
      %p27 = scmp.eq.s32.totalorder %s26, 0
      %s29 = sadd.s32 %s28, 1
      %s30 = scalar_select %p27, %s28, %s29
      %p33 = pneg %p27
      %p34 = scmp.eq.s32.totalorder %s18, 1
      %p35 = por %p33, %p34
      %p36 = scmp.ne.s32.totalorder %s28, %s31
      %p37 = scmp.eq.s32.totalorder %s18, 0
      %p38 = por %p36, %p37
      %p39 = scmp.ne.s32.totalorder %s28, %s31
      %p40 = scmp.eq.s32.totalorder %s23, 1
      %p41 = por %p39, %p40
      %p42 = scmp.ne.s32.totalorder %s31, %s32
      %p43 = scmp.eq.s32.totalorder %s23, 0
      %p44 = por %p42, %p43
      %p45 = scmp.ne.s32.totalorder %s31, %s32
      %p46 = scmp.eq.s32.totalorder %s24, 1
      %p47 = por %p45, %p46
      %p49 = scmp.ne.s32.totalorder %s32, %s48
      %p50 = scmp.eq.s32.totalorder %s24, 0
      %p51 = por %p49, %p50
      %s53 = sadd.s32 %s52, 1
      %p56 = scmp.eq.s32.totalorder %s18, 1
      %p57 = scmp.ne.s32.totalorder %s52, %s54
      %p58 = scmp.eq.s32.totalorder %s18, 0
      %p59 = por %p57, %p58
      %p60 = scmp.ne.s32.totalorder %s52, %s54
      %p61 = scmp.eq.s32.totalorder %s23, 1
      %p62 = por %p60, %p61
      %p63 = scmp.ne.s32.totalorder %s54, %s55
      %p64 = scmp.eq.s32.totalorder %s23, 0
      %p65 = por %p63, %p64
      %p66 = scmp.ne.s32.totalorder %s54, %s55
      %p67 = scmp.eq.s32.totalorder %s24, 1
      %p68 = por %p66, %p67
      %p70 = scmp.ne.s32.totalorder %s55, %s69
      %p71 = scmp.eq.s32.totalorder %s24, 0
      %p72 = por %p70, %p71
      %s74 = sadd.s32 %s73, 1
      %p77 = scmp.eq.s32.totalorder %s18, 1
      %p78 = scmp.ne.s32.totalorder %s73, %s75
      %p79 = scmp.eq.s32.totalorder %s18, 0
      %p80 = por %p78, %p79
      %p81 = scmp.ne.s32.totalorder %s73, %s75
      %p82 = scmp.eq.s32.totalorder %s23, 1
      %p83 = por %p81, %p82
      %p84 = scmp.ne.s32.totalorder %s75, %s76
      %p85 = scmp.eq.s32.totalorder %s23, 0
      %p86 = por %p84, %p85
      %p87 = scmp.ne.s32.totalorder %s75, %s76
      %p88 = scmp.eq.s32.totalorder %s24, 1
      %p89 = por %p87, %p88
      %p91 = scmp.ne.s32.totalorder %s76, %s90
      %p92 = scmp.eq.s32.totalorder %s24, 0
      %p93 = por %p91, %p92
      %s95 = sadd.s32 %s94, 1
      %p98 = scmp.eq.s32.totalorder %s18, 1
      %p99 = scmp.ne.s32.totalorder %s94, %s96
      %p100 = scmp.eq.s32.totalorder %s18, 0
      %p101 = por %p99, %p100
      %p102 = scmp.ne.s32.totalorder %s94, %s96
      %p103 = scmp.eq.s32.totalorder %s23, 1
      %p104 = por %p102, %p103
      %p105 = scmp.ne.s32.totalorder %s96, %s97
      %p106 = scmp.eq.s32.totalorder %s23, 0
      %p107 = por %p105, %p106
      %p108 = scmp.ne.s32.totalorder %s96, %s97
      %p109 = scmp.eq.s32.totalorder %s24, 1
      %p110 = por %p108, %p109
      %p112 = scmp.ne.s32.totalorder %s97, %s111
      %p113 = scmp.eq.s32.totalorder %s24, 0
      %p114 = por %p112, %p113
      %s116 = sadd.s32 %s115, 1
      %p119 = scmp.eq.s32.totalorder %s18, 1
      %p120 = scmp.ne.s32.totalorder %s115, %s117
      %p121 = scmp.eq.s32.totalorder %s18, 0
      %p122 = por %p120, %p121
      %p123 = scmp.ne.s32.totalorder %s115, %s117
      %p124 = scmp.eq.s32.totalorder %s23, 1
      %p125 = por %p123, %p124
      %p126 = scmp.ne.s32.totalorder %s117, %s118
      %p127 = scmp.eq.s32.totalorder %s23, 0
      %p128 = por %p126, %p127
      %p129 = scmp.ne.s32.totalorder %s117, %s118
      %p130 = scmp.eq.s32.totalorder %s24, 1
      %p131 = por %p129, %p130
      %p133 = scmp.ne.s32.totalorder %s118, %s132
      %p134 = scmp.eq.s32.totalorder %s24, 0
      %p135 = por %p133, %p134
      %s137 = sadd.s32 %s136, 1
      %p140 = scmp.eq.s32.totalorder %s18, 1
      %p141 = scmp.ne.s32.totalorder %s136, %s138
      %p142 = scmp.eq.s32.totalorder %s18, 0
      %p143 = por %p141, %p142
      %p144 = scmp.ne.s32.totalorder %s136, %s138
      %p145 = scmp.eq.s32.totalorder %s23, 1
      %p146 = por %p144, %p145
      %p147 = scmp.ne.s32.totalorder %s138, %s139
      %p148 = scmp.eq.s32.totalorder %s23, 0
      %p149 = por %p147, %p148
      %p150 = scmp.ne.s32.totalorder %s138, %s139
      %p151 = scmp.eq.s32.totalorder %s24, 1
      %p152 = por %p150, %p151
      %p154 = scmp.ne.s32.totalorder %s139, %s153
      %p155 = scmp.eq.s32.totalorder %s24, 0
      %p156 = por %p154, %p155
      %s158 = sadd.s32 %s157, 1
      %p161 = scmp.eq.s32.totalorder %s18, 1
      %p162 = scmp.ne.s32.totalorder %s157, %s159
      %p163 = scmp.eq.s32.totalorder %s18, 0
      %p164 = por %p162, %p163
      %p165 = scmp.ne.s32.totalorder %s157, %s159
      %p166 = scmp.eq.s32.totalorder %s23, 1
      %p167 = por %p165, %p166
      %p168 = scmp.ne.s32.totalorder %s159, %s160
      %p169 = scmp.eq.s32.totalorder %s23, 0
      %p170 = por %p168, %p169
      %p171 = scmp.ne.s32.totalorder %s159, %s160
      %p172 = scmp.eq.s32.totalorder %s24, 1
      %p173 = por %p171, %p172
      %p175 = scmp.ne.s32.totalorder %s160, %s174
      %p176 = scmp.eq.s32.totalorder %s24, 0
      %p177 = por %p175, %p176
      %s179 = sadd.s32 %s178, 1
      %p182 = scmp.eq.s32.totalorder %s18, 1
      %p183 = scmp.ne.s32.totalorder %s178, %s180
      %p184 = scmp.eq.s32.totalorder %s18, 0
      %p185 = por %p183, %p184
      %p186 = scmp.ne.s32.totalorder %s178, %s180
      %p187 = scmp.eq.s32.totalorder %s23, 1
      %p188 = por %p186, %p187
      %p189 = scmp.ne.s32.totalorder %s180, %s181
      %p190 = scmp.eq.s32.totalorder %s23, 0
      %p191 = por %p189, %p190
      %p192 = scmp.ne.s32.totalorder %s180, %s181
      %p193 = scmp.eq.s32.totalorder %s24, 1
      %p194 = por %p192, %p193
      %p196 = scmp.ne.s32.totalorder %s181, %s195
      %p197 = scmp.eq.s32.totalorder %s24, 0
      %p198 = por %p196, %p197
      %s200 = sadd.s32 %s199, 1
      %p203 = scmp.eq.s32.totalorder %s18, 1
      %p204 = scmp.ne.s32.totalorder %s199, %s201
      %p205 = scmp.eq.s32.totalorder %s18, 0
      %p206 = por %p204, %p205
      %p207 = scmp.ne.s32.totalorder %s199, %s201
      %p208 = scmp.eq.s32.totalorder %s23, 1
      %p209 = por %p207, %p208
      %p210 = scmp.ne.s32.totalorder %s201, %s202
      %p211 = scmp.eq.s32.totalorder %s23, 0
      %p212 = por %p210, %p211
      %p213 = scmp.ne.s32.totalorder %s201, %s202
      %p214 = scmp.eq.s32.totalorder %s24, 1
      %p215 = por %p213, %p214
      %p217 = scmp.ne.s32.totalorder %s202, %s216
      %p218 = scmp.eq.s32.totalorder %s24, 0
      %p219 = por %p217, %p218
      %s221 = sadd.s32 %s220, 1
      %p224 = scmp.eq.s32.totalorder %s18, 1
      %p225 = scmp.ne.s32.totalorder %s220, %s222
      %p226 = scmp.eq.s32.totalorder %s18, 0
      %p227 = por %p225, %p226
      %p228 = scmp.ne.s32.totalorder %s220, %s222
      %p229 = scmp.eq.s32.totalorder %s23, 1
      %p230 = por %p228, %p229
      %p231 = scmp.ne.s32.totalorder %s222, %s223
      %p232 = scmp.eq.s32.totalorder %s23, 0
      %p233 = por %p231, %p232
      %p234 = scmp.ne.s32.totalorder %s222, %s223
      %p235 = scmp.eq.s32.totalorder %s24, 1
      %p236 = por %p234, %p235
      %p238 = scmp.ne.s32.totalorder %s223, %s237
      %p239 = scmp.eq.s32.totalorder %s24, 0
      %p240 = por %p238, %p239
      %s242 = sadd.s32 %s241, 1
      %p245 = scmp.eq.s32.totalorder %s18, 1
      %p246 = scmp.ne.s32.totalorder %s241, %s243
      %p247 = scmp.eq.s32.totalorder %s18, 0
      %p248 = por %p246, %p247
      %p249 = scmp.ne.s32.totalorder %s241, %s243
      %p250 = scmp.eq.s32.totalorder %s23, 1
      %p251 = por %p249, %p250
      %p252 = scmp.ne.s32.totalorder %s243, %s244
      %p253 = scmp.eq.s32.totalorder %s23, 0
      %p254 = por %p252, %p253
      %p255 = scmp.ne.s32.totalorder %s243, %s244
      %p256 = scmp.eq.s32.totalorder %s24, 1
      %p257 = por %p255, %p256
      %p259 = scmp.ne.s32.totalorder %s244, %s258
      %p260 = scmp.eq.s32.totalorder %s24, 0
      %p261 = por %p259, %p260
      %s262 = ssub.s32 %s18, %s25
      %p263 = scmp.eq.s32.totalorder %s262, 0
      %s265 = sadd.s32 %s264, 1
      %s266 = scalar_select %p263, %s264, %s265
      %p269 = pneg %p263
      %p270 = scmp.eq.s32.totalorder %s18, 1
      %p271 = por %p269, %p270
      %p272 = scmp.ne.s32.totalorder %s264, %s267
      %p273 = scmp.eq.s32.totalorder %s18, 0
      %p274 = por %p272, %p273
      %p275 = scmp.ne.s32.totalorder %s264, %s267
      %p276 = scmp.eq.s32.totalorder %s23, 1
      %p277 = por %p275, %p276
      %p278 = scmp.ne.s32.totalorder %s267, %s268
      %p279 = scmp.eq.s32.totalorder %s23, 0
      %p280 = por %p278, %p279
      %p281 = scmp.ne.s32.totalorder %s267, %s268
      %p282 = scmp.eq.s32.totalorder %s24, 1
      %p283 = por %p281, %p282
      %p285 = scmp.ne.s32.totalorder %s268, %s284
      %p286 = scmp.eq.s32.totalorder %s24, 0
      %p287 = por %p285, %p286
      %p288 = scmp.le.s32.totalorder 1, %s18
      %p289 = scmp.lt.s32.totalorder %s18, 3
      %p290 = pnand %p288, %p289
      %p291 = pneg %p290
      // Predicated region
      $region9: #{postnet_forward.1} parent=5 // pred_check
        _
      $region10: #{postnet_forward.1} parent=5 // pred_check_branch
        %293 = sbr.rel (%p290) target = $region12
      $region11: #{postnet_forward.1} parent=5 // pred_region
        %s294 = ssub.s32 %s18, 1
        // Predicated region
        $region13: #{postnet_forward.1} parent=11 // pred_check
          %p295 = pneg %p65
        $region14: #{postnet_forward.1} parent=11 // pred_check_branch
          %297 = sbr.rel (%p295) target = $region16
        $region15: #{postnet_forward.1} parent=11 // pred_region
          _
        $region16: #{postnet_forward.1} parent=11 // pred_fallthru
          _
        // Predicated region
        $region17: #{postnet_forward.1} parent=11 // pred_check
          %p298 = pneg %p86
        $region18: #{postnet_forward.1} parent=11 // pred_check_branch
          %300 = sbr.rel (%p298) target = $region20
        $region19: #{postnet_forward.1} parent=11 // pred_region
          _
        $region20: #{postnet_forward.1} parent=11 // pred_fallthru
          _
        // Predicated region
        $region21: #{postnet_forward.1} parent=11 // pred_check
          %p301 = pneg %p107
        $region22: #{postnet_forward.1} parent=11 // pred_check_branch
          %303 = sbr.rel (%p301) target = $region24
        $region23: #{postnet_forward.1} parent=11 // pred_region
          _
        $region24: #{postnet_forward.1} parent=11 // pred_fallthru
          _
        // Predicated region
        $region25: #{postnet_forward.1} parent=11 // pred_check
          %p304 = pneg %p128
        $region26: #{postnet_forward.1} parent=11 // pred_check_branch
          %306 = sbr.rel (%p304) target = $region28
        $region27: #{postnet_forward.1} parent=11 // pred_region
          _
        $region28: #{postnet_forward.1} parent=11 // pred_fallthru
          _
        // Predicated region
        $region29: #{postnet_forward.1} parent=11 // pred_check
          %p307 = pneg %p149
        $region30: #{postnet_forward.1} parent=11 // pred_check_branch
          %309 = sbr.rel (%p307) target = $region32
        $region31: #{postnet_forward.1} parent=11 // pred_region
          _
        $region32: #{postnet_forward.1} parent=11 // pred_fallthru
          _
        // Predicated region
        $region33: #{postnet_forward.1} parent=11 // pred_check
          %p310 = pneg %p170
        $region34: #{postnet_forward.1} parent=11 // pred_check_branch
          %312 = sbr.rel (%p310) target = $region36
        $region35: #{postnet_forward.1} parent=11 // pred_region
          _
        $region36: #{postnet_forward.1} parent=11 // pred_fallthru
          _
        // Predicated region
        $region37: #{postnet_forward.1} parent=11 // pred_check
          %p313 = pneg %p191
        $region38: #{postnet_forward.1} parent=11 // pred_check_branch
          %315 = sbr.rel (%p313) target = $region40
        $region39: #{postnet_forward.1} parent=11 // pred_region
          %317 = vsyncadd [#allocation3], 0
          %s318 = sshll.u32 %s7, 4
          %s319 = int_to_ptr.hbm [resolvable:$true] %s318
          %s320 = sshll.u32 [#allocation2], 4
          %s321 = int_to_ptr.vmem [resolvable:$true] %s320
          %326 = dma.hbm_to_vmem [thread:$0]  %s319, 5120, %s321, [#allocation3], 64, 64, 4
        $region40: #{postnet_forward.1} parent=11 // pred_fallthru
          _
        // Predicated region
        $region41: #{postnet_forward.1} parent=11 // pred_check
          %p327 = pneg %p212
        $region42: #{postnet_forward.1} parent=11 // pred_check_branch
          %329 = sbr.rel (%p327) target = $region44
        $region43: #{postnet_forward.1} parent=11 // pred_region
          _
        $region44: #{postnet_forward.1} parent=11 // pred_fallthru
          _
        // Predicated region
        $region45: #{postnet_forward.1} parent=11 // pred_check
          %p330 = pneg %p233
        $region46: #{postnet_forward.1} parent=11 // pred_check_branch
          %332 = sbr.rel (%p330) target = $region48
        $region47: #{postnet_forward.1} parent=11 // pred_region
          _
        $region48: #{postnet_forward.1} parent=11 // pred_fallthru
          _
        // Predicated region
        $region49: #{postnet_forward.1} parent=11 // pred_check
          %p333 = pneg %p254
        $region50: #{postnet_forward.1} parent=11 // pred_check_branch
          %335 = sbr.rel (%p333) target = $region52
        $region51: #{postnet_forward.1} parent=11 // pred_region
          _
        $region52: #{postnet_forward.1} parent=11 // pred_fallthru
          _
      $region12: #{postnet_forward.1} parent=5 // pred_fallthru
        _
      %p336 = scmp.lt.s32.totalorder %s18, 2
      // Predicated region
      $region53: #{postnet_forward.1} parent=5 // pred_check
        %p337 = pneg %p336
      $region54: #{postnet_forward.1} parent=5 // pred_check_branch
        %339 = sbr.rel (%p337) target = $region56
      $region55: #{postnet_forward.1} parent=5 // pred_region
        // Predicated region
        $region57: #{postnet_forward.1} parent=55 // pred_check
          %p340 = pneg %p38
        $region58: #{postnet_forward.1} parent=55 // pred_check_branch
          %342 = sbr.rel (%p340) target = $region60
        $region59: #{postnet_forward.1} parent=55 // pred_region
          %s343 = smul.u32 32, %s18
          %p344 = scmp.lt.s32.totalorder %s343, 63
          %s345 = scalar_select %p344, %s343, 63
          %s346 = smul.addr %s345, 8
          %s347 = scalar_lea.vmem %s0, %s346
          %s348 = smul.u32 32, %s18
        $region60: #{postnet_forward.1} parent=55 // pred_fallthru
          _
      $region56: #{postnet_forward.1} parent=5 // pred_fallthru
        _
      %p349 = scmp.le.s32.totalorder 1, %s18
      %p350 = scmp.lt.s32.totalorder %s18, 3
      %p351 = pnand %p349, %p350
      %p352 = pneg %p351
      // Predicated region
      $region61: #{postnet_forward.1} parent=5 // pred_check
        _
      $region62: #{postnet_forward.1} parent=5 // pred_check_branch
        %354 = sbr.rel (%p351) target = $region64
      $region63: #{postnet_forward.1} parent=5 // pred_region
        %s355 = ssub.s32 %s18, 1
        // Predicated region
        $region65: #{postnet_forward.1} parent=63 // pred_check
          %p356 = pneg %p191
        $region66: #{postnet_forward.1} parent=63 // pred_check_branch
          %358 = sbr.rel (%p356) target = $region68
        $region67: #{postnet_forward.1} parent=63 // pred_region
          %360 = dma.done [#allocation3], 5120
        $region68: #{postnet_forward.1} parent=63 // pred_fallthru
          _
        %s361 = smul.u32 32, %s23
        %p362 = scmp.lt.s32.totalorder %s361, 63
        %s363 = scalar_select %p362, %s361, 63
        %s364 = smul.addr %s363, 8
        %s365 = scalar_lea.vmem %s0, %s364
        %p366 = pneg %p44
        %p367 = pneg %p41
        %p368 = pneg %p65
        %p369 = pneg %p62
        %p370 = pneg %p86
        %p371 = pneg %p83
        %p372 = pneg %p107
        %p373 = pneg %p104
        %p374 = pneg %p128
        %p375 = pneg %p125
        %p376 = pneg %p149
        %p377 = pneg %p146
        %p378 = pneg %p170
        %p379 = pneg %p167
        %p380 = pneg %p191
        %p381 = pneg %p188
        %p382 = pneg %p212
        %p383 = pneg %p209
        %p384 = pneg %p233
        %p385 = pneg %p230
        %p386 = pneg %p254
        %p387 = pneg %p251
        %p388 = pneg %p280
        %p389 = pneg %p277
        %s390 = smul.u32 32, %s23
        %p391 = scmp.lt.s32.totalorder %s390, 63
        %s392 = scalar_select %p391, %s390, 63
        %s393 = smul.addr %s392, 8
        %s394 = scalar_lea.vmem %s11, %s393
        %s395 = smul.u32 32, %s23
        %p396 = scmp.lt.s32.totalorder %s395, 63
        %s397 = scalar_select %p396, %s395, 63
        %s398 = smul.addr %s397, 8
        %s399 = scalar_lea.vmem %s0, %s398
        %s400 = smul.u32 32, %s23
        %s401 = smul.u32 32, %s23
        %p402 = scmp.lt.s32.totalorder %s401, 63
        %s403 = scalar_select %p402, %s401, 63
        %s404 = smul.addr %s403, 8
        %s405 = scalar_lea.vmem %s11, %s404
        %s406 = smul.u32 32, %s23
        %v408 = vlaneseq
        %v409 = vshrl.u32 %v408, 7
        %v410 = vadd.s32 %v409, 8
        %v411 = vadd.s32 %v409, 16
        %v412 = vadd.s32 %v409, 24
        %v413 = vadd.s32 %v409, 32
        %v414 = vadd.s32 %v409, 40
        %v415 = vadd.s32 %v409, 48
        %v416 = vadd.s32 %v409, 56
        %v417 = vadd.s32 %v409, 64
        %v418 = vadd.s32 %v409, 72
        %v419 = vadd.s32 %v409, 80
        %v420 = vadd.s32 %v409, 88
        %v421 = vadd.s32 %v409, 96
        %v422 = vadd.s32 %v409, 104
        %v423 = vadd.s32 %v409, 112
        %v424 = vadd.s32 %v409, 120
        %v425 = vadd.s32 %v409, 128
        %v426 = vadd.s32 %v409, 136
        %v427 = vadd.s32 %v409, 144
        %v428 = vadd.s32 %v409, 152
        %v429 = vadd.s32 %v409, 160
        %v430 = vadd.s32 %v409, 168
        %v431 = vadd.s32 %v409, 176
        %v432 = vadd.s32 %v409, 184
        %v433 = vadd.s32 %v409, 192
        %v434 = vadd.s32 %v409, 200
        %v435 = vadd.s32 %v409, 208
        %v436 = vadd.s32 %v409, 216
        %v437 = vadd.s32 %v409, 224
        %v438 = vadd.s32 %v409, 232
        %v439 = vadd.s32 %v409, 240
        %v440 = vadd.s32 %v409, 248
        %v441 = vld [vmem:[%s399] sm:$0xff]
        %v442 = vld [vmem:[%s399 + $0x8] sm:$0xff]
        %v443 = vld [vmem:[%s399 + $0x10] sm:$0xff]
        %v444 = vld [vmem:[%s399 + $0x18] sm:$0xff]
        %v445 = vld [vmem:[%s399 + $0x20] sm:$0xff]
        %v446 = vld [vmem:[%s399 + $0x28] sm:$0xff]
        %v447 = vld [vmem:[%s399 + $0x30] sm:$0xff]
        %v448 = vld [vmem:[%s399 + $0x38] sm:$0xff]
        %v449 = vld [vmem:[%s399 + $0x40] sm:$0xff]
        %v450 = vld [vmem:[%s399 + $0x48] sm:$0xff]
        %v451 = vld [vmem:[%s399 + $0x50] sm:$0xff]
        %v452 = vld [vmem:[%s399 + $0x58] sm:$0xff]
        %v453 = vld [vmem:[%s399 + $0x60] sm:$0xff]
        %v454 = vld [vmem:[%s399 + $0x68] sm:$0xff]
        %v455 = vld [vmem:[%s399 + $0x70] sm:$0xff]
        %v456 = vld [vmem:[%s399 + $0x78] sm:$0xff]
        %v457 = vld [vmem:[%s399 + $0x80] sm:$0xff]
        %v458 = vld [vmem:[%s399 + $0x88] sm:$0xff]
        %v459 = vld [vmem:[%s399 + $0x90] sm:$0xff]
        %v460 = vld [vmem:[%s399 + $0x98] sm:$0xff]
        %v461 = vld [vmem:[%s399 + $0xa0] sm:$0xff]
        %v462 = vld [vmem:[%s399 + $0xa8] sm:$0xff]
        %v463 = vld [vmem:[%s399 + $0xb0] sm:$0xff]
        %v464 = vld [vmem:[%s399 + $0xb8] sm:$0xff]
        %v465 = vld [vmem:[%s399 + $0xc0] sm:$0xff]
        %v466 = vld [vmem:[%s399 + $0xc8] sm:$0xff]
        %v467 = vld [vmem:[%s399 + $0xd0] sm:$0xff]
        %v468 = vld [vmem:[%s399 + $0xd8] sm:$0xff]
        %v469 = vld [vmem:[%s399 + $0xe0] sm:$0xff]
        %v470 = vld [vmem:[%s399 + $0xe8] sm:$0xff]
        %v471 = vld [vmem:[%s399 + $0xf0] sm:$0xff]
        %v472 = vld [vmem:[%s399 + $0xf8] sm:$0xff]
        %v473 = vpack.c.bf16 %v442, %v441
        %v474 = vpack.c.bf16 %v444, %v443
        %v475 = vpack.c.bf16 %v446, %v445
        %v476 = vpack.c.bf16 %v448, %v447
        %v477 = vpack.c.bf16 %v450, %v449
        %v478 = vpack.c.bf16 %v452, %v451
        %v479 = vpack.c.bf16 %v454, %v453
        %v480 = vpack.c.bf16 %v456, %v455
        %v481 = vpack.c.bf16 %v458, %v457
        %v482 = vpack.c.bf16 %v460, %v459
        %v483 = vpack.c.bf16 %v462, %v461
        %v484 = vpack.c.bf16 %v464, %v463
        %v485 = vpack.c.bf16 %v466, %v465
        %v486 = vpack.c.bf16 %v468, %v467
        %v487 = vpack.c.bf16 %v470, %v469
        %v488 = vpack.c.bf16 %v472, %v471
        %s489 = scalar_lea.vmem %s1, 32
        %v490 = vld [vmem:[%s489] sm:$0xf]
        %v491 = vld [vmem:[%s489 + $0x4] sm:$0xf]
        %v492 = vld [vmem:[%s489 + $0x8] sm:$0xf]
        %v493 = vld [vmem:[%s489 + $0xc] sm:$0xf]
        %v494 = vrot.slane %v441, 6
        %v495 = vrot.slane %v442, 6
        %v496 = vrot.slane %v443, 6
        %v497 = vrot.slane %v444, 6
        %v498 = vrot.slane %v445, 6
        %v499 = vrot.slane %v446, 6
        %v500 = vrot.slane %v447, 6
        %v501 = vrot.slane %v448, 6
        %v502 = vrot.slane %v449, 6
        %v503 = vrot.slane %v450, 6
        %v504 = vrot.slane %v451, 6
        %v505 = vrot.slane %v452, 6
        %v506 = vrot.slane %v453, 6
        %v507 = vrot.slane %v454, 6
        %v508 = vrot.slane %v455, 6
        %v509 = vrot.slane %v456, 6
        %v510 = vrot.slane %v457, 6
        %v511 = vrot.slane %v458, 6
        %v512 = vrot.slane %v459, 6
        %v513 = vrot.slane %v460, 6
        %v514 = vrot.slane %v461, 6
        %v515 = vrot.slane %v462, 6
        %v516 = vrot.slane %v463, 6
        %v517 = vrot.slane %v464, 6
        %v518 = vrot.slane %v465, 6
        %v519 = vrot.slane %v466, 6
        %v520 = vrot.slane %v467, 6
        %v521 = vrot.slane %v468, 6
        %v522 = vrot.slane %v469, 6
        %v523 = vrot.slane %v470, 6
        %v524 = vrot.slane %v471, 6
        %v525 = vrot.slane %v472, 6
        %vm526 = vcmp.lt.s32.totalorder %v409, 2
        %v527 = vsel %vm526, %v524, %v525
        %v528 = vsel %vm526, %v523, %v524
        %v529 = vsel %vm526, %v522, %v523
        %v530 = vsel %vm526, %v521, %v522
        %v531 = vsel %vm526, %v520, %v521
        %v532 = vsel %vm526, %v519, %v520
        %v533 = vsel %vm526, %v518, %v519
        %v534 = vsel %vm526, %v517, %v518
        %v535 = vsel %vm526, %v516, %v517
        %v536 = vsel %vm526, %v515, %v516
        %v537 = vsel %vm526, %v514, %v515
        %v538 = vsel %vm526, %v513, %v514
        %v539 = vsel %vm526, %v512, %v513
        %v540 = vsel %vm526, %v511, %v512
        %v541 = vsel %vm526, %v510, %v511
        %v542 = vsel %vm526, %v509, %v510
        %v543 = vsel %vm526, %v508, %v509
        %v544 = vsel %vm526, %v507, %v508
        %v545 = vsel %vm526, %v506, %v507
        %v546 = vsel %vm526, %v505, %v506
        %v547 = vsel %vm526, %v504, %v505
        %v548 = vsel %vm526, %v503, %v504
        %v549 = vsel %vm526, %v502, %v503
        %v550 = vsel %vm526, %v501, %v502
        %v551 = vsel %vm526, %v500, %v501
        %v552 = vsel %vm526, %v499, %v500
        %v553 = vsel %vm526, %v498, %v499
        %v554 = vsel %vm526, %v497, %v498
        %v555 = vsel %vm526, %v496, %v497
        %v556 = vsel %vm526, %v495, %v496
        %v557 = vsel %vm526, %v494, %v495
        %v558 = vsel %vm526, %v525, %v494
        %v559 = vadd.s32 %v409, 4294967294
        %v560 = vadd.s32 %v410, 4294967294
        %v561 = vadd.s32 %v411, 4294967294
        %v562 = vadd.s32 %v412, 4294967294
        %v563 = vadd.s32 %v413, 4294967294
        %v564 = vadd.s32 %v414, 4294967294
        %v565 = vadd.s32 %v415, 4294967294
        %v566 = vadd.s32 %v416, 4294967294
        %v567 = vadd.s32 %v417, 4294967294
        %v568 = vadd.s32 %v418, 4294967294
        %v569 = vadd.s32 %v419, 4294967294
        %v570 = vadd.s32 %v420, 4294967294
        %v571 = vadd.s32 %v421, 4294967294
        %v572 = vadd.s32 %v422, 4294967294
        %v573 = vadd.s32 %v423, 4294967294
        %v574 = vadd.s32 %v424, 4294967294
        %v575 = vadd.s32 %v425, 4294967294
        %v576 = vadd.s32 %v426, 4294967294
        %v577 = vadd.s32 %v427, 4294967294
        %v578 = vadd.s32 %v428, 4294967294
        %v579 = vadd.s32 %v429, 4294967294
        %v580 = vadd.s32 %v430, 4294967294
        %v581 = vadd.s32 %v431, 4294967294
        %v582 = vadd.s32 %v432, 4294967294
        %v583 = vadd.s32 %v433, 4294967294
        %v584 = vadd.s32 %v434, 4294967294
        %v585 = vadd.s32 %v435, 4294967294
        %v586 = vadd.s32 %v436, 4294967294
        %v587 = vadd.s32 %v437, 4294967294
        %v588 = vadd.s32 %v438, 4294967294
        %v589 = vadd.s32 %v439, 4294967294
        %v590 = vadd.s32 %v440, 4294967294
        %vm591 = vcmp.ge.s32.totalorder %v559, 0
        %vm592 = vcmp.ge.s32.totalorder %v560, 0
        %vm593 = vcmp.ge.s32.totalorder %v561, 0
        %vm594 = vcmp.ge.s32.totalorder %v562, 0
        %vm595 = vcmp.ge.s32.totalorder %v563, 0
        %vm596 = vcmp.ge.s32.totalorder %v564, 0
        %vm597 = vcmp.ge.s32.totalorder %v565, 0
        %vm598 = vcmp.ge.s32.totalorder %v566, 0
        %vm599 = vcmp.ge.s32.totalorder %v567, 0
        %vm600 = vcmp.ge.s32.totalorder %v568, 0
        %vm601 = vcmp.ge.s32.totalorder %v569, 0
        %vm602 = vcmp.ge.s32.totalorder %v570, 0
        %vm603 = vcmp.ge.s32.totalorder %v571, 0
        %vm604 = vcmp.ge.s32.totalorder %v572, 0
        %vm605 = vcmp.ge.s32.totalorder %v573, 0
        %vm606 = vcmp.ge.s32.totalorder %v574, 0
        %vm607 = vcmp.ge.s32.totalorder %v575, 0
        %vm608 = vcmp.ge.s32.totalorder %v576, 0
        %vm609 = vcmp.ge.s32.totalorder %v577, 0
        %vm610 = vcmp.ge.s32.totalorder %v578, 0
        %vm611 = vcmp.ge.s32.totalorder %v579, 0
        %vm612 = vcmp.ge.s32.totalorder %v580, 0
        %vm613 = vcmp.ge.s32.totalorder %v581, 0
        %vm614 = vcmp.ge.s32.totalorder %v582, 0
        %vm615 = vcmp.ge.s32.totalorder %v583, 0
        %vm616 = vcmp.ge.s32.totalorder %v584, 0
        %vm617 = vcmp.ge.s32.totalorder %v585, 0
        %vm618 = vcmp.ge.s32.totalorder %v586, 0
        %vm619 = vcmp.ge.s32.totalorder %v587, 0
        %vm620 = vcmp.ge.s32.totalorder %v588, 0
        %vm621 = vcmp.ge.s32.totalorder %v589, 0
        %vm622 = vcmp.ge.s32.totalorder %v590, 0
        %vm623 = vcmp.lt.s32.totalorder %v559, 256
        %vm624 = vcmp.lt.s32.totalorder %v560, 256
        %vm625 = vcmp.lt.s32.totalorder %v561, 256
        %vm626 = vcmp.lt.s32.totalorder %v562, 256
        %vm627 = vcmp.lt.s32.totalorder %v563, 256
        %vm628 = vcmp.lt.s32.totalorder %v564, 256
        %vm629 = vcmp.lt.s32.totalorder %v565, 256
        %vm630 = vcmp.lt.s32.totalorder %v566, 256
        %vm631 = vcmp.lt.s32.totalorder %v567, 256
        %vm632 = vcmp.lt.s32.totalorder %v568, 256
        %vm633 = vcmp.lt.s32.totalorder %v569, 256
        %vm634 = vcmp.lt.s32.totalorder %v570, 256
        %vm635 = vcmp.lt.s32.totalorder %v571, 256
        %vm636 = vcmp.lt.s32.totalorder %v572, 256
        %vm637 = vcmp.lt.s32.totalorder %v573, 256
        %vm638 = vcmp.lt.s32.totalorder %v574, 256
        %vm639 = vcmp.lt.s32.totalorder %v575, 256
        %vm640 = vcmp.lt.s32.totalorder %v576, 256
        %vm641 = vcmp.lt.s32.totalorder %v577, 256
        %vm642 = vcmp.lt.s32.totalorder %v578, 256
        %vm643 = vcmp.lt.s32.totalorder %v579, 256
        %vm644 = vcmp.lt.s32.totalorder %v580, 256
        %vm645 = vcmp.lt.s32.totalorder %v581, 256
        %vm646 = vcmp.lt.s32.totalorder %v582, 256
        %vm647 = vcmp.lt.s32.totalorder %v583, 256
        %vm648 = vcmp.lt.s32.totalorder %v584, 256
        %vm649 = vcmp.lt.s32.totalorder %v585, 256
        %vm650 = vcmp.lt.s32.totalorder %v586, 256
        %vm651 = vcmp.lt.s32.totalorder %v587, 256
        %vm652 = vcmp.lt.s32.totalorder %v588, 256
        %vm653 = vcmp.lt.s32.totalorder %v589, 256
        %vm654 = vcmp.lt.s32.totalorder %v590, 256
        %vm655 = vmand %vm591, %vm623
        %vm656 = vmand %vm592, %vm624
        %vm657 = vmand %vm593, %vm625
        %vm658 = vmand %vm594, %vm626
        %vm659 = vmand %vm595, %vm627
        %vm660 = vmand %vm596, %vm628
        %vm661 = vmand %vm597, %vm629
        %vm662 = vmand %vm598, %vm630
        %vm663 = vmand %vm599, %vm631
        %vm664 = vmand %vm600, %vm632
        %vm665 = vmand %vm601, %vm633
        %vm666 = vmand %vm602, %vm634
        %vm667 = vmand %vm603, %vm635
        %vm668 = vmand %vm604, %vm636
        %vm669 = vmand %vm605, %vm637
        %vm670 = vmand %vm606, %vm638
        %vm671 = vmand %vm607, %vm639
        %vm672 = vmand %vm608, %vm640
        %vm673 = vmand %vm609, %vm641
        %vm674 = vmand %vm610, %vm642
        %vm675 = vmand %vm611, %vm643
        %vm676 = vmand %vm612, %vm644
        %vm677 = vmand %vm613, %vm645
        %vm678 = vmand %vm614, %vm646
        %vm679 = vmand %vm615, %vm647
        %vm680 = vmand %vm616, %vm648
        %vm681 = vmand %vm617, %vm649
        %vm682 = vmand %vm618, %vm650
        %vm683 = vmand %vm619, %vm651
        %vm684 = vmand %vm620, %vm652
        %vm685 = vmand %vm621, %vm653
        %vm686 = vmand %vm622, %vm654
        %v687 = vsel %vm655, 1, 0
        %v688 = vsel %vm656, 1, 0
        %v689 = vsel %vm657, 1, 0
        %v690 = vsel %vm658, 1, 0
        %v691 = vsel %vm659, 1, 0
        %v692 = vsel %vm660, 1, 0
        %v693 = vsel %vm661, 1, 0
        %v694 = vsel %vm662, 1, 0
        %v695 = vsel %vm663, 1, 0
        %v696 = vsel %vm664, 1, 0
        %v697 = vsel %vm665, 1, 0
        %v698 = vsel %vm666, 1, 0
        %v699 = vsel %vm667, 1, 0
        %v700 = vsel %vm668, 1, 0
        %v701 = vsel %vm669, 1, 0
        %v702 = vsel %vm670, 1, 0
        %v703 = vsel %vm671, 1, 0
        %v704 = vsel %vm672, 1, 0
        %v705 = vsel %vm673, 1, 0
        %v706 = vsel %vm674, 1, 0
        %v707 = vsel %vm675, 1, 0
        %v708 = vsel %vm676, 1, 0
        %v709 = vsel %vm677, 1, 0
        %v710 = vsel %vm678, 1, 0
        %v711 = vsel %vm679, 1, 0
        %v712 = vsel %vm680, 1, 0
        %v713 = vsel %vm681, 1, 0
        %v714 = vsel %vm682, 1, 0
        %v715 = vsel %vm683, 1, 0
        %v716 = vsel %vm684, 1, 0
        %v717 = vsel %vm685, 1, 0
        %v718 = vsel %vm686, 1, 0
        %vm719 = vcmp.eq.s32.totalorder %v687, 1
        %vm720 = vcmp.eq.s32.totalorder %v688, 1
        %vm721 = vcmp.eq.s32.totalorder %v689, 1
        %vm722 = vcmp.eq.s32.totalorder %v690, 1
        %vm723 = vcmp.eq.s32.totalorder %v691, 1
        %vm724 = vcmp.eq.s32.totalorder %v692, 1
        %vm725 = vcmp.eq.s32.totalorder %v693, 1
        %vm726 = vcmp.eq.s32.totalorder %v694, 1
        %vm727 = vcmp.eq.s32.totalorder %v695, 1
        %vm728 = vcmp.eq.s32.totalorder %v696, 1
        %vm729 = vcmp.eq.s32.totalorder %v697, 1
        %vm730 = vcmp.eq.s32.totalorder %v698, 1
        %vm731 = vcmp.eq.s32.totalorder %v699, 1
        %vm732 = vcmp.eq.s32.totalorder %v700, 1
        %vm733 = vcmp.eq.s32.totalorder %v701, 1
        %vm734 = vcmp.eq.s32.totalorder %v702, 1
        %vm735 = vcmp.eq.s32.totalorder %v703, 1
        %vm736 = vcmp.eq.s32.totalorder %v704, 1
        %vm737 = vcmp.eq.s32.totalorder %v705, 1
        %vm738 = vcmp.eq.s32.totalorder %v706, 1
        %vm739 = vcmp.eq.s32.totalorder %v707, 1
        %vm740 = vcmp.eq.s32.totalorder %v708, 1
        %vm741 = vcmp.eq.s32.totalorder %v709, 1
        %vm742 = vcmp.eq.s32.totalorder %v710, 1
        %vm743 = vcmp.eq.s32.totalorder %v711, 1
        %vm744 = vcmp.eq.s32.totalorder %v712, 1
        %vm745 = vcmp.eq.s32.totalorder %v713, 1
        %vm746 = vcmp.eq.s32.totalorder %v714, 1
        %vm747 = vcmp.eq.s32.totalorder %v715, 1
        %vm748 = vcmp.eq.s32.totalorder %v716, 1
        %vm749 = vcmp.eq.s32.totalorder %v717, 1
        %vm750 = vcmp.eq.s32.totalorder %v718, 1
        %v751 = vsel %vm719, %v558, 0.0
        %v752 = vsel %vm720, %v557, 0.0
        %v753 = vsel %vm721, %v556, 0.0
        %v754 = vsel %vm722, %v555, 0.0
        %v755 = vsel %vm723, %v554, 0.0
        %v756 = vsel %vm724, %v553, 0.0
        %v757 = vsel %vm725, %v552, 0.0
        %v758 = vsel %vm726, %v551, 0.0
        %v759 = vsel %vm727, %v550, 0.0
        %v760 = vsel %vm728, %v549, 0.0
        %v761 = vsel %vm729, %v548, 0.0
        %v762 = vsel %vm730, %v547, 0.0
        %v763 = vsel %vm731, %v546, 0.0
        %v764 = vsel %vm732, %v545, 0.0
        %v765 = vsel %vm733, %v544, 0.0
        %v766 = vsel %vm734, %v543, 0.0
        %v767 = vsel %vm735, %v542, 0.0
        %v768 = vsel %vm736, %v541, 0.0
        %v769 = vsel %vm737, %v540, 0.0
        %v770 = vsel %vm738, %v539, 0.0
        %v771 = vsel %vm739, %v538, 0.0
        %v772 = vsel %vm740, %v537, 0.0
        %v773 = vsel %vm741, %v536, 0.0
        %v774 = vsel %vm742, %v535, 0.0
        %v775 = vsel %vm743, %v534, 0.0
        %v776 = vsel %vm744, %v533, 0.0
        %v777 = vsel %vm745, %v532, 0.0
        %v778 = vsel %vm746, %v531, 0.0
        %v779 = vsel %vm747, %v530, 0.0
        %v780 = vsel %vm748, %v529, 0.0
        %v781 = vsel %vm749, %v528, 0.0
        %v782 = vsel %vm750, %v527, 0.0
        %v783 = vpack.c.bf16 %v752, %v751
        %v784 = vpack.c.bf16 %v754, %v753
        %v785 = vpack.c.bf16 %v756, %v755
        %v786 = vpack.c.bf16 %v758, %v757
        %v787 = vpack.c.bf16 %v760, %v759
        %v788 = vpack.c.bf16 %v762, %v761
        %v789 = vpack.c.bf16 %v764, %v763
        %v790 = vpack.c.bf16 %v766, %v765
        %v791 = vpack.c.bf16 %v768, %v767
        %v792 = vpack.c.bf16 %v770, %v769
        %v793 = vpack.c.bf16 %v772, %v771
        %v794 = vpack.c.bf16 %v774, %v773
        %v795 = vpack.c.bf16 %v776, %v775
        %v796 = vpack.c.bf16 %v778, %v777
        %v797 = vpack.c.bf16 %v780, %v779
        %v798 = vpack.c.bf16 %v782, %v781
        %v799 = vld [vmem:[%s1] sm:$0xf]
        %v800 = vld [vmem:[%s1 + $0x4] sm:$0xf]
        %v801 = vld [vmem:[%s1 + $0x8] sm:$0xf]
        %v802 = vld [vmem:[%s1 + $0xc] sm:$0xf]
        %v807 = vunpack.c.l.b16 %v799
        %v808 = vunpack.c.l.b16 %v800
        %v809 = vunpack.c.l.b16 %v801
        %v810 = vunpack.c.l.b16 %v802
        %v811 = vpack.c.b16 %v808, %v807
        %v812 = vpack.c.b16 %v810, %v809
        %vm815 = vcmask 261120
        %v817 = vsel %vm815, %v783, 0
        %v820 = vsel %vm815, %v784, 0
        %v823 = vsel %vm815, %v785, 0
        %v826 = vsel %vm815, %v786, 0
        %v829 = vsel %vm815, %v787, 0
        %v832 = vsel %vm815, %v788, 0
        %v835 = vsel %vm815, %v789, 0
        %v838 = vsel %vm815, %v790, 0
        %v841 = vsel %vm815, %v791, 0
        %v844 = vsel %vm815, %v792, 0
        %v847 = vsel %vm815, %v793, 0
        %v850 = vsel %vm815, %v794, 0
        %v853 = vsel %vm815, %v795, 0
        %v856 = vsel %vm815, %v796, 0
        %v859 = vsel %vm815, %v797, 0
        %v862 = vsel %vm815, %v798, 0
        %864 = vmatpush.bf16.msra.mxu0 0
        %865 = vmatpush.bf16.msra.mxu0 0
        %866 = vmatpush.bf16.msra.mxu0 0
        %867 = vmatpush.bf16.msra.mxu0 0
        %868 = vmatpush.bf16.msra.mxu0 0
        %869 = vmatpush.bf16.msra.mxu0 0
        %870 = vmatpush.bf16.msra.mxu0 %v812
        %871 = vmatpush.bf16.msra.mxu0 %v811
        %872 = vmatmul.bf16.gmra.mxu0 %v817
        %v873 = vpop.f32.mrf.mxu0
        %v874 = vadd.f32 0.0, %v873
        %v875 = vpop.f32.mrf.mxu0
        %v876 = vadd.f32 0.0, %v875
        %877 = vmatmul.bf16.gmra.mxu0 %v820
        %v878 = vpop.f32.mrf.mxu0
        %v879 = vadd.f32 0.0, %v878
        %v880 = vpop.f32.mrf.mxu0
        %v881 = vadd.f32 0.0, %v880
        %882 = vmatmul.bf16.gmra.mxu0 %v823
        %v883 = vpop.f32.mrf.mxu0
        %v884 = vadd.f32 0.0, %v883
        %v885 = vpop.f32.mrf.mxu0
        %v886 = vadd.f32 0.0, %v885
        %887 = vmatmul.bf16.gmra.mxu0 %v826
        %v888 = vpop.f32.mrf.mxu0
        %v889 = vadd.f32 0.0, %v888
        %v890 = vpop.f32.mrf.mxu0
        %v891 = vadd.f32 0.0, %v890
        %892 = vmatmul.bf16.gmra.mxu0 %v829
        %v893 = vpop.f32.mrf.mxu0
        %v894 = vadd.f32 0.0, %v893
        %v895 = vpop.f32.mrf.mxu0
        %v896 = vadd.f32 0.0, %v895
        %897 = vmatmul.bf16.gmra.mxu0 %v832
        %v898 = vpop.f32.mrf.mxu0
        %v899 = vadd.f32 0.0, %v898
        %v900 = vpop.f32.mrf.mxu0
        %v901 = vadd.f32 0.0, %v900
        %902 = vmatmul.bf16.gmra.mxu0 %v835
        %v903 = vpop.f32.mrf.mxu0
        %v904 = vadd.f32 0.0, %v903
        %v905 = vpop.f32.mrf.mxu0
        %v906 = vadd.f32 0.0, %v905
        %907 = vmatmul.bf16.gmra.mxu0 %v838
        %v908 = vpop.f32.mrf.mxu0
        %v909 = vadd.f32 0.0, %v908
        %v910 = vpop.f32.mrf.mxu0
        %v911 = vadd.f32 0.0, %v910
        %912 = vmatmul.bf16.gmra.mxu0 %v841
        %v913 = vpop.f32.mrf.mxu0
        %v914 = vadd.f32 0.0, %v913
        %v915 = vpop.f32.mrf.mxu0
        %v916 = vadd.f32 0.0, %v915
        %917 = vmatmul.bf16.gmra.mxu0 %v844
        %v918 = vpop.f32.mrf.mxu0
        %v919 = vadd.f32 0.0, %v918
        %v920 = vpop.f32.mrf.mxu0
        %v921 = vadd.f32 0.0, %v920
        %922 = vmatmul.bf16.gmra.mxu0 %v847
        %v923 = vpop.f32.mrf.mxu0
        %v924 = vadd.f32 0.0, %v923
        %v925 = vpop.f32.mrf.mxu0
        %v926 = vadd.f32 0.0, %v925
        %927 = vmatmul.bf16.gmra.mxu0 %v850
        %v928 = vpop.f32.mrf.mxu0
        %v929 = vadd.f32 0.0, %v928
        %v930 = vpop.f32.mrf.mxu0
        %v931 = vadd.f32 0.0, %v930
        %932 = vmatmul.bf16.gmra.mxu0 %v853
        %v933 = vpop.f32.mrf.mxu0
        %v934 = vadd.f32 0.0, %v933
        %v935 = vpop.f32.mrf.mxu0
        %v936 = vadd.f32 0.0, %v935
        %937 = vmatmul.bf16.gmra.mxu0 %v856
        %v938 = vpop.f32.mrf.mxu0
        %v939 = vadd.f32 0.0, %v938
        %v940 = vpop.f32.mrf.mxu0
        %v941 = vadd.f32 0.0, %v940
        %942 = vmatmul.bf16.gmra.mxu0 %v859
        %v943 = vpop.f32.mrf.mxu0
        %v944 = vadd.f32 0.0, %v943
        %v945 = vpop.f32.mrf.mxu0
        %v946 = vadd.f32 0.0, %v945
        %947 = vmatmul.bf16.gmra.mxu0 %v862
        %v948 = vpop.f32.mrf.mxu0
        %v949 = vadd.f32 0.0, %v948
        %v950 = vpop.f32.mrf.mxu0
        %v951 = vadd.f32 0.0, %v950
        %952 = vdwg.mxu0
        %v957 = vunpack.c.l.b16 %v490
        %v958 = vunpack.c.l.b16 %v491
        %v959 = vunpack.c.l.b16 %v492
        %v960 = vunpack.c.l.b16 %v493
        %v961 = vpack.c.b16 %v958, %v957
        %v962 = vpack.c.b16 %v960, %v959
        %v966 = vsel %vm815, %v473, 0
        %v969 = vsel %vm815, %v474, 0
        %v972 = vsel %vm815, %v475, 0
        %v975 = vsel %vm815, %v476, 0
        %v978 = vsel %vm815, %v477, 0
        %v981 = vsel %vm815, %v478, 0
        %v984 = vsel %vm815, %v479, 0
        %v987 = vsel %vm815, %v480, 0
        %v990 = vsel %vm815, %v481, 0
        %v993 = vsel %vm815, %v482, 0
        %v996 = vsel %vm815, %v483, 0
        %v999 = vsel %vm815, %v484, 0
        %v1002 = vsel %vm815, %v485, 0
        %v1005 = vsel %vm815, %v486, 0
        %v1008 = vsel %vm815, %v487, 0
        %v1011 = vsel %vm815, %v488, 0
        %1013 = vmatpush.bf16.msra.mxu0 0
        %1014 = vmatpush.bf16.msra.mxu0 0
        %1015 = vmatpush.bf16.msra.mxu0 0
        %1016 = vmatpush.bf16.msra.mxu0 0
        %1017 = vmatpush.bf16.msra.mxu0 0
        %1018 = vmatpush.bf16.msra.mxu0 0
        %1019 = vmatpush.bf16.msra.mxu0 %v962
        %1020 = vmatpush.bf16.msra.mxu0 %v961
        %1021 = vmatmul.bf16.gmra.mxu0 %v966
        %v1022 = vpop.f32.mrf.mxu0
        %v1023 = vadd.f32 %v874, %v1022
        %v1024 = vpop.f32.mrf.mxu0
        %v1025 = vadd.f32 %v876, %v1024
        %1026 = vmatmul.bf16.gmra.mxu0 %v969
        %v1027 = vpop.f32.mrf.mxu0
        %v1028 = vadd.f32 %v879, %v1027
        %v1029 = vpop.f32.mrf.mxu0
        %v1030 = vadd.f32 %v881, %v1029
        %1031 = vmatmul.bf16.gmra.mxu0 %v972
        %v1032 = vpop.f32.mrf.mxu0
        %v1033 = vadd.f32 %v884, %v1032
        %v1034 = vpop.f32.mrf.mxu0
        %v1035 = vadd.f32 %v886, %v1034
        %1036 = vmatmul.bf16.gmra.mxu0 %v975
        %v1037 = vpop.f32.mrf.mxu0
        %v1038 = vadd.f32 %v889, %v1037
        %v1039 = vpop.f32.mrf.mxu0
        %v1040 = vadd.f32 %v891, %v1039
        %1041 = vmatmul.bf16.gmra.mxu0 %v978
        %v1042 = vpop.f32.mrf.mxu0
        %v1043 = vadd.f32 %v894, %v1042
        %v1044 = vpop.f32.mrf.mxu0
        %v1045 = vadd.f32 %v896, %v1044
        %1046 = vmatmul.bf16.gmra.mxu0 %v981
        %v1047 = vpop.f32.mrf.mxu0
        %v1048 = vadd.f32 %v899, %v1047
        %v1049 = vpop.f32.mrf.mxu0
        %v1050 = vadd.f32 %v901, %v1049
        %1051 = vmatmul.bf16.gmra.mxu0 %v984
        %v1052 = vpop.f32.mrf.mxu0
        %v1053 = vadd.f32 %v904, %v1052
        %v1054 = vpop.f32.mrf.mxu0
        %v1055 = vadd.f32 %v906, %v1054
        %1056 = vmatmul.bf16.gmra.mxu0 %v987
        %v1057 = vpop.f32.mrf.mxu0
        %v1058 = vadd.f32 %v909, %v1057
        %v1059 = vpop.f32.mrf.mxu0
        %v1060 = vadd.f32 %v911, %v1059
        %1061 = vmatmul.bf16.gmra.mxu0 %v990
        %v1062 = vpop.f32.mrf.mxu0
        %v1063 = vadd.f32 %v914, %v1062
        %v1064 = vpop.f32.mrf.mxu0
        %v1065 = vadd.f32 %v916, %v1064
        %1066 = vmatmul.bf16.gmra.mxu0 %v993
        %v1067 = vpop.f32.mrf.mxu0
        %v1068 = vadd.f32 %v919, %v1067
        %v1069 = vpop.f32.mrf.mxu0
        %v1070 = vadd.f32 %v921, %v1069
        %1071 = vmatmul.bf16.gmra.mxu0 %v996
        %v1072 = vpop.f32.mrf.mxu0
        %v1073 = vadd.f32 %v924, %v1072
        %v1074 = vpop.f32.mrf.mxu0
        %v1075 = vadd.f32 %v926, %v1074
        %1076 = vmatmul.bf16.gmra.mxu0 %v999
        %v1077 = vpop.f32.mrf.mxu0
        %v1078 = vadd.f32 %v929, %v1077
        %v1079 = vpop.f32.mrf.mxu0
        %v1080 = vadd.f32 %v931, %v1079
        %1081 = vmatmul.bf16.gmra.mxu0 %v1002
        %v1082 = vpop.f32.mrf.mxu0
        %v1083 = vadd.f32 %v934, %v1082
        %v1084 = vpop.f32.mrf.mxu0
        %v1085 = vadd.f32 %v936, %v1084
        %1086 = vmatmul.bf16.gmra.mxu0 %v1005
        %v1087 = vpop.f32.mrf.mxu0
        %v1088 = vadd.f32 %v939, %v1087
        %v1089 = vpop.f32.mrf.mxu0
        %v1090 = vadd.f32 %v941, %v1089
        %1091 = vmatmul.bf16.gmra.mxu0 %v1008
        %v1092 = vpop.f32.mrf.mxu0
        %v1093 = vadd.f32 %v944, %v1092
        %v1094 = vpop.f32.mrf.mxu0
        %v1095 = vadd.f32 %v946, %v1094
        %1096 = vmatmul.bf16.gmra.mxu0 %v1011
        %v1097 = vpop.f32.mrf.mxu0
        %v1098 = vadd.f32 %v949, %v1097
        %v1099 = vpop.f32.mrf.mxu0
        %v1100 = vadd.f32 %v951, %v1099
        %1101 = vdwg.mxu0
        %v1102 = vrot.slane %v441, 7
        %v1103 = vrot.slane %v442, 7
        %v1104 = vrot.slane %v443, 7
        %v1105 = vrot.slane %v444, 7
        %v1106 = vrot.slane %v445, 7
        %v1107 = vrot.slane %v446, 7
        %v1108 = vrot.slane %v447, 7
        %v1109 = vrot.slane %v448, 7
        %v1110 = vrot.slane %v449, 7
        %v1111 = vrot.slane %v450, 7
        %v1112 = vrot.slane %v451, 7
        %v1113 = vrot.slane %v452, 7
        %v1114 = vrot.slane %v453, 7
        %v1115 = vrot.slane %v454, 7
        %v1116 = vrot.slane %v455, 7
        %v1117 = vrot.slane %v456, 7
        %v1118 = vrot.slane %v457, 7
        %v1119 = vrot.slane %v458, 7
        %v1120 = vrot.slane %v459, 7
        %v1121 = vrot.slane %v460, 7
        %v1122 = vrot.slane %v461, 7
        %v1123 = vrot.slane %v462, 7
        %v1124 = vrot.slane %v463, 7
        %v1125 = vrot.slane %v464, 7
        %v1126 = vrot.slane %v465, 7
        %v1127 = vrot.slane %v466, 7
        %v1128 = vrot.slane %v467, 7
        %v1129 = vrot.slane %v468, 7
        %v1130 = vrot.slane %v469, 7
        %v1131 = vrot.slane %v470, 7
        %v1132 = vrot.slane %v471, 7
        %v1133 = vrot.slane %v472, 7
        %vm1134 = vcmp.lt.s32.totalorder %v409, 1
        %v1135 = vsel %vm1134, %v1132, %v1133
        %v1136 = vsel %vm1134, %v1131, %v1132
        %v1137 = vsel %vm1134, %v1130, %v1131
        %v1138 = vsel %vm1134, %v1129, %v1130
        %v1139 = vsel %vm1134, %v1128, %v1129
        %v1140 = vsel %vm1134, %v1127, %v1128
        %v1141 = vsel %vm1134, %v1126, %v1127
        %v1142 = vsel %vm1134, %v1125, %v1126
        %v1143 = vsel %vm1134, %v1124, %v1125
        %v1144 = vsel %vm1134, %v1123, %v1124
        %v1145 = vsel %vm1134, %v1122, %v1123
        %v1146 = vsel %vm1134, %v1121, %v1122
        %v1147 = vsel %vm1134, %v1120, %v1121
        %v1148 = vsel %vm1134, %v1119, %v1120
        %v1149 = vsel %vm1134, %v1118, %v1119
        %v1150 = vsel %vm1134, %v1117, %v1118
        %v1151 = vsel %vm1134, %v1116, %v1117
        %v1152 = vsel %vm1134, %v1115, %v1116
        %v1153 = vsel %vm1134, %v1114, %v1115
        %v1154 = vsel %vm1134, %v1113, %v1114
        %v1155 = vsel %vm1134, %v1112, %v1113
        %v1156 = vsel %vm1134, %v1111, %v1112
        %v1157 = vsel %vm1134, %v1110, %v1111
        %v1158 = vsel %vm1134, %v1109, %v1110
        %v1159 = vsel %vm1134, %v1108, %v1109
        %v1160 = vsel %vm1134, %v1107, %v1108
        %v1161 = vsel %vm1134, %v1106, %v1107
        %v1162 = vsel %vm1134, %v1105, %v1106
        %v1163 = vsel %vm1134, %v1104, %v1105
        %v1164 = vsel %vm1134, %v1103, %v1104
        %v1165 = vsel %vm1134, %v1102, %v1103
        %v1166 = vsel %vm1134, %v1133, %v1102
        %v1167 = vadd.s32 %v409, 4294967295
        %v1168 = vadd.s32 %v410, 4294967295
        %v1169 = vadd.s32 %v411, 4294967295
        %v1170 = vadd.s32 %v412, 4294967295
        %v1171 = vadd.s32 %v413, 4294967295
        %v1172 = vadd.s32 %v414, 4294967295
        %v1173 = vadd.s32 %v415, 4294967295
        %v1174 = vadd.s32 %v416, 4294967295
        %v1175 = vadd.s32 %v417, 4294967295
        %v1176 = vadd.s32 %v418, 4294967295
        %v1177 = vadd.s32 %v419, 4294967295
        %v1178 = vadd.s32 %v420, 4294967295
        %v1179 = vadd.s32 %v421, 4294967295
        %v1180 = vadd.s32 %v422, 4294967295
        %v1181 = vadd.s32 %v423, 4294967295
        %v1182 = vadd.s32 %v424, 4294967295
        %v1183 = vadd.s32 %v425, 4294967295
        %v1184 = vadd.s32 %v426, 4294967295
        %v1185 = vadd.s32 %v427, 4294967295
        %v1186 = vadd.s32 %v428, 4294967295
        %v1187 = vadd.s32 %v429, 4294967295
        %v1188 = vadd.s32 %v430, 4294967295
        %v1189 = vadd.s32 %v431, 4294967295
        %v1190 = vadd.s32 %v432, 4294967295
        %v1191 = vadd.s32 %v433, 4294967295
        %v1192 = vadd.s32 %v434, 4294967295
        %v1193 = vadd.s32 %v435, 4294967295
        %v1194 = vadd.s32 %v436, 4294967295
        %v1195 = vadd.s32 %v437, 4294967295
        %v1196 = vadd.s32 %v438, 4294967295
        %v1197 = vadd.s32 %v439, 4294967295
        %v1198 = vadd.s32 %v440, 4294967295
        %vm1199 = vcmp.ge.s32.totalorder %v1167, 0
        %vm1200 = vcmp.ge.s32.totalorder %v1168, 0
        %vm1201 = vcmp.ge.s32.totalorder %v1169, 0
        %vm1202 = vcmp.ge.s32.totalorder %v1170, 0
        %vm1203 = vcmp.ge.s32.totalorder %v1171, 0
        %vm1204 = vcmp.ge.s32.totalorder %v1172, 0
        %vm1205 = vcmp.ge.s32.totalorder %v1173, 0
        %vm1206 = vcmp.ge.s32.totalorder %v1174, 0
        %vm1207 = vcmp.ge.s32.totalorder %v1175, 0
        %vm1208 = vcmp.ge.s32.totalorder %v1176, 0
        %vm1209 = vcmp.ge.s32.totalorder %v1177, 0
        %vm1210 = vcmp.ge.s32.totalorder %v1178, 0
        %vm1211 = vcmp.ge.s32.totalorder %v1179, 0
        %vm1212 = vcmp.ge.s32.totalorder %v1180, 0
        %vm1213 = vcmp.ge.s32.totalorder %v1181, 0
        %vm1214 = vcmp.ge.s32.totalorder %v1182, 0
        %vm1215 = vcmp.ge.s32.totalorder %v1183, 0
        %vm1216 = vcmp.ge.s32.totalorder %v1184, 0
        %vm1217 = vcmp.ge.s32.totalorder %v1185, 0
        %vm1218 = vcmp.ge.s32.totalorder %v1186, 0
        %vm1219 = vcmp.ge.s32.totalorder %v1187, 0
        %vm1220 = vcmp.ge.s32.totalorder %v1188, 0
        %vm1221 = vcmp.ge.s32.totalorder %v1189, 0
        %vm1222 = vcmp.ge.s32.totalorder %v1190, 0
        %vm1223 = vcmp.ge.s32.totalorder %v1191, 0
        %vm1224 = vcmp.ge.s32.totalorder %v1192, 0
        %vm1225 = vcmp.ge.s32.totalorder %v1193, 0
        %vm1226 = vcmp.ge.s32.totalorder %v1194, 0
        %vm1227 = vcmp.ge.s32.totalorder %v1195, 0
        %vm1228 = vcmp.ge.s32.totalorder %v1196, 0
        %vm1229 = vcmp.ge.s32.totalorder %v1197, 0
        %vm1230 = vcmp.ge.s32.totalorder %v1198, 0
        %vm1231 = vcmp.lt.s32.totalorder %v1167, 256
        %vm1232 = vcmp.lt.s32.totalorder %v1168, 256
        %vm1233 = vcmp.lt.s32.totalorder %v1169, 256
        %vm1234 = vcmp.lt.s32.totalorder %v1170, 256
        %vm1235 = vcmp.lt.s32.totalorder %v1171, 256
        %vm1236 = vcmp.lt.s32.totalorder %v1172, 256
        %vm1237 = vcmp.lt.s32.totalorder %v1173, 256
        %vm1238 = vcmp.lt.s32.totalorder %v1174, 256
        %vm1239 = vcmp.lt.s32.totalorder %v1175, 256
        %vm1240 = vcmp.lt.s32.totalorder %v1176, 256
        %vm1241 = vcmp.lt.s32.totalorder %v1177, 256
        %vm1242 = vcmp.lt.s32.totalorder %v1178, 256
        %vm1243 = vcmp.lt.s32.totalorder %v1179, 256
        %vm1244 = vcmp.lt.s32.totalorder %v1180, 256
        %vm1245 = vcmp.lt.s32.totalorder %v1181, 256
        %vm1246 = vcmp.lt.s32.totalorder %v1182, 256
        %vm1247 = vcmp.lt.s32.totalorder %v1183, 256
        %vm1248 = vcmp.lt.s32.totalorder %v1184, 256
        %vm1249 = vcmp.lt.s32.totalorder %v1185, 256
        %vm1250 = vcmp.lt.s32.totalorder %v1186, 256
        %vm1251 = vcmp.lt.s32.totalorder %v1187, 256
        %vm1252 = vcmp.lt.s32.totalorder %v1188, 256
        %vm1253 = vcmp.lt.s32.totalorder %v1189, 256
        %vm1254 = vcmp.lt.s32.totalorder %v1190, 256
        %vm1255 = vcmp.lt.s32.totalorder %v1191, 256
        %vm1256 = vcmp.lt.s32.totalorder %v1192, 256
        %vm1257 = vcmp.lt.s32.totalorder %v1193, 256
        %vm1258 = vcmp.lt.s32.totalorder %v1194, 256
        %vm1259 = vcmp.lt.s32.totalorder %v1195, 256
        %vm1260 = vcmp.lt.s32.totalorder %v1196, 256
        %vm1261 = vcmp.lt.s32.totalorder %v1197, 256
        %vm1262 = vcmp.lt.s32.totalorder %v1198, 256
        %vm1263 = vmand %vm1199, %vm1231
        %vm1264 = vmand %vm1200, %vm1232
        %vm1265 = vmand %vm1201, %vm1233
        %vm1266 = vmand %vm1202, %vm1234
        %vm1267 = vmand %vm1203, %vm1235
        %vm1268 = vmand %vm1204, %vm1236
        %vm1269 = vmand %vm1205, %vm1237
        %vm1270 = vmand %vm1206, %vm1238
        %vm1271 = vmand %vm1207, %vm1239
        %vm1272 = vmand %vm1208, %vm1240
        %vm1273 = vmand %vm1209, %vm1241
        %vm1274 = vmand %vm1210, %vm1242
        %vm1275 = vmand %vm1211, %vm1243
        %vm1276 = vmand %vm1212, %vm1244
        %vm1277 = vmand %vm1213, %vm1245
        %vm1278 = vmand %vm1214, %vm1246
        %vm1279 = vmand %vm1215, %vm1247
        %vm1280 = vmand %vm1216, %vm1248
        %vm1281 = vmand %vm1217, %vm1249
        %vm1282 = vmand %vm1218, %vm1250
        %vm1283 = vmand %vm1219, %vm1251
        %vm1284 = vmand %vm1220, %vm1252
        %vm1285 = vmand %vm1221, %vm1253
        %vm1286 = vmand %vm1222, %vm1254
        %vm1287 = vmand %vm1223, %vm1255
        %vm1288 = vmand %vm1224, %vm1256
        %vm1289 = vmand %vm1225, %vm1257
        %vm1290 = vmand %vm1226, %vm1258
        %vm1291 = vmand %vm1227, %vm1259
        %vm1292 = vmand %vm1228, %vm1260
        %vm1293 = vmand %vm1229, %vm1261
        %vm1294 = vmand %vm1230, %vm1262
        %v1295 = vsel %vm1263, 1, 0
        %v1296 = vsel %vm1264, 1, 0
        %v1297 = vsel %vm1265, 1, 0
        %v1298 = vsel %vm1266, 1, 0
        %v1299 = vsel %vm1267, 1, 0
        %v1300 = vsel %vm1268, 1, 0
        %v1301 = vsel %vm1269, 1, 0
        %v1302 = vsel %vm1270, 1, 0
        %v1303 = vsel %vm1271, 1, 0
        %v1304 = vsel %vm1272, 1, 0
        %v1305 = vsel %vm1273, 1, 0
        %v1306 = vsel %vm1274, 1, 0
        %v1307 = vsel %vm1275, 1, 0
        %v1308 = vsel %vm1276, 1, 0
        %v1309 = vsel %vm1277, 1, 0
        %v1310 = vsel %vm1278, 1, 0
        %v1311 = vsel %vm1279, 1, 0
        %v1312 = vsel %vm1280, 1, 0
        %v1313 = vsel %vm1281, 1, 0
        %v1314 = vsel %vm1282, 1, 0
        %v1315 = vsel %vm1283, 1, 0
        %v1316 = vsel %vm1284, 1, 0
        %v1317 = vsel %vm1285, 1, 0
        %v1318 = vsel %vm1286, 1, 0
        %v1319 = vsel %vm1287, 1, 0
        %v1320 = vsel %vm1288, 1, 0
        %v1321 = vsel %vm1289, 1, 0
        %v1322 = vsel %vm1290, 1, 0
        %v1323 = vsel %vm1291, 1, 0
        %v1324 = vsel %vm1292, 1, 0
        %v1325 = vsel %vm1293, 1, 0
        %v1326 = vsel %vm1294, 1, 0
        %vm1327 = vcmp.eq.s32.totalorder %v1295, 1
        %vm1328 = vcmp.eq.s32.totalorder %v1296, 1
        %vm1329 = vcmp.eq.s32.totalorder %v1297, 1
        %vm1330 = vcmp.eq.s32.totalorder %v1298, 1
        %vm1331 = vcmp.eq.s32.totalorder %v1299, 1
        %vm1332 = vcmp.eq.s32.totalorder %v1300, 1
        %vm1333 = vcmp.eq.s32.totalorder %v1301, 1
        %vm1334 = vcmp.eq.s32.totalorder %v1302, 1
        %vm1335 = vcmp.eq.s32.totalorder %v1303, 1
        %vm1336 = vcmp.eq.s32.totalorder %v1304, 1
        %vm1337 = vcmp.eq.s32.totalorder %v1305, 1
        %vm1338 = vcmp.eq.s32.totalorder %v1306, 1
        %vm1339 = vcmp.eq.s32.totalorder %v1307, 1
        %vm1340 = vcmp.eq.s32.totalorder %v1308, 1
        %vm1341 = vcmp.eq.s32.totalorder %v1309, 1
        %vm1342 = vcmp.eq.s32.totalorder %v1310, 1
        %vm1343 = vcmp.eq.s32.totalorder %v1311, 1
        %vm1344 = vcmp.eq.s32.totalorder %v1312, 1
        %vm1345 = vcmp.eq.s32.totalorder %v1313, 1
        %vm1346 = vcmp.eq.s32.totalorder %v1314, 1
        %vm1347 = vcmp.eq.s32.totalorder %v1315, 1
        %vm1348 = vcmp.eq.s32.totalorder %v1316, 1
        %vm1349 = vcmp.eq.s32.totalorder %v1317, 1
        %vm1350 = vcmp.eq.s32.totalorder %v1318, 1
        %vm1351 = vcmp.eq.s32.totalorder %v1319, 1
        %vm1352 = vcmp.eq.s32.totalorder %v1320, 1
        %vm1353 = vcmp.eq.s32.totalorder %v1321, 1
        %vm1354 = vcmp.eq.s32.totalorder %v1322, 1
        %vm1355 = vcmp.eq.s32.totalorder %v1323, 1
        %vm1356 = vcmp.eq.s32.totalorder %v1324, 1
        %vm1357 = vcmp.eq.s32.totalorder %v1325, 1
        %vm1358 = vcmp.eq.s32.totalorder %v1326, 1
        %v1359 = vsel %vm1327, %v1166, 0.0
        %v1360 = vsel %vm1328, %v1165, 0.0
        %v1361 = vsel %vm1329, %v1164, 0.0
        %v1362 = vsel %vm1330, %v1163, 0.0
        %v1363 = vsel %vm1331, %v1162, 0.0
        %v1364 = vsel %vm1332, %v1161, 0.0
        %v1365 = vsel %vm1333, %v1160, 0.0
        %v1366 = vsel %vm1334, %v1159, 0.0
        %v1367 = vsel %vm1335, %v1158, 0.0
        %v1368 = vsel %vm1336, %v1157, 0.0
        %v1369 = vsel %vm1337, %v1156, 0.0
        %v1370 = vsel %vm1338, %v1155, 0.0
        %v1371 = vsel %vm1339, %v1154, 0.0
        %v1372 = vsel %vm1340, %v1153, 0.0
        %v1373 = vsel %vm1341, %v1152, 0.0
        %v1374 = vsel %vm1342, %v1151, 0.0
        %v1375 = vsel %vm1343, %v1150, 0.0
        %v1376 = vsel %vm1344, %v1149, 0.0
        %v1377 = vsel %vm1345, %v1148, 0.0
        %v1378 = vsel %vm1346, %v1147, 0.0
        %v1379 = vsel %vm1347, %v1146, 0.0
        %v1380 = vsel %vm1348, %v1145, 0.0
        %v1381 = vsel %vm1349, %v1144, 0.0
        %v1382 = vsel %vm1350, %v1143, 0.0
        %v1383 = vsel %vm1351, %v1142, 0.0
        %v1384 = vsel %vm1352, %v1141, 0.0
        %v1385 = vsel %vm1353, %v1140, 0.0
        %v1386 = vsel %vm1354, %v1139, 0.0
        %v1387 = vsel %vm1355, %v1138, 0.0
        %v1388 = vsel %vm1356, %v1137, 0.0
        %v1389 = vsel %vm1357, %v1136, 0.0
        %v1390 = vsel %vm1358, %v1135, 0.0
        %v1391 = vpack.c.bf16 %v1360, %v1359
        %v1392 = vpack.c.bf16 %v1362, %v1361
        %v1393 = vpack.c.bf16 %v1364, %v1363
        %v1394 = vpack.c.bf16 %v1366, %v1365
        %v1395 = vpack.c.bf16 %v1368, %v1367
        %v1396 = vpack.c.bf16 %v1370, %v1369
        %v1397 = vpack.c.bf16 %v1372, %v1371
        %v1398 = vpack.c.bf16 %v1374, %v1373
        %v1399 = vpack.c.bf16 %v1376, %v1375
        %v1400 = vpack.c.bf16 %v1378, %v1377
        %v1401 = vpack.c.bf16 %v1380, %v1379
        %v1402 = vpack.c.bf16 %v1382, %v1381
        %v1403 = vpack.c.bf16 %v1384, %v1383
        %v1404 = vpack.c.bf16 %v1386, %v1385
        %v1405 = vpack.c.bf16 %v1388, %v1387
        %v1406 = vpack.c.bf16 %v1390, %v1389
        %s1407 = scalar_lea.vmem %s1, 16
        %v1408 = vld [vmem:[%s1407] sm:$0xf]
        %v1409 = vld [vmem:[%s1407 + $0x4] sm:$0xf]
        %v1410 = vld [vmem:[%s1407 + $0x8] sm:$0xf]
        %v1411 = vld [vmem:[%s1407 + $0xc] sm:$0xf]
        %v1416 = vunpack.c.l.b16 %v1408
        %v1417 = vunpack.c.l.b16 %v1409
        %v1418 = vunpack.c.l.b16 %v1410
        %v1419 = vunpack.c.l.b16 %v1411
        %v1420 = vpack.c.b16 %v1417, %v1416
        %v1421 = vpack.c.b16 %v1419, %v1418
        %v1425 = vsel %vm815, %v1391, 0
        %v1428 = vsel %vm815, %v1392, 0
        %v1431 = vsel %vm815, %v1393, 0
        %v1434 = vsel %vm815, %v1394, 0
        %v1437 = vsel %vm815, %v1395, 0
        %v1440 = vsel %vm815, %v1396, 0
        %v1443 = vsel %vm815, %v1397, 0
        %v1446 = vsel %vm815, %v1398, 0
        %v1449 = vsel %vm815, %v1399, 0
        %v1452 = vsel %vm815, %v1400, 0
        %v1455 = vsel %vm815, %v1401, 0
        %v1458 = vsel %vm815, %v1402, 0
        %v1461 = vsel %vm815, %v1403, 0
        %v1464 = vsel %vm815, %v1404, 0
        %v1467 = vsel %vm815, %v1405, 0
        %v1470 = vsel %vm815, %v1406, 0
        %1472 = vmatpush.bf16.msra.mxu0 0
        %1473 = vmatpush.bf16.msra.mxu0 0
        %1474 = vmatpush.bf16.msra.mxu0 0
        %1475 = vmatpush.bf16.msra.mxu0 0
        %1476 = vmatpush.bf16.msra.mxu0 0
        %1477 = vmatpush.bf16.msra.mxu0 0
        %1478 = vmatpush.bf16.msra.mxu0 %v1421
        %1479 = vmatpush.bf16.msra.mxu0 %v1420
        %1480 = vmatmul.bf16.gmra.mxu0 %v1425
        %v1481 = vpop.f32.mrf.mxu0
        %v1482 = vadd.f32 0.0, %v1481
        %v1483 = vpop.f32.mrf.mxu0
        %v1484 = vadd.f32 0.0, %v1483
        %1485 = vmatmul.bf16.gmra.mxu0 %v1428
        %v1486 = vpop.f32.mrf.mxu0
        %v1487 = vadd.f32 0.0, %v1486
        %v1488 = vpop.f32.mrf.mxu0
        %v1489 = vadd.f32 0.0, %v1488
        %1490 = vmatmul.bf16.gmra.mxu0 %v1431
        %v1491 = vpop.f32.mrf.mxu0
        %v1492 = vadd.f32 0.0, %v1491
        %v1493 = vpop.f32.mrf.mxu0
        %v1494 = vadd.f32 0.0, %v1493
        %1495 = vmatmul.bf16.gmra.mxu0 %v1434
        %v1496 = vpop.f32.mrf.mxu0
        %v1497 = vadd.f32 0.0, %v1496
        %v1498 = vpop.f32.mrf.mxu0
        %v1499 = vadd.f32 0.0, %v1498
        %1500 = vmatmul.bf16.gmra.mxu0 %v1437
        %v1501 = vpop.f32.mrf.mxu0
        %v1502 = vadd.f32 0.0, %v1501
        %v1503 = vpop.f32.mrf.mxu0
        %v1504 = vadd.f32 0.0, %v1503
        %1505 = vmatmul.bf16.gmra.mxu0 %v1440
        %v1506 = vpop.f32.mrf.mxu0
        %v1507 = vadd.f32 0.0, %v1506
        %v1508 = vpop.f32.mrf.mxu0
        %v1509 = vadd.f32 0.0, %v1508
        %1510 = vmatmul.bf16.gmra.mxu0 %v1443
        %v1511 = vpop.f32.mrf.mxu0
        %v1512 = vadd.f32 0.0, %v1511
        %v1513 = vpop.f32.mrf.mxu0
        %v1514 = vadd.f32 0.0, %v1513
        %1515 = vmatmul.bf16.gmra.mxu0 %v1446
        %v1516 = vpop.f32.mrf.mxu0
        %v1517 = vadd.f32 0.0, %v1516
        %v1518 = vpop.f32.mrf.mxu0
        %v1519 = vadd.f32 0.0, %v1518
        %1520 = vmatmul.bf16.gmra.mxu0 %v1449
        %v1521 = vpop.f32.mrf.mxu0
        %v1522 = vadd.f32 0.0, %v1521
        %v1523 = vpop.f32.mrf.mxu0
        %v1524 = vadd.f32 0.0, %v1523
        %1525 = vmatmul.bf16.gmra.mxu0 %v1452
        %v1526 = vpop.f32.mrf.mxu0
        %v1527 = vadd.f32 0.0, %v1526
        %v1528 = vpop.f32.mrf.mxu0
        %v1529 = vadd.f32 0.0, %v1528
        %1530 = vmatmul.bf16.gmra.mxu0 %v1455
        %v1531 = vpop.f32.mrf.mxu0
        %v1532 = vadd.f32 0.0, %v1531
        %v1533 = vpop.f32.mrf.mxu0
        %v1534 = vadd.f32 0.0, %v1533
        %1535 = vmatmul.bf16.gmra.mxu0 %v1458
        %v1536 = vpop.f32.mrf.mxu0
        %v1537 = vadd.f32 0.0, %v1536
        %v1538 = vpop.f32.mrf.mxu0
        %v1539 = vadd.f32 0.0, %v1538
        %1540 = vmatmul.bf16.gmra.mxu0 %v1461
        %v1541 = vpop.f32.mrf.mxu0
        %v1542 = vadd.f32 0.0, %v1541
        %v1543 = vpop.f32.mrf.mxu0
        %v1544 = vadd.f32 0.0, %v1543
        %1545 = vmatmul.bf16.gmra.mxu0 %v1464
        %v1546 = vpop.f32.mrf.mxu0
        %v1547 = vadd.f32 0.0, %v1546
        %v1548 = vpop.f32.mrf.mxu0
        %v1549 = vadd.f32 0.0, %v1548
        %1550 = vmatmul.bf16.gmra.mxu0 %v1467
        %v1551 = vpop.f32.mrf.mxu0
        %v1552 = vadd.f32 0.0, %v1551
        %v1553 = vpop.f32.mrf.mxu0
        %v1554 = vadd.f32 0.0, %v1553
        %1555 = vmatmul.bf16.gmra.mxu0 %v1470
        %v1556 = vpop.f32.mrf.mxu0
        %v1557 = vadd.f32 0.0, %v1556
        %v1558 = vpop.f32.mrf.mxu0
        %v1559 = vadd.f32 0.0, %v1558
        %1560 = vdwg.mxu0
        %v1561 = vadd.f32 %v1023, %v1482
        %v1562 = vadd.f32 %v1025, %v1484
        %v1563 = vadd.f32 %v1028, %v1487
        %v1564 = vadd.f32 %v1030, %v1489
        %v1565 = vadd.f32 %v1033, %v1492
        %v1566 = vadd.f32 %v1035, %v1494
        %v1567 = vadd.f32 %v1038, %v1497
        %v1568 = vadd.f32 %v1040, %v1499
        %v1569 = vadd.f32 %v1043, %v1502
        %v1570 = vadd.f32 %v1045, %v1504
        %v1571 = vadd.f32 %v1048, %v1507
        %v1572 = vadd.f32 %v1050, %v1509
        %v1573 = vadd.f32 %v1053, %v1512
        %v1574 = vadd.f32 %v1055, %v1514
        %v1575 = vadd.f32 %v1058, %v1517
        %v1576 = vadd.f32 %v1060, %v1519
        %v1577 = vadd.f32 %v1063, %v1522
        %v1578 = vadd.f32 %v1065, %v1524
        %v1579 = vadd.f32 %v1068, %v1527
        %v1580 = vadd.f32 %v1070, %v1529
        %v1581 = vadd.f32 %v1073, %v1532
        %v1582 = vadd.f32 %v1075, %v1534
        %v1583 = vadd.f32 %v1078, %v1537
        %v1584 = vadd.f32 %v1080, %v1539
        %v1585 = vadd.f32 %v1083, %v1542
        %v1586 = vadd.f32 %v1085, %v1544
        %v1587 = vadd.f32 %v1088, %v1547
        %v1588 = vadd.f32 %v1090, %v1549
        %v1589 = vadd.f32 %v1093, %v1552
        %v1590 = vadd.f32 %v1095, %v1554
        %v1591 = vadd.f32 %v1098, %v1557
        %v1592 = vadd.f32 %v1100, %v1559
        %v1593 = vrot.slane %v441, 1
        %v1594 = vrot.slane %v442, 1
        %v1595 = vrot.slane %v443, 1
        %v1596 = vrot.slane %v444, 1
        %v1597 = vrot.slane %v445, 1
        %v1598 = vrot.slane %v446, 1
        %v1599 = vrot.slane %v447, 1
        %v1600 = vrot.slane %v448, 1
        %v1601 = vrot.slane %v449, 1
        %v1602 = vrot.slane %v450, 1
        %v1603 = vrot.slane %v451, 1
        %v1604 = vrot.slane %v452, 1
        %v1605 = vrot.slane %v453, 1
        %v1606 = vrot.slane %v454, 1
        %v1607 = vrot.slane %v455, 1
        %v1608 = vrot.slane %v456, 1
        %v1609 = vrot.slane %v457, 1
        %v1610 = vrot.slane %v458, 1
        %v1611 = vrot.slane %v459, 1
        %v1612 = vrot.slane %v460, 1
        %v1613 = vrot.slane %v461, 1
        %v1614 = vrot.slane %v462, 1
        %v1615 = vrot.slane %v463, 1
        %v1616 = vrot.slane %v464, 1
        %v1617 = vrot.slane %v465, 1
        %v1618 = vrot.slane %v466, 1
        %v1619 = vrot.slane %v467, 1
        %v1620 = vrot.slane %v468, 1
        %v1621 = vrot.slane %v469, 1
        %v1622 = vrot.slane %v470, 1
        %v1623 = vrot.slane %v471, 1
        %v1624 = vrot.slane %v472, 1
        %vm1625 = vcmp.lt.s32.totalorder %v409, 7
        %v1626 = vsel %vm1625, %v1623, %v1624
        %v1627 = vsel %vm1625, %v1622, %v1623
        %v1628 = vsel %vm1625, %v1621, %v1622
        %v1629 = vsel %vm1625, %v1620, %v1621
        %v1630 = vsel %vm1625, %v1619, %v1620
        %v1631 = vsel %vm1625, %v1618, %v1619
        %v1632 = vsel %vm1625, %v1617, %v1618
        %v1633 = vsel %vm1625, %v1616, %v1617
        %v1634 = vsel %vm1625, %v1615, %v1616
        %v1635 = vsel %vm1625, %v1614, %v1615
        %v1636 = vsel %vm1625, %v1613, %v1614
        %v1637 = vsel %vm1625, %v1612, %v1613
        %v1638 = vsel %vm1625, %v1611, %v1612
        %v1639 = vsel %vm1625, %v1610, %v1611
        %v1640 = vsel %vm1625, %v1609, %v1610
        %v1641 = vsel %vm1625, %v1608, %v1609
        %v1642 = vsel %vm1625, %v1607, %v1608
        %v1643 = vsel %vm1625, %v1606, %v1607
        %v1644 = vsel %vm1625, %v1605, %v1606
        %v1645 = vsel %vm1625, %v1604, %v1605
        %v1646 = vsel %vm1625, %v1603, %v1604
        %v1647 = vsel %vm1625, %v1602, %v1603
        %v1648 = vsel %vm1625, %v1601, %v1602
        %v1649 = vsel %vm1625, %v1600, %v1601
        %v1650 = vsel %vm1625, %v1599, %v1600
        %v1651 = vsel %vm1625, %v1598, %v1599
        %v1652 = vsel %vm1625, %v1597, %v1598
        %v1653 = vsel %vm1625, %v1596, %v1597
        %v1654 = vsel %vm1625, %v1595, %v1596
        %v1655 = vsel %vm1625, %v1594, %v1595
        %v1656 = vsel %vm1625, %v1593, %v1594
        %v1657 = vsel %vm1625, %v1624, %v1593
        %v1658 = vadd.s32 %v409, 1
        %v1659 = vadd.s32 %v410, 1
        %v1660 = vadd.s32 %v411, 1
        %v1661 = vadd.s32 %v412, 1
        %v1662 = vadd.s32 %v413, 1
        %v1663 = vadd.s32 %v414, 1
        %v1664 = vadd.s32 %v415, 1
        %v1665 = vadd.s32 %v416, 1
        %v1666 = vadd.s32 %v417, 1
        %v1667 = vadd.s32 %v418, 1
        %v1668 = vadd.s32 %v419, 1
        %v1669 = vadd.s32 %v420, 1
        %v1670 = vadd.s32 %v421, 1
        %v1671 = vadd.s32 %v422, 1
        %v1672 = vadd.s32 %v423, 1
        %v1673 = vadd.s32 %v424, 1
        %v1674 = vadd.s32 %v425, 1
        %v1675 = vadd.s32 %v426, 1
        %v1676 = vadd.s32 %v427, 1
        %v1677 = vadd.s32 %v428, 1
        %v1678 = vadd.s32 %v429, 1
        %v1679 = vadd.s32 %v430, 1
        %v1680 = vadd.s32 %v431, 1
        %v1681 = vadd.s32 %v432, 1
        %v1682 = vadd.s32 %v433, 1
        %v1683 = vadd.s32 %v434, 1
        %v1684 = vadd.s32 %v435, 1
        %v1685 = vadd.s32 %v436, 1
        %v1686 = vadd.s32 %v437, 1
        %v1687 = vadd.s32 %v438, 1
        %v1688 = vadd.s32 %v439, 1
        %v1689 = vadd.s32 %v440, 1
        %vm1690 = vcmp.ge.s32.totalorder %v1658, 0
        %vm1691 = vcmp.ge.s32.totalorder %v1659, 0
        %vm1692 = vcmp.ge.s32.totalorder %v1660, 0
        %vm1693 = vcmp.ge.s32.totalorder %v1661, 0
        %vm1694 = vcmp.ge.s32.totalorder %v1662, 0
        %vm1695 = vcmp.ge.s32.totalorder %v1663, 0
        %vm1696 = vcmp.ge.s32.totalorder %v1664, 0
        %vm1697 = vcmp.ge.s32.totalorder %v1665, 0
        %vm1698 = vcmp.ge.s32.totalorder %v1666, 0
        %vm1699 = vcmp.ge.s32.totalorder %v1667, 0
        %vm1700 = vcmp.ge.s32.totalorder %v1668, 0
        %vm1701 = vcmp.ge.s32.totalorder %v1669, 0
        %vm1702 = vcmp.ge.s32.totalorder %v1670, 0
        %vm1703 = vcmp.ge.s32.totalorder %v1671, 0
        %vm1704 = vcmp.ge.s32.totalorder %v1672, 0
        %vm1705 = vcmp.ge.s32.totalorder %v1673, 0
        %vm1706 = vcmp.ge.s32.totalorder %v1674, 0
        %vm1707 = vcmp.ge.s32.totalorder %v1675, 0
        %vm1708 = vcmp.ge.s32.totalorder %v1676, 0
        %vm1709 = vcmp.ge.s32.totalorder %v1677, 0
        %vm1710 = vcmp.ge.s32.totalorder %v1678, 0
        %vm1711 = vcmp.ge.s32.totalorder %v1679, 0
        %vm1712 = vcmp.ge.s32.totalorder %v1680, 0
        %vm1713 = vcmp.ge.s32.totalorder %v1681, 0
        %vm1714 = vcmp.ge.s32.totalorder %v1682, 0
        %vm1715 = vcmp.ge.s32.totalorder %v1683, 0
        %vm1716 = vcmp.ge.s32.totalorder %v1684, 0
        %vm1717 = vcmp.ge.s32.totalorder %v1685, 0
        %vm1718 = vcmp.ge.s32.totalorder %v1686, 0
        %vm1719 = vcmp.ge.s32.totalorder %v1687, 0
        %vm1720 = vcmp.ge.s32.totalorder %v1688, 0
        %vm1721 = vcmp.ge.s32.totalorder %v1689, 0
        %vm1722 = vcmp.lt.s32.totalorder %v1658, 256
        %vm1723 = vcmp.lt.s32.totalorder %v1659, 256
        %vm1724 = vcmp.lt.s32.totalorder %v1660, 256
        %vm1725 = vcmp.lt.s32.totalorder %v1661, 256
        %vm1726 = vcmp.lt.s32.totalorder %v1662, 256
        %vm1727 = vcmp.lt.s32.totalorder %v1663, 256
        %vm1728 = vcmp.lt.s32.totalorder %v1664, 256
        %vm1729 = vcmp.lt.s32.totalorder %v1665, 256
        %vm1730 = vcmp.lt.s32.totalorder %v1666, 256
        %vm1731 = vcmp.lt.s32.totalorder %v1667, 256
        %vm1732 = vcmp.lt.s32.totalorder %v1668, 256
        %vm1733 = vcmp.lt.s32.totalorder %v1669, 256
        %vm1734 = vcmp.lt.s32.totalorder %v1670, 256
        %vm1735 = vcmp.lt.s32.totalorder %v1671, 256
        %vm1736 = vcmp.lt.s32.totalorder %v1672, 256
        %vm1737 = vcmp.lt.s32.totalorder %v1673, 256
        %vm1738 = vcmp.lt.s32.totalorder %v1674, 256
        %vm1739 = vcmp.lt.s32.totalorder %v1675, 256
        %vm1740 = vcmp.lt.s32.totalorder %v1676, 256
        %vm1741 = vcmp.lt.s32.totalorder %v1677, 256
        %vm1742 = vcmp.lt.s32.totalorder %v1678, 256
        %vm1743 = vcmp.lt.s32.totalorder %v1679, 256
        %vm1744 = vcmp.lt.s32.totalorder %v1680, 256
        %vm1745 = vcmp.lt.s32.totalorder %v1681, 256
        %vm1746 = vcmp.lt.s32.totalorder %v1682, 256
        %vm1747 = vcmp.lt.s32.totalorder %v1683, 256
        %vm1748 = vcmp.lt.s32.totalorder %v1684, 256
        %vm1749 = vcmp.lt.s32.totalorder %v1685, 256
        %vm1750 = vcmp.lt.s32.totalorder %v1686, 256
        %vm1751 = vcmp.lt.s32.totalorder %v1687, 256
        %vm1752 = vcmp.lt.s32.totalorder %v1688, 256
        %vm1753 = vcmp.lt.s32.totalorder %v1689, 256
        %vm1754 = vmand %vm1690, %vm1722
        %vm1755 = vmand %vm1691, %vm1723
        %vm1756 = vmand %vm1692, %vm1724
        %vm1757 = vmand %vm1693, %vm1725
        %vm1758 = vmand %vm1694, %vm1726
        %vm1759 = vmand %vm1695, %vm1727
        %vm1760 = vmand %vm1696, %vm1728
        %vm1761 = vmand %vm1697, %vm1729
        %vm1762 = vmand %vm1698, %vm1730
        %vm1763 = vmand %vm1699, %vm1731
        %vm1764 = vmand %vm1700, %vm1732
        %vm1765 = vmand %vm1701, %vm1733
        %vm1766 = vmand %vm1702, %vm1734
        %vm1767 = vmand %vm1703, %vm1735
        %vm1768 = vmand %vm1704, %vm1736
        %vm1769 = vmand %vm1705, %vm1737
        %vm1770 = vmand %vm1706, %vm1738
        %vm1771 = vmand %vm1707, %vm1739
        %vm1772 = vmand %vm1708, %vm1740
        %vm1773 = vmand %vm1709, %vm1741
        %vm1774 = vmand %vm1710, %vm1742
        %vm1775 = vmand %vm1711, %vm1743
        %vm1776 = vmand %vm1712, %vm1744
        %vm1777 = vmand %vm1713, %vm1745
        %vm1778 = vmand %vm1714, %vm1746
        %vm1779 = vmand %vm1715, %vm1747
        %vm1780 = vmand %vm1716, %vm1748
        %vm1781 = vmand %vm1717, %vm1749
        %vm1782 = vmand %vm1718, %vm1750
        %vm1783 = vmand %vm1719, %vm1751
        %vm1784 = vmand %vm1720, %vm1752
        %vm1785 = vmand %vm1721, %vm1753
        %v1786 = vsel %vm1754, 1, 0
        %v1787 = vsel %vm1755, 1, 0
        %v1788 = vsel %vm1756, 1, 0
        %v1789 = vsel %vm1757, 1, 0
        %v1790 = vsel %vm1758, 1, 0
        %v1791 = vsel %vm1759, 1, 0
        %v1792 = vsel %vm1760, 1, 0
        %v1793 = vsel %vm1761, 1, 0
        %v1794 = vsel %vm1762, 1, 0
        %v1795 = vsel %vm1763, 1, 0
        %v1796 = vsel %vm1764, 1, 0
        %v1797 = vsel %vm1765, 1, 0
        %v1798 = vsel %vm1766, 1, 0
        %v1799 = vsel %vm1767, 1, 0
        %v1800 = vsel %vm1768, 1, 0
        %v1801 = vsel %vm1769, 1, 0
        %v1802 = vsel %vm1770, 1, 0
        %v1803 = vsel %vm1771, 1, 0
        %v1804 = vsel %vm1772, 1, 0
        %v1805 = vsel %vm1773, 1, 0
        %v1806 = vsel %vm1774, 1, 0
        %v1807 = vsel %vm1775, 1, 0
        %v1808 = vsel %vm1776, 1, 0
        %v1809 = vsel %vm1777, 1, 0
        %v1810 = vsel %vm1778, 1, 0
        %v1811 = vsel %vm1779, 1, 0
        %v1812 = vsel %vm1780, 1, 0
        %v1813 = vsel %vm1781, 1, 0
        %v1814 = vsel %vm1782, 1, 0
        %v1815 = vsel %vm1783, 1, 0
        %v1816 = vsel %vm1784, 1, 0
        %v1817 = vsel %vm1785, 1, 0
        %vm1818 = vcmp.eq.s32.totalorder %v1786, 1
        %vm1819 = vcmp.eq.s32.totalorder %v1787, 1
        %vm1820 = vcmp.eq.s32.totalorder %v1788, 1
        %vm1821 = vcmp.eq.s32.totalorder %v1789, 1
        %vm1822 = vcmp.eq.s32.totalorder %v1790, 1
        %vm1823 = vcmp.eq.s32.totalorder %v1791, 1
        %vm1824 = vcmp.eq.s32.totalorder %v1792, 1
        %vm1825 = vcmp.eq.s32.totalorder %v1793, 1
        %vm1826 = vcmp.eq.s32.totalorder %v1794, 1
        %vm1827 = vcmp.eq.s32.totalorder %v1795, 1
        %vm1828 = vcmp.eq.s32.totalorder %v1796, 1
        %vm1829 = vcmp.eq.s32.totalorder %v1797, 1
        %vm1830 = vcmp.eq.s32.totalorder %v1798, 1
        %vm1831 = vcmp.eq.s32.totalorder %v1799, 1
        %vm1832 = vcmp.eq.s32.totalorder %v1800, 1
        %vm1833 = vcmp.eq.s32.totalorder %v1801, 1
        %vm1834 = vcmp.eq.s32.totalorder %v1802, 1
        %vm1835 = vcmp.eq.s32.totalorder %v1803, 1
        %vm1836 = vcmp.eq.s32.totalorder %v1804, 1
        %vm1837 = vcmp.eq.s32.totalorder %v1805, 1
        %vm1838 = vcmp.eq.s32.totalorder %v1806, 1
        %vm1839 = vcmp.eq.s32.totalorder %v1807, 1
        %vm1840 = vcmp.eq.s32.totalorder %v1808, 1
        %vm1841 = vcmp.eq.s32.totalorder %v1809, 1
        %vm1842 = vcmp.eq.s32.totalorder %v1810, 1
        %vm1843 = vcmp.eq.s32.totalorder %v1811, 1
        %vm1844 = vcmp.eq.s32.totalorder %v1812, 1
        %vm1845 = vcmp.eq.s32.totalorder %v1813, 1
        %vm1846 = vcmp.eq.s32.totalorder %v1814, 1
        %vm1847 = vcmp.eq.s32.totalorder %v1815, 1
        %vm1848 = vcmp.eq.s32.totalorder %v1816, 1
        %vm1849 = vcmp.eq.s32.totalorder %v1817, 1
        %v1850 = vsel %vm1818, %v1656, 0.0
        %v1851 = vsel %vm1819, %v1655, 0.0
        %v1852 = vsel %vm1820, %v1654, 0.0
        %v1853 = vsel %vm1821, %v1653, 0.0
        %v1854 = vsel %vm1822, %v1652, 0.0
        %v1855 = vsel %vm1823, %v1651, 0.0
        %v1856 = vsel %vm1824, %v1650, 0.0
        %v1857 = vsel %vm1825, %v1649, 0.0
        %v1858 = vsel %vm1826, %v1648, 0.0
        %v1859 = vsel %vm1827, %v1647, 0.0
        %v1860 = vsel %vm1828, %v1646, 0.0
        %v1861 = vsel %vm1829, %v1645, 0.0
        %v1862 = vsel %vm1830, %v1644, 0.0
        %v1863 = vsel %vm1831, %v1643, 0.0
        %v1864 = vsel %vm1832, %v1642, 0.0
        %v1865 = vsel %vm1833, %v1641, 0.0
        %v1866 = vsel %vm1834, %v1640, 0.0
        %v1867 = vsel %vm1835, %v1639, 0.0
        %v1868 = vsel %vm1836, %v1638, 0.0
        %v1869 = vsel %vm1837, %v1637, 0.0
        %v1870 = vsel %vm1838, %v1636, 0.0
        %v1871 = vsel %vm1839, %v1635, 0.0
        %v1872 = vsel %vm1840, %v1634, 0.0
        %v1873 = vsel %vm1841, %v1633, 0.0
        %v1874 = vsel %vm1842, %v1632, 0.0
        %v1875 = vsel %vm1843, %v1631, 0.0
        %v1876 = vsel %vm1844, %v1630, 0.0
        %v1877 = vsel %vm1845, %v1629, 0.0
        %v1878 = vsel %vm1846, %v1628, 0.0
        %v1879 = vsel %vm1847, %v1627, 0.0
        %v1880 = vsel %vm1848, %v1626, 0.0
        %v1881 = vsel %vm1849, %v1657, 0.0
        %v1882 = vpack.c.bf16 %v1851, %v1850
        %v1883 = vpack.c.bf16 %v1853, %v1852
        %v1884 = vpack.c.bf16 %v1855, %v1854
        %v1885 = vpack.c.bf16 %v1857, %v1856
        %v1886 = vpack.c.bf16 %v1859, %v1858
        %v1887 = vpack.c.bf16 %v1861, %v1860
        %v1888 = vpack.c.bf16 %v1863, %v1862
        %v1889 = vpack.c.bf16 %v1865, %v1864
        %v1890 = vpack.c.bf16 %v1867, %v1866
        %v1891 = vpack.c.bf16 %v1869, %v1868
        %v1892 = vpack.c.bf16 %v1871, %v1870
        %v1893 = vpack.c.bf16 %v1873, %v1872
        %v1894 = vpack.c.bf16 %v1875, %v1874
        %v1895 = vpack.c.bf16 %v1877, %v1876
        %v1896 = vpack.c.bf16 %v1879, %v1878
        %v1897 = vpack.c.bf16 %v1881, %v1880
        %s1898 = scalar_lea.vmem %s1, 48
        %v1899 = vld [vmem:[%s1898] sm:$0xf]
        %v1900 = vld [vmem:[%s1898 + $0x4] sm:$0xf]
        %v1901 = vld [vmem:[%s1898 + $0x8] sm:$0xf]
        %v1902 = vld [vmem:[%s1898 + $0xc] sm:$0xf]
        %v1907 = vunpack.c.l.b16 %v1899
        %v1908 = vunpack.c.l.b16 %v1900
        %v1909 = vunpack.c.l.b16 %v1901
        %v1910 = vunpack.c.l.b16 %v1902
        %v1911 = vpack.c.b16 %v1908, %v1907
        %v1912 = vpack.c.b16 %v1910, %v1909
        %v1916 = vsel %vm815, %v1882, 0
        %v1919 = vsel %vm815, %v1883, 0
        %v1922 = vsel %vm815, %v1884, 0
        %v1925 = vsel %vm815, %v1885, 0
        %v1928 = vsel %vm815, %v1886, 0
        %v1931 = vsel %vm815, %v1887, 0
        %v1934 = vsel %vm815, %v1888, 0
        %v1937 = vsel %vm815, %v1889, 0
        %v1940 = vsel %vm815, %v1890, 0
        %v1943 = vsel %vm815, %v1891, 0
        %v1946 = vsel %vm815, %v1892, 0
        %v1949 = vsel %vm815, %v1893, 0
        %v1952 = vsel %vm815, %v1894, 0
        %v1955 = vsel %vm815, %v1895, 0
        %v1958 = vsel %vm815, %v1896, 0
        %v1961 = vsel %vm815, %v1897, 0
        %1963 = vmatpush.bf16.msra.mxu0 0
        %1964 = vmatpush.bf16.msra.mxu0 0
        %1965 = vmatpush.bf16.msra.mxu0 0
        %1966 = vmatpush.bf16.msra.mxu0 0
        %1967 = vmatpush.bf16.msra.mxu0 0
        %1968 = vmatpush.bf16.msra.mxu0 0
        %1969 = vmatpush.bf16.msra.mxu0 %v1912
        %1970 = vmatpush.bf16.msra.mxu0 %v1911
        %1971 = vmatmul.bf16.gmra.mxu0 %v1916
        %v1972 = vpop.f32.mrf.mxu0
        %v1973 = vadd.f32 0.0, %v1972
        %v1974 = vpop.f32.mrf.mxu0
        %v1975 = vadd.f32 0.0, %v1974
        %1976 = vmatmul.bf16.gmra.mxu0 %v1919
        %v1977 = vpop.f32.mrf.mxu0
        %v1978 = vadd.f32 0.0, %v1977
        %v1979 = vpop.f32.mrf.mxu0
        %v1980 = vadd.f32 0.0, %v1979
        %1981 = vmatmul.bf16.gmra.mxu0 %v1922
        %v1982 = vpop.f32.mrf.mxu0
        %v1983 = vadd.f32 0.0, %v1982
        %v1984 = vpop.f32.mrf.mxu0
        %v1985 = vadd.f32 0.0, %v1984
        %1986 = vmatmul.bf16.gmra.mxu0 %v1925
        %v1987 = vpop.f32.mrf.mxu0
        %v1988 = vadd.f32 0.0, %v1987
        %v1989 = vpop.f32.mrf.mxu0
        %v1990 = vadd.f32 0.0, %v1989
        %1991 = vmatmul.bf16.gmra.mxu0 %v1928
        %v1992 = vpop.f32.mrf.mxu0
        %v1993 = vadd.f32 0.0, %v1992
        %v1994 = vpop.f32.mrf.mxu0
        %v1995 = vadd.f32 0.0, %v1994
        %1996 = vmatmul.bf16.gmra.mxu0 %v1931
        %v1997 = vpop.f32.mrf.mxu0
        %v1998 = vadd.f32 0.0, %v1997
        %v1999 = vpop.f32.mrf.mxu0
        %v2000 = vadd.f32 0.0, %v1999
        %2001 = vmatmul.bf16.gmra.mxu0 %v1934
        %v2002 = vpop.f32.mrf.mxu0
        %v2003 = vadd.f32 0.0, %v2002
        %v2004 = vpop.f32.mrf.mxu0
        %v2005 = vadd.f32 0.0, %v2004
        %2006 = vmatmul.bf16.gmra.mxu0 %v1937
        %v2007 = vpop.f32.mrf.mxu0
        %v2008 = vadd.f32 0.0, %v2007
        %v2009 = vpop.f32.mrf.mxu0
        %v2010 = vadd.f32 0.0, %v2009
        %2011 = vmatmul.bf16.gmra.mxu0 %v1940
        %v2012 = vpop.f32.mrf.mxu0
        %v2013 = vadd.f32 0.0, %v2012
        %v2014 = vpop.f32.mrf.mxu0
        %v2015 = vadd.f32 0.0, %v2014
        %2016 = vmatmul.bf16.gmra.mxu0 %v1943
        %v2017 = vpop.f32.mrf.mxu0
        %v2018 = vadd.f32 0.0, %v2017
        %v2019 = vpop.f32.mrf.mxu0
        %v2020 = vadd.f32 0.0, %v2019
        %2021 = vmatmul.bf16.gmra.mxu0 %v1946
        %v2022 = vpop.f32.mrf.mxu0
        %v2023 = vadd.f32 0.0, %v2022
        %v2024 = vpop.f32.mrf.mxu0
        %v2025 = vadd.f32 0.0, %v2024
        %2026 = vmatmul.bf16.gmra.mxu0 %v1949
        %v2027 = vpop.f32.mrf.mxu0
        %v2028 = vadd.f32 0.0, %v2027
        %v2029 = vpop.f32.mrf.mxu0
        %v2030 = vadd.f32 0.0, %v2029
        %2031 = vmatmul.bf16.gmra.mxu0 %v1952
        %v2032 = vpop.f32.mrf.mxu0
        %v2033 = vadd.f32 0.0, %v2032
        %v2034 = vpop.f32.mrf.mxu0
        %v2035 = vadd.f32 0.0, %v2034
        %2036 = vmatmul.bf16.gmra.mxu0 %v1955
        %v2037 = vpop.f32.mrf.mxu0
        %v2038 = vadd.f32 0.0, %v2037
        %v2039 = vpop.f32.mrf.mxu0
        %v2040 = vadd.f32 0.0, %v2039
        %2041 = vmatmul.bf16.gmra.mxu0 %v1958
        %v2042 = vpop.f32.mrf.mxu0
        %v2043 = vadd.f32 0.0, %v2042
        %v2044 = vpop.f32.mrf.mxu0
        %v2045 = vadd.f32 0.0, %v2044
        %2046 = vmatmul.bf16.gmra.mxu0 %v1961
        %v2047 = vpop.f32.mrf.mxu0
        %v2048 = vadd.f32 0.0, %v2047
        %v2049 = vpop.f32.mrf.mxu0
        %v2050 = vadd.f32 0.0, %v2049
        %2051 = vdwg.mxu0
        %v2052 = vadd.f32 %v1561, %v1973
        %v2053 = vadd.f32 %v1562, %v1975
        %v2054 = vadd.f32 %v1563, %v1978
        %v2055 = vadd.f32 %v1564, %v1980
        %v2056 = vadd.f32 %v1565, %v1983
        %v2057 = vadd.f32 %v1566, %v1985
        %v2058 = vadd.f32 %v1567, %v1988
        %v2059 = vadd.f32 %v1568, %v1990
        %v2060 = vadd.f32 %v1569, %v1993
        %v2061 = vadd.f32 %v1570, %v1995
        %v2062 = vadd.f32 %v1571, %v1998
        %v2063 = vadd.f32 %v1572, %v2000
        %v2064 = vadd.f32 %v1573, %v2003
        %v2065 = vadd.f32 %v1574, %v2005
        %v2066 = vadd.f32 %v1575, %v2008
        %v2067 = vadd.f32 %v1576, %v2010
        %v2068 = vadd.f32 %v1577, %v2013
        %v2069 = vadd.f32 %v1578, %v2015
        %v2070 = vadd.f32 %v1579, %v2018
        %v2071 = vadd.f32 %v1580, %v2020
        %v2072 = vadd.f32 %v1581, %v2023
        %v2073 = vadd.f32 %v1582, %v2025
        %v2074 = vadd.f32 %v1583, %v2028
        %v2075 = vadd.f32 %v1584, %v2030
        %v2076 = vadd.f32 %v1585, %v2033
        %v2077 = vadd.f32 %v1586, %v2035
        %v2078 = vadd.f32 %v1587, %v2038
        %v2079 = vadd.f32 %v1588, %v2040
        %v2080 = vadd.f32 %v1589, %v2043
        %v2081 = vadd.f32 %v1590, %v2045
        %v2082 = vadd.f32 %v1591, %v2048
        %v2083 = vadd.f32 %v1592, %v2050
        %v2084 = vrot.slane %v441, 2
        %v2085 = vrot.slane %v442, 2
        %v2086 = vrot.slane %v443, 2
        %v2087 = vrot.slane %v444, 2
        %v2088 = vrot.slane %v445, 2
        %v2089 = vrot.slane %v446, 2
        %v2090 = vrot.slane %v447, 2
        %v2091 = vrot.slane %v448, 2
        %v2092 = vrot.slane %v449, 2
        %v2093 = vrot.slane %v450, 2
        %v2094 = vrot.slane %v451, 2
        %v2095 = vrot.slane %v452, 2
        %v2096 = vrot.slane %v453, 2
        %v2097 = vrot.slane %v454, 2
        %v2098 = vrot.slane %v455, 2
        %v2099 = vrot.slane %v456, 2
        %v2100 = vrot.slane %v457, 2
        %v2101 = vrot.slane %v458, 2
        %v2102 = vrot.slane %v459, 2
        %v2103 = vrot.slane %v460, 2
        %v2104 = vrot.slane %v461, 2
        %v2105 = vrot.slane %v462, 2
        %v2106 = vrot.slane %v463, 2
        %v2107 = vrot.slane %v464, 2
        %v2108 = vrot.slane %v465, 2
        %v2109 = vrot.slane %v466, 2
        %v2110 = vrot.slane %v467, 2
        %v2111 = vrot.slane %v468, 2
        %v2112 = vrot.slane %v469, 2
        %v2113 = vrot.slane %v470, 2
        %v2114 = vrot.slane %v471, 2
        %v2115 = vrot.slane %v472, 2
        %vm2116 = vcmp.lt.s32.totalorder %v409, 6
        %v2117 = vsel %vm2116, %v2114, %v2115
        %v2118 = vsel %vm2116, %v2113, %v2114
        %v2119 = vsel %vm2116, %v2112, %v2113
        %v2120 = vsel %vm2116, %v2111, %v2112
        %v2121 = vsel %vm2116, %v2110, %v2111
        %v2122 = vsel %vm2116, %v2109, %v2110
        %v2123 = vsel %vm2116, %v2108, %v2109
        %v2124 = vsel %vm2116, %v2107, %v2108
        %v2125 = vsel %vm2116, %v2106, %v2107
        %v2126 = vsel %vm2116, %v2105, %v2106
        %v2127 = vsel %vm2116, %v2104, %v2105
        %v2128 = vsel %vm2116, %v2103, %v2104
        %v2129 = vsel %vm2116, %v2102, %v2103
        %v2130 = vsel %vm2116, %v2101, %v2102
        %v2131 = vsel %vm2116, %v2100, %v2101
        %v2132 = vsel %vm2116, %v2099, %v2100
        %v2133 = vsel %vm2116, %v2098, %v2099
        %v2134 = vsel %vm2116, %v2097, %v2098
        %v2135 = vsel %vm2116, %v2096, %v2097
        %v2136 = vsel %vm2116, %v2095, %v2096
        %v2137 = vsel %vm2116, %v2094, %v2095
        %v2138 = vsel %vm2116, %v2093, %v2094
        %v2139 = vsel %vm2116, %v2092, %v2093
        %v2140 = vsel %vm2116, %v2091, %v2092
        %v2141 = vsel %vm2116, %v2090, %v2091
        %v2142 = vsel %vm2116, %v2089, %v2090
        %v2143 = vsel %vm2116, %v2088, %v2089
        %v2144 = vsel %vm2116, %v2087, %v2088
        %v2145 = vsel %vm2116, %v2086, %v2087
        %v2146 = vsel %vm2116, %v2085, %v2086
        %v2147 = vsel %vm2116, %v2084, %v2085
        %v2148 = vsel %vm2116, %v2115, %v2084
        %v2149 = vadd.s32 %v409, 2
        %v2150 = vadd.s32 %v410, 2
        %v2151 = vadd.s32 %v411, 2
        %v2152 = vadd.s32 %v412, 2
        %v2153 = vadd.s32 %v413, 2
        %v2154 = vadd.s32 %v414, 2
        %v2155 = vadd.s32 %v415, 2
        %v2156 = vadd.s32 %v416, 2
        %v2157 = vadd.s32 %v417, 2
        %v2158 = vadd.s32 %v418, 2
        %v2159 = vadd.s32 %v419, 2
        %v2160 = vadd.s32 %v420, 2
        %v2161 = vadd.s32 %v421, 2
        %v2162 = vadd.s32 %v422, 2
        %v2163 = vadd.s32 %v423, 2
        %v2164 = vadd.s32 %v424, 2
        %v2165 = vadd.s32 %v425, 2
        %v2166 = vadd.s32 %v426, 2
        %v2167 = vadd.s32 %v427, 2
        %v2168 = vadd.s32 %v428, 2
        %v2169 = vadd.s32 %v429, 2
        %v2170 = vadd.s32 %v430, 2
        %v2171 = vadd.s32 %v431, 2
        %v2172 = vadd.s32 %v432, 2
        %v2173 = vadd.s32 %v433, 2
        %v2174 = vadd.s32 %v434, 2
        %v2175 = vadd.s32 %v435, 2
        %v2176 = vadd.s32 %v436, 2
        %v2177 = vadd.s32 %v437, 2
        %v2178 = vadd.s32 %v438, 2
        %v2179 = vadd.s32 %v439, 2
        %v2180 = vadd.s32 %v440, 2
        %vm2181 = vcmp.ge.s32.totalorder %v2149, 0
        %vm2182 = vcmp.ge.s32.totalorder %v2150, 0
        %vm2183 = vcmp.ge.s32.totalorder %v2151, 0
        %vm2184 = vcmp.ge.s32.totalorder %v2152, 0
        %vm2185 = vcmp.ge.s32.totalorder %v2153, 0
        %vm2186 = vcmp.ge.s32.totalorder %v2154, 0
        %vm2187 = vcmp.ge.s32.totalorder %v2155, 0
        %vm2188 = vcmp.ge.s32.totalorder %v2156, 0
        %vm2189 = vcmp.ge.s32.totalorder %v2157, 0
        %vm2190 = vcmp.ge.s32.totalorder %v2158, 0
        %vm2191 = vcmp.ge.s32.totalorder %v2159, 0
        %vm2192 = vcmp.ge.s32.totalorder %v2160, 0
        %vm2193 = vcmp.ge.s32.totalorder %v2161, 0
        %vm2194 = vcmp.ge.s32.totalorder %v2162, 0
        %vm2195 = vcmp.ge.s32.totalorder %v2163, 0
        %vm2196 = vcmp.ge.s32.totalorder %v2164, 0
        %vm2197 = vcmp.ge.s32.totalorder %v2165, 0
        %vm2198 = vcmp.ge.s32.totalorder %v2166, 0
        %vm2199 = vcmp.ge.s32.totalorder %v2167, 0
        %vm2200 = vcmp.ge.s32.totalorder %v2168, 0
        %vm2201 = vcmp.ge.s32.totalorder %v2169, 0
        %vm2202 = vcmp.ge.s32.totalorder %v2170, 0
        %vm2203 = vcmp.ge.s32.totalorder %v2171, 0
        %vm2204 = vcmp.ge.s32.totalorder %v2172, 0
        %vm2205 = vcmp.ge.s32.totalorder %v2173, 0
        %vm2206 = vcmp.ge.s32.totalorder %v2174, 0
        %vm2207 = vcmp.ge.s32.totalorder %v2175, 0
        %vm2208 = vcmp.ge.s32.totalorder %v2176, 0
        %vm2209 = vcmp.ge.s32.totalorder %v2177, 0
        %vm2210 = vcmp.ge.s32.totalorder %v2178, 0
        %vm2211 = vcmp.ge.s32.totalorder %v2179, 0
        %vm2212 = vcmp.ge.s32.totalorder %v2180, 0
        %vm2213 = vcmp.lt.s32.totalorder %v2149, 256
        %vm2214 = vcmp.lt.s32.totalorder %v2150, 256
        %vm2215 = vcmp.lt.s32.totalorder %v2151, 256
        %vm2216 = vcmp.lt.s32.totalorder %v2152, 256
        %vm2217 = vcmp.lt.s32.totalorder %v2153, 256
        %vm2218 = vcmp.lt.s32.totalorder %v2154, 256
        %vm2219 = vcmp.lt.s32.totalorder %v2155, 256
        %vm2220 = vcmp.lt.s32.totalorder %v2156, 256
        %vm2221 = vcmp.lt.s32.totalorder %v2157, 256
        %vm2222 = vcmp.lt.s32.totalorder %v2158, 256
        %vm2223 = vcmp.lt.s32.totalorder %v2159, 256
        %vm2224 = vcmp.lt.s32.totalorder %v2160, 256
        %vm2225 = vcmp.lt.s32.totalorder %v2161, 256
        %vm2226 = vcmp.lt.s32.totalorder %v2162, 256
        %vm2227 = vcmp.lt.s32.totalorder %v2163, 256
        %vm2228 = vcmp.lt.s32.totalorder %v2164, 256
        %vm2229 = vcmp.lt.s32.totalorder %v2165, 256
        %vm2230 = vcmp.lt.s32.totalorder %v2166, 256
        %vm2231 = vcmp.lt.s32.totalorder %v2167, 256
        %vm2232 = vcmp.lt.s32.totalorder %v2168, 256
        %vm2233 = vcmp.lt.s32.totalorder %v2169, 256
        %vm2234 = vcmp.lt.s32.totalorder %v2170, 256
        %vm2235 = vcmp.lt.s32.totalorder %v2171, 256
        %vm2236 = vcmp.lt.s32.totalorder %v2172, 256
        %vm2237 = vcmp.lt.s32.totalorder %v2173, 256
        %vm2238 = vcmp.lt.s32.totalorder %v2174, 256
        %vm2239 = vcmp.lt.s32.totalorder %v2175, 256
        %vm2240 = vcmp.lt.s32.totalorder %v2176, 256
        %vm2241 = vcmp.lt.s32.totalorder %v2177, 256
        %vm2242 = vcmp.lt.s32.totalorder %v2178, 256
        %vm2243 = vcmp.lt.s32.totalorder %v2179, 256
        %vm2244 = vcmp.lt.s32.totalorder %v2180, 256
        %vm2245 = vmand %vm2181, %vm2213
        %vm2246 = vmand %vm2182, %vm2214
        %vm2247 = vmand %vm2183, %vm2215
        %vm2248 = vmand %vm2184, %vm2216
        %vm2249 = vmand %vm2185, %vm2217
        %vm2250 = vmand %vm2186, %vm2218
        %vm2251 = vmand %vm2187, %vm2219
        %vm2252 = vmand %vm2188, %vm2220
        %vm2253 = vmand %vm2189, %vm2221
        %vm2254 = vmand %vm2190, %vm2222
        %vm2255 = vmand %vm2191, %vm2223
        %vm2256 = vmand %vm2192, %vm2224
        %vm2257 = vmand %vm2193, %vm2225
        %vm2258 = vmand %vm2194, %vm2226
        %vm2259 = vmand %vm2195, %vm2227
        %vm2260 = vmand %vm2196, %vm2228
        %vm2261 = vmand %vm2197, %vm2229
        %vm2262 = vmand %vm2198, %vm2230
        %vm2263 = vmand %vm2199, %vm2231
        %vm2264 = vmand %vm2200, %vm2232
        %vm2265 = vmand %vm2201, %vm2233
        %vm2266 = vmand %vm2202, %vm2234
        %vm2267 = vmand %vm2203, %vm2235
        %vm2268 = vmand %vm2204, %vm2236
        %vm2269 = vmand %vm2205, %vm2237
        %vm2270 = vmand %vm2206, %vm2238
        %vm2271 = vmand %vm2207, %vm2239
        %vm2272 = vmand %vm2208, %vm2240
        %vm2273 = vmand %vm2209, %vm2241
        %vm2274 = vmand %vm2210, %vm2242
        %vm2275 = vmand %vm2211, %vm2243
        %vm2276 = vmand %vm2212, %vm2244
        %v2277 = vsel %vm2245, 1, 0
        %v2278 = vsel %vm2246, 1, 0
        %v2279 = vsel %vm2247, 1, 0
        %v2280 = vsel %vm2248, 1, 0
        %v2281 = vsel %vm2249, 1, 0
        %v2282 = vsel %vm2250, 1, 0
        %v2283 = vsel %vm2251, 1, 0
        %v2284 = vsel %vm2252, 1, 0
        %v2285 = vsel %vm2253, 1, 0
        %v2286 = vsel %vm2254, 1, 0
        %v2287 = vsel %vm2255, 1, 0
        %v2288 = vsel %vm2256, 1, 0
        %v2289 = vsel %vm2257, 1, 0
        %v2290 = vsel %vm2258, 1, 0
        %v2291 = vsel %vm2259, 1, 0
        %v2292 = vsel %vm2260, 1, 0
        %v2293 = vsel %vm2261, 1, 0
        %v2294 = vsel %vm2262, 1, 0
        %v2295 = vsel %vm2263, 1, 0
        %v2296 = vsel %vm2264, 1, 0
        %v2297 = vsel %vm2265, 1, 0
        %v2298 = vsel %vm2266, 1, 0
        %v2299 = vsel %vm2267, 1, 0
        %v2300 = vsel %vm2268, 1, 0
        %v2301 = vsel %vm2269, 1, 0
        %v2302 = vsel %vm2270, 1, 0
        %v2303 = vsel %vm2271, 1, 0
        %v2304 = vsel %vm2272, 1, 0
        %v2305 = vsel %vm2273, 1, 0
        %v2306 = vsel %vm2274, 1, 0
        %v2307 = vsel %vm2275, 1, 0
        %v2308 = vsel %vm2276, 1, 0
        %vm2309 = vcmp.eq.s32.totalorder %v2277, 1
        %vm2310 = vcmp.eq.s32.totalorder %v2278, 1
        %vm2311 = vcmp.eq.s32.totalorder %v2279, 1
        %vm2312 = vcmp.eq.s32.totalorder %v2280, 1
        %vm2313 = vcmp.eq.s32.totalorder %v2281, 1
        %vm2314 = vcmp.eq.s32.totalorder %v2282, 1
        %vm2315 = vcmp.eq.s32.totalorder %v2283, 1
        %vm2316 = vcmp.eq.s32.totalorder %v2284, 1
        %vm2317 = vcmp.eq.s32.totalorder %v2285, 1
        %vm2318 = vcmp.eq.s32.totalorder %v2286, 1
        %vm2319 = vcmp.eq.s32.totalorder %v2287, 1
        %vm2320 = vcmp.eq.s32.totalorder %v2288, 1
        %vm2321 = vcmp.eq.s32.totalorder %v2289, 1
        %vm2322 = vcmp.eq.s32.totalorder %v2290, 1
        %vm2323 = vcmp.eq.s32.totalorder %v2291, 1
        %vm2324 = vcmp.eq.s32.totalorder %v2292, 1
        %vm2325 = vcmp.eq.s32.totalorder %v2293, 1
        %vm2326 = vcmp.eq.s32.totalorder %v2294, 1
        %vm2327 = vcmp.eq.s32.totalorder %v2295, 1
        %vm2328 = vcmp.eq.s32.totalorder %v2296, 1
        %vm2329 = vcmp.eq.s32.totalorder %v2297, 1
        %vm2330 = vcmp.eq.s32.totalorder %v2298, 1
        %vm2331 = vcmp.eq.s32.totalorder %v2299, 1
        %vm2332 = vcmp.eq.s32.totalorder %v2300, 1
        %vm2333 = vcmp.eq.s32.totalorder %v2301, 1
        %vm2334 = vcmp.eq.s32.totalorder %v2302, 1
        %vm2335 = vcmp.eq.s32.totalorder %v2303, 1
        %vm2336 = vcmp.eq.s32.totalorder %v2304, 1
        %vm2337 = vcmp.eq.s32.totalorder %v2305, 1
        %vm2338 = vcmp.eq.s32.totalorder %v2306, 1
        %vm2339 = vcmp.eq.s32.totalorder %v2307, 1
        %vm2340 = vcmp.eq.s32.totalorder %v2308, 1
        %v2341 = vsel %vm2309, %v2147, 0.0
        %v2342 = vsel %vm2310, %v2146, 0.0
        %v2343 = vsel %vm2311, %v2145, 0.0
        %v2344 = vsel %vm2312, %v2144, 0.0
        %v2345 = vsel %vm2313, %v2143, 0.0
        %v2346 = vsel %vm2314, %v2142, 0.0
        %v2347 = vsel %vm2315, %v2141, 0.0
        %v2348 = vsel %vm2316, %v2140, 0.0
        %v2349 = vsel %vm2317, %v2139, 0.0
        %v2350 = vsel %vm2318, %v2138, 0.0
        %v2351 = vsel %vm2319, %v2137, 0.0
        %v2352 = vsel %vm2320, %v2136, 0.0
        %v2353 = vsel %vm2321, %v2135, 0.0
        %v2354 = vsel %vm2322, %v2134, 0.0
        %v2355 = vsel %vm2323, %v2133, 0.0
        %v2356 = vsel %vm2324, %v2132, 0.0
        %v2357 = vsel %vm2325, %v2131, 0.0
        %v2358 = vsel %vm2326, %v2130, 0.0
        %v2359 = vsel %vm2327, %v2129, 0.0
        %v2360 = vsel %vm2328, %v2128, 0.0
        %v2361 = vsel %vm2329, %v2127, 0.0
        %v2362 = vsel %vm2330, %v2126, 0.0
        %v2363 = vsel %vm2331, %v2125, 0.0
        %v2364 = vsel %vm2332, %v2124, 0.0
        %v2365 = vsel %vm2333, %v2123, 0.0
        %v2366 = vsel %vm2334, %v2122, 0.0
        %v2367 = vsel %vm2335, %v2121, 0.0
        %v2368 = vsel %vm2336, %v2120, 0.0
        %v2369 = vsel %vm2337, %v2119, 0.0
        %v2370 = vsel %vm2338, %v2118, 0.0
        %v2371 = vsel %vm2339, %v2117, 0.0
        %v2372 = vsel %vm2340, %v2148, 0.0
        %v2373 = vpack.c.bf16 %v2342, %v2341
        %v2374 = vpack.c.bf16 %v2344, %v2343
        %v2375 = vpack.c.bf16 %v2346, %v2345
        %v2376 = vpack.c.bf16 %v2348, %v2347
        %v2377 = vpack.c.bf16 %v2350, %v2349
        %v2378 = vpack.c.bf16 %v2352, %v2351
        %v2379 = vpack.c.bf16 %v2354, %v2353
        %v2380 = vpack.c.bf16 %v2356, %v2355
        %v2381 = vpack.c.bf16 %v2358, %v2357
        %v2382 = vpack.c.bf16 %v2360, %v2359
        %v2383 = vpack.c.bf16 %v2362, %v2361
        %v2384 = vpack.c.bf16 %v2364, %v2363
        %v2385 = vpack.c.bf16 %v2366, %v2365
        %v2386 = vpack.c.bf16 %v2368, %v2367
        %v2387 = vpack.c.bf16 %v2370, %v2369
        %v2388 = vpack.c.bf16 %v2372, %v2371
        %s2389 = scalar_lea.vmem %s1, 64
        %v2390 = vld [vmem:[%s2389] sm:$0xf]
        %v2391 = vld [vmem:[%s2389 + $0x4] sm:$0xf]
        %v2392 = vld [vmem:[%s2389 + $0x8] sm:$0xf]
        %v2393 = vld [vmem:[%s2389 + $0xc] sm:$0xf]
        %v2398 = vunpack.c.l.b16 %v2390
        %v2399 = vunpack.c.l.b16 %v2391
        %v2400 = vunpack.c.l.b16 %v2392
        %v2401 = vunpack.c.l.b16 %v2393
        %v2402 = vpack.c.b16 %v2399, %v2398
        %v2403 = vpack.c.b16 %v2401, %v2400
        %v2407 = vsel %vm815, %v2373, 0
        %v2410 = vsel %vm815, %v2374, 0
        %v2413 = vsel %vm815, %v2375, 0
        %v2416 = vsel %vm815, %v2376, 0
        %v2419 = vsel %vm815, %v2377, 0
        %v2422 = vsel %vm815, %v2378, 0
        %v2425 = vsel %vm815, %v2379, 0
        %v2428 = vsel %vm815, %v2380, 0
        %v2431 = vsel %vm815, %v2381, 0
        %v2434 = vsel %vm815, %v2382, 0
        %v2437 = vsel %vm815, %v2383, 0
        %v2440 = vsel %vm815, %v2384, 0
        %v2443 = vsel %vm815, %v2385, 0
        %v2446 = vsel %vm815, %v2386, 0
        %v2449 = vsel %vm815, %v2387, 0
        %v2452 = vsel %vm815, %v2388, 0
        %2454 = vmatpush.bf16.msra.mxu0 0
        %2455 = vmatpush.bf16.msra.mxu0 0
        %2456 = vmatpush.bf16.msra.mxu0 0
        %2457 = vmatpush.bf16.msra.mxu0 0
        %2458 = vmatpush.bf16.msra.mxu0 0
        %2459 = vmatpush.bf16.msra.mxu0 0
        %2460 = vmatpush.bf16.msra.mxu0 %v2403
        %2461 = vmatpush.bf16.msra.mxu0 %v2402
        %2462 = vmatmul.bf16.gmra.mxu0 %v2407
        %v2463 = vpop.f32.mrf.mxu0
        %v2464 = vadd.f32 0.0, %v2463
        %v2465 = vpop.f32.mrf.mxu0
        %v2466 = vadd.f32 0.0, %v2465
        %2467 = vmatmul.bf16.gmra.mxu0 %v2410
        %v2468 = vpop.f32.mrf.mxu0
        %v2469 = vadd.f32 0.0, %v2468
        %v2470 = vpop.f32.mrf.mxu0
        %v2471 = vadd.f32 0.0, %v2470
        %2472 = vmatmul.bf16.gmra.mxu0 %v2413
        %v2473 = vpop.f32.mrf.mxu0
        %v2474 = vadd.f32 0.0, %v2473
        %v2475 = vpop.f32.mrf.mxu0
        %v2476 = vadd.f32 0.0, %v2475
        %2477 = vmatmul.bf16.gmra.mxu0 %v2416
        %v2478 = vpop.f32.mrf.mxu0
        %v2479 = vadd.f32 0.0, %v2478
        %v2480 = vpop.f32.mrf.mxu0
        %v2481 = vadd.f32 0.0, %v2480
        %2482 = vmatmul.bf16.gmra.mxu0 %v2419
        %v2483 = vpop.f32.mrf.mxu0
        %v2484 = vadd.f32 0.0, %v2483
        %v2485 = vpop.f32.mrf.mxu0
        %v2486 = vadd.f32 0.0, %v2485
        %2487 = vmatmul.bf16.gmra.mxu0 %v2422
        %v2488 = vpop.f32.mrf.mxu0
        %v2489 = vadd.f32 0.0, %v2488
        %v2490 = vpop.f32.mrf.mxu0
        %v2491 = vadd.f32 0.0, %v2490
        %2492 = vmatmul.bf16.gmra.mxu0 %v2425
        %v2493 = vpop.f32.mrf.mxu0
        %v2494 = vadd.f32 0.0, %v2493
        %v2495 = vpop.f32.mrf.mxu0
        %v2496 = vadd.f32 0.0, %v2495
        %2497 = vmatmul.bf16.gmra.mxu0 %v2428
        %v2498 = vpop.f32.mrf.mxu0
        %v2499 = vadd.f32 0.0, %v2498
        %v2500 = vpop.f32.mrf.mxu0
        %v2501 = vadd.f32 0.0, %v2500
        %2502 = vmatmul.bf16.gmra.mxu0 %v2431
        %v2503 = vpop.f32.mrf.mxu0
        %v2504 = vadd.f32 0.0, %v2503
        %v2505 = vpop.f32.mrf.mxu0
        %v2506 = vadd.f32 0.0, %v2505
        %2507 = vmatmul.bf16.gmra.mxu0 %v2434
        %v2508 = vpop.f32.mrf.mxu0
        %v2509 = vadd.f32 0.0, %v2508
        %v2510 = vpop.f32.mrf.mxu0
        %v2511 = vadd.f32 0.0, %v2510
        %2512 = vmatmul.bf16.gmra.mxu0 %v2437
        %v2513 = vpop.f32.mrf.mxu0
        %v2514 = vadd.f32 0.0, %v2513
        %v2515 = vpop.f32.mrf.mxu0
        %v2516 = vadd.f32 0.0, %v2515
        %2517 = vmatmul.bf16.gmra.mxu0 %v2440
        %v2518 = vpop.f32.mrf.mxu0
        %v2519 = vadd.f32 0.0, %v2518
        %v2520 = vpop.f32.mrf.mxu0
        %v2521 = vadd.f32 0.0, %v2520
        %2522 = vmatmul.bf16.gmra.mxu0 %v2443
        %v2523 = vpop.f32.mrf.mxu0
        %v2524 = vadd.f32 0.0, %v2523
        %v2525 = vpop.f32.mrf.mxu0
        %v2526 = vadd.f32 0.0, %v2525
        %2527 = vmatmul.bf16.gmra.mxu0 %v2446
        %v2528 = vpop.f32.mrf.mxu0
        %v2529 = vadd.f32 0.0, %v2528
        %v2530 = vpop.f32.mrf.mxu0
        %v2531 = vadd.f32 0.0, %v2530
        %2532 = vmatmul.bf16.gmra.mxu0 %v2449
        %v2533 = vpop.f32.mrf.mxu0
        %v2534 = vadd.f32 0.0, %v2533
        %v2535 = vpop.f32.mrf.mxu0
        %v2536 = vadd.f32 0.0, %v2535
        %2537 = vmatmul.bf16.gmra.mxu0 %v2452
        %v2538 = vpop.f32.mrf.mxu0
        %v2539 = vadd.f32 0.0, %v2538
        %v2540 = vpop.f32.mrf.mxu0
        %v2541 = vadd.f32 0.0, %v2540
        %2542 = vdwg.mxu0
        %v2543 = vadd.f32 %v2052, %v2464
        %v2544 = vadd.f32 %v2053, %v2466
        %v2545 = vadd.f32 %v2054, %v2469
        %v2546 = vadd.f32 %v2055, %v2471
        %v2547 = vadd.f32 %v2056, %v2474
        %v2548 = vadd.f32 %v2057, %v2476
        %v2549 = vadd.f32 %v2058, %v2479
        %v2550 = vadd.f32 %v2059, %v2481
        %v2551 = vadd.f32 %v2060, %v2484
        %v2552 = vadd.f32 %v2061, %v2486
        %v2553 = vadd.f32 %v2062, %v2489
        %v2554 = vadd.f32 %v2063, %v2491
        %v2555 = vadd.f32 %v2064, %v2494
        %v2556 = vadd.f32 %v2065, %v2496
        %v2557 = vadd.f32 %v2066, %v2499
        %v2558 = vadd.f32 %v2067, %v2501
        %v2559 = vadd.f32 %v2068, %v2504
        %v2560 = vadd.f32 %v2069, %v2506
        %v2561 = vadd.f32 %v2070, %v2509
        %v2562 = vadd.f32 %v2071, %v2511
        %v2563 = vadd.f32 %v2072, %v2514
        %v2564 = vadd.f32 %v2073, %v2516
        %v2565 = vadd.f32 %v2074, %v2519
        %v2566 = vadd.f32 %v2075, %v2521
        %v2567 = vadd.f32 %v2076, %v2524
        %v2568 = vadd.f32 %v2077, %v2526
        %v2569 = vadd.f32 %v2078, %v2529
        %v2570 = vadd.f32 %v2079, %v2531
        %v2571 = vadd.f32 %v2080, %v2534
        %v2572 = vadd.f32 %v2081, %v2536
        %v2573 = vadd.f32 %v2082, %v2539
        %v2574 = vadd.f32 %v2083, %v2541
        %v2575 = vld [vmem:[%s2] sm:$0x1]
        %v2577 = vperm.slane %v2575, 0
        %v2579 = vadd.f32 %v2543, %v2577
        %v2580 = vadd.f32 %v2544, %v2577
        %v2581 = vadd.f32 %v2545, %v2577
        %v2582 = vadd.f32 %v2546, %v2577
        %v2583 = vadd.f32 %v2547, %v2577
        %v2584 = vadd.f32 %v2548, %v2577
        %v2585 = vadd.f32 %v2549, %v2577
        %v2586 = vadd.f32 %v2550, %v2577
        %v2587 = vadd.f32 %v2551, %v2577
        %v2588 = vadd.f32 %v2552, %v2577
        %v2589 = vadd.f32 %v2553, %v2577
        %v2590 = vadd.f32 %v2554, %v2577
        %v2591 = vadd.f32 %v2555, %v2577
        %v2592 = vadd.f32 %v2556, %v2577
        %v2593 = vadd.f32 %v2557, %v2577
        %v2594 = vadd.f32 %v2558, %v2577
        %v2595 = vadd.f32 %v2559, %v2577
        %v2596 = vadd.f32 %v2560, %v2577
        %v2597 = vadd.f32 %v2561, %v2577
        %v2598 = vadd.f32 %v2562, %v2577
        %v2599 = vadd.f32 %v2563, %v2577
        %v2600 = vadd.f32 %v2564, %v2577
        %v2601 = vadd.f32 %v2565, %v2577
        %v2602 = vadd.f32 %v2566, %v2577
        %v2603 = vadd.f32 %v2567, %v2577
        %v2604 = vadd.f32 %v2568, %v2577
        %v2605 = vadd.f32 %v2569, %v2577
        %v2606 = vadd.f32 %v2570, %v2577
        %v2607 = vadd.f32 %v2571, %v2577
        %v2608 = vadd.f32 %v2572, %v2577
        %v2609 = vadd.f32 %v2573, %v2577
        %v2610 = vadd.f32 %v2574, %v2577
        %v2611 = vtanh.pop %v2579
        %v2612 = vtanh.pop %v2580
        %v2613 = vtanh.pop %v2581
        %v2614 = vtanh.pop %v2582
        %v2615 = vtanh.pop %v2583
        %v2616 = vtanh.pop %v2584
        %v2617 = vtanh.pop %v2585
        %v2618 = vtanh.pop %v2586
        %v2619 = vtanh.pop %v2587
        %v2620 = vtanh.pop %v2588
        %v2621 = vtanh.pop %v2589
        %v2622 = vtanh.pop %v2590
        %v2623 = vtanh.pop %v2591
        %v2624 = vtanh.pop %v2592
        %v2625 = vtanh.pop %v2593
        %v2626 = vtanh.pop %v2594
        %v2627 = vtanh.pop %v2595
        %v2628 = vtanh.pop %v2596
        %v2629 = vtanh.pop %v2597
        %v2630 = vtanh.pop %v2598
        %v2631 = vtanh.pop %v2599
        %v2632 = vtanh.pop %v2600
        %v2633 = vtanh.pop %v2601
        %v2634 = vtanh.pop %v2602
        %v2635 = vtanh.pop %v2603
        %v2636 = vtanh.pop %v2604
        %v2637 = vtanh.pop %v2605
        %v2638 = vtanh.pop %v2606
        %v2639 = vtanh.pop %v2607
        %v2640 = vtanh.pop %v2608
        %v2641 = vtanh.pop %v2609
        %v2642 = vtanh.pop %v2610
        %v2643 = vpack.c.bf16 %v2612, %v2611
        %v2644 = vpack.c.bf16 %v2614, %v2613
        %v2645 = vpack.c.bf16 %v2616, %v2615
        %v2646 = vpack.c.bf16 %v2618, %v2617
        %v2647 = vpack.c.bf16 %v2620, %v2619
        %v2648 = vpack.c.bf16 %v2622, %v2621
        %v2649 = vpack.c.bf16 %v2624, %v2623
        %v2650 = vpack.c.bf16 %v2626, %v2625
        %v2651 = vpack.c.bf16 %v2628, %v2627
        %v2652 = vpack.c.bf16 %v2630, %v2629
        %v2653 = vpack.c.bf16 %v2632, %v2631
        %v2654 = vpack.c.bf16 %v2634, %v2633
        %v2655 = vpack.c.bf16 %v2636, %v2635
        %v2656 = vpack.c.bf16 %v2638, %v2637
        %v2657 = vpack.c.bf16 %v2640, %v2639
        %v2658 = vpack.c.bf16 %v2642, %v2641
        %s2659 = scalar_lea.vmem %s3, 128
        %v2660 = vld [vmem:[%s2659] sm:$0xf]
        %v2661 = vld [vmem:[%s2659 + $0x4] sm:$0xf]
        %v2662 = vld [vmem:[%s2659 + $0x8] sm:$0xf]
        %v2663 = vld [vmem:[%s2659 + $0xc] sm:$0xf]
        %v2664 = vld [vmem:[%s2659 + $0x10] sm:$0xf]
        %v2665 = vld [vmem:[%s2659 + $0x14] sm:$0xf]
        %v2666 = vld [vmem:[%s2659 + $0x18] sm:$0xf]
        %v2667 = vld [vmem:[%s2659 + $0x1c] sm:$0xf]
        %v2668 = vld [vmem:[%s2659 + $0x20] sm:$0xf]
        %v2669 = vld [vmem:[%s2659 + $0x24] sm:$0xf]
        %v2670 = vld [vmem:[%s2659 + $0x28] sm:$0xf]
        %v2671 = vld [vmem:[%s2659 + $0x2c] sm:$0xf]
        %v2672 = vld [vmem:[%s2659 + $0x30] sm:$0xf]
        %v2673 = vld [vmem:[%s2659 + $0x34] sm:$0xf]
        %v2674 = vld [vmem:[%s2659 + $0x38] sm:$0xf]
        %v2675 = vld [vmem:[%s2659 + $0x3c] sm:$0xf]
        %v2676 = vrot.slane %v2611, 6
        %v2677 = vrot.slane %v2612, 6
        %v2678 = vrot.slane %v2613, 6
        %v2679 = vrot.slane %v2614, 6
        %v2680 = vrot.slane %v2615, 6
        %v2681 = vrot.slane %v2616, 6
        %v2682 = vrot.slane %v2617, 6
        %v2683 = vrot.slane %v2618, 6
        %v2684 = vrot.slane %v2619, 6
        %v2685 = vrot.slane %v2620, 6
        %v2686 = vrot.slane %v2621, 6
        %v2687 = vrot.slane %v2622, 6
        %v2688 = vrot.slane %v2623, 6
        %v2689 = vrot.slane %v2624, 6
        %v2690 = vrot.slane %v2625, 6
        %v2691 = vrot.slane %v2626, 6
        %v2692 = vrot.slane %v2627, 6
        %v2693 = vrot.slane %v2628, 6
        %v2694 = vrot.slane %v2629, 6
        %v2695 = vrot.slane %v2630, 6
        %v2696 = vrot.slane %v2631, 6
        %v2697 = vrot.slane %v2632, 6
        %v2698 = vrot.slane %v2633, 6
        %v2699 = vrot.slane %v2634, 6
        %v2700 = vrot.slane %v2635, 6
        %v2701 = vrot.slane %v2636, 6
        %v2702 = vrot.slane %v2637, 6
        %v2703 = vrot.slane %v2638, 6
        %v2704 = vrot.slane %v2639, 6
        %v2705 = vrot.slane %v2640, 6
        %v2706 = vrot.slane %v2641, 6
        %v2707 = vrot.slane %v2642, 6
        %v2708 = vsel %vm526, %v2706, %v2707
        %v2709 = vsel %vm526, %v2705, %v2706
        %v2710 = vsel %vm526, %v2704, %v2705
        %v2711 = vsel %vm526, %v2703, %v2704
        %v2712 = vsel %vm526, %v2702, %v2703
        %v2713 = vsel %vm526, %v2701, %v2702
        %v2714 = vsel %vm526, %v2700, %v2701
        %v2715 = vsel %vm526, %v2699, %v2700
        %v2716 = vsel %vm526, %v2698, %v2699
        %v2717 = vsel %vm526, %v2697, %v2698
        %v2718 = vsel %vm526, %v2696, %v2697
        %v2719 = vsel %vm526, %v2695, %v2696
        %v2720 = vsel %vm526, %v2694, %v2695
        %v2721 = vsel %vm526, %v2693, %v2694
        %v2722 = vsel %vm526, %v2692, %v2693
        %v2723 = vsel %vm526, %v2691, %v2692
        %v2724 = vsel %vm526, %v2690, %v2691
        %v2725 = vsel %vm526, %v2689, %v2690
        %v2726 = vsel %vm526, %v2688, %v2689
        %v2727 = vsel %vm526, %v2687, %v2688
        %v2728 = vsel %vm526, %v2686, %v2687
        %v2729 = vsel %vm526, %v2685, %v2686
        %v2730 = vsel %vm526, %v2684, %v2685
        %v2731 = vsel %vm526, %v2683, %v2684
        %v2732 = vsel %vm526, %v2682, %v2683
        %v2733 = vsel %vm526, %v2681, %v2682
        %v2734 = vsel %vm526, %v2680, %v2681
        %v2735 = vsel %vm526, %v2679, %v2680
        %v2736 = vsel %vm526, %v2678, %v2679
        %v2737 = vsel %vm526, %v2677, %v2678
        %v2738 = vsel %vm526, %v2676, %v2677
        %v2739 = vsel %vm526, %v2707, %v2676
        %v2740 = vsel %vm719, %v2739, 0.0
        %v2741 = vsel %vm720, %v2738, 0.0
        %v2742 = vsel %vm721, %v2737, 0.0
        %v2743 = vsel %vm722, %v2736, 0.0
        %v2744 = vsel %vm723, %v2735, 0.0
        %v2745 = vsel %vm724, %v2734, 0.0
        %v2746 = vsel %vm725, %v2733, 0.0
        %v2747 = vsel %vm726, %v2732, 0.0
        %v2748 = vsel %vm727, %v2731, 0.0
        %v2749 = vsel %vm728, %v2730, 0.0
        %v2750 = vsel %vm729, %v2729, 0.0
        %v2751 = vsel %vm730, %v2728, 0.0
        %v2752 = vsel %vm731, %v2727, 0.0
        %v2753 = vsel %vm732, %v2726, 0.0
        %v2754 = vsel %vm733, %v2725, 0.0
        %v2755 = vsel %vm734, %v2724, 0.0
        %v2756 = vsel %vm735, %v2723, 0.0
        %v2757 = vsel %vm736, %v2722, 0.0
        %v2758 = vsel %vm737, %v2721, 0.0
        %v2759 = vsel %vm738, %v2720, 0.0
        %v2760 = vsel %vm739, %v2719, 0.0
        %v2761 = vsel %vm740, %v2718, 0.0
        %v2762 = vsel %vm741, %v2717, 0.0
        %v2763 = vsel %vm742, %v2716, 0.0
        %v2764 = vsel %vm743, %v2715, 0.0
        %v2765 = vsel %vm744, %v2714, 0.0
        %v2766 = vsel %vm745, %v2713, 0.0
        %v2767 = vsel %vm746, %v2712, 0.0
        %v2768 = vsel %vm747, %v2711, 0.0
        %v2769 = vsel %vm748, %v2710, 0.0
        %v2770 = vsel %vm749, %v2709, 0.0
        %v2771 = vsel %vm750, %v2708, 0.0
        %v2772 = vpack.c.bf16 %v2741, %v2740
        %v2773 = vpack.c.bf16 %v2743, %v2742
        %v2774 = vpack.c.bf16 %v2745, %v2744
        %v2775 = vpack.c.bf16 %v2747, %v2746
        %v2776 = vpack.c.bf16 %v2749, %v2748
        %v2777 = vpack.c.bf16 %v2751, %v2750
        %v2778 = vpack.c.bf16 %v2753, %v2752
        %v2779 = vpack.c.bf16 %v2755, %v2754
        %v2780 = vpack.c.bf16 %v2757, %v2756
        %v2781 = vpack.c.bf16 %v2759, %v2758
        %v2782 = vpack.c.bf16 %v2761, %v2760
        %v2783 = vpack.c.bf16 %v2763, %v2762
        %v2784 = vpack.c.bf16 %v2765, %v2764
        %v2785 = vpack.c.bf16 %v2767, %v2766
        %v2786 = vpack.c.bf16 %v2769, %v2768
        %v2787 = vpack.c.bf16 %v2771, %v2770
        %v2788 = vld [vmem:[%s3] sm:$0xf]
        %v2789 = vld [vmem:[%s3 + $0x4] sm:$0xf]
        %v2790 = vld [vmem:[%s3 + $0x8] sm:$0xf]
        %v2791 = vld [vmem:[%s3 + $0xc] sm:$0xf]
        %v2792 = vld [vmem:[%s3 + $0x10] sm:$0xf]
        %v2793 = vld [vmem:[%s3 + $0x14] sm:$0xf]
        %v2794 = vld [vmem:[%s3 + $0x18] sm:$0xf]
        %v2795 = vld [vmem:[%s3 + $0x1c] sm:$0xf]
        %v2796 = vld [vmem:[%s3 + $0x20] sm:$0xf]
        %v2797 = vld [vmem:[%s3 + $0x24] sm:$0xf]
        %v2798 = vld [vmem:[%s3 + $0x28] sm:$0xf]
        %v2799 = vld [vmem:[%s3 + $0x2c] sm:$0xf]
        %v2800 = vld [vmem:[%s3 + $0x30] sm:$0xf]
        %v2801 = vld [vmem:[%s3 + $0x34] sm:$0xf]
        %v2802 = vld [vmem:[%s3 + $0x38] sm:$0xf]
        %v2803 = vld [vmem:[%s3 + $0x3c] sm:$0xf]
        %v2820 = vunpack.c.l.b16 %v2788
        %v2821 = vunpack.c.l.b16 %v2789
        %v2822 = vunpack.c.l.b16 %v2790
        %v2823 = vunpack.c.l.b16 %v2791
        %v2824 = vunpack.c.l.b16 %v2792
        %v2825 = vunpack.c.l.b16 %v2793
        %v2826 = vunpack.c.l.b16 %v2794
        %v2827 = vunpack.c.l.b16 %v2795
        %v2828 = vunpack.c.l.b16 %v2796
        %v2829 = vunpack.c.l.b16 %v2797
        %v2830 = vunpack.c.l.b16 %v2798
        %v2831 = vunpack.c.l.b16 %v2799
        %v2832 = vunpack.c.l.b16 %v2800
        %v2833 = vunpack.c.l.b16 %v2801
        %v2834 = vunpack.c.l.b16 %v2802
        %v2835 = vunpack.c.l.b16 %v2803
        %v2836 = vpack.c.b16 %v2821, %v2820
        %v2837 = vpack.c.b16 %v2823, %v2822
        %v2838 = vpack.c.b16 %v2825, %v2824
        %v2839 = vpack.c.b16 %v2827, %v2826
        %v2840 = vpack.c.b16 %v2829, %v2828
        %v2841 = vpack.c.b16 %v2831, %v2830
        %v2842 = vpack.c.b16 %v2833, %v2832
        %v2843 = vpack.c.b16 %v2835, %v2834
        %2852 = vmatpush.bf16.msra.mxu0 %v2843
        %2853 = vmatpush.bf16.msra.mxu0 %v2842
        %2854 = vmatpush.bf16.msra.mxu0 %v2841
        %2855 = vmatpush.bf16.msra.mxu0 %v2840
        %2856 = vmatpush.bf16.msra.mxu0 %v2839
        %2857 = vmatpush.bf16.msra.mxu0 %v2838
        %2858 = vmatpush.bf16.msra.mxu0 %v2837
        %2859 = vmatpush.bf16.msra.mxu0 %v2836
        %2860 = vmatmul.bf16.gmra.mxu0 %v2772
        %v2861 = vpop.f32.mrf.mxu0
        %v2862 = vadd.f32 0.0, %v2861
        %v2863 = vpop.f32.mrf.mxu0
        %v2864 = vadd.f32 0.0, %v2863
        %2865 = vmatmul.bf16.gmra.mxu0 %v2773
        %v2866 = vpop.f32.mrf.mxu0
        %v2867 = vadd.f32 0.0, %v2866
        %v2868 = vpop.f32.mrf.mxu0
        %v2869 = vadd.f32 0.0, %v2868
        %2870 = vmatmul.bf16.gmra.mxu0 %v2774
        %v2871 = vpop.f32.mrf.mxu0
        %v2872 = vadd.f32 0.0, %v2871
        %v2873 = vpop.f32.mrf.mxu0
        %v2874 = vadd.f32 0.0, %v2873
        %2875 = vmatmul.bf16.gmra.mxu0 %v2775
        %v2876 = vpop.f32.mrf.mxu0
        %v2877 = vadd.f32 0.0, %v2876
        %v2878 = vpop.f32.mrf.mxu0
        %v2879 = vadd.f32 0.0, %v2878
        %2880 = vmatmul.bf16.gmra.mxu0 %v2776
        %v2881 = vpop.f32.mrf.mxu0
        %v2882 = vadd.f32 0.0, %v2881
        %v2883 = vpop.f32.mrf.mxu0
        %v2884 = vadd.f32 0.0, %v2883
        %2885 = vmatmul.bf16.gmra.mxu0 %v2777
        %v2886 = vpop.f32.mrf.mxu0
        %v2887 = vadd.f32 0.0, %v2886
        %v2888 = vpop.f32.mrf.mxu0
        %v2889 = vadd.f32 0.0, %v2888
        %2890 = vmatmul.bf16.gmra.mxu0 %v2778
        %v2891 = vpop.f32.mrf.mxu0
        %v2892 = vadd.f32 0.0, %v2891
        %v2893 = vpop.f32.mrf.mxu0
        %v2894 = vadd.f32 0.0, %v2893
        %2895 = vmatmul.bf16.gmra.mxu0 %v2779
        %v2896 = vpop.f32.mrf.mxu0
        %v2897 = vadd.f32 0.0, %v2896
        %v2898 = vpop.f32.mrf.mxu0
        %v2899 = vadd.f32 0.0, %v2898
        %2900 = vmatmul.bf16.gmra.mxu0 %v2780
        %v2901 = vpop.f32.mrf.mxu0
        %v2902 = vadd.f32 0.0, %v2901
        %v2903 = vpop.f32.mrf.mxu0
        %v2904 = vadd.f32 0.0, %v2903
        %2905 = vmatmul.bf16.gmra.mxu0 %v2781
        %v2906 = vpop.f32.mrf.mxu0
        %v2907 = vadd.f32 0.0, %v2906
        %v2908 = vpop.f32.mrf.mxu0
        %v2909 = vadd.f32 0.0, %v2908
        %2910 = vmatmul.bf16.gmra.mxu0 %v2782
        %v2911 = vpop.f32.mrf.mxu0
        %v2912 = vadd.f32 0.0, %v2911
        %v2913 = vpop.f32.mrf.mxu0
        %v2914 = vadd.f32 0.0, %v2913
        %2915 = vmatmul.bf16.gmra.mxu0 %v2783
        %v2916 = vpop.f32.mrf.mxu0
        %v2917 = vadd.f32 0.0, %v2916
        %v2918 = vpop.f32.mrf.mxu0
        %v2919 = vadd.f32 0.0, %v2918
        %2920 = vmatmul.bf16.gmra.mxu0 %v2784
        %v2921 = vpop.f32.mrf.mxu0
        %v2922 = vadd.f32 0.0, %v2921
        %v2923 = vpop.f32.mrf.mxu0
        %v2924 = vadd.f32 0.0, %v2923
        %2925 = vmatmul.bf16.gmra.mxu0 %v2785
        %v2926 = vpop.f32.mrf.mxu0
        %v2927 = vadd.f32 0.0, %v2926
        %v2928 = vpop.f32.mrf.mxu0
        %v2929 = vadd.f32 0.0, %v2928
        %2930 = vmatmul.bf16.gmra.mxu0 %v2786
        %v2931 = vpop.f32.mrf.mxu0
        %v2932 = vadd.f32 0.0, %v2931
        %v2933 = vpop.f32.mrf.mxu0
        %v2934 = vadd.f32 0.0, %v2933
        %2935 = vmatmul.bf16.gmra.mxu0 %v2787
        %v2936 = vpop.f32.mrf.mxu0
        %v2937 = vadd.f32 0.0, %v2936
        %v2938 = vpop.f32.mrf.mxu0
        %v2939 = vadd.f32 0.0, %v2938
        %2940 = vdwg.mxu0
        %v2957 = vunpack.c.l.b16 %v2660
        %v2958 = vunpack.c.l.b16 %v2661
        %v2959 = vunpack.c.l.b16 %v2662
        %v2960 = vunpack.c.l.b16 %v2663
        %v2961 = vunpack.c.l.b16 %v2664
        %v2962 = vunpack.c.l.b16 %v2665
        %v2963 = vunpack.c.l.b16 %v2666
        %v2964 = vunpack.c.l.b16 %v2667
        %v2965 = vunpack.c.l.b16 %v2668
        %v2966 = vunpack.c.l.b16 %v2669
        %v2967 = vunpack.c.l.b16 %v2670
        %v2968 = vunpack.c.l.b16 %v2671
        %v2969 = vunpack.c.l.b16 %v2672
        %v2970 = vunpack.c.l.b16 %v2673
        %v2971 = vunpack.c.l.b16 %v2674
        %v2972 = vunpack.c.l.b16 %v2675
        %v2973 = vpack.c.b16 %v2958, %v2957
        %v2974 = vpack.c.b16 %v2960, %v2959
        %v2975 = vpack.c.b16 %v2962, %v2961
        %v2976 = vpack.c.b16 %v2964, %v2963
        %v2977 = vpack.c.b16 %v2966, %v2965
        %v2978 = vpack.c.b16 %v2968, %v2967
        %v2979 = vpack.c.b16 %v2970, %v2969
        %v2980 = vpack.c.b16 %v2972, %v2971
        %2989 = vmatpush.bf16.msra.mxu0 %v2980
        %2990 = vmatpush.bf16.msra.mxu0 %v2979
        %2991 = vmatpush.bf16.msra.mxu0 %v2978
        %2992 = vmatpush.bf16.msra.mxu0 %v2977
        %2993 = vmatpush.bf16.msra.mxu0 %v2976
        %2994 = vmatpush.bf16.msra.mxu0 %v2975
        %2995 = vmatpush.bf16.msra.mxu0 %v2974
        %2996 = vmatpush.bf16.msra.mxu0 %v2973
        %2997 = vmatmul.bf16.gmra.mxu0 %v2643
        %v2998 = vpop.f32.mrf.mxu0
        %v2999 = vadd.f32 %v2862, %v2998
        %v3000 = vpop.f32.mrf.mxu0
        %v3001 = vadd.f32 %v2864, %v3000
        %3002 = vmatmul.bf16.gmra.mxu0 %v2644
        %v3003 = vpop.f32.mrf.mxu0
        %v3004 = vadd.f32 %v2867, %v3003
        %v3005 = vpop.f32.mrf.mxu0
        %v3006 = vadd.f32 %v2869, %v3005
        %3007 = vmatmul.bf16.gmra.mxu0 %v2645
        %v3008 = vpop.f32.mrf.mxu0
        %v3009 = vadd.f32 %v2872, %v3008
        %v3010 = vpop.f32.mrf.mxu0
        %v3011 = vadd.f32 %v2874, %v3010
        %3012 = vmatmul.bf16.gmra.mxu0 %v2646
        %v3013 = vpop.f32.mrf.mxu0
        %v3014 = vadd.f32 %v2877, %v3013
        %v3015 = vpop.f32.mrf.mxu0
        %v3016 = vadd.f32 %v2879, %v3015
        %3017 = vmatmul.bf16.gmra.mxu0 %v2647
        %v3018 = vpop.f32.mrf.mxu0
        %v3019 = vadd.f32 %v2882, %v3018
        %v3020 = vpop.f32.mrf.mxu0
        %v3021 = vadd.f32 %v2884, %v3020
        %3022 = vmatmul.bf16.gmra.mxu0 %v2648
        %v3023 = vpop.f32.mrf.mxu0
        %v3024 = vadd.f32 %v2887, %v3023
        %v3025 = vpop.f32.mrf.mxu0
        %v3026 = vadd.f32 %v2889, %v3025
        %3027 = vmatmul.bf16.gmra.mxu0 %v2649
        %v3028 = vpop.f32.mrf.mxu0
        %v3029 = vadd.f32 %v2892, %v3028
        %v3030 = vpop.f32.mrf.mxu0
        %v3031 = vadd.f32 %v2894, %v3030
        %3032 = vmatmul.bf16.gmra.mxu0 %v2650
        %v3033 = vpop.f32.mrf.mxu0
        %v3034 = vadd.f32 %v2897, %v3033
        %v3035 = vpop.f32.mrf.mxu0
        %v3036 = vadd.f32 %v2899, %v3035
        %3037 = vmatmul.bf16.gmra.mxu0 %v2651
        %v3038 = vpop.f32.mrf.mxu0
        %v3039 = vadd.f32 %v2902, %v3038
        %v3040 = vpop.f32.mrf.mxu0
        %v3041 = vadd.f32 %v2904, %v3040
        %3042 = vmatmul.bf16.gmra.mxu0 %v2652
        %v3043 = vpop.f32.mrf.mxu0
        %v3044 = vadd.f32 %v2907, %v3043
        %v3045 = vpop.f32.mrf.mxu0
        %v3046 = vadd.f32 %v2909, %v3045
        %3047 = vmatmul.bf16.gmra.mxu0 %v2653
        %v3048 = vpop.f32.mrf.mxu0
        %v3049 = vadd.f32 %v2912, %v3048
        %v3050 = vpop.f32.mrf.mxu0
        %v3051 = vadd.f32 %v2914, %v3050
        %3052 = vmatmul.bf16.gmra.mxu0 %v2654
        %v3053 = vpop.f32.mrf.mxu0
        %v3054 = vadd.f32 %v2917, %v3053
        %v3055 = vpop.f32.mrf.mxu0
        %v3056 = vadd.f32 %v2919, %v3055
        %3057 = vmatmul.bf16.gmra.mxu0 %v2655
        %v3058 = vpop.f32.mrf.mxu0
        %v3059 = vadd.f32 %v2922, %v3058
        %v3060 = vpop.f32.mrf.mxu0
        %v3061 = vadd.f32 %v2924, %v3060
        %3062 = vmatmul.bf16.gmra.mxu0 %v2656
        %v3063 = vpop.f32.mrf.mxu0
        %v3064 = vadd.f32 %v2927, %v3063
        %v3065 = vpop.f32.mrf.mxu0
        %v3066 = vadd.f32 %v2929, %v3065
        %3067 = vmatmul.bf16.gmra.mxu0 %v2657
        %v3068 = vpop.f32.mrf.mxu0
        %v3069 = vadd.f32 %v2932, %v3068
        %v3070 = vpop.f32.mrf.mxu0
        %v3071 = vadd.f32 %v2934, %v3070
        %3072 = vmatmul.bf16.gmra.mxu0 %v2658
        %v3073 = vpop.f32.mrf.mxu0
        %v3074 = vadd.f32 %v2937, %v3073
        %v3075 = vpop.f32.mrf.mxu0
        %v3076 = vadd.f32 %v2939, %v3075
        %3077 = vdwg.mxu0
        %v3078 = vrot.slane %v2611, 7
        %v3079 = vrot.slane %v2612, 7
        %v3080 = vrot.slane %v2613, 7
        %v3081 = vrot.slane %v2614, 7
        %v3082 = vrot.slane %v2615, 7
        %v3083 = vrot.slane %v2616, 7
        %v3084 = vrot.slane %v2617, 7
        %v3085 = vrot.slane %v2618, 7
        %v3086 = vrot.slane %v2619, 7
        %v3087 = vrot.slane %v2620, 7
        %v3088 = vrot.slane %v2621, 7
        %v3089 = vrot.slane %v2622, 7
        %v3090 = vrot.slane %v2623, 7
        %v3091 = vrot.slane %v2624, 7
        %v3092 = vrot.slane %v2625, 7
        %v3093 = vrot.slane %v2626, 7
        %v3094 = vrot.slane %v2627, 7
        %v3095 = vrot.slane %v2628, 7
        %v3096 = vrot.slane %v2629, 7
        %v3097 = vrot.slane %v2630, 7
        %v3098 = vrot.slane %v2631, 7
        %v3099 = vrot.slane %v2632, 7
        %v3100 = vrot.slane %v2633, 7
        %v3101 = vrot.slane %v2634, 7
        %v3102 = vrot.slane %v2635, 7
        %v3103 = vrot.slane %v2636, 7
        %v3104 = vrot.slane %v2637, 7
        %v3105 = vrot.slane %v2638, 7
        %v3106 = vrot.slane %v2639, 7
        %v3107 = vrot.slane %v2640, 7
        %v3108 = vrot.slane %v2641, 7
        %v3109 = vrot.slane %v2642, 7
        %v3110 = vsel %vm1134, %v3108, %v3109
        %v3111 = vsel %vm1134, %v3107, %v3108
        %v3112 = vsel %vm1134, %v3106, %v3107
        %v3113 = vsel %vm1134, %v3105, %v3106
        %v3114 = vsel %vm1134, %v3104, %v3105
        %v3115 = vsel %vm1134, %v3103, %v3104
        %v3116 = vsel %vm1134, %v3102, %v3103
        %v3117 = vsel %vm1134, %v3101, %v3102
        %v3118 = vsel %vm1134, %v3100, %v3101
        %v3119 = vsel %vm1134, %v3099, %v3100
        %v3120 = vsel %vm1134, %v3098, %v3099
        %v3121 = vsel %vm1134, %v3097, %v3098
        %v3122 = vsel %vm1134, %v3096, %v3097
        %v3123 = vsel %vm1134, %v3095, %v3096
        %v3124 = vsel %vm1134, %v3094, %v3095
        %v3125 = vsel %vm1134, %v3093, %v3094
        %v3126 = vsel %vm1134, %v3092, %v3093
        %v3127 = vsel %vm1134, %v3091, %v3092
        %v3128 = vsel %vm1134, %v3090, %v3091
        %v3129 = vsel %vm1134, %v3089, %v3090
        %v3130 = vsel %vm1134, %v3088, %v3089
        %v3131 = vsel %vm1134, %v3087, %v3088
        %v3132 = vsel %vm1134, %v3086, %v3087
        %v3133 = vsel %vm1134, %v3085, %v3086
        %v3134 = vsel %vm1134, %v3084, %v3085
        %v3135 = vsel %vm1134, %v3083, %v3084
        %v3136 = vsel %vm1134, %v3082, %v3083
        %v3137 = vsel %vm1134, %v3081, %v3082
        %v3138 = vsel %vm1134, %v3080, %v3081
        %v3139 = vsel %vm1134, %v3079, %v3080
        %v3140 = vsel %vm1134, %v3078, %v3079
        %v3141 = vsel %vm1134, %v3109, %v3078
        %v3142 = vsel %vm1327, %v3141, 0.0
        %v3143 = vsel %vm1328, %v3140, 0.0
        %v3144 = vsel %vm1329, %v3139, 0.0
        %v3145 = vsel %vm1330, %v3138, 0.0
        %v3146 = vsel %vm1331, %v3137, 0.0
        %v3147 = vsel %vm1332, %v3136, 0.0
        %v3148 = vsel %vm1333, %v3135, 0.0
        %v3149 = vsel %vm1334, %v3134, 0.0
        %v3150 = vsel %vm1335, %v3133, 0.0
        %v3151 = vsel %vm1336, %v3132, 0.0
        %v3152 = vsel %vm1337, %v3131, 0.0
        %v3153 = vsel %vm1338, %v3130, 0.0
        %v3154 = vsel %vm1339, %v3129, 0.0
        %v3155 = vsel %vm1340, %v3128, 0.0
        %v3156 = vsel %vm1341, %v3127, 0.0
        %v3157 = vsel %vm1342, %v3126, 0.0
        %v3158 = vsel %vm1343, %v3125, 0.0
        %v3159 = vsel %vm1344, %v3124, 0.0
        %v3160 = vsel %vm1345, %v3123, 0.0
        %v3161 = vsel %vm1346, %v3122, 0.0
        %v3162 = vsel %vm1347, %v3121, 0.0
        %v3163 = vsel %vm1348, %v3120, 0.0
        %v3164 = vsel %vm1349, %v3119, 0.0
        %v3165 = vsel %vm1350, %v3118, 0.0
        %v3166 = vsel %vm1351, %v3117, 0.0
        %v3167 = vsel %vm1352, %v3116, 0.0
        %v3168 = vsel %vm1353, %v3115, 0.0
        %v3169 = vsel %vm1354, %v3114, 0.0
        %v3170 = vsel %vm1355, %v3113, 0.0
        %v3171 = vsel %vm1356, %v3112, 0.0
        %v3172 = vsel %vm1357, %v3111, 0.0
        %v3173 = vsel %vm1358, %v3110, 0.0
        %v3174 = vpack.c.bf16 %v3143, %v3142
        %v3175 = vpack.c.bf16 %v3145, %v3144
        %v3176 = vpack.c.bf16 %v3147, %v3146
        %v3177 = vpack.c.bf16 %v3149, %v3148
        %v3178 = vpack.c.bf16 %v3151, %v3150
        %v3179 = vpack.c.bf16 %v3153, %v3152
        %v3180 = vpack.c.bf16 %v3155, %v3154
        %v3181 = vpack.c.bf16 %v3157, %v3156
        %v3182 = vpack.c.bf16 %v3159, %v3158
        %v3183 = vpack.c.bf16 %v3161, %v3160
        %v3184 = vpack.c.bf16 %v3163, %v3162
        %v3185 = vpack.c.bf16 %v3165, %v3164
        %v3186 = vpack.c.bf16 %v3167, %v3166
        %v3187 = vpack.c.bf16 %v3169, %v3168
        %v3188 = vpack.c.bf16 %v3171, %v3170
        %v3189 = vpack.c.bf16 %v3173, %v3172
        %s3190 = scalar_lea.vmem %s3, 64
        %v3191 = vld [vmem:[%s3190] sm:$0xf]
        %v3192 = vld [vmem:[%s3190 + $0x4] sm:$0xf]
        %v3193 = vld [vmem:[%s3190 + $0x8] sm:$0xf]
        %v3194 = vld [vmem:[%s3190 + $0xc] sm:$0xf]
        %v3195 = vld [vmem:[%s3190 + $0x10] sm:$0xf]
        %v3196 = vld [vmem:[%s3190 + $0x14] sm:$0xf]
        %v3197 = vld [vmem:[%s3190 + $0x18] sm:$0xf]
        %v3198 = vld [vmem:[%s3190 + $0x1c] sm:$0xf]
        %v3199 = vld [vmem:[%s3190 + $0x20] sm:$0xf]
        %v3200 = vld [vmem:[%s3190 + $0x24] sm:$0xf]
        %v3201 = vld [vmem:[%s3190 + $0x28] sm:$0xf]
        %v3202 = vld [vmem:[%s3190 + $0x2c] sm:$0xf]
        %v3203 = vld [vmem:[%s3190 + $0x30] sm:$0xf]
        %v3204 = vld [vmem:[%s3190 + $0x34] sm:$0xf]
        %v3205 = vld [vmem:[%s3190 + $0x38] sm:$0xf]
        %v3206 = vld [vmem:[%s3190 + $0x3c] sm:$0xf]
        %v3223 = vunpack.c.l.b16 %v3191
        %v3224 = vunpack.c.l.b16 %v3192
        %v3225 = vunpack.c.l.b16 %v3193
        %v3226 = vunpack.c.l.b16 %v3194
        %v3227 = vunpack.c.l.b16 %v3195
        %v3228 = vunpack.c.l.b16 %v3196
        %v3229 = vunpack.c.l.b16 %v3197
        %v3230 = vunpack.c.l.b16 %v3198
        %v3231 = vunpack.c.l.b16 %v3199
        %v3232 = vunpack.c.l.b16 %v3200
        %v3233 = vunpack.c.l.b16 %v3201
        %v3234 = vunpack.c.l.b16 %v3202
        %v3235 = vunpack.c.l.b16 %v3203
        %v3236 = vunpack.c.l.b16 %v3204
        %v3237 = vunpack.c.l.b16 %v3205
        %v3238 = vunpack.c.l.b16 %v3206
        %v3239 = vpack.c.b16 %v3224, %v3223
        %v3240 = vpack.c.b16 %v3226, %v3225
        %v3241 = vpack.c.b16 %v3228, %v3227
        %v3242 = vpack.c.b16 %v3230, %v3229
        %v3243 = vpack.c.b16 %v3232, %v3231
        %v3244 = vpack.c.b16 %v3234, %v3233
        %v3245 = vpack.c.b16 %v3236, %v3235
        %v3246 = vpack.c.b16 %v3238, %v3237
        %3255 = vmatpush.bf16.msra.mxu0 %v3246
        %3256 = vmatpush.bf16.msra.mxu0 %v3245
        %3257 = vmatpush.bf16.msra.mxu0 %v3244
        %3258 = vmatpush.bf16.msra.mxu0 %v3243
        %3259 = vmatpush.bf16.msra.mxu0 %v3242
        %3260 = vmatpush.bf16.msra.mxu0 %v3241
        %3261 = vmatpush.bf16.msra.mxu0 %v3240
        %3262 = vmatpush.bf16.msra.mxu0 %v3239
        %3263 = vmatmul.bf16.gmra.mxu0 %v3174
        %v3264 = vpop.f32.mrf.mxu0
        %v3265 = vadd.f32 0.0, %v3264
        %v3266 = vpop.f32.mrf.mxu0
        %v3267 = vadd.f32 0.0, %v3266
        %3268 = vmatmul.bf16.gmra.mxu0 %v3175
        %v3269 = vpop.f32.mrf.mxu0
        %v3270 = vadd.f32 0.0, %v3269
        %v3271 = vpop.f32.mrf.mxu0
        %v3272 = vadd.f32 0.0, %v3271
        %3273 = vmatmul.bf16.gmra.mxu0 %v3176
        %v3274 = vpop.f32.mrf.mxu0
        %v3275 = vadd.f32 0.0, %v3274
        %v3276 = vpop.f32.mrf.mxu0
        %v3277 = vadd.f32 0.0, %v3276
        %3278 = vmatmul.bf16.gmra.mxu0 %v3177
        %v3279 = vpop.f32.mrf.mxu0
        %v3280 = vadd.f32 0.0, %v3279
        %v3281 = vpop.f32.mrf.mxu0
        %v3282 = vadd.f32 0.0, %v3281
        %3283 = vmatmul.bf16.gmra.mxu0 %v3178
        %v3284 = vpop.f32.mrf.mxu0
        %v3285 = vadd.f32 0.0, %v3284
        %v3286 = vpop.f32.mrf.mxu0
        %v3287 = vadd.f32 0.0, %v3286
        %3288 = vmatmul.bf16.gmra.mxu0 %v3179
        %v3289 = vpop.f32.mrf.mxu0
        %v3290 = vadd.f32 0.0, %v3289
        %v3291 = vpop.f32.mrf.mxu0
        %v3292 = vadd.f32 0.0, %v3291
        %3293 = vmatmul.bf16.gmra.mxu0 %v3180
        %v3294 = vpop.f32.mrf.mxu0
        %v3295 = vadd.f32 0.0, %v3294
        %v3296 = vpop.f32.mrf.mxu0
        %v3297 = vadd.f32 0.0, %v3296
        %3298 = vmatmul.bf16.gmra.mxu0 %v3181
        %v3299 = vpop.f32.mrf.mxu0
        %v3300 = vadd.f32 0.0, %v3299
        %v3301 = vpop.f32.mrf.mxu0
        %v3302 = vadd.f32 0.0, %v3301
        %3303 = vmatmul.bf16.gmra.mxu0 %v3182
        %v3304 = vpop.f32.mrf.mxu0
        %v3305 = vadd.f32 0.0, %v3304
        %v3306 = vpop.f32.mrf.mxu0
        %v3307 = vadd.f32 0.0, %v3306
        %3308 = vmatmul.bf16.gmra.mxu0 %v3183
        %v3309 = vpop.f32.mrf.mxu0
        %v3310 = vadd.f32 0.0, %v3309
        %v3311 = vpop.f32.mrf.mxu0
        %v3312 = vadd.f32 0.0, %v3311
        %3313 = vmatmul.bf16.gmra.mxu0 %v3184
        %v3314 = vpop.f32.mrf.mxu0
        %v3315 = vadd.f32 0.0, %v3314
        %v3316 = vpop.f32.mrf.mxu0
        %v3317 = vadd.f32 0.0, %v3316
        %3318 = vmatmul.bf16.gmra.mxu0 %v3185
        %v3319 = vpop.f32.mrf.mxu0
        %v3320 = vadd.f32 0.0, %v3319
        %v3321 = vpop.f32.mrf.mxu0
        %v3322 = vadd.f32 0.0, %v3321
        %3323 = vmatmul.bf16.gmra.mxu0 %v3186
        %v3324 = vpop.f32.mrf.mxu0
        %v3325 = vadd.f32 0.0, %v3324
        %v3326 = vpop.f32.mrf.mxu0
        %v3327 = vadd.f32 0.0, %v3326
        %3328 = vmatmul.bf16.gmra.mxu0 %v3187
        %v3329 = vpop.f32.mrf.mxu0
        %v3330 = vadd.f32 0.0, %v3329
        %v3331 = vpop.f32.mrf.mxu0
        %v3332 = vadd.f32 0.0, %v3331
        %3333 = vmatmul.bf16.gmra.mxu0 %v3188
        %v3334 = vpop.f32.mrf.mxu0
        %v3335 = vadd.f32 0.0, %v3334
        %v3336 = vpop.f32.mrf.mxu0
        %v3337 = vadd.f32 0.0, %v3336
        %3338 = vmatmul.bf16.gmra.mxu0 %v3189
        %v3339 = vpop.f32.mrf.mxu0
        %v3340 = vadd.f32 0.0, %v3339
        %v3341 = vpop.f32.mrf.mxu0
        %v3342 = vadd.f32 0.0, %v3341
        %3343 = vdwg.mxu0
        %v3344 = vadd.f32 %v2999, %v3265
        %v3345 = vadd.f32 %v3001, %v3267
        %v3346 = vadd.f32 %v3004, %v3270
        %v3347 = vadd.f32 %v3006, %v3272
        %v3348 = vadd.f32 %v3009, %v3275
        %v3349 = vadd.f32 %v3011, %v3277
        %v3350 = vadd.f32 %v3014, %v3280
        %v3351 = vadd.f32 %v3016, %v3282
        %v3352 = vadd.f32 %v3019, %v3285
        %v3353 = vadd.f32 %v3021, %v3287
        %v3354 = vadd.f32 %v3024, %v3290
        %v3355 = vadd.f32 %v3026, %v3292
        %v3356 = vadd.f32 %v3029, %v3295
        %v3357 = vadd.f32 %v3031, %v3297
        %v3358 = vadd.f32 %v3034, %v3300
        %v3359 = vadd.f32 %v3036, %v3302
        %v3360 = vadd.f32 %v3039, %v3305
        %v3361 = vadd.f32 %v3041, %v3307
        %v3362 = vadd.f32 %v3044, %v3310
        %v3363 = vadd.f32 %v3046, %v3312
        %v3364 = vadd.f32 %v3049, %v3315
        %v3365 = vadd.f32 %v3051, %v3317
        %v3366 = vadd.f32 %v3054, %v3320
        %v3367 = vadd.f32 %v3056, %v3322
        %v3368 = vadd.f32 %v3059, %v3325
        %v3369 = vadd.f32 %v3061, %v3327
        %v3370 = vadd.f32 %v3064, %v3330
        %v3371 = vadd.f32 %v3066, %v3332
        %v3372 = vadd.f32 %v3069, %v3335
        %v3373 = vadd.f32 %v3071, %v3337
        %v3374 = vadd.f32 %v3074, %v3340
        %v3375 = vadd.f32 %v3076, %v3342
        %v3376 = vrot.slane %v2611, 1
        %v3377 = vrot.slane %v2612, 1
        %v3378 = vrot.slane %v2613, 1
        %v3379 = vrot.slane %v2614, 1
        %v3380 = vrot.slane %v2615, 1
        %v3381 = vrot.slane %v2616, 1
        %v3382 = vrot.slane %v2617, 1
        %v3383 = vrot.slane %v2618, 1
        %v3384 = vrot.slane %v2619, 1
        %v3385 = vrot.slane %v2620, 1
        %v3386 = vrot.slane %v2621, 1
        %v3387 = vrot.slane %v2622, 1
        %v3388 = vrot.slane %v2623, 1
        %v3389 = vrot.slane %v2624, 1
        %v3390 = vrot.slane %v2625, 1
        %v3391 = vrot.slane %v2626, 1
        %v3392 = vrot.slane %v2627, 1
        %v3393 = vrot.slane %v2628, 1
        %v3394 = vrot.slane %v2629, 1
        %v3395 = vrot.slane %v2630, 1
        %v3396 = vrot.slane %v2631, 1
        %v3397 = vrot.slane %v2632, 1
        %v3398 = vrot.slane %v2633, 1
        %v3399 = vrot.slane %v2634, 1
        %v3400 = vrot.slane %v2635, 1
        %v3401 = vrot.slane %v2636, 1
        %v3402 = vrot.slane %v2637, 1
        %v3403 = vrot.slane %v2638, 1
        %v3404 = vrot.slane %v2639, 1
        %v3405 = vrot.slane %v2640, 1
        %v3406 = vrot.slane %v2641, 1
        %v3407 = vrot.slane %v2642, 1
        %v3408 = vsel %vm1625, %v3406, %v3407
        %v3409 = vsel %vm1625, %v3405, %v3406
        %v3410 = vsel %vm1625, %v3404, %v3405
        %v3411 = vsel %vm1625, %v3403, %v3404
        %v3412 = vsel %vm1625, %v3402, %v3403
        %v3413 = vsel %vm1625, %v3401, %v3402
        %v3414 = vsel %vm1625, %v3400, %v3401
        %v3415 = vsel %vm1625, %v3399, %v3400
        %v3416 = vsel %vm1625, %v3398, %v3399
        %v3417 = vsel %vm1625, %v3397, %v3398
        %v3418 = vsel %vm1625, %v3396, %v3397
        %v3419 = vsel %vm1625, %v3395, %v3396
        %v3420 = vsel %vm1625, %v3394, %v3395
        %v3421 = vsel %vm1625, %v3393, %v3394
        %v3422 = vsel %vm1625, %v3392, %v3393
        %v3423 = vsel %vm1625, %v3391, %v3392
        %v3424 = vsel %vm1625, %v3390, %v3391
        %v3425 = vsel %vm1625, %v3389, %v3390
        %v3426 = vsel %vm1625, %v3388, %v3389
        %v3427 = vsel %vm1625, %v3387, %v3388
        %v3428 = vsel %vm1625, %v3386, %v3387
        %v3429 = vsel %vm1625, %v3385, %v3386
        %v3430 = vsel %vm1625, %v3384, %v3385
        %v3431 = vsel %vm1625, %v3383, %v3384
        %v3432 = vsel %vm1625, %v3382, %v3383
        %v3433 = vsel %vm1625, %v3381, %v3382
        %v3434 = vsel %vm1625, %v3380, %v3381
        %v3435 = vsel %vm1625, %v3379, %v3380
        %v3436 = vsel %vm1625, %v3378, %v3379
        %v3437 = vsel %vm1625, %v3377, %v3378
        %v3438 = vsel %vm1625, %v3376, %v3377
        %v3439 = vsel %vm1625, %v3407, %v3376
        %v3440 = vsel %vm1818, %v3438, 0.0
        %v3441 = vsel %vm1819, %v3437, 0.0
        %v3442 = vsel %vm1820, %v3436, 0.0
        %v3443 = vsel %vm1821, %v3435, 0.0
        %v3444 = vsel %vm1822, %v3434, 0.0
        %v3445 = vsel %vm1823, %v3433, 0.0
        %v3446 = vsel %vm1824, %v3432, 0.0
        %v3447 = vsel %vm1825, %v3431, 0.0
        %v3448 = vsel %vm1826, %v3430, 0.0
        %v3449 = vsel %vm1827, %v3429, 0.0
        %v3450 = vsel %vm1828, %v3428, 0.0
        %v3451 = vsel %vm1829, %v3427, 0.0
        %v3452 = vsel %vm1830, %v3426, 0.0
        %v3453 = vsel %vm1831, %v3425, 0.0
        %v3454 = vsel %vm1832, %v3424, 0.0
        %v3455 = vsel %vm1833, %v3423, 0.0
        %v3456 = vsel %vm1834, %v3422, 0.0
        %v3457 = vsel %vm1835, %v3421, 0.0
        %v3458 = vsel %vm1836, %v3420, 0.0
        %v3459 = vsel %vm1837, %v3419, 0.0
        %v3460 = vsel %vm1838, %v3418, 0.0
        %v3461 = vsel %vm1839, %v3417, 0.0
        %v3462 = vsel %vm1840, %v3416, 0.0
        %v3463 = vsel %vm1841, %v3415, 0.0
        %v3464 = vsel %vm1842, %v3414, 0.0
        %v3465 = vsel %vm1843, %v3413, 0.0
        %v3466 = vsel %vm1844, %v3412, 0.0
        %v3467 = vsel %vm1845, %v3411, 0.0
        %v3468 = vsel %vm1846, %v3410, 0.0
        %v3469 = vsel %vm1847, %v3409, 0.0
        %v3470 = vsel %vm1848, %v3408, 0.0
        %v3471 = vsel %vm1849, %v3439, 0.0
        %v3472 = vpack.c.bf16 %v3441, %v3440
        %v3473 = vpack.c.bf16 %v3443, %v3442
        %v3474 = vpack.c.bf16 %v3445, %v3444
        %v3475 = vpack.c.bf16 %v3447, %v3446
        %v3476 = vpack.c.bf16 %v3449, %v3448
        %v3477 = vpack.c.bf16 %v3451, %v3450
        %v3478 = vpack.c.bf16 %v3453, %v3452
        %v3479 = vpack.c.bf16 %v3455, %v3454
        %v3480 = vpack.c.bf16 %v3457, %v3456
        %v3481 = vpack.c.bf16 %v3459, %v3458
        %v3482 = vpack.c.bf16 %v3461, %v3460
        %v3483 = vpack.c.bf16 %v3463, %v3462
        %v3484 = vpack.c.bf16 %v3465, %v3464
        %v3485 = vpack.c.bf16 %v3467, %v3466
        %v3486 = vpack.c.bf16 %v3469, %v3468
        %v3487 = vpack.c.bf16 %v3471, %v3470
        %s3488 = scalar_lea.vmem %s3, 192
        %v3489 = vld [vmem:[%s3488] sm:$0xf]
        %v3490 = vld [vmem:[%s3488 + $0x4] sm:$0xf]
        %v3491 = vld [vmem:[%s3488 + $0x8] sm:$0xf]
        %v3492 = vld [vmem:[%s3488 + $0xc] sm:$0xf]
        %v3493 = vld [vmem:[%s3488 + $0x10] sm:$0xf]
        %v3494 = vld [vmem:[%s3488 + $0x14] sm:$0xf]
        %v3495 = vld [vmem:[%s3488 + $0x18] sm:$0xf]
        %v3496 = vld [vmem:[%s3488 + $0x1c] sm:$0xf]
        %v3497 = vld [vmem:[%s3488 + $0x20] sm:$0xf]
        %v3498 = vld [vmem:[%s3488 + $0x24] sm:$0xf]
        %v3499 = vld [vmem:[%s3488 + $0x28] sm:$0xf]
        %v3500 = vld [vmem:[%s3488 + $0x2c] sm:$0xf]
        %v3501 = vld [vmem:[%s3488 + $0x30] sm:$0xf]
        %v3502 = vld [vmem:[%s3488 + $0x34] sm:$0xf]
        %v3503 = vld [vmem:[%s3488 + $0x38] sm:$0xf]
        %v3504 = vld [vmem:[%s3488 + $0x3c] sm:$0xf]
        %v3521 = vunpack.c.l.b16 %v3489
        %v3522 = vunpack.c.l.b16 %v3490
        %v3523 = vunpack.c.l.b16 %v3491
        %v3524 = vunpack.c.l.b16 %v3492
        %v3525 = vunpack.c.l.b16 %v3493
        %v3526 = vunpack.c.l.b16 %v3494
        %v3527 = vunpack.c.l.b16 %v3495
        %v3528 = vunpack.c.l.b16 %v3496
        %v3529 = vunpack.c.l.b16 %v3497
        %v3530 = vunpack.c.l.b16 %v3498
        %v3531 = vunpack.c.l.b16 %v3499
        %v3532 = vunpack.c.l.b16 %v3500
        %v3533 = vunpack.c.l.b16 %v3501
        %v3534 = vunpack.c.l.b16 %v3502
        %v3535 = vunpack.c.l.b16 %v3503
        %v3536 = vunpack.c.l.b16 %v3504
        %v3537 = vpack.c.b16 %v3522, %v3521
        %v3538 = vpack.c.b16 %v3524, %v3523
        %v3539 = vpack.c.b16 %v3526, %v3525
        %v3540 = vpack.c.b16 %v3528, %v3527
        %v3541 = vpack.c.b16 %v3530, %v3529
        %v3542 = vpack.c.b16 %v3532, %v3531
        %v3543 = vpack.c.b16 %v3534, %v3533
        %v3544 = vpack.c.b16 %v3536, %v3535
        %3553 = vmatpush.bf16.msra.mxu0 %v3544
        %3554 = vmatpush.bf16.msra.mxu0 %v3543
        %3555 = vmatpush.bf16.msra.mxu0 %v3542
        %3556 = vmatpush.bf16.msra.mxu0 %v3541
        %3557 = vmatpush.bf16.msra.mxu0 %v3540
        %3558 = vmatpush.bf16.msra.mxu0 %v3539
        %3559 = vmatpush.bf16.msra.mxu0 %v3538
        %3560 = vmatpush.bf16.msra.mxu0 %v3537
        %3561 = vmatmul.bf16.gmra.mxu0 %v3472
        %v3562 = vpop.f32.mrf.mxu0
        %v3563 = vadd.f32 0.0, %v3562
        %v3564 = vpop.f32.mrf.mxu0
        %v3565 = vadd.f32 0.0, %v3564
        %3566 = vmatmul.bf16.gmra.mxu0 %v3473
        %v3567 = vpop.f32.mrf.mxu0
        %v3568 = vadd.f32 0.0, %v3567
        %v3569 = vpop.f32.mrf.mxu0
        %v3570 = vadd.f32 0.0, %v3569
        %3571 = vmatmul.bf16.gmra.mxu0 %v3474
        %v3572 = vpop.f32.mrf.mxu0
        %v3573 = vadd.f32 0.0, %v3572
        %v3574 = vpop.f32.mrf.mxu0
        %v3575 = vadd.f32 0.0, %v3574
        %3576 = vmatmul.bf16.gmra.mxu0 %v3475
        %v3577 = vpop.f32.mrf.mxu0
        %v3578 = vadd.f32 0.0, %v3577
        %v3579 = vpop.f32.mrf.mxu0
        %v3580 = vadd.f32 0.0, %v3579
        %3581 = vmatmul.bf16.gmra.mxu0 %v3476
        %v3582 = vpop.f32.mrf.mxu0
        %v3583 = vadd.f32 0.0, %v3582
        %v3584 = vpop.f32.mrf.mxu0
        %v3585 = vadd.f32 0.0, %v3584
        %3586 = vmatmul.bf16.gmra.mxu0 %v3477
        %v3587 = vpop.f32.mrf.mxu0
        %v3588 = vadd.f32 0.0, %v3587
        %v3589 = vpop.f32.mrf.mxu0
        %v3590 = vadd.f32 0.0, %v3589
        %3591 = vmatmul.bf16.gmra.mxu0 %v3478
        %v3592 = vpop.f32.mrf.mxu0
        %v3593 = vadd.f32 0.0, %v3592
        %v3594 = vpop.f32.mrf.mxu0
        %v3595 = vadd.f32 0.0, %v3594
        %3596 = vmatmul.bf16.gmra.mxu0 %v3479
        %v3597 = vpop.f32.mrf.mxu0
        %v3598 = vadd.f32 0.0, %v3597
        %v3599 = vpop.f32.mrf.mxu0
        %v3600 = vadd.f32 0.0, %v3599
        %3601 = vmatmul.bf16.gmra.mxu0 %v3480
        %v3602 = vpop.f32.mrf.mxu0
        %v3603 = vadd.f32 0.0, %v3602
        %v3604 = vpop.f32.mrf.mxu0
        %v3605 = vadd.f32 0.0, %v3604
        %3606 = vmatmul.bf16.gmra.mxu0 %v3481
        %v3607 = vpop.f32.mrf.mxu0
        %v3608 = vadd.f32 0.0, %v3607
        %v3609 = vpop.f32.mrf.mxu0
        %v3610 = vadd.f32 0.0, %v3609
        %3611 = vmatmul.bf16.gmra.mxu0 %v3482
        %v3612 = vpop.f32.mrf.mxu0
        %v3613 = vadd.f32 0.0, %v3612
        %v3614 = vpop.f32.mrf.mxu0
        %v3615 = vadd.f32 0.0, %v3614
        %3616 = vmatmul.bf16.gmra.mxu0 %v3483
        %v3617 = vpop.f32.mrf.mxu0
        %v3618 = vadd.f32 0.0, %v3617
        %v3619 = vpop.f32.mrf.mxu0
        %v3620 = vadd.f32 0.0, %v3619
        %3621 = vmatmul.bf16.gmra.mxu0 %v3484
        %v3622 = vpop.f32.mrf.mxu0
        %v3623 = vadd.f32 0.0, %v3622
        %v3624 = vpop.f32.mrf.mxu0
        %v3625 = vadd.f32 0.0, %v3624
        %3626 = vmatmul.bf16.gmra.mxu0 %v3485
        %v3627 = vpop.f32.mrf.mxu0
        %v3628 = vadd.f32 0.0, %v3627
        %v3629 = vpop.f32.mrf.mxu0
        %v3630 = vadd.f32 0.0, %v3629
        %3631 = vmatmul.bf16.gmra.mxu0 %v3486
        %v3632 = vpop.f32.mrf.mxu0
        %v3633 = vadd.f32 0.0, %v3632
        %v3634 = vpop.f32.mrf.mxu0
        %v3635 = vadd.f32 0.0, %v3634
        %3636 = vmatmul.bf16.gmra.mxu0 %v3487
        %v3637 = vpop.f32.mrf.mxu0
        %v3638 = vadd.f32 0.0, %v3637
        %v3639 = vpop.f32.mrf.mxu0
        %v3640 = vadd.f32 0.0, %v3639
        %3641 = vdwg.mxu0
        %v3642 = vadd.f32 %v3344, %v3563
        %v3643 = vadd.f32 %v3345, %v3565
        %v3644 = vadd.f32 %v3346, %v3568
        %v3645 = vadd.f32 %v3347, %v3570
        %v3646 = vadd.f32 %v3348, %v3573
        %v3647 = vadd.f32 %v3349, %v3575
        %v3648 = vadd.f32 %v3350, %v3578
        %v3649 = vadd.f32 %v3351, %v3580
        %v3650 = vadd.f32 %v3352, %v3583
        %v3651 = vadd.f32 %v3353, %v3585
        %v3652 = vadd.f32 %v3354, %v3588
        %v3653 = vadd.f32 %v3355, %v3590
        %v3654 = vadd.f32 %v3356, %v3593
        %v3655 = vadd.f32 %v3357, %v3595
        %v3656 = vadd.f32 %v3358, %v3598
        %v3657 = vadd.f32 %v3359, %v3600
        %v3658 = vadd.f32 %v3360, %v3603
        %v3659 = vadd.f32 %v3361, %v3605
        %v3660 = vadd.f32 %v3362, %v3608
        %v3661 = vadd.f32 %v3363, %v3610
        %v3662 = vadd.f32 %v3364, %v3613
        %v3663 = vadd.f32 %v3365, %v3615
        %v3664 = vadd.f32 %v3366, %v3618
        %v3665 = vadd.f32 %v3367, %v3620
        %v3666 = vadd.f32 %v3368, %v3623
        %v3667 = vadd.f32 %v3369, %v3625
        %v3668 = vadd.f32 %v3370, %v3628
        %v3669 = vadd.f32 %v3371, %v3630
        %v3670 = vadd.f32 %v3372, %v3633
        %v3671 = vadd.f32 %v3373, %v3635
        %v3672 = vadd.f32 %v3374, %v3638
        %v3673 = vadd.f32 %v3375, %v3640
        %v3674 = vrot.slane %v2611, 2
        %v3675 = vrot.slane %v2612, 2
        %v3676 = vrot.slane %v2613, 2
        %v3677 = vrot.slane %v2614, 2
        %v3678 = vrot.slane %v2615, 2
        %v3679 = vrot.slane %v2616, 2
        %v3680 = vrot.slane %v2617, 2
        %v3681 = vrot.slane %v2618, 2
        %v3682 = vrot.slane %v2619, 2
        %v3683 = vrot.slane %v2620, 2
        %v3684 = vrot.slane %v2621, 2
        %v3685 = vrot.slane %v2622, 2
        %v3686 = vrot.slane %v2623, 2
        %v3687 = vrot.slane %v2624, 2
        %v3688 = vrot.slane %v2625, 2
        %v3689 = vrot.slane %v2626, 2
        %v3690 = vrot.slane %v2627, 2
        %v3691 = vrot.slane %v2628, 2
        %v3692 = vrot.slane %v2629, 2
        %v3693 = vrot.slane %v2630, 2
        %v3694 = vrot.slane %v2631, 2
        %v3695 = vrot.slane %v2632, 2
        %v3696 = vrot.slane %v2633, 2
        %v3697 = vrot.slane %v2634, 2
        %v3698 = vrot.slane %v2635, 2
        %v3699 = vrot.slane %v2636, 2
        %v3700 = vrot.slane %v2637, 2
        %v3701 = vrot.slane %v2638, 2
        %v3702 = vrot.slane %v2639, 2
        %v3703 = vrot.slane %v2640, 2
        %v3704 = vrot.slane %v2641, 2
        %v3705 = vrot.slane %v2642, 2
        %v3706 = vsel %vm2116, %v3704, %v3705
        %v3707 = vsel %vm2116, %v3703, %v3704
        %v3708 = vsel %vm2116, %v3702, %v3703
        %v3709 = vsel %vm2116, %v3701, %v3702
        %v3710 = vsel %vm2116, %v3700, %v3701
        %v3711 = vsel %vm2116, %v3699, %v3700
        %v3712 = vsel %vm2116, %v3698, %v3699
        %v3713 = vsel %vm2116, %v3697, %v3698
        %v3714 = vsel %vm2116, %v3696, %v3697
        %v3715 = vsel %vm2116, %v3695, %v3696
        %v3716 = vsel %vm2116, %v3694, %v3695
        %v3717 = vsel %vm2116, %v3693, %v3694
        %v3718 = vsel %vm2116, %v3692, %v3693
        %v3719 = vsel %vm2116, %v3691, %v3692
        %v3720 = vsel %vm2116, %v3690, %v3691
        %v3721 = vsel %vm2116, %v3689, %v3690
        %v3722 = vsel %vm2116, %v3688, %v3689
        %v3723 = vsel %vm2116, %v3687, %v3688
        %v3724 = vsel %vm2116, %v3686, %v3687
        %v3725 = vsel %vm2116, %v3685, %v3686
        %v3726 = vsel %vm2116, %v3684, %v3685
        %v3727 = vsel %vm2116, %v3683, %v3684
        %v3728 = vsel %vm2116, %v3682, %v3683
        %v3729 = vsel %vm2116, %v3681, %v3682
        %v3730 = vsel %vm2116, %v3680, %v3681
        %v3731 = vsel %vm2116, %v3679, %v3680
        %v3732 = vsel %vm2116, %v3678, %v3679
        %v3733 = vsel %vm2116, %v3677, %v3678
        %v3734 = vsel %vm2116, %v3676, %v3677
        %v3735 = vsel %vm2116, %v3675, %v3676
        %v3736 = vsel %vm2116, %v3674, %v3675
        %v3737 = vsel %vm2116, %v3705, %v3674
        %v3738 = vsel %vm2309, %v3736, 0.0
        %v3739 = vsel %vm2310, %v3735, 0.0
        %v3740 = vsel %vm2311, %v3734, 0.0
        %v3741 = vsel %vm2312, %v3733, 0.0
        %v3742 = vsel %vm2313, %v3732, 0.0
        %v3743 = vsel %vm2314, %v3731, 0.0
        %v3744 = vsel %vm2315, %v3730, 0.0
        %v3745 = vsel %vm2316, %v3729, 0.0
        %v3746 = vsel %vm2317, %v3728, 0.0
        %v3747 = vsel %vm2318, %v3727, 0.0
        %v3748 = vsel %vm2319, %v3726, 0.0
        %v3749 = vsel %vm2320, %v3725, 0.0
        %v3750 = vsel %vm2321, %v3724, 0.0
        %v3751 = vsel %vm2322, %v3723, 0.0
        %v3752 = vsel %vm2323, %v3722, 0.0
        %v3753 = vsel %vm2324, %v3721, 0.0
        %v3754 = vsel %vm2325, %v3720, 0.0
        %v3755 = vsel %vm2326, %v3719, 0.0
        %v3756 = vsel %vm2327, %v3718, 0.0
        %v3757 = vsel %vm2328, %v3717, 0.0
        %v3758 = vsel %vm2329, %v3716, 0.0
        %v3759 = vsel %vm2330, %v3715, 0.0
        %v3760 = vsel %vm2331, %v3714, 0.0
        %v3761 = vsel %vm2332, %v3713, 0.0
        %v3762 = vsel %vm2333, %v3712, 0.0
        %v3763 = vsel %vm2334, %v3711, 0.0
        %v3764 = vsel %vm2335, %v3710, 0.0
        %v3765 = vsel %vm2336, %v3709, 0.0
        %v3766 = vsel %vm2337, %v3708, 0.0
        %v3767 = vsel %vm2338, %v3707, 0.0
        %v3768 = vsel %vm2339, %v3706, 0.0
        %v3769 = vsel %vm2340, %v3737, 0.0
        %v3770 = vpack.c.bf16 %v3739, %v3738
        %v3771 = vpack.c.bf16 %v3741, %v3740
        %v3772 = vpack.c.bf16 %v3743, %v3742
        %v3773 = vpack.c.bf16 %v3745, %v3744
        %v3774 = vpack.c.bf16 %v3747, %v3746
        %v3775 = vpack.c.bf16 %v3749, %v3748
        %v3776 = vpack.c.bf16 %v3751, %v3750
        %v3777 = vpack.c.bf16 %v3753, %v3752
        %v3778 = vpack.c.bf16 %v3755, %v3754
        %v3779 = vpack.c.bf16 %v3757, %v3756
        %v3780 = vpack.c.bf16 %v3759, %v3758
        %v3781 = vpack.c.bf16 %v3761, %v3760
        %v3782 = vpack.c.bf16 %v3763, %v3762
        %v3783 = vpack.c.bf16 %v3765, %v3764
        %v3784 = vpack.c.bf16 %v3767, %v3766
        %v3785 = vpack.c.bf16 %v3769, %v3768
        %s3786 = scalar_lea.vmem %s3, 256
        %v3787 = vld [vmem:[%s3786] sm:$0xf]
        %v3788 = vld [vmem:[%s3786 + $0x4] sm:$0xf]
        %v3789 = vld [vmem:[%s3786 + $0x8] sm:$0xf]
        %v3790 = vld [vmem:[%s3786 + $0xc] sm:$0xf]
        %v3791 = vld [vmem:[%s3786 + $0x10] sm:$0xf]
        %v3792 = vld [vmem:[%s3786 + $0x14] sm:$0xf]
        %v3793 = vld [vmem:[%s3786 + $0x18] sm:$0xf]
        %v3794 = vld [vmem:[%s3786 + $0x1c] sm:$0xf]
        %v3795 = vld [vmem:[%s3786 + $0x20] sm:$0xf]
        %v3796 = vld [vmem:[%s3786 + $0x24] sm:$0xf]
        %v3797 = vld [vmem:[%s3786 + $0x28] sm:$0xf]
        %v3798 = vld [vmem:[%s3786 + $0x2c] sm:$0xf]
        %v3799 = vld [vmem:[%s3786 + $0x30] sm:$0xf]
        %v3800 = vld [vmem:[%s3786 + $0x34] sm:$0xf]
        %v3801 = vld [vmem:[%s3786 + $0x38] sm:$0xf]
        %v3802 = vld [vmem:[%s3786 + $0x3c] sm:$0xf]
        %v3819 = vunpack.c.l.b16 %v3787
        %v3820 = vunpack.c.l.b16 %v3788
        %v3821 = vunpack.c.l.b16 %v3789
        %v3822 = vunpack.c.l.b16 %v3790
        %v3823 = vunpack.c.l.b16 %v3791
        %v3824 = vunpack.c.l.b16 %v3792
        %v3825 = vunpack.c.l.b16 %v3793
        %v3826 = vunpack.c.l.b16 %v3794
        %v3827 = vunpack.c.l.b16 %v3795
        %v3828 = vunpack.c.l.b16 %v3796
        %v3829 = vunpack.c.l.b16 %v3797
        %v3830 = vunpack.c.l.b16 %v3798
        %v3831 = vunpack.c.l.b16 %v3799
        %v3832 = vunpack.c.l.b16 %v3800
        %v3833 = vunpack.c.l.b16 %v3801
        %v3834 = vunpack.c.l.b16 %v3802
        %v3835 = vpack.c.b16 %v3820, %v3819
        %v3836 = vpack.c.b16 %v3822, %v3821
        %v3837 = vpack.c.b16 %v3824, %v3823
        %v3838 = vpack.c.b16 %v3826, %v3825
        %v3839 = vpack.c.b16 %v3828, %v3827
        %v3840 = vpack.c.b16 %v3830, %v3829
        %v3841 = vpack.c.b16 %v3832, %v3831
        %v3842 = vpack.c.b16 %v3834, %v3833
        %3851 = vmatpush.bf16.msra.mxu0 %v3842
        %3852 = vmatpush.bf16.msra.mxu0 %v3841
        %3853 = vmatpush.bf16.msra.mxu0 %v3840
        %3854 = vmatpush.bf16.msra.mxu0 %v3839
        %3855 = vmatpush.bf16.msra.mxu0 %v3838
        %3856 = vmatpush.bf16.msra.mxu0 %v3837
        %3857 = vmatpush.bf16.msra.mxu0 %v3836
        %3858 = vmatpush.bf16.msra.mxu0 %v3835
        %3859 = vmatmul.bf16.gmra.mxu0 %v3770
        %v3860 = vpop.f32.mrf.mxu0
        %v3861 = vadd.f32 0.0, %v3860
        %v3862 = vpop.f32.mrf.mxu0
        %v3863 = vadd.f32 0.0, %v3862
        %3864 = vmatmul.bf16.gmra.mxu0 %v3771
        %v3865 = vpop.f32.mrf.mxu0
        %v3866 = vadd.f32 0.0, %v3865
        %v3867 = vpop.f32.mrf.mxu0
        %v3868 = vadd.f32 0.0, %v3867
        %3869 = vmatmul.bf16.gmra.mxu0 %v3772
        %v3870 = vpop.f32.mrf.mxu0
        %v3871 = vadd.f32 0.0, %v3870
        %v3872 = vpop.f32.mrf.mxu0
        %v3873 = vadd.f32 0.0, %v3872
        %3874 = vmatmul.bf16.gmra.mxu0 %v3773
        %v3875 = vpop.f32.mrf.mxu0
        %v3876 = vadd.f32 0.0, %v3875
        %v3877 = vpop.f32.mrf.mxu0
        %v3878 = vadd.f32 0.0, %v3877
        %3879 = vmatmul.bf16.gmra.mxu0 %v3774
        %v3880 = vpop.f32.mrf.mxu0
        %v3881 = vadd.f32 0.0, %v3880
        %v3882 = vpop.f32.mrf.mxu0
        %v3883 = vadd.f32 0.0, %v3882
        %3884 = vmatmul.bf16.gmra.mxu0 %v3775
        %v3885 = vpop.f32.mrf.mxu0
        %v3886 = vadd.f32 0.0, %v3885
        %v3887 = vpop.f32.mrf.mxu0
        %v3888 = vadd.f32 0.0, %v3887
        %3889 = vmatmul.bf16.gmra.mxu0 %v3776
        %v3890 = vpop.f32.mrf.mxu0
        %v3891 = vadd.f32 0.0, %v3890
        %v3892 = vpop.f32.mrf.mxu0
        %v3893 = vadd.f32 0.0, %v3892
        %3894 = vmatmul.bf16.gmra.mxu0 %v3777
        %v3895 = vpop.f32.mrf.mxu0
        %v3896 = vadd.f32 0.0, %v3895
        %v3897 = vpop.f32.mrf.mxu0
        %v3898 = vadd.f32 0.0, %v3897
        %3899 = vmatmul.bf16.gmra.mxu0 %v3778
        %v3900 = vpop.f32.mrf.mxu0
        %v3901 = vadd.f32 0.0, %v3900
        %v3902 = vpop.f32.mrf.mxu0
        %v3903 = vadd.f32 0.0, %v3902
        %3904 = vmatmul.bf16.gmra.mxu0 %v3779
        %v3905 = vpop.f32.mrf.mxu0
        %v3906 = vadd.f32 0.0, %v3905
        %v3907 = vpop.f32.mrf.mxu0
        %v3908 = vadd.f32 0.0, %v3907
        %3909 = vmatmul.bf16.gmra.mxu0 %v3780
        %v3910 = vpop.f32.mrf.mxu0
        %v3911 = vadd.f32 0.0, %v3910
        %v3912 = vpop.f32.mrf.mxu0
        %v3913 = vadd.f32 0.0, %v3912
        %3914 = vmatmul.bf16.gmra.mxu0 %v3781
        %v3915 = vpop.f32.mrf.mxu0
        %v3916 = vadd.f32 0.0, %v3915
        %v3917 = vpop.f32.mrf.mxu0
        %v3918 = vadd.f32 0.0, %v3917
        %3919 = vmatmul.bf16.gmra.mxu0 %v3782
        %v3920 = vpop.f32.mrf.mxu0
        %v3921 = vadd.f32 0.0, %v3920
        %v3922 = vpop.f32.mrf.mxu0
        %v3923 = vadd.f32 0.0, %v3922
        %3924 = vmatmul.bf16.gmra.mxu0 %v3783
        %v3925 = vpop.f32.mrf.mxu0
        %v3926 = vadd.f32 0.0, %v3925
        %v3927 = vpop.f32.mrf.mxu0
        %v3928 = vadd.f32 0.0, %v3927
        %3929 = vmatmul.bf16.gmra.mxu0 %v3784
        %v3930 = vpop.f32.mrf.mxu0
        %v3931 = vadd.f32 0.0, %v3930
        %v3932 = vpop.f32.mrf.mxu0
        %v3933 = vadd.f32 0.0, %v3932
        %3934 = vmatmul.bf16.gmra.mxu0 %v3785
        %v3935 = vpop.f32.mrf.mxu0
        %v3936 = vadd.f32 0.0, %v3935
        %v3937 = vpop.f32.mrf.mxu0
        %v3938 = vadd.f32 0.0, %v3937
        %3939 = vdwg.mxu0
        %v3940 = vadd.f32 %v3642, %v3861
        %v3941 = vadd.f32 %v3643, %v3863
        %v3942 = vadd.f32 %v3644, %v3866
        %v3943 = vadd.f32 %v3645, %v3868
        %v3944 = vadd.f32 %v3646, %v3871
        %v3945 = vadd.f32 %v3647, %v3873
        %v3946 = vadd.f32 %v3648, %v3876
        %v3947 = vadd.f32 %v3649, %v3878
        %v3948 = vadd.f32 %v3650, %v3881
        %v3949 = vadd.f32 %v3651, %v3883
        %v3950 = vadd.f32 %v3652, %v3886
        %v3951 = vadd.f32 %v3653, %v3888
        %v3952 = vadd.f32 %v3654, %v3891
        %v3953 = vadd.f32 %v3655, %v3893
        %v3954 = vadd.f32 %v3656, %v3896
        %v3955 = vadd.f32 %v3657, %v3898
        %v3956 = vadd.f32 %v3658, %v3901
        %v3957 = vadd.f32 %v3659, %v3903
        %v3958 = vadd.f32 %v3660, %v3906
        %v3959 = vadd.f32 %v3661, %v3908
        %v3960 = vadd.f32 %v3662, %v3911
        %v3961 = vadd.f32 %v3663, %v3913
        %v3962 = vadd.f32 %v3664, %v3916
        %v3963 = vadd.f32 %v3665, %v3918
        %v3964 = vadd.f32 %v3666, %v3921
        %v3965 = vadd.f32 %v3667, %v3923
        %v3966 = vadd.f32 %v3668, %v3926
        %v3967 = vadd.f32 %v3669, %v3928
        %v3968 = vadd.f32 %v3670, %v3931
        %v3969 = vadd.f32 %v3671, %v3933
        %v3970 = vadd.f32 %v3672, %v3936
        %v3971 = vadd.f32 %v3673, %v3938
        %v3972 = vld [vmem:[%s4] sm:$0x1]
        %v3974 = vperm.slane %v3972, 0
        %v3976 = vadd.f32 %v3940, %v3974
        %v3977 = vadd.f32 %v3941, %v3974
        %v3978 = vadd.f32 %v3942, %v3974
        %v3979 = vadd.f32 %v3943, %v3974
        %v3980 = vadd.f32 %v3944, %v3974
        %v3981 = vadd.f32 %v3945, %v3974
        %v3982 = vadd.f32 %v3946, %v3974
        %v3983 = vadd.f32 %v3947, %v3974
        %v3984 = vadd.f32 %v3948, %v3974
        %v3985 = vadd.f32 %v3949, %v3974
        %v3986 = vadd.f32 %v3950, %v3974
        %v3987 = vadd.f32 %v3951, %v3974
        %v3988 = vadd.f32 %v3952, %v3974
        %v3989 = vadd.f32 %v3953, %v3974
        %v3990 = vadd.f32 %v3954, %v3974
        %v3991 = vadd.f32 %v3955, %v3974
        %v3992 = vadd.f32 %v3956, %v3974
        %v3993 = vadd.f32 %v3957, %v3974
        %v3994 = vadd.f32 %v3958, %v3974
        %v3995 = vadd.f32 %v3959, %v3974
        %v3996 = vadd.f32 %v3960, %v3974
        %v3997 = vadd.f32 %v3961, %v3974
        %v3998 = vadd.f32 %v3962, %v3974
        %v3999 = vadd.f32 %v3963, %v3974
        %v4000 = vadd.f32 %v3964, %v3974
        %v4001 = vadd.f32 %v3965, %v3974
        %v4002 = vadd.f32 %v3966, %v3974
        %v4003 = vadd.f32 %v3967, %v3974
        %v4004 = vadd.f32 %v3968, %v3974
        %v4005 = vadd.f32 %v3969, %v3974
        %v4006 = vadd.f32 %v3970, %v3974
        %v4007 = vadd.f32 %v3971, %v3974
        %v4008 = vtanh.pop %v3976
        %v4009 = vtanh.pop %v3977
        %v4010 = vtanh.pop %v3978
        %v4011 = vtanh.pop %v3979
        %v4012 = vtanh.pop %v3980
        %v4013 = vtanh.pop %v3981
        %v4014 = vtanh.pop %v3982
        %v4015 = vtanh.pop %v3983
        %v4016 = vtanh.pop %v3984
        %v4017 = vtanh.pop %v3985
        %v4018 = vtanh.pop %v3986
        %v4019 = vtanh.pop %v3987
        %v4020 = vtanh.pop %v3988
        %v4021 = vtanh.pop %v3989
        %v4022 = vtanh.pop %v3990
        %v4023 = vtanh.pop %v3991
        %v4024 = vtanh.pop %v3992
        %v4025 = vtanh.pop %v3993
        %v4026 = vtanh.pop %v3994
        %v4027 = vtanh.pop %v3995
        %v4028 = vtanh.pop %v3996
        %v4029 = vtanh.pop %v3997
        %v4030 = vtanh.pop %v3998
        %v4031 = vtanh.pop %v3999
        %v4032 = vtanh.pop %v4000
        %v4033 = vtanh.pop %v4001
        %v4034 = vtanh.pop %v4002
        %v4035 = vtanh.pop %v4003
        %v4036 = vtanh.pop %v4004
        %v4037 = vtanh.pop %v4005
        %v4038 = vtanh.pop %v4006
        %v4039 = vtanh.pop %v4007
        %v4040 = vpack.c.bf16 %v4009, %v4008
        %v4041 = vpack.c.bf16 %v4011, %v4010
        %v4042 = vpack.c.bf16 %v4013, %v4012
        %v4043 = vpack.c.bf16 %v4015, %v4014
        %v4044 = vpack.c.bf16 %v4017, %v4016
        %v4045 = vpack.c.bf16 %v4019, %v4018
        %v4046 = vpack.c.bf16 %v4021, %v4020
        %v4047 = vpack.c.bf16 %v4023, %v4022
        %v4048 = vpack.c.bf16 %v4025, %v4024
        %v4049 = vpack.c.bf16 %v4027, %v4026
        %v4050 = vpack.c.bf16 %v4029, %v4028
        %v4051 = vpack.c.bf16 %v4031, %v4030
        %v4052 = vpack.c.bf16 %v4033, %v4032
        %v4053 = vpack.c.bf16 %v4035, %v4034
        %v4054 = vpack.c.bf16 %v4037, %v4036
        %v4055 = vpack.c.bf16 %v4039, %v4038
        %s4056 = scalar_lea.vmem %s5, 128
        %v4057 = vld [vmem:[%s4056] sm:$0xf]
        %v4058 = vld [vmem:[%s4056 + $0x4] sm:$0xf]
        %v4059 = vld [vmem:[%s4056 + $0x8] sm:$0xf]
        %v4060 = vld [vmem:[%s4056 + $0xc] sm:$0xf]
        %v4061 = vld [vmem:[%s4056 + $0x10] sm:$0xf]
        %v4062 = vld [vmem:[%s4056 + $0x14] sm:$0xf]
        %v4063 = vld [vmem:[%s4056 + $0x18] sm:$0xf]
        %v4064 = vld [vmem:[%s4056 + $0x1c] sm:$0xf]
        %v4065 = vld [vmem:[%s4056 + $0x20] sm:$0xf]
        %v4066 = vld [vmem:[%s4056 + $0x24] sm:$0xf]
        %v4067 = vld [vmem:[%s4056 + $0x28] sm:$0xf]
        %v4068 = vld [vmem:[%s4056 + $0x2c] sm:$0xf]
        %v4069 = vld [vmem:[%s4056 + $0x30] sm:$0xf]
        %v4070 = vld [vmem:[%s4056 + $0x34] sm:$0xf]
        %v4071 = vld [vmem:[%s4056 + $0x38] sm:$0xf]
        %v4072 = vld [vmem:[%s4056 + $0x3c] sm:$0xf]
        %v4073 = vrot.slane %v4008, 6
        %v4074 = vrot.slane %v4009, 6
        %v4075 = vrot.slane %v4010, 6
        %v4076 = vrot.slane %v4011, 6
        %v4077 = vrot.slane %v4012, 6
        %v4078 = vrot.slane %v4013, 6
        %v4079 = vrot.slane %v4014, 6
        %v4080 = vrot.slane %v4015, 6
        %v4081 = vrot.slane %v4016, 6
        %v4082 = vrot.slane %v4017, 6
        %v4083 = vrot.slane %v4018, 6
        %v4084 = vrot.slane %v4019, 6
        %v4085 = vrot.slane %v4020, 6
        %v4086 = vrot.slane %v4021, 6
        %v4087 = vrot.slane %v4022, 6
        %v4088 = vrot.slane %v4023, 6
        %v4089 = vrot.slane %v4024, 6
        %v4090 = vrot.slane %v4025, 6
        %v4091 = vrot.slane %v4026, 6
        %v4092 = vrot.slane %v4027, 6
        %v4093 = vrot.slane %v4028, 6
        %v4094 = vrot.slane %v4029, 6
        %v4095 = vrot.slane %v4030, 6
        %v4096 = vrot.slane %v4031, 6
        %v4097 = vrot.slane %v4032, 6
        %v4098 = vrot.slane %v4033, 6
        %v4099 = vrot.slane %v4034, 6
        %v4100 = vrot.slane %v4035, 6
        %v4101 = vrot.slane %v4036, 6
        %v4102 = vrot.slane %v4037, 6
        %v4103 = vrot.slane %v4038, 6
        %v4104 = vrot.slane %v4039, 6
        %v4105 = vsel %vm526, %v4103, %v4104
        %v4106 = vsel %vm526, %v4102, %v4103
        %v4107 = vsel %vm526, %v4101, %v4102
        %v4108 = vsel %vm526, %v4100, %v4101
        %v4109 = vsel %vm526, %v4099, %v4100
        %v4110 = vsel %vm526, %v4098, %v4099
        %v4111 = vsel %vm526, %v4097, %v4098
        %v4112 = vsel %vm526, %v4096, %v4097
        %v4113 = vsel %vm526, %v4095, %v4096
        %v4114 = vsel %vm526, %v4094, %v4095
        %v4115 = vsel %vm526, %v4093, %v4094
        %v4116 = vsel %vm526, %v4092, %v4093
        %v4117 = vsel %vm526, %v4091, %v4092
        %v4118 = vsel %vm526, %v4090, %v4091
        %v4119 = vsel %vm526, %v4089, %v4090
        %v4120 = vsel %vm526, %v4088, %v4089
        %v4121 = vsel %vm526, %v4087, %v4088
        %v4122 = vsel %vm526, %v4086, %v4087
        %v4123 = vsel %vm526, %v4085, %v4086
        %v4124 = vsel %vm526, %v4084, %v4085
        %v4125 = vsel %vm526, %v4083, %v4084
        %v4126 = vsel %vm526, %v4082, %v4083
        %v4127 = vsel %vm526, %v4081, %v4082
        %v4128 = vsel %vm526, %v4080, %v4081
        %v4129 = vsel %vm526, %v4079, %v4080
        %v4130 = vsel %vm526, %v4078, %v4079
        %v4131 = vsel %vm526, %v4077, %v4078
        %v4132 = vsel %vm526, %v4076, %v4077
        %v4133 = vsel %vm526, %v4075, %v4076
        %v4134 = vsel %vm526, %v4074, %v4075
        %v4135 = vsel %vm526, %v4073, %v4074
        %v4136 = vsel %vm526, %v4104, %v4073
        %v4137 = vsel %vm719, %v4136, 0.0
        %v4138 = vsel %vm720, %v4135, 0.0
        %v4139 = vsel %vm721, %v4134, 0.0
        %v4140 = vsel %vm722, %v4133, 0.0
        %v4141 = vsel %vm723, %v4132, 0.0
        %v4142 = vsel %vm724, %v4131, 0.0
        %v4143 = vsel %vm725, %v4130, 0.0
        %v4144 = vsel %vm726, %v4129, 0.0
        %v4145 = vsel %vm727, %v4128, 0.0
        %v4146 = vsel %vm728, %v4127, 0.0
        %v4147 = vsel %vm729, %v4126, 0.0
        %v4148 = vsel %vm730, %v4125, 0.0
        %v4149 = vsel %vm731, %v4124, 0.0
        %v4150 = vsel %vm732, %v4123, 0.0
        %v4151 = vsel %vm733, %v4122, 0.0
        %v4152 = vsel %vm734, %v4121, 0.0
        %v4153 = vsel %vm735, %v4120, 0.0
        %v4154 = vsel %vm736, %v4119, 0.0
        %v4155 = vsel %vm737, %v4118, 0.0
        %v4156 = vsel %vm738, %v4117, 0.0
        %v4157 = vsel %vm739, %v4116, 0.0
        %v4158 = vsel %vm740, %v4115, 0.0
        %v4159 = vsel %vm741, %v4114, 0.0
        %v4160 = vsel %vm742, %v4113, 0.0
        %v4161 = vsel %vm743, %v4112, 0.0
        %v4162 = vsel %vm744, %v4111, 0.0
        %v4163 = vsel %vm745, %v4110, 0.0
        %v4164 = vsel %vm746, %v4109, 0.0
        %v4165 = vsel %vm747, %v4108, 0.0
        %v4166 = vsel %vm748, %v4107, 0.0
        %v4167 = vsel %vm749, %v4106, 0.0
        %v4168 = vsel %vm750, %v4105, 0.0
        %v4169 = vpack.c.bf16 %v4138, %v4137
        %v4170 = vpack.c.bf16 %v4140, %v4139
        %v4171 = vpack.c.bf16 %v4142, %v4141
        %v4172 = vpack.c.bf16 %v4144, %v4143
        %v4173 = vpack.c.bf16 %v4146, %v4145
        %v4174 = vpack.c.bf16 %v4148, %v4147
        %v4175 = vpack.c.bf16 %v4150, %v4149
        %v4176 = vpack.c.bf16 %v4152, %v4151
        %v4177 = vpack.c.bf16 %v4154, %v4153
        %v4178 = vpack.c.bf16 %v4156, %v4155
        %v4179 = vpack.c.bf16 %v4158, %v4157
        %v4180 = vpack.c.bf16 %v4160, %v4159
        %v4181 = vpack.c.bf16 %v4162, %v4161
        %v4182 = vpack.c.bf16 %v4164, %v4163
        %v4183 = vpack.c.bf16 %v4166, %v4165
        %v4184 = vpack.c.bf16 %v4168, %v4167
        %v4185 = vld [vmem:[%s5] sm:$0xf]
        %v4186 = vld [vmem:[%s5 + $0x4] sm:$0xf]
        %v4187 = vld [vmem:[%s5 + $0x8] sm:$0xf]
        %v4188 = vld [vmem:[%s5 + $0xc] sm:$0xf]
        %v4189 = vld [vmem:[%s5 + $0x10] sm:$0xf]
        %v4190 = vld [vmem:[%s5 + $0x14] sm:$0xf]
        %v4191 = vld [vmem:[%s5 + $0x18] sm:$0xf]
        %v4192 = vld [vmem:[%s5 + $0x1c] sm:$0xf]
        %v4193 = vld [vmem:[%s5 + $0x20] sm:$0xf]
        %v4194 = vld [vmem:[%s5 + $0x24] sm:$0xf]
        %v4195 = vld [vmem:[%s5 + $0x28] sm:$0xf]
        %v4196 = vld [vmem:[%s5 + $0x2c] sm:$0xf]
        %v4197 = vld [vmem:[%s5 + $0x30] sm:$0xf]
        %v4198 = vld [vmem:[%s5 + $0x34] sm:$0xf]
        %v4199 = vld [vmem:[%s5 + $0x38] sm:$0xf]
        %v4200 = vld [vmem:[%s5 + $0x3c] sm:$0xf]
        %v4217 = vunpack.c.l.b16 %v4185
        %v4218 = vunpack.c.l.b16 %v4186
        %v4219 = vunpack.c.l.b16 %v4187
        %v4220 = vunpack.c.l.b16 %v4188
        %v4221 = vunpack.c.l.b16 %v4189
        %v4222 = vunpack.c.l.b16 %v4190
        %v4223 = vunpack.c.l.b16 %v4191
        %v4224 = vunpack.c.l.b16 %v4192
        %v4225 = vunpack.c.l.b16 %v4193
        %v4226 = vunpack.c.l.b16 %v4194
        %v4227 = vunpack.c.l.b16 %v4195
        %v4228 = vunpack.c.l.b16 %v4196
        %v4229 = vunpack.c.l.b16 %v4197
        %v4230 = vunpack.c.l.b16 %v4198
        %v4231 = vunpack.c.l.b16 %v4199
        %v4232 = vunpack.c.l.b16 %v4200
        %v4233 = vpack.c.b16 %v4218, %v4217
        %v4234 = vpack.c.b16 %v4220, %v4219
        %v4235 = vpack.c.b16 %v4222, %v4221
        %v4236 = vpack.c.b16 %v4224, %v4223
        %v4237 = vpack.c.b16 %v4226, %v4225
        %v4238 = vpack.c.b16 %v4228, %v4227
        %v4239 = vpack.c.b16 %v4230, %v4229
        %v4240 = vpack.c.b16 %v4232, %v4231
        %4249 = vmatpush.bf16.msra.mxu0 %v4240
        %4250 = vmatpush.bf16.msra.mxu0 %v4239
        %4251 = vmatpush.bf16.msra.mxu0 %v4238
        %4252 = vmatpush.bf16.msra.mxu0 %v4237
        %4253 = vmatpush.bf16.msra.mxu0 %v4236
        %4254 = vmatpush.bf16.msra.mxu0 %v4235
        %4255 = vmatpush.bf16.msra.mxu0 %v4234
        %4256 = vmatpush.bf16.msra.mxu0 %v4233
        %4257 = vmatmul.bf16.gmra.mxu0 %v4169
        %v4258 = vpop.f32.mrf.mxu0
        %v4259 = vadd.f32 0.0, %v4258
        %v4260 = vpop.f32.mrf.mxu0
        %v4261 = vadd.f32 0.0, %v4260
        %4262 = vmatmul.bf16.gmra.mxu0 %v4170
        %v4263 = vpop.f32.mrf.mxu0
        %v4264 = vadd.f32 0.0, %v4263
        %v4265 = vpop.f32.mrf.mxu0
        %v4266 = vadd.f32 0.0, %v4265
        %4267 = vmatmul.bf16.gmra.mxu0 %v4171
        %v4268 = vpop.f32.mrf.mxu0
        %v4269 = vadd.f32 0.0, %v4268
        %v4270 = vpop.f32.mrf.mxu0
        %v4271 = vadd.f32 0.0, %v4270
        %4272 = vmatmul.bf16.gmra.mxu0 %v4172
        %v4273 = vpop.f32.mrf.mxu0
        %v4274 = vadd.f32 0.0, %v4273
        %v4275 = vpop.f32.mrf.mxu0
        %v4276 = vadd.f32 0.0, %v4275
        %4277 = vmatmul.bf16.gmra.mxu0 %v4173
        %v4278 = vpop.f32.mrf.mxu0
        %v4279 = vadd.f32 0.0, %v4278
        %v4280 = vpop.f32.mrf.mxu0
        %v4281 = vadd.f32 0.0, %v4280
        %4282 = vmatmul.bf16.gmra.mxu0 %v4174
        %v4283 = vpop.f32.mrf.mxu0
        %v4284 = vadd.f32 0.0, %v4283
        %v4285 = vpop.f32.mrf.mxu0
        %v4286 = vadd.f32 0.0, %v4285
        %4287 = vmatmul.bf16.gmra.mxu0 %v4175
        %v4288 = vpop.f32.mrf.mxu0
        %v4289 = vadd.f32 0.0, %v4288
        %v4290 = vpop.f32.mrf.mxu0
        %v4291 = vadd.f32 0.0, %v4290
        %4292 = vmatmul.bf16.gmra.mxu0 %v4176
        %v4293 = vpop.f32.mrf.mxu0
        %v4294 = vadd.f32 0.0, %v4293
        %v4295 = vpop.f32.mrf.mxu0
        %v4296 = vadd.f32 0.0, %v4295
        %4297 = vmatmul.bf16.gmra.mxu0 %v4177
        %v4298 = vpop.f32.mrf.mxu0
        %v4299 = vadd.f32 0.0, %v4298
        %v4300 = vpop.f32.mrf.mxu0
        %v4301 = vadd.f32 0.0, %v4300
        %4302 = vmatmul.bf16.gmra.mxu0 %v4178
        %v4303 = vpop.f32.mrf.mxu0
        %v4304 = vadd.f32 0.0, %v4303
        %v4305 = vpop.f32.mrf.mxu0
        %v4306 = vadd.f32 0.0, %v4305
        %4307 = vmatmul.bf16.gmra.mxu0 %v4179
        %v4308 = vpop.f32.mrf.mxu0
        %v4309 = vadd.f32 0.0, %v4308
        %v4310 = vpop.f32.mrf.mxu0
        %v4311 = vadd.f32 0.0, %v4310
        %4312 = vmatmul.bf16.gmra.mxu0 %v4180
        %v4313 = vpop.f32.mrf.mxu0
        %v4314 = vadd.f32 0.0, %v4313
        %v4315 = vpop.f32.mrf.mxu0
        %v4316 = vadd.f32 0.0, %v4315
        %4317 = vmatmul.bf16.gmra.mxu0 %v4181
        %v4318 = vpop.f32.mrf.mxu0
        %v4319 = vadd.f32 0.0, %v4318
        %v4320 = vpop.f32.mrf.mxu0
        %v4321 = vadd.f32 0.0, %v4320
        %4322 = vmatmul.bf16.gmra.mxu0 %v4182
        %v4323 = vpop.f32.mrf.mxu0
        %v4324 = vadd.f32 0.0, %v4323
        %v4325 = vpop.f32.mrf.mxu0
        %v4326 = vadd.f32 0.0, %v4325
        %4327 = vmatmul.bf16.gmra.mxu0 %v4183
        %v4328 = vpop.f32.mrf.mxu0
        %v4329 = vadd.f32 0.0, %v4328
        %v4330 = vpop.f32.mrf.mxu0
        %v4331 = vadd.f32 0.0, %v4330
        %4332 = vmatmul.bf16.gmra.mxu0 %v4184
        %v4333 = vpop.f32.mrf.mxu0
        %v4334 = vadd.f32 0.0, %v4333
        %v4335 = vpop.f32.mrf.mxu0
        %v4336 = vadd.f32 0.0, %v4335
        %4337 = vdwg.mxu0
        %v4354 = vunpack.c.l.b16 %v4057
        %v4355 = vunpack.c.l.b16 %v4058
        %v4356 = vunpack.c.l.b16 %v4059
        %v4357 = vunpack.c.l.b16 %v4060
        %v4358 = vunpack.c.l.b16 %v4061
        %v4359 = vunpack.c.l.b16 %v4062
        %v4360 = vunpack.c.l.b16 %v4063
        %v4361 = vunpack.c.l.b16 %v4064
        %v4362 = vunpack.c.l.b16 %v4065
        %v4363 = vunpack.c.l.b16 %v4066
        %v4364 = vunpack.c.l.b16 %v4067
        %v4365 = vunpack.c.l.b16 %v4068
        %v4366 = vunpack.c.l.b16 %v4069
        %v4367 = vunpack.c.l.b16 %v4070
        %v4368 = vunpack.c.l.b16 %v4071
        %v4369 = vunpack.c.l.b16 %v4072
        %v4370 = vpack.c.b16 %v4355, %v4354
        %v4371 = vpack.c.b16 %v4357, %v4356
        %v4372 = vpack.c.b16 %v4359, %v4358
        %v4373 = vpack.c.b16 %v4361, %v4360
        %v4374 = vpack.c.b16 %v4363, %v4362
        %v4375 = vpack.c.b16 %v4365, %v4364
        %v4376 = vpack.c.b16 %v4367, %v4366
        %v4377 = vpack.c.b16 %v4369, %v4368
        %4386 = vmatpush.bf16.msra.mxu0 %v4377
        %4387 = vmatpush.bf16.msra.mxu0 %v4376
        %4388 = vmatpush.bf16.msra.mxu0 %v4375
        %4389 = vmatpush.bf16.msra.mxu0 %v4374
        %4390 = vmatpush.bf16.msra.mxu0 %v4373
        %4391 = vmatpush.bf16.msra.mxu0 %v4372
        %4392 = vmatpush.bf16.msra.mxu0 %v4371
        %4393 = vmatpush.bf16.msra.mxu0 %v4370
        %4394 = vmatmul.bf16.gmra.mxu0 %v4040
        %v4395 = vpop.f32.mrf.mxu0
        %v4396 = vadd.f32 %v4259, %v4395
        %v4397 = vpop.f32.mrf.mxu0
        %v4398 = vadd.f32 %v4261, %v4397
        %4399 = vmatmul.bf16.gmra.mxu0 %v4041
        %v4400 = vpop.f32.mrf.mxu0
        %v4401 = vadd.f32 %v4264, %v4400
        %v4402 = vpop.f32.mrf.mxu0
        %v4403 = vadd.f32 %v4266, %v4402
        %4404 = vmatmul.bf16.gmra.mxu0 %v4042
        %v4405 = vpop.f32.mrf.mxu0
        %v4406 = vadd.f32 %v4269, %v4405
        %v4407 = vpop.f32.mrf.mxu0
        %v4408 = vadd.f32 %v4271, %v4407
        %4409 = vmatmul.bf16.gmra.mxu0 %v4043
        %v4410 = vpop.f32.mrf.mxu0
        %v4411 = vadd.f32 %v4274, %v4410
        %v4412 = vpop.f32.mrf.mxu0
        %v4413 = vadd.f32 %v4276, %v4412
        %4414 = vmatmul.bf16.gmra.mxu0 %v4044
        %v4415 = vpop.f32.mrf.mxu0
        %v4416 = vadd.f32 %v4279, %v4415
        %v4417 = vpop.f32.mrf.mxu0
        %v4418 = vadd.f32 %v4281, %v4417
        %4419 = vmatmul.bf16.gmra.mxu0 %v4045
        %v4420 = vpop.f32.mrf.mxu0
        %v4421 = vadd.f32 %v4284, %v4420
        %v4422 = vpop.f32.mrf.mxu0
        %v4423 = vadd.f32 %v4286, %v4422
        %4424 = vmatmul.bf16.gmra.mxu0 %v4046
        %v4425 = vpop.f32.mrf.mxu0
        %v4426 = vadd.f32 %v4289, %v4425
        %v4427 = vpop.f32.mrf.mxu0
        %v4428 = vadd.f32 %v4291, %v4427
        %4429 = vmatmul.bf16.gmra.mxu0 %v4047
        %v4430 = vpop.f32.mrf.mxu0
        %v4431 = vadd.f32 %v4294, %v4430
        %v4432 = vpop.f32.mrf.mxu0
        %v4433 = vadd.f32 %v4296, %v4432
        %4434 = vmatmul.bf16.gmra.mxu0 %v4048
        %v4435 = vpop.f32.mrf.mxu0
        %v4436 = vadd.f32 %v4299, %v4435
        %v4437 = vpop.f32.mrf.mxu0
        %v4438 = vadd.f32 %v4301, %v4437
        %4439 = vmatmul.bf16.gmra.mxu0 %v4049
        %v4440 = vpop.f32.mrf.mxu0
        %v4441 = vadd.f32 %v4304, %v4440
        %v4442 = vpop.f32.mrf.mxu0
        %v4443 = vadd.f32 %v4306, %v4442
        %4444 = vmatmul.bf16.gmra.mxu0 %v4050
        %v4445 = vpop.f32.mrf.mxu0
        %v4446 = vadd.f32 %v4309, %v4445
        %v4447 = vpop.f32.mrf.mxu0
        %v4448 = vadd.f32 %v4311, %v4447
        %4449 = vmatmul.bf16.gmra.mxu0 %v4051
        %v4450 = vpop.f32.mrf.mxu0
        %v4451 = vadd.f32 %v4314, %v4450
        %v4452 = vpop.f32.mrf.mxu0
        %v4453 = vadd.f32 %v4316, %v4452
        %4454 = vmatmul.bf16.gmra.mxu0 %v4052
        %v4455 = vpop.f32.mrf.mxu0
        %v4456 = vadd.f32 %v4319, %v4455
        %v4457 = vpop.f32.mrf.mxu0
        %v4458 = vadd.f32 %v4321, %v4457
        %4459 = vmatmul.bf16.gmra.mxu0 %v4053
        %v4460 = vpop.f32.mrf.mxu0
        %v4461 = vadd.f32 %v4324, %v4460
        %v4462 = vpop.f32.mrf.mxu0
        %v4463 = vadd.f32 %v4326, %v4462
        %4464 = vmatmul.bf16.gmra.mxu0 %v4054
        %v4465 = vpop.f32.mrf.mxu0
        %v4466 = vadd.f32 %v4329, %v4465
        %v4467 = vpop.f32.mrf.mxu0
        %v4468 = vadd.f32 %v4331, %v4467
        %4469 = vmatmul.bf16.gmra.mxu0 %v4055
        %v4470 = vpop.f32.mrf.mxu0
        %v4471 = vadd.f32 %v4334, %v4470
        %v4472 = vpop.f32.mrf.mxu0
        %v4473 = vadd.f32 %v4336, %v4472
        %4474 = vdwg.mxu0
        %v4475 = vrot.slane %v4008, 7
        %v4476 = vrot.slane %v4009, 7
        %v4477 = vrot.slane %v4010, 7
        %v4478 = vrot.slane %v4011, 7
        %v4479 = vrot.slane %v4012, 7
        %v4480 = vrot.slane %v4013, 7
        %v4481 = vrot.slane %v4014, 7
        %v4482 = vrot.slane %v4015, 7
        %v4483 = vrot.slane %v4016, 7
        %v4484 = vrot.slane %v4017, 7
        %v4485 = vrot.slane %v4018, 7
        %v4486 = vrot.slane %v4019, 7
        %v4487 = vrot.slane %v4020, 7
        %v4488 = vrot.slane %v4021, 7
        %v4489 = vrot.slane %v4022, 7
        %v4490 = vrot.slane %v4023, 7
        %v4491 = vrot.slane %v4024, 7
        %v4492 = vrot.slane %v4025, 7
        %v4493 = vrot.slane %v4026, 7
        %v4494 = vrot.slane %v4027, 7
        %v4495 = vrot.slane %v4028, 7
        %v4496 = vrot.slane %v4029, 7
        %v4497 = vrot.slane %v4030, 7
        %v4498 = vrot.slane %v4031, 7
        %v4499 = vrot.slane %v4032, 7
        %v4500 = vrot.slane %v4033, 7
        %v4501 = vrot.slane %v4034, 7
        %v4502 = vrot.slane %v4035, 7
        %v4503 = vrot.slane %v4036, 7
        %v4504 = vrot.slane %v4037, 7
        %v4505 = vrot.slane %v4038, 7
        %v4506 = vrot.slane %v4039, 7
        %v4507 = vsel %vm1134, %v4505, %v4506
        %v4508 = vsel %vm1134, %v4504, %v4505
        %v4509 = vsel %vm1134, %v4503, %v4504
        %v4510 = vsel %vm1134, %v4502, %v4503
        %v4511 = vsel %vm1134, %v4501, %v4502
        %v4512 = vsel %vm1134, %v4500, %v4501
        %v4513 = vsel %vm1134, %v4499, %v4500
        %v4514 = vsel %vm1134, %v4498, %v4499
        %v4515 = vsel %vm1134, %v4497, %v4498
        %v4516 = vsel %vm1134, %v4496, %v4497
        %v4517 = vsel %vm1134, %v4495, %v4496
        %v4518 = vsel %vm1134, %v4494, %v4495
        %v4519 = vsel %vm1134, %v4493, %v4494
        %v4520 = vsel %vm1134, %v4492, %v4493
        %v4521 = vsel %vm1134, %v4491, %v4492
        %v4522 = vsel %vm1134, %v4490, %v4491
        %v4523 = vsel %vm1134, %v4489, %v4490
        %v4524 = vsel %vm1134, %v4488, %v4489
        %v4525 = vsel %vm1134, %v4487, %v4488
        %v4526 = vsel %vm1134, %v4486, %v4487
        %v4527 = vsel %vm1134, %v4485, %v4486
        %v4528 = vsel %vm1134, %v4484, %v4485
        %v4529 = vsel %vm1134, %v4483, %v4484
        %v4530 = vsel %vm1134, %v4482, %v4483
        %v4531 = vsel %vm1134, %v4481, %v4482
        %v4532 = vsel %vm1134, %v4480, %v4481
        %v4533 = vsel %vm1134, %v4479, %v4480
        %v4534 = vsel %vm1134, %v4478, %v4479
        %v4535 = vsel %vm1134, %v4477, %v4478
        %v4536 = vsel %vm1134, %v4476, %v4477
        %v4537 = vsel %vm1134, %v4475, %v4476
        %v4538 = vsel %vm1134, %v4506, %v4475
        %v4539 = vsel %vm1327, %v4538, 0.0
        %v4540 = vsel %vm1328, %v4537, 0.0
        %v4541 = vsel %vm1329, %v4536, 0.0
        %v4542 = vsel %vm1330, %v4535, 0.0
        %v4543 = vsel %vm1331, %v4534, 0.0
        %v4544 = vsel %vm1332, %v4533, 0.0
        %v4545 = vsel %vm1333, %v4532, 0.0
        %v4546 = vsel %vm1334, %v4531, 0.0
        %v4547 = vsel %vm1335, %v4530, 0.0
        %v4548 = vsel %vm1336, %v4529, 0.0
        %v4549 = vsel %vm1337, %v4528, 0.0
        %v4550 = vsel %vm1338, %v4527, 0.0
        %v4551 = vsel %vm1339, %v4526, 0.0
        %v4552 = vsel %vm1340, %v4525, 0.0
        %v4553 = vsel %vm1341, %v4524, 0.0
        %v4554 = vsel %vm1342, %v4523, 0.0
        %v4555 = vsel %vm1343, %v4522, 0.0
        %v4556 = vsel %vm1344, %v4521, 0.0
        %v4557 = vsel %vm1345, %v4520, 0.0
        %v4558 = vsel %vm1346, %v4519, 0.0
        %v4559 = vsel %vm1347, %v4518, 0.0
        %v4560 = vsel %vm1348, %v4517, 0.0
        %v4561 = vsel %vm1349, %v4516, 0.0
        %v4562 = vsel %vm1350, %v4515, 0.0
        %v4563 = vsel %vm1351, %v4514, 0.0
        %v4564 = vsel %vm1352, %v4513, 0.0
        %v4565 = vsel %vm1353, %v4512, 0.0
        %v4566 = vsel %vm1354, %v4511, 0.0
        %v4567 = vsel %vm1355, %v4510, 0.0
        %v4568 = vsel %vm1356, %v4509, 0.0
        %v4569 = vsel %vm1357, %v4508, 0.0
        %v4570 = vsel %vm1358, %v4507, 0.0
        %v4571 = vpack.c.bf16 %v4540, %v4539
        %v4572 = vpack.c.bf16 %v4542, %v4541
        %v4573 = vpack.c.bf16 %v4544, %v4543
        %v4574 = vpack.c.bf16 %v4546, %v4545
        %v4575 = vpack.c.bf16 %v4548, %v4547
        %v4576 = vpack.c.bf16 %v4550, %v4549
        %v4577 = vpack.c.bf16 %v4552, %v4551
        %v4578 = vpack.c.bf16 %v4554, %v4553
        %v4579 = vpack.c.bf16 %v4556, %v4555
        %v4580 = vpack.c.bf16 %v4558, %v4557
        %v4581 = vpack.c.bf16 %v4560, %v4559
        %v4582 = vpack.c.bf16 %v4562, %v4561
        %v4583 = vpack.c.bf16 %v4564, %v4563
        %v4584 = vpack.c.bf16 %v4566, %v4565
        %v4585 = vpack.c.bf16 %v4568, %v4567
        %v4586 = vpack.c.bf16 %v4570, %v4569
        %s4587 = scalar_lea.vmem %s5, 64
        %v4588 = vld [vmem:[%s4587] sm:$0xf]
        %v4589 = vld [vmem:[%s4587 + $0x4] sm:$0xf]
        %v4590 = vld [vmem:[%s4587 + $0x8] sm:$0xf]
        %v4591 = vld [vmem:[%s4587 + $0xc] sm:$0xf]
        %v4592 = vld [vmem:[%s4587 + $0x10] sm:$0xf]
        %v4593 = vld [vmem:[%s4587 + $0x14] sm:$0xf]
        %v4594 = vld [vmem:[%s4587 + $0x18] sm:$0xf]
        %v4595 = vld [vmem:[%s4587 + $0x1c] sm:$0xf]
        %v4596 = vld [vmem:[%s4587 + $0x20] sm:$0xf]
        %v4597 = vld [vmem:[%s4587 + $0x24] sm:$0xf]
        %v4598 = vld [vmem:[%s4587 + $0x28] sm:$0xf]
        %v4599 = vld [vmem:[%s4587 + $0x2c] sm:$0xf]
        %v4600 = vld [vmem:[%s4587 + $0x30] sm:$0xf]
        %v4601 = vld [vmem:[%s4587 + $0x34] sm:$0xf]
        %v4602 = vld [vmem:[%s4587 + $0x38] sm:$0xf]
        %v4603 = vld [vmem:[%s4587 + $0x3c] sm:$0xf]
        %v4620 = vunpack.c.l.b16 %v4588
        %v4621 = vunpack.c.l.b16 %v4589
        %v4622 = vunpack.c.l.b16 %v4590
        %v4623 = vunpack.c.l.b16 %v4591
        %v4624 = vunpack.c.l.b16 %v4592
        %v4625 = vunpack.c.l.b16 %v4593
        %v4626 = vunpack.c.l.b16 %v4594
        %v4627 = vunpack.c.l.b16 %v4595
        %v4628 = vunpack.c.l.b16 %v4596
        %v4629 = vunpack.c.l.b16 %v4597
        %v4630 = vunpack.c.l.b16 %v4598
        %v4631 = vunpack.c.l.b16 %v4599
        %v4632 = vunpack.c.l.b16 %v4600
        %v4633 = vunpack.c.l.b16 %v4601
        %v4634 = vunpack.c.l.b16 %v4602
        %v4635 = vunpack.c.l.b16 %v4603
        %v4636 = vpack.c.b16 %v4621, %v4620
        %v4637 = vpack.c.b16 %v4623, %v4622
        %v4638 = vpack.c.b16 %v4625, %v4624
        %v4639 = vpack.c.b16 %v4627, %v4626
        %v4640 = vpack.c.b16 %v4629, %v4628
        %v4641 = vpack.c.b16 %v4631, %v4630
        %v4642 = vpack.c.b16 %v4633, %v4632
        %v4643 = vpack.c.b16 %v4635, %v4634
        %4652 = vmatpush.bf16.msra.mxu0 %v4643
        %4653 = vmatpush.bf16.msra.mxu0 %v4642
        %4654 = vmatpush.bf16.msra.mxu0 %v4641
        %4655 = vmatpush.bf16.msra.mxu0 %v4640
        %4656 = vmatpush.bf16.msra.mxu0 %v4639
        %4657 = vmatpush.bf16.msra.mxu0 %v4638
        %4658 = vmatpush.bf16.msra.mxu0 %v4637
        %4659 = vmatpush.bf16.msra.mxu0 %v4636
        %4660 = vmatmul.bf16.gmra.mxu0 %v4571
        %v4661 = vpop.f32.mrf.mxu0
        %v4662 = vadd.f32 0.0, %v4661
        %v4663 = vpop.f32.mrf.mxu0
        %v4664 = vadd.f32 0.0, %v4663
        %4665 = vmatmul.bf16.gmra.mxu0 %v4572
        %v4666 = vpop.f32.mrf.mxu0
        %v4667 = vadd.f32 0.0, %v4666
        %v4668 = vpop.f32.mrf.mxu0
        %v4669 = vadd.f32 0.0, %v4668
        %4670 = vmatmul.bf16.gmra.mxu0 %v4573
        %v4671 = vpop.f32.mrf.mxu0
        %v4672 = vadd.f32 0.0, %v4671
        %v4673 = vpop.f32.mrf.mxu0
        %v4674 = vadd.f32 0.0, %v4673
        %4675 = vmatmul.bf16.gmra.mxu0 %v4574
        %v4676 = vpop.f32.mrf.mxu0
        %v4677 = vadd.f32 0.0, %v4676
        %v4678 = vpop.f32.mrf.mxu0
        %v4679 = vadd.f32 0.0, %v4678
        %4680 = vmatmul.bf16.gmra.mxu0 %v4575
        %v4681 = vpop.f32.mrf.mxu0
        %v4682 = vadd.f32 0.0, %v4681
        %v4683 = vpop.f32.mrf.mxu0
        %v4684 = vadd.f32 0.0, %v4683
        %4685 = vmatmul.bf16.gmra.mxu0 %v4576
        %v4686 = vpop.f32.mrf.mxu0
        %v4687 = vadd.f32 0.0, %v4686
        %v4688 = vpop.f32.mrf.mxu0
        %v4689 = vadd.f32 0.0, %v4688
        %4690 = vmatmul.bf16.gmra.mxu0 %v4577
        %v4691 = vpop.f32.mrf.mxu0
        %v4692 = vadd.f32 0.0, %v4691
        %v4693 = vpop.f32.mrf.mxu0
        %v4694 = vadd.f32 0.0, %v4693
        %4695 = vmatmul.bf16.gmra.mxu0 %v4578
        %v4696 = vpop.f32.mrf.mxu0
        %v4697 = vadd.f32 0.0, %v4696
        %v4698 = vpop.f32.mrf.mxu0
        %v4699 = vadd.f32 0.0, %v4698
        %4700 = vmatmul.bf16.gmra.mxu0 %v4579
        %v4701 = vpop.f32.mrf.mxu0
        %v4702 = vadd.f32 0.0, %v4701
        %v4703 = vpop.f32.mrf.mxu0
        %v4704 = vadd.f32 0.0, %v4703
        %4705 = vmatmul.bf16.gmra.mxu0 %v4580
        %v4706 = vpop.f32.mrf.mxu0
        %v4707 = vadd.f32 0.0, %v4706
        %v4708 = vpop.f32.mrf.mxu0
        %v4709 = vadd.f32 0.0, %v4708
        %4710 = vmatmul.bf16.gmra.mxu0 %v4581
        %v4711 = vpop.f32.mrf.mxu0
        %v4712 = vadd.f32 0.0, %v4711
        %v4713 = vpop.f32.mrf.mxu0
        %v4714 = vadd.f32 0.0, %v4713
        %4715 = vmatmul.bf16.gmra.mxu0 %v4582
        %v4716 = vpop.f32.mrf.mxu0
        %v4717 = vadd.f32 0.0, %v4716
        %v4718 = vpop.f32.mrf.mxu0
        %v4719 = vadd.f32 0.0, %v4718
        %4720 = vmatmul.bf16.gmra.mxu0 %v4583
        %v4721 = vpop.f32.mrf.mxu0
        %v4722 = vadd.f32 0.0, %v4721
        %v4723 = vpop.f32.mrf.mxu0
        %v4724 = vadd.f32 0.0, %v4723
        %4725 = vmatmul.bf16.gmra.mxu0 %v4584
        %v4726 = vpop.f32.mrf.mxu0
        %v4727 = vadd.f32 0.0, %v4726
        %v4728 = vpop.f32.mrf.mxu0
        %v4729 = vadd.f32 0.0, %v4728
        %4730 = vmatmul.bf16.gmra.mxu0 %v4585
        %v4731 = vpop.f32.mrf.mxu0
        %v4732 = vadd.f32 0.0, %v4731
        %v4733 = vpop.f32.mrf.mxu0
        %v4734 = vadd.f32 0.0, %v4733
        %4735 = vmatmul.bf16.gmra.mxu0 %v4586
        %v4736 = vpop.f32.mrf.mxu0
        %v4737 = vadd.f32 0.0, %v4736
        %v4738 = vpop.f32.mrf.mxu0
        %v4739 = vadd.f32 0.0, %v4738
        %4740 = vdwg.mxu0
        %v4741 = vadd.f32 %v4396, %v4662
        %v4742 = vadd.f32 %v4398, %v4664
        %v4743 = vadd.f32 %v4401, %v4667
        %v4744 = vadd.f32 %v4403, %v4669
        %v4745 = vadd.f32 %v4406, %v4672
        %v4746 = vadd.f32 %v4408, %v4674
        %v4747 = vadd.f32 %v4411, %v4677
        %v4748 = vadd.f32 %v4413, %v4679
        %v4749 = vadd.f32 %v4416, %v4682
        %v4750 = vadd.f32 %v4418, %v4684
        %v4751 = vadd.f32 %v4421, %v4687
        %v4752 = vadd.f32 %v4423, %v4689
        %v4753 = vadd.f32 %v4426, %v4692
        %v4754 = vadd.f32 %v4428, %v4694
        %v4755 = vadd.f32 %v4431, %v4697
        %v4756 = vadd.f32 %v4433, %v4699
        %v4757 = vadd.f32 %v4436, %v4702
        %v4758 = vadd.f32 %v4438, %v4704
        %v4759 = vadd.f32 %v4441, %v4707
        %v4760 = vadd.f32 %v4443, %v4709
        %v4761 = vadd.f32 %v4446, %v4712
        %v4762 = vadd.f32 %v4448, %v4714
        %v4763 = vadd.f32 %v4451, %v4717
        %v4764 = vadd.f32 %v4453, %v4719
        %v4765 = vadd.f32 %v4456, %v4722
        %v4766 = vadd.f32 %v4458, %v4724
        %v4767 = vadd.f32 %v4461, %v4727
        %v4768 = vadd.f32 %v4463, %v4729
        %v4769 = vadd.f32 %v4466, %v4732
        %v4770 = vadd.f32 %v4468, %v4734
        %v4771 = vadd.f32 %v4471, %v4737
        %v4772 = vadd.f32 %v4473, %v4739
        %v4773 = vrot.slane %v4008, 1
        %v4774 = vrot.slane %v4009, 1
        %v4775 = vrot.slane %v4010, 1
        %v4776 = vrot.slane %v4011, 1
        %v4777 = vrot.slane %v4012, 1
        %v4778 = vrot.slane %v4013, 1
        %v4779 = vrot.slane %v4014, 1
        %v4780 = vrot.slane %v4015, 1
        %v4781 = vrot.slane %v4016, 1
        %v4782 = vrot.slane %v4017, 1
        %v4783 = vrot.slane %v4018, 1
        %v4784 = vrot.slane %v4019, 1
        %v4785 = vrot.slane %v4020, 1
        %v4786 = vrot.slane %v4021, 1
        %v4787 = vrot.slane %v4022, 1
        %v4788 = vrot.slane %v4023, 1
        %v4789 = vrot.slane %v4024, 1
        %v4790 = vrot.slane %v4025, 1
        %v4791 = vrot.slane %v4026, 1
        %v4792 = vrot.slane %v4027, 1
        %v4793 = vrot.slane %v4028, 1
        %v4794 = vrot.slane %v4029, 1
        %v4795 = vrot.slane %v4030, 1
        %v4796 = vrot.slane %v4031, 1
        %v4797 = vrot.slane %v4032, 1
        %v4798 = vrot.slane %v4033, 1
        %v4799 = vrot.slane %v4034, 1
        %v4800 = vrot.slane %v4035, 1
        %v4801 = vrot.slane %v4036, 1
        %v4802 = vrot.slane %v4037, 1
        %v4803 = vrot.slane %v4038, 1
        %v4804 = vrot.slane %v4039, 1
        %v4805 = vsel %vm1625, %v4803, %v4804
        %v4806 = vsel %vm1625, %v4802, %v4803
        %v4807 = vsel %vm1625, %v4801, %v4802
        %v4808 = vsel %vm1625, %v4800, %v4801
        %v4809 = vsel %vm1625, %v4799, %v4800
        %v4810 = vsel %vm1625, %v4798, %v4799
        %v4811 = vsel %vm1625, %v4797, %v4798
        %v4812 = vsel %vm1625, %v4796, %v4797
        %v4813 = vsel %vm1625, %v4795, %v4796
        %v4814 = vsel %vm1625, %v4794, %v4795
        %v4815 = vsel %vm1625, %v4793, %v4794
        %v4816 = vsel %vm1625, %v4792, %v4793
        %v4817 = vsel %vm1625, %v4791, %v4792
        %v4818 = vsel %vm1625, %v4790, %v4791
        %v4819 = vsel %vm1625, %v4789, %v4790
        %v4820 = vsel %vm1625, %v4788, %v4789
        %v4821 = vsel %vm1625, %v4787, %v4788
        %v4822 = vsel %vm1625, %v4786, %v4787
        %v4823 = vsel %vm1625, %v4785, %v4786
        %v4824 = vsel %vm1625, %v4784, %v4785
        %v4825 = vsel %vm1625, %v4783, %v4784
        %v4826 = vsel %vm1625, %v4782, %v4783
        %v4827 = vsel %vm1625, %v4781, %v4782
        %v4828 = vsel %vm1625, %v4780, %v4781
        %v4829 = vsel %vm1625, %v4779, %v4780
        %v4830 = vsel %vm1625, %v4778, %v4779
        %v4831 = vsel %vm1625, %v4777, %v4778
        %v4832 = vsel %vm1625, %v4776, %v4777
        %v4833 = vsel %vm1625, %v4775, %v4776
        %v4834 = vsel %vm1625, %v4774, %v4775
        %v4835 = vsel %vm1625, %v4773, %v4774
        %v4836 = vsel %vm1625, %v4804, %v4773
        %v4837 = vsel %vm1818, %v4835, 0.0
        %v4838 = vsel %vm1819, %v4834, 0.0
        %v4839 = vsel %vm1820, %v4833, 0.0
        %v4840 = vsel %vm1821, %v4832, 0.0
        %v4841 = vsel %vm1822, %v4831, 0.0
        %v4842 = vsel %vm1823, %v4830, 0.0
        %v4843 = vsel %vm1824, %v4829, 0.0
        %v4844 = vsel %vm1825, %v4828, 0.0
        %v4845 = vsel %vm1826, %v4827, 0.0
        %v4846 = vsel %vm1827, %v4826, 0.0
        %v4847 = vsel %vm1828, %v4825, 0.0
        %v4848 = vsel %vm1829, %v4824, 0.0
        %v4849 = vsel %vm1830, %v4823, 0.0
        %v4850 = vsel %vm1831, %v4822, 0.0
        %v4851 = vsel %vm1832, %v4821, 0.0
        %v4852 = vsel %vm1833, %v4820, 0.0
        %v4853 = vsel %vm1834, %v4819, 0.0
        %v4854 = vsel %vm1835, %v4818, 0.0
        %v4855 = vsel %vm1836, %v4817, 0.0
        %v4856 = vsel %vm1837, %v4816, 0.0
        %v4857 = vsel %vm1838, %v4815, 0.0
        %v4858 = vsel %vm1839, %v4814, 0.0
        %v4859 = vsel %vm1840, %v4813, 0.0
        %v4860 = vsel %vm1841, %v4812, 0.0
        %v4861 = vsel %vm1842, %v4811, 0.0
        %v4862 = vsel %vm1843, %v4810, 0.0
        %v4863 = vsel %vm1844, %v4809, 0.0
        %v4864 = vsel %vm1845, %v4808, 0.0
        %v4865 = vsel %vm1846, %v4807, 0.0
        %v4866 = vsel %vm1847, %v4806, 0.0
        %v4867 = vsel %vm1848, %v4805, 0.0
        %v4868 = vsel %vm1849, %v4836, 0.0
        %v4869 = vpack.c.bf16 %v4838, %v4837
        %v4870 = vpack.c.bf16 %v4840, %v4839
        %v4871 = vpack.c.bf16 %v4842, %v4841
        %v4872 = vpack.c.bf16 %v4844, %v4843
        %v4873 = vpack.c.bf16 %v4846, %v4845
        %v4874 = vpack.c.bf16 %v4848, %v4847
        %v4875 = vpack.c.bf16 %v4850, %v4849
        %v4876 = vpack.c.bf16 %v4852, %v4851
        %v4877 = vpack.c.bf16 %v4854, %v4853
        %v4878 = vpack.c.bf16 %v4856, %v4855
        %v4879 = vpack.c.bf16 %v4858, %v4857
        %v4880 = vpack.c.bf16 %v4860, %v4859
        %v4881 = vpack.c.bf16 %v4862, %v4861
        %v4882 = vpack.c.bf16 %v4864, %v4863
        %v4883 = vpack.c.bf16 %v4866, %v4865
        %v4884 = vpack.c.bf16 %v4868, %v4867
        %s4885 = scalar_lea.vmem %s5, 192
        %v4886 = vld [vmem:[%s4885] sm:$0xf]
        %v4887 = vld [vmem:[%s4885 + $0x4] sm:$0xf]
        %v4888 = vld [vmem:[%s4885 + $0x8] sm:$0xf]
        %v4889 = vld [vmem:[%s4885 + $0xc] sm:$0xf]
        %v4890 = vld [vmem:[%s4885 + $0x10] sm:$0xf]
        %v4891 = vld [vmem:[%s4885 + $0x14] sm:$0xf]
        %v4892 = vld [vmem:[%s4885 + $0x18] sm:$0xf]
        %v4893 = vld [vmem:[%s4885 + $0x1c] sm:$0xf]
        %v4894 = vld [vmem:[%s4885 + $0x20] sm:$0xf]
        %v4895 = vld [vmem:[%s4885 + $0x24] sm:$0xf]
        %v4896 = vld [vmem:[%s4885 + $0x28] sm:$0xf]
        %v4897 = vld [vmem:[%s4885 + $0x2c] sm:$0xf]
        %v4898 = vld [vmem:[%s4885 + $0x30] sm:$0xf]
        %v4899 = vld [vmem:[%s4885 + $0x34] sm:$0xf]
        %v4900 = vld [vmem:[%s4885 + $0x38] sm:$0xf]
        %v4901 = vld [vmem:[%s4885 + $0x3c] sm:$0xf]
        %v4918 = vunpack.c.l.b16 %v4886
        %v4919 = vunpack.c.l.b16 %v4887
        %v4920 = vunpack.c.l.b16 %v4888
        %v4921 = vunpack.c.l.b16 %v4889
        %v4922 = vunpack.c.l.b16 %v4890
        %v4923 = vunpack.c.l.b16 %v4891
        %v4924 = vunpack.c.l.b16 %v4892
        %v4925 = vunpack.c.l.b16 %v4893
        %v4926 = vunpack.c.l.b16 %v4894
        %v4927 = vunpack.c.l.b16 %v4895
        %v4928 = vunpack.c.l.b16 %v4896
        %v4929 = vunpack.c.l.b16 %v4897
        %v4930 = vunpack.c.l.b16 %v4898
        %v4931 = vunpack.c.l.b16 %v4899
        %v4932 = vunpack.c.l.b16 %v4900
        %v4933 = vunpack.c.l.b16 %v4901
        %v4934 = vpack.c.b16 %v4919, %v4918
        %v4935 = vpack.c.b16 %v4921, %v4920
        %v4936 = vpack.c.b16 %v4923, %v4922
        %v4937 = vpack.c.b16 %v4925, %v4924
        %v4938 = vpack.c.b16 %v4927, %v4926
        %v4939 = vpack.c.b16 %v4929, %v4928
        %v4940 = vpack.c.b16 %v4931, %v4930
        %v4941 = vpack.c.b16 %v4933, %v4932
        %4950 = vmatpush.bf16.msra.mxu0 %v4941
        %4951 = vmatpush.bf16.msra.mxu0 %v4940
        %4952 = vmatpush.bf16.msra.mxu0 %v4939
        %4953 = vmatpush.bf16.msra.mxu0 %v4938
        %4954 = vmatpush.bf16.msra.mxu0 %v4937
        %4955 = vmatpush.bf16.msra.mxu0 %v4936
        %4956 = vmatpush.bf16.msra.mxu0 %v4935
        %4957 = vmatpush.bf16.msra.mxu0 %v4934
        %4958 = vmatmul.bf16.gmra.mxu0 %v4869
        %v4959 = vpop.f32.mrf.mxu0
        %v4960 = vadd.f32 0.0, %v4959
        %v4961 = vpop.f32.mrf.mxu0
        %v4962 = vadd.f32 0.0, %v4961
        %4963 = vmatmul.bf16.gmra.mxu0 %v4870
        %v4964 = vpop.f32.mrf.mxu0
        %v4965 = vadd.f32 0.0, %v4964
        %v4966 = vpop.f32.mrf.mxu0
        %v4967 = vadd.f32 0.0, %v4966
        %4968 = vmatmul.bf16.gmra.mxu0 %v4871
        %v4969 = vpop.f32.mrf.mxu0
        %v4970 = vadd.f32 0.0, %v4969
        %v4971 = vpop.f32.mrf.mxu0
        %v4972 = vadd.f32 0.0, %v4971
        %4973 = vmatmul.bf16.gmra.mxu0 %v4872
        %v4974 = vpop.f32.mrf.mxu0
        %v4975 = vadd.f32 0.0, %v4974
        %v4976 = vpop.f32.mrf.mxu0
        %v4977 = vadd.f32 0.0, %v4976
        %4978 = vmatmul.bf16.gmra.mxu0 %v4873
        %v4979 = vpop.f32.mrf.mxu0
        %v4980 = vadd.f32 0.0, %v4979
        %v4981 = vpop.f32.mrf.mxu0
        %v4982 = vadd.f32 0.0, %v4981
        %4983 = vmatmul.bf16.gmra.mxu0 %v4874
        %v4984 = vpop.f32.mrf.mxu0
        %v4985 = vadd.f32 0.0, %v4984
        %v4986 = vpop.f32.mrf.mxu0
        %v4987 = vadd.f32 0.0, %v4986
        %4988 = vmatmul.bf16.gmra.mxu0 %v4875
        %v4989 = vpop.f32.mrf.mxu0
        %v4990 = vadd.f32 0.0, %v4989
        %v4991 = vpop.f32.mrf.mxu0
        %v4992 = vadd.f32 0.0, %v4991
        %4993 = vmatmul.bf16.gmra.mxu0 %v4876
        %v4994 = vpop.f32.mrf.mxu0
        %v4995 = vadd.f32 0.0, %v4994
        %v4996 = vpop.f32.mrf.mxu0
        %v4997 = vadd.f32 0.0, %v4996
        %4998 = vmatmul.bf16.gmra.mxu0 %v4877
        %v4999 = vpop.f32.mrf.mxu0
        %v5000 = vadd.f32 0.0, %v4999
        %v5001 = vpop.f32.mrf.mxu0
        %v5002 = vadd.f32 0.0, %v5001
        %5003 = vmatmul.bf16.gmra.mxu0 %v4878
        %v5004 = vpop.f32.mrf.mxu0
        %v5005 = vadd.f32 0.0, %v5004
        %v5006 = vpop.f32.mrf.mxu0
        %v5007 = vadd.f32 0.0, %v5006
        %5008 = vmatmul.bf16.gmra.mxu0 %v4879
        %v5009 = vpop.f32.mrf.mxu0
        %v5010 = vadd.f32 0.0, %v5009
        %v5011 = vpop.f32.mrf.mxu0
        %v5012 = vadd.f32 0.0, %v5011
        %5013 = vmatmul.bf16.gmra.mxu0 %v4880
        %v5014 = vpop.f32.mrf.mxu0
        %v5015 = vadd.f32 0.0, %v5014
        %v5016 = vpop.f32.mrf.mxu0
        %v5017 = vadd.f32 0.0, %v5016
        %5018 = vmatmul.bf16.gmra.mxu0 %v4881
        %v5019 = vpop.f32.mrf.mxu0
        %v5020 = vadd.f32 0.0, %v5019
        %v5021 = vpop.f32.mrf.mxu0
        %v5022 = vadd.f32 0.0, %v5021
        %5023 = vmatmul.bf16.gmra.mxu0 %v4882
        %v5024 = vpop.f32.mrf.mxu0
        %v5025 = vadd.f32 0.0, %v5024
        %v5026 = vpop.f32.mrf.mxu0
        %v5027 = vadd.f32 0.0, %v5026
        %5028 = vmatmul.bf16.gmra.mxu0 %v4883
        %v5029 = vpop.f32.mrf.mxu0
        %v5030 = vadd.f32 0.0, %v5029
        %v5031 = vpop.f32.mrf.mxu0
        %v5032 = vadd.f32 0.0, %v5031
        %5033 = vmatmul.bf16.gmra.mxu0 %v4884
        %v5034 = vpop.f32.mrf.mxu0
        %v5035 = vadd.f32 0.0, %v5034
        %v5036 = vpop.f32.mrf.mxu0
        %v5037 = vadd.f32 0.0, %v5036
        %5038 = vdwg.mxu0
        %v5039 = vadd.f32 %v4741, %v4960
        %v5040 = vadd.f32 %v4742, %v4962
        %v5041 = vadd.f32 %v4743, %v4965
        %v5042 = vadd.f32 %v4744, %v4967
        %v5043 = vadd.f32 %v4745, %v4970
        %v5044 = vadd.f32 %v4746, %v4972
        %v5045 = vadd.f32 %v4747, %v4975
        %v5046 = vadd.f32 %v4748, %v4977
        %v5047 = vadd.f32 %v4749, %v4980
        %v5048 = vadd.f32 %v4750, %v4982
        %v5049 = vadd.f32 %v4751, %v4985
        %v5050 = vadd.f32 %v4752, %v4987
        %v5051 = vadd.f32 %v4753, %v4990
        %v5052 = vadd.f32 %v4754, %v4992
        %v5053 = vadd.f32 %v4755, %v4995
        %v5054 = vadd.f32 %v4756, %v4997
        %v5055 = vadd.f32 %v4757, %v5000
        %v5056 = vadd.f32 %v4758, %v5002
        %v5057 = vadd.f32 %v4759, %v5005
        %v5058 = vadd.f32 %v4760, %v5007
        %v5059 = vadd.f32 %v4761, %v5010
        %v5060 = vadd.f32 %v4762, %v5012
        %v5061 = vadd.f32 %v4763, %v5015
        %v5062 = vadd.f32 %v4764, %v5017
        %v5063 = vadd.f32 %v4765, %v5020
        %v5064 = vadd.f32 %v4766, %v5022
        %v5065 = vadd.f32 %v4767, %v5025
        %v5066 = vadd.f32 %v4768, %v5027
        %v5067 = vadd.f32 %v4769, %v5030
        %v5068 = vadd.f32 %v4770, %v5032
        %v5069 = vadd.f32 %v4771, %v5035
        %v5070 = vadd.f32 %v4772, %v5037
        %v5071 = vrot.slane %v4008, 2
        %v5072 = vrot.slane %v4009, 2
        %v5073 = vrot.slane %v4010, 2
        %v5074 = vrot.slane %v4011, 2
        %v5075 = vrot.slane %v4012, 2
        %v5076 = vrot.slane %v4013, 2
        %v5077 = vrot.slane %v4014, 2
        %v5078 = vrot.slane %v4015, 2
        %v5079 = vrot.slane %v4016, 2
        %v5080 = vrot.slane %v4017, 2
        %v5081 = vrot.slane %v4018, 2
        %v5082 = vrot.slane %v4019, 2
        %v5083 = vrot.slane %v4020, 2
        %v5084 = vrot.slane %v4021, 2
        %v5085 = vrot.slane %v4022, 2
        %v5086 = vrot.slane %v4023, 2
        %v5087 = vrot.slane %v4024, 2
        %v5088 = vrot.slane %v4025, 2
        %v5089 = vrot.slane %v4026, 2
        %v5090 = vrot.slane %v4027, 2
        %v5091 = vrot.slane %v4028, 2
        %v5092 = vrot.slane %v4029, 2
        %v5093 = vrot.slane %v4030, 2
        %v5094 = vrot.slane %v4031, 2
        %v5095 = vrot.slane %v4032, 2
        %v5096 = vrot.slane %v4033, 2
        %v5097 = vrot.slane %v4034, 2
        %v5098 = vrot.slane %v4035, 2
        %v5099 = vrot.slane %v4036, 2
        %v5100 = vrot.slane %v4037, 2
        %v5101 = vrot.slane %v4038, 2
        %v5102 = vrot.slane %v4039, 2
        %v5103 = vsel %vm2116, %v5101, %v5102
        %v5104 = vsel %vm2116, %v5100, %v5101
        %v5105 = vsel %vm2116, %v5099, %v5100
        %v5106 = vsel %vm2116, %v5098, %v5099
        %v5107 = vsel %vm2116, %v5097, %v5098
        %v5108 = vsel %vm2116, %v5096, %v5097
        %v5109 = vsel %vm2116, %v5095, %v5096
        %v5110 = vsel %vm2116, %v5094, %v5095
        %v5111 = vsel %vm2116, %v5093, %v5094
        %v5112 = vsel %vm2116, %v5092, %v5093
        %v5113 = vsel %vm2116, %v5091, %v5092
        %v5114 = vsel %vm2116, %v5090, %v5091
        %v5115 = vsel %vm2116, %v5089, %v5090
        %v5116 = vsel %vm2116, %v5088, %v5089
        %v5117 = vsel %vm2116, %v5087, %v5088
        %v5118 = vsel %vm2116, %v5086, %v5087
        %v5119 = vsel %vm2116, %v5085, %v5086
        %v5120 = vsel %vm2116, %v5084, %v5085
        %v5121 = vsel %vm2116, %v5083, %v5084
        %v5122 = vsel %vm2116, %v5082, %v5083
        %v5123 = vsel %vm2116, %v5081, %v5082
        %v5124 = vsel %vm2116, %v5080, %v5081
        %v5125 = vsel %vm2116, %v5079, %v5080
        %v5126 = vsel %vm2116, %v5078, %v5079
        %v5127 = vsel %vm2116, %v5077, %v5078
        %v5128 = vsel %vm2116, %v5076, %v5077
        %v5129 = vsel %vm2116, %v5075, %v5076
        %v5130 = vsel %vm2116, %v5074, %v5075
        %v5131 = vsel %vm2116, %v5073, %v5074
        %v5132 = vsel %vm2116, %v5072, %v5073
        %v5133 = vsel %vm2116, %v5071, %v5072
        %v5134 = vsel %vm2116, %v5102, %v5071
        %v5135 = vsel %vm2309, %v5133, 0.0
        %v5136 = vsel %vm2310, %v5132, 0.0
        %v5137 = vsel %vm2311, %v5131, 0.0
        %v5138 = vsel %vm2312, %v5130, 0.0
        %v5139 = vsel %vm2313, %v5129, 0.0
        %v5140 = vsel %vm2314, %v5128, 0.0
        %v5141 = vsel %vm2315, %v5127, 0.0
        %v5142 = vsel %vm2316, %v5126, 0.0
        %v5143 = vsel %vm2317, %v5125, 0.0
        %v5144 = vsel %vm2318, %v5124, 0.0
        %v5145 = vsel %vm2319, %v5123, 0.0
        %v5146 = vsel %vm2320, %v5122, 0.0
        %v5147 = vsel %vm2321, %v5121, 0.0
        %v5148 = vsel %vm2322, %v5120, 0.0
        %v5149 = vsel %vm2323, %v5119, 0.0
        %v5150 = vsel %vm2324, %v5118, 0.0
        %v5151 = vsel %vm2325, %v5117, 0.0
        %v5152 = vsel %vm2326, %v5116, 0.0
        %v5153 = vsel %vm2327, %v5115, 0.0
        %v5154 = vsel %vm2328, %v5114, 0.0
        %v5155 = vsel %vm2329, %v5113, 0.0
        %v5156 = vsel %vm2330, %v5112, 0.0
        %v5157 = vsel %vm2331, %v5111, 0.0
        %v5158 = vsel %vm2332, %v5110, 0.0
        %v5159 = vsel %vm2333, %v5109, 0.0
        %v5160 = vsel %vm2334, %v5108, 0.0
        %v5161 = vsel %vm2335, %v5107, 0.0
        %v5162 = vsel %vm2336, %v5106, 0.0
        %v5163 = vsel %vm2337, %v5105, 0.0
        %v5164 = vsel %vm2338, %v5104, 0.0
        %v5165 = vsel %vm2339, %v5103, 0.0
        %v5166 = vsel %vm2340, %v5134, 0.0
        %v5167 = vpack.c.bf16 %v5136, %v5135
        %v5168 = vpack.c.bf16 %v5138, %v5137
        %v5169 = vpack.c.bf16 %v5140, %v5139
        %v5170 = vpack.c.bf16 %v5142, %v5141
        %v5171 = vpack.c.bf16 %v5144, %v5143
        %v5172 = vpack.c.bf16 %v5146, %v5145
        %v5173 = vpack.c.bf16 %v5148, %v5147
        %v5174 = vpack.c.bf16 %v5150, %v5149
        %v5175 = vpack.c.bf16 %v5152, %v5151
        %v5176 = vpack.c.bf16 %v5154, %v5153
        %v5177 = vpack.c.bf16 %v5156, %v5155
        %v5178 = vpack.c.bf16 %v5158, %v5157
        %v5179 = vpack.c.bf16 %v5160, %v5159
        %v5180 = vpack.c.bf16 %v5162, %v5161
        %v5181 = vpack.c.bf16 %v5164, %v5163
        %v5182 = vpack.c.bf16 %v5166, %v5165
        %s5183 = scalar_lea.vmem %s5, 256
        %v5184 = vld [vmem:[%s5183] sm:$0xf]
        %v5185 = vld [vmem:[%s5183 + $0x4] sm:$0xf]
        %v5186 = vld [vmem:[%s5183 + $0x8] sm:$0xf]
        %v5187 = vld [vmem:[%s5183 + $0xc] sm:$0xf]
        %v5188 = vld [vmem:[%s5183 + $0x10] sm:$0xf]
        %v5189 = vld [vmem:[%s5183 + $0x14] sm:$0xf]
        %v5190 = vld [vmem:[%s5183 + $0x18] sm:$0xf]
        %v5191 = vld [vmem:[%s5183 + $0x1c] sm:$0xf]
        %v5192 = vld [vmem:[%s5183 + $0x20] sm:$0xf]
        %v5193 = vld [vmem:[%s5183 + $0x24] sm:$0xf]
        %v5194 = vld [vmem:[%s5183 + $0x28] sm:$0xf]
        %v5195 = vld [vmem:[%s5183 + $0x2c] sm:$0xf]
        %v5196 = vld [vmem:[%s5183 + $0x30] sm:$0xf]
        %v5197 = vld [vmem:[%s5183 + $0x34] sm:$0xf]
        %v5198 = vld [vmem:[%s5183 + $0x38] sm:$0xf]
        %v5199 = vld [vmem:[%s5183 + $0x3c] sm:$0xf]
        %v5216 = vunpack.c.l.b16 %v5184
        %v5217 = vunpack.c.l.b16 %v5185
        %v5218 = vunpack.c.l.b16 %v5186
        %v5219 = vunpack.c.l.b16 %v5187
        %v5220 = vunpack.c.l.b16 %v5188
        %v5221 = vunpack.c.l.b16 %v5189
        %v5222 = vunpack.c.l.b16 %v5190
        %v5223 = vunpack.c.l.b16 %v5191
        %v5224 = vunpack.c.l.b16 %v5192
        %v5225 = vunpack.c.l.b16 %v5193
        %v5226 = vunpack.c.l.b16 %v5194
        %v5227 = vunpack.c.l.b16 %v5195
        %v5228 = vunpack.c.l.b16 %v5196
        %v5229 = vunpack.c.l.b16 %v5197
        %v5230 = vunpack.c.l.b16 %v5198
        %v5231 = vunpack.c.l.b16 %v5199
        %v5232 = vpack.c.b16 %v5217, %v5216
        %v5233 = vpack.c.b16 %v5219, %v5218
        %v5234 = vpack.c.b16 %v5221, %v5220
        %v5235 = vpack.c.b16 %v5223, %v5222
        %v5236 = vpack.c.b16 %v5225, %v5224
        %v5237 = vpack.c.b16 %v5227, %v5226
        %v5238 = vpack.c.b16 %v5229, %v5228
        %v5239 = vpack.c.b16 %v5231, %v5230
        %5248 = vmatpush.bf16.msra.mxu0 %v5239
        %5249 = vmatpush.bf16.msra.mxu0 %v5238
        %5250 = vmatpush.bf16.msra.mxu0 %v5237
        %5251 = vmatpush.bf16.msra.mxu0 %v5236
        %5252 = vmatpush.bf16.msra.mxu0 %v5235
        %5253 = vmatpush.bf16.msra.mxu0 %v5234
        %5254 = vmatpush.bf16.msra.mxu0 %v5233
        %5255 = vmatpush.bf16.msra.mxu0 %v5232
        %5256 = vmatmul.bf16.gmra.mxu0 %v5167
        %v5257 = vpop.f32.mrf.mxu0
        %v5258 = vadd.f32 0.0, %v5257
        %v5259 = vpop.f32.mrf.mxu0
        %v5260 = vadd.f32 0.0, %v5259
        %5261 = vmatmul.bf16.gmra.mxu0 %v5168
        %v5262 = vpop.f32.mrf.mxu0
        %v5263 = vadd.f32 0.0, %v5262
        %v5264 = vpop.f32.mrf.mxu0
        %v5265 = vadd.f32 0.0, %v5264
        %5266 = vmatmul.bf16.gmra.mxu0 %v5169
        %v5267 = vpop.f32.mrf.mxu0
        %v5268 = vadd.f32 0.0, %v5267
        %v5269 = vpop.f32.mrf.mxu0
        %v5270 = vadd.f32 0.0, %v5269
        %5271 = vmatmul.bf16.gmra.mxu0 %v5170
        %v5272 = vpop.f32.mrf.mxu0
        %v5273 = vadd.f32 0.0, %v5272
        %v5274 = vpop.f32.mrf.mxu0
        %v5275 = vadd.f32 0.0, %v5274
        %5276 = vmatmul.bf16.gmra.mxu0 %v5171
        %v5277 = vpop.f32.mrf.mxu0
        %v5278 = vadd.f32 0.0, %v5277
        %v5279 = vpop.f32.mrf.mxu0
        %v5280 = vadd.f32 0.0, %v5279
        %5281 = vmatmul.bf16.gmra.mxu0 %v5172
        %v5282 = vpop.f32.mrf.mxu0
        %v5283 = vadd.f32 0.0, %v5282
        %v5284 = vpop.f32.mrf.mxu0
        %v5285 = vadd.f32 0.0, %v5284
        %5286 = vmatmul.bf16.gmra.mxu0 %v5173
        %v5287 = vpop.f32.mrf.mxu0
        %v5288 = vadd.f32 0.0, %v5287
        %v5289 = vpop.f32.mrf.mxu0
        %v5290 = vadd.f32 0.0, %v5289
        %5291 = vmatmul.bf16.gmra.mxu0 %v5174
        %v5292 = vpop.f32.mrf.mxu0
        %v5293 = vadd.f32 0.0, %v5292
        %v5294 = vpop.f32.mrf.mxu0
        %v5295 = vadd.f32 0.0, %v5294
        %5296 = vmatmul.bf16.gmra.mxu0 %v5175
        %v5297 = vpop.f32.mrf.mxu0
        %v5298 = vadd.f32 0.0, %v5297
        %v5299 = vpop.f32.mrf.mxu0
        %v5300 = vadd.f32 0.0, %v5299
        %5301 = vmatmul.bf16.gmra.mxu0 %v5176
        %v5302 = vpop.f32.mrf.mxu0
        %v5303 = vadd.f32 0.0, %v5302
        %v5304 = vpop.f32.mrf.mxu0
        %v5305 = vadd.f32 0.0, %v5304
        %5306 = vmatmul.bf16.gmra.mxu0 %v5177
        %v5307 = vpop.f32.mrf.mxu0
        %v5308 = vadd.f32 0.0, %v5307
        %v5309 = vpop.f32.mrf.mxu0
        %v5310 = vadd.f32 0.0, %v5309
        %5311 = vmatmul.bf16.gmra.mxu0 %v5178
        %v5312 = vpop.f32.mrf.mxu0
        %v5313 = vadd.f32 0.0, %v5312
        %v5314 = vpop.f32.mrf.mxu0
        %v5315 = vadd.f32 0.0, %v5314
        %5316 = vmatmul.bf16.gmra.mxu0 %v5179
        %v5317 = vpop.f32.mrf.mxu0
        %v5318 = vadd.f32 0.0, %v5317
        %v5319 = vpop.f32.mrf.mxu0
        %v5320 = vadd.f32 0.0, %v5319
        %5321 = vmatmul.bf16.gmra.mxu0 %v5180
        %v5322 = vpop.f32.mrf.mxu0
        %v5323 = vadd.f32 0.0, %v5322
        %v5324 = vpop.f32.mrf.mxu0
        %v5325 = vadd.f32 0.0, %v5324
        %5326 = vmatmul.bf16.gmra.mxu0 %v5181
        %v5327 = vpop.f32.mrf.mxu0
        %v5328 = vadd.f32 0.0, %v5327
        %v5329 = vpop.f32.mrf.mxu0
        %v5330 = vadd.f32 0.0, %v5329
        %5331 = vmatmul.bf16.gmra.mxu0 %v5182
        %v5332 = vpop.f32.mrf.mxu0
        %v5333 = vadd.f32 0.0, %v5332
        %v5334 = vpop.f32.mrf.mxu0
        %v5335 = vadd.f32 0.0, %v5334
        %5336 = vdwg.mxu0
        %v5337 = vadd.f32 %v5039, %v5258
        %v5338 = vadd.f32 %v5040, %v5260
        %v5339 = vadd.f32 %v5041, %v5263
        %v5340 = vadd.f32 %v5042, %v5265
        %v5341 = vadd.f32 %v5043, %v5268
        %v5342 = vadd.f32 %v5044, %v5270
        %v5343 = vadd.f32 %v5045, %v5273
        %v5344 = vadd.f32 %v5046, %v5275
        %v5345 = vadd.f32 %v5047, %v5278
        %v5346 = vadd.f32 %v5048, %v5280
        %v5347 = vadd.f32 %v5049, %v5283
        %v5348 = vadd.f32 %v5050, %v5285
        %v5349 = vadd.f32 %v5051, %v5288
        %v5350 = vadd.f32 %v5052, %v5290
        %v5351 = vadd.f32 %v5053, %v5293
        %v5352 = vadd.f32 %v5054, %v5295
        %v5353 = vadd.f32 %v5055, %v5298
        %v5354 = vadd.f32 %v5056, %v5300
        %v5355 = vadd.f32 %v5057, %v5303
        %v5356 = vadd.f32 %v5058, %v5305
        %v5357 = vadd.f32 %v5059, %v5308
        %v5358 = vadd.f32 %v5060, %v5310
        %v5359 = vadd.f32 %v5061, %v5313
        %v5360 = vadd.f32 %v5062, %v5315
        %v5361 = vadd.f32 %v5063, %v5318
        %v5362 = vadd.f32 %v5064, %v5320
        %v5363 = vadd.f32 %v5065, %v5323
        %v5364 = vadd.f32 %v5066, %v5325
        %v5365 = vadd.f32 %v5067, %v5328
        %v5366 = vadd.f32 %v5068, %v5330
        %v5367 = vadd.f32 %v5069, %v5333
        %v5368 = vadd.f32 %v5070, %v5335
        %v5369 = vld [vmem:[%s6] sm:$0x1]
        %v5371 = vperm.slane %v5369, 0
        %v5373 = vadd.f32 %v5337, %v5371
        %v5374 = vadd.f32 %v5338, %v5371
        %v5375 = vadd.f32 %v5339, %v5371
        %v5376 = vadd.f32 %v5340, %v5371
        %v5377 = vadd.f32 %v5341, %v5371
        %v5378 = vadd.f32 %v5342, %v5371
        %v5379 = vadd.f32 %v5343, %v5371
        %v5380 = vadd.f32 %v5344, %v5371
        %v5381 = vadd.f32 %v5345, %v5371
        %v5382 = vadd.f32 %v5346, %v5371
        %v5383 = vadd.f32 %v5347, %v5371
        %v5384 = vadd.f32 %v5348, %v5371
        %v5385 = vadd.f32 %v5349, %v5371
        %v5386 = vadd.f32 %v5350, %v5371
        %v5387 = vadd.f32 %v5351, %v5371
        %v5388 = vadd.f32 %v5352, %v5371
        %v5389 = vadd.f32 %v5353, %v5371
        %v5390 = vadd.f32 %v5354, %v5371
        %v5391 = vadd.f32 %v5355, %v5371
        %v5392 = vadd.f32 %v5356, %v5371
        %v5393 = vadd.f32 %v5357, %v5371
        %v5394 = vadd.f32 %v5358, %v5371
        %v5395 = vadd.f32 %v5359, %v5371
        %v5396 = vadd.f32 %v5360, %v5371
        %v5397 = vadd.f32 %v5361, %v5371
        %v5398 = vadd.f32 %v5362, %v5371
        %v5399 = vadd.f32 %v5363, %v5371
        %v5400 = vadd.f32 %v5364, %v5371
        %v5401 = vadd.f32 %v5365, %v5371
        %v5402 = vadd.f32 %v5366, %v5371
        %v5403 = vadd.f32 %v5367, %v5371
        %v5404 = vadd.f32 %v5368, %v5371
        %v5405 = vtanh.pop %v5373
        %v5406 = vtanh.pop %v5374
        %v5407 = vtanh.pop %v5375
        %v5408 = vtanh.pop %v5376
        %v5409 = vtanh.pop %v5377
        %v5410 = vtanh.pop %v5378
        %v5411 = vtanh.pop %v5379
        %v5412 = vtanh.pop %v5380
        %v5413 = vtanh.pop %v5381
        %v5414 = vtanh.pop %v5382
        %v5415 = vtanh.pop %v5383
        %v5416 = vtanh.pop %v5384
        %v5417 = vtanh.pop %v5385
        %v5418 = vtanh.pop %v5386
        %v5419 = vtanh.pop %v5387
        %v5420 = vtanh.pop %v5388
        %v5421 = vtanh.pop %v5389
        %v5422 = vtanh.pop %v5390
        %v5423 = vtanh.pop %v5391
        %v5424 = vtanh.pop %v5392
        %v5425 = vtanh.pop %v5393
        %v5426 = vtanh.pop %v5394
        %v5427 = vtanh.pop %v5395
        %v5428 = vtanh.pop %v5396
        %v5429 = vtanh.pop %v5397
        %v5430 = vtanh.pop %v5398
        %v5431 = vtanh.pop %v5399
        %v5432 = vtanh.pop %v5400
        %v5433 = vtanh.pop %v5401
        %v5434 = vtanh.pop %v5402
        %v5435 = vtanh.pop %v5403
        %v5436 = vtanh.pop %v5404
        %v5437 = vpack.c.bf16 %v5406, %v5405
        %v5438 = vpack.c.bf16 %v5408, %v5407
        %v5439 = vpack.c.bf16 %v5410, %v5409
        %v5440 = vpack.c.bf16 %v5412, %v5411
        %v5441 = vpack.c.bf16 %v5414, %v5413
        %v5442 = vpack.c.bf16 %v5416, %v5415
        %v5443 = vpack.c.bf16 %v5418, %v5417
        %v5444 = vpack.c.bf16 %v5420, %v5419
        %v5445 = vpack.c.bf16 %v5422, %v5421
        %v5446 = vpack.c.bf16 %v5424, %v5423
        %v5447 = vpack.c.bf16 %v5426, %v5425
        %v5448 = vpack.c.bf16 %v5428, %v5427
        %v5449 = vpack.c.bf16 %v5430, %v5429
        %v5450 = vpack.c.bf16 %v5432, %v5431
        %v5451 = vpack.c.bf16 %v5434, %v5433
        %v5452 = vpack.c.bf16 %v5436, %v5435
        %s5453 = scalar_lea.vmem [#allocation2], 128
        %v5454 = vld [vmem:[%s5453] sm:$0xf]
        %v5455 = vld [vmem:[%s5453 + $0x4] sm:$0xf]
        %v5456 = vld [vmem:[%s5453 + $0x8] sm:$0xf]
        %v5457 = vld [vmem:[%s5453 + $0xc] sm:$0xf]
        %v5458 = vld [vmem:[%s5453 + $0x10] sm:$0xf]
        %v5459 = vld [vmem:[%s5453 + $0x14] sm:$0xf]
        %v5460 = vld [vmem:[%s5453 + $0x18] sm:$0xf]
        %v5461 = vld [vmem:[%s5453 + $0x1c] sm:$0xf]
        %v5462 = vld [vmem:[%s5453 + $0x20] sm:$0xf]
        %v5463 = vld [vmem:[%s5453 + $0x24] sm:$0xf]
        %v5464 = vld [vmem:[%s5453 + $0x28] sm:$0xf]
        %v5465 = vld [vmem:[%s5453 + $0x2c] sm:$0xf]
        %v5466 = vld [vmem:[%s5453 + $0x30] sm:$0xf]
        %v5467 = vld [vmem:[%s5453 + $0x34] sm:$0xf]
        %v5468 = vld [vmem:[%s5453 + $0x38] sm:$0xf]
        %v5469 = vld [vmem:[%s5453 + $0x3c] sm:$0xf]
        %v5470 = vrot.slane %v5405, 6
        %v5471 = vrot.slane %v5406, 6
        %v5472 = vrot.slane %v5407, 6
        %v5473 = vrot.slane %v5408, 6
        %v5474 = vrot.slane %v5409, 6
        %v5475 = vrot.slane %v5410, 6
        %v5476 = vrot.slane %v5411, 6
        %v5477 = vrot.slane %v5412, 6
        %v5478 = vrot.slane %v5413, 6
        %v5479 = vrot.slane %v5414, 6
        %v5480 = vrot.slane %v5415, 6
        %v5481 = vrot.slane %v5416, 6
        %v5482 = vrot.slane %v5417, 6
        %v5483 = vrot.slane %v5418, 6
        %v5484 = vrot.slane %v5419, 6
        %v5485 = vrot.slane %v5420, 6
        %v5486 = vrot.slane %v5421, 6
        %v5487 = vrot.slane %v5422, 6
        %v5488 = vrot.slane %v5423, 6
        %v5489 = vrot.slane %v5424, 6
        %v5490 = vrot.slane %v5425, 6
        %v5491 = vrot.slane %v5426, 6
        %v5492 = vrot.slane %v5427, 6
        %v5493 = vrot.slane %v5428, 6
        %v5494 = vrot.slane %v5429, 6
        %v5495 = vrot.slane %v5430, 6
        %v5496 = vrot.slane %v5431, 6
        %v5497 = vrot.slane %v5432, 6
        %v5498 = vrot.slane %v5433, 6
        %v5499 = vrot.slane %v5434, 6
        %v5500 = vrot.slane %v5435, 6
        %v5501 = vrot.slane %v5436, 6
        %v5502 = vsel %vm526, %v5500, %v5501
        %v5503 = vsel %vm526, %v5499, %v5500
        %v5504 = vsel %vm526, %v5498, %v5499
        %v5505 = vsel %vm526, %v5497, %v5498
        %v5506 = vsel %vm526, %v5496, %v5497
        %v5507 = vsel %vm526, %v5495, %v5496
        %v5508 = vsel %vm526, %v5494, %v5495
        %v5509 = vsel %vm526, %v5493, %v5494
        %v5510 = vsel %vm526, %v5492, %v5493
        %v5511 = vsel %vm526, %v5491, %v5492
        %v5512 = vsel %vm526, %v5490, %v5491
        %v5513 = vsel %vm526, %v5489, %v5490
        %v5514 = vsel %vm526, %v5488, %v5489
        %v5515 = vsel %vm526, %v5487, %v5488
        %v5516 = vsel %vm526, %v5486, %v5487
        %v5517 = vsel %vm526, %v5485, %v5486
        %v5518 = vsel %vm526, %v5484, %v5485
        %v5519 = vsel %vm526, %v5483, %v5484
        %v5520 = vsel %vm526, %v5482, %v5483
        %v5521 = vsel %vm526, %v5481, %v5482
        %v5522 = vsel %vm526, %v5480, %v5481
        %v5523 = vsel %vm526, %v5479, %v5480
        %v5524 = vsel %vm526, %v5478, %v5479
        %v5525 = vsel %vm526, %v5477, %v5478
        %v5526 = vsel %vm526, %v5476, %v5477
        %v5527 = vsel %vm526, %v5475, %v5476
        %v5528 = vsel %vm526, %v5474, %v5475
        %v5529 = vsel %vm526, %v5473, %v5474
        %v5530 = vsel %vm526, %v5472, %v5473
        %v5531 = vsel %vm526, %v5471, %v5472
        %v5532 = vsel %vm526, %v5470, %v5471
        %v5533 = vsel %vm526, %v5501, %v5470
        %v5534 = vsel %vm719, %v5533, 0.0
        %v5535 = vsel %vm720, %v5532, 0.0
        %v5536 = vsel %vm721, %v5531, 0.0
        %v5537 = vsel %vm722, %v5530, 0.0
        %v5538 = vsel %vm723, %v5529, 0.0
        %v5539 = vsel %vm724, %v5528, 0.0
        %v5540 = vsel %vm725, %v5527, 0.0
        %v5541 = vsel %vm726, %v5526, 0.0
        %v5542 = vsel %vm727, %v5525, 0.0
        %v5543 = vsel %vm728, %v5524, 0.0
        %v5544 = vsel %vm729, %v5523, 0.0
        %v5545 = vsel %vm730, %v5522, 0.0
        %v5546 = vsel %vm731, %v5521, 0.0
        %v5547 = vsel %vm732, %v5520, 0.0
        %v5548 = vsel %vm733, %v5519, 0.0
        %v5549 = vsel %vm734, %v5518, 0.0
        %v5550 = vsel %vm735, %v5517, 0.0
        %v5551 = vsel %vm736, %v5516, 0.0
        %v5552 = vsel %vm737, %v5515, 0.0
        %v5553 = vsel %vm738, %v5514, 0.0
        %v5554 = vsel %vm739, %v5513, 0.0
        %v5555 = vsel %vm740, %v5512, 0.0
        %v5556 = vsel %vm741, %v5511, 0.0
        %v5557 = vsel %vm742, %v5510, 0.0
        %v5558 = vsel %vm743, %v5509, 0.0
        %v5559 = vsel %vm744, %v5508, 0.0
        %v5560 = vsel %vm745, %v5507, 0.0
        %v5561 = vsel %vm746, %v5506, 0.0
        %v5562 = vsel %vm747, %v5505, 0.0
        %v5563 = vsel %vm748, %v5504, 0.0
        %v5564 = vsel %vm749, %v5503, 0.0
        %v5565 = vsel %vm750, %v5502, 0.0
        %v5566 = vpack.c.bf16 %v5535, %v5534
        %v5567 = vpack.c.bf16 %v5537, %v5536
        %v5568 = vpack.c.bf16 %v5539, %v5538
        %v5569 = vpack.c.bf16 %v5541, %v5540
        %v5570 = vpack.c.bf16 %v5543, %v5542
        %v5571 = vpack.c.bf16 %v5545, %v5544
        %v5572 = vpack.c.bf16 %v5547, %v5546
        %v5573 = vpack.c.bf16 %v5549, %v5548
        %v5574 = vpack.c.bf16 %v5551, %v5550
        %v5575 = vpack.c.bf16 %v5553, %v5552
        %v5576 = vpack.c.bf16 %v5555, %v5554
        %v5577 = vpack.c.bf16 %v5557, %v5556
        %v5578 = vpack.c.bf16 %v5559, %v5558
        %v5579 = vpack.c.bf16 %v5561, %v5560
        %v5580 = vpack.c.bf16 %v5563, %v5562
        %v5581 = vpack.c.bf16 %v5565, %v5564
        %v5582 = vld [vmem:[#allocation2] sm:$0xf]
        %v5583 = vld [vmem:[#allocation2 + $0x4] sm:$0xf]
        %v5584 = vld [vmem:[#allocation2 + $0x8] sm:$0xf]
        %v5585 = vld [vmem:[#allocation2 + $0xc] sm:$0xf]
        %v5586 = vld [vmem:[#allocation2 + $0x10] sm:$0xf]
        %v5587 = vld [vmem:[#allocation2 + $0x14] sm:$0xf]
        %v5588 = vld [vmem:[#allocation2 + $0x18] sm:$0xf]
        %v5589 = vld [vmem:[#allocation2 + $0x1c] sm:$0xf]
        %v5590 = vld [vmem:[#allocation2 + $0x20] sm:$0xf]
        %v5591 = vld [vmem:[#allocation2 + $0x24] sm:$0xf]
        %v5592 = vld [vmem:[#allocation2 + $0x28] sm:$0xf]
        %v5593 = vld [vmem:[#allocation2 + $0x2c] sm:$0xf]
        %v5594 = vld [vmem:[#allocation2 + $0x30] sm:$0xf]
        %v5595 = vld [vmem:[#allocation2 + $0x34] sm:$0xf]
        %v5596 = vld [vmem:[#allocation2 + $0x38] sm:$0xf]
        %v5597 = vld [vmem:[#allocation2 + $0x3c] sm:$0xf]
        %v5614 = vunpack.c.l.b16 %v5582
        %v5615 = vunpack.c.l.b16 %v5583
        %v5616 = vunpack.c.l.b16 %v5584
        %v5617 = vunpack.c.l.b16 %v5585
        %v5618 = vunpack.c.l.b16 %v5586
        %v5619 = vunpack.c.l.b16 %v5587
        %v5620 = vunpack.c.l.b16 %v5588
        %v5621 = vunpack.c.l.b16 %v5589
        %v5622 = vunpack.c.l.b16 %v5590
        %v5623 = vunpack.c.l.b16 %v5591
        %v5624 = vunpack.c.l.b16 %v5592
        %v5625 = vunpack.c.l.b16 %v5593
        %v5626 = vunpack.c.l.b16 %v5594
        %v5627 = vunpack.c.l.b16 %v5595
        %v5628 = vunpack.c.l.b16 %v5596
        %v5629 = vunpack.c.l.b16 %v5597
        %v5630 = vpack.c.b16 %v5615, %v5614
        %v5631 = vpack.c.b16 %v5617, %v5616
        %v5632 = vpack.c.b16 %v5619, %v5618
        %v5633 = vpack.c.b16 %v5621, %v5620
        %v5634 = vpack.c.b16 %v5623, %v5622
        %v5635 = vpack.c.b16 %v5625, %v5624
        %v5636 = vpack.c.b16 %v5627, %v5626
        %v5637 = vpack.c.b16 %v5629, %v5628
        %5646 = vmatpush.bf16.msra.mxu0 %v5637
        %5647 = vmatpush.bf16.msra.mxu0 %v5636
        %5648 = vmatpush.bf16.msra.mxu0 %v5635
        %5649 = vmatpush.bf16.msra.mxu0 %v5634
        %5650 = vmatpush.bf16.msra.mxu0 %v5633
        %5651 = vmatpush.bf16.msra.mxu0 %v5632
        %5652 = vmatpush.bf16.msra.mxu0 %v5631
        %5653 = vmatpush.bf16.msra.mxu0 %v5630
        %5654 = vmatmul.bf16.gmra.mxu0 %v5566
        %v5655 = vpop.f32.mrf.mxu0
        %v5656 = vadd.f32 0.0, %v5655
        %v5657 = vpop.f32.mrf.mxu0
        %v5658 = vadd.f32 0.0, %v5657
        %5659 = vmatmul.bf16.gmra.mxu0 %v5567
        %v5660 = vpop.f32.mrf.mxu0
        %v5661 = vadd.f32 0.0, %v5660
        %v5662 = vpop.f32.mrf.mxu0
        %v5663 = vadd.f32 0.0, %v5662
        %5664 = vmatmul.bf16.gmra.mxu0 %v5568
        %v5665 = vpop.f32.mrf.mxu0
        %v5666 = vadd.f32 0.0, %v5665
        %v5667 = vpop.f32.mrf.mxu0
        %v5668 = vadd.f32 0.0, %v5667
        %5669 = vmatmul.bf16.gmra.mxu0 %v5569
        %v5670 = vpop.f32.mrf.mxu0
        %v5671 = vadd.f32 0.0, %v5670
        %v5672 = vpop.f32.mrf.mxu0
        %v5673 = vadd.f32 0.0, %v5672
        %5674 = vmatmul.bf16.gmra.mxu0 %v5570
        %v5675 = vpop.f32.mrf.mxu0
        %v5676 = vadd.f32 0.0, %v5675
        %v5677 = vpop.f32.mrf.mxu0
        %v5678 = vadd.f32 0.0, %v5677
        %5679 = vmatmul.bf16.gmra.mxu0 %v5571
        %v5680 = vpop.f32.mrf.mxu0
        %v5681 = vadd.f32 0.0, %v5680
        %v5682 = vpop.f32.mrf.mxu0
        %v5683 = vadd.f32 0.0, %v5682
        %5684 = vmatmul.bf16.gmra.mxu0 %v5572
        %v5685 = vpop.f32.mrf.mxu0
        %v5686 = vadd.f32 0.0, %v5685
        %v5687 = vpop.f32.mrf.mxu0
        %v5688 = vadd.f32 0.0, %v5687
        %5689 = vmatmul.bf16.gmra.mxu0 %v5573
        %v5690 = vpop.f32.mrf.mxu0
        %v5691 = vadd.f32 0.0, %v5690
        %v5692 = vpop.f32.mrf.mxu0
        %v5693 = vadd.f32 0.0, %v5692
        %5694 = vmatmul.bf16.gmra.mxu0 %v5574
        %v5695 = vpop.f32.mrf.mxu0
        %v5696 = vadd.f32 0.0, %v5695
        %v5697 = vpop.f32.mrf.mxu0
        %v5698 = vadd.f32 0.0, %v5697
        %5699 = vmatmul.bf16.gmra.mxu0 %v5575
        %v5700 = vpop.f32.mrf.mxu0
        %v5701 = vadd.f32 0.0, %v5700
        %v5702 = vpop.f32.mrf.mxu0
        %v5703 = vadd.f32 0.0, %v5702
        %5704 = vmatmul.bf16.gmra.mxu0 %v5576
        %v5705 = vpop.f32.mrf.mxu0
        %v5706 = vadd.f32 0.0, %v5705
        %v5707 = vpop.f32.mrf.mxu0
        %v5708 = vadd.f32 0.0, %v5707
        %5709 = vmatmul.bf16.gmra.mxu0 %v5577
        %v5710 = vpop.f32.mrf.mxu0
        %v5711 = vadd.f32 0.0, %v5710
        %v5712 = vpop.f32.mrf.mxu0
        %v5713 = vadd.f32 0.0, %v5712
        %5714 = vmatmul.bf16.gmra.mxu0 %v5578
        %v5715 = vpop.f32.mrf.mxu0
        %v5716 = vadd.f32 0.0, %v5715
        %v5717 = vpop.f32.mrf.mxu0
        %v5718 = vadd.f32 0.0, %v5717
        %5719 = vmatmul.bf16.gmra.mxu0 %v5579
        %v5720 = vpop.f32.mrf.mxu0
        %v5721 = vadd.f32 0.0, %v5720
        %v5722 = vpop.f32.mrf.mxu0
        %v5723 = vadd.f32 0.0, %v5722
        %5724 = vmatmul.bf16.gmra.mxu0 %v5580
        %v5725 = vpop.f32.mrf.mxu0
        %v5726 = vadd.f32 0.0, %v5725
        %v5727 = vpop.f32.mrf.mxu0
        %v5728 = vadd.f32 0.0, %v5727
        %5729 = vmatmul.bf16.gmra.mxu0 %v5581
        %v5730 = vpop.f32.mrf.mxu0
        %v5731 = vadd.f32 0.0, %v5730
        %v5732 = vpop.f32.mrf.mxu0
        %v5733 = vadd.f32 0.0, %v5732
        %5734 = vdwg.mxu0
        %v5751 = vunpack.c.l.b16 %v5454
        %v5752 = vunpack.c.l.b16 %v5455
        %v5753 = vunpack.c.l.b16 %v5456
        %v5754 = vunpack.c.l.b16 %v5457
        %v5755 = vunpack.c.l.b16 %v5458
        %v5756 = vunpack.c.l.b16 %v5459
        %v5757 = vunpack.c.l.b16 %v5460
        %v5758 = vunpack.c.l.b16 %v5461
        %v5759 = vunpack.c.l.b16 %v5462
        %v5760 = vunpack.c.l.b16 %v5463
        %v5761 = vunpack.c.l.b16 %v5464
        %v5762 = vunpack.c.l.b16 %v5465
        %v5763 = vunpack.c.l.b16 %v5466
        %v5764 = vunpack.c.l.b16 %v5467
        %v5765 = vunpack.c.l.b16 %v5468
        %v5766 = vunpack.c.l.b16 %v5469
        %v5767 = vpack.c.b16 %v5752, %v5751
        %v5768 = vpack.c.b16 %v5754, %v5753
        %v5769 = vpack.c.b16 %v5756, %v5755
        %v5770 = vpack.c.b16 %v5758, %v5757
        %v5771 = vpack.c.b16 %v5760, %v5759
        %v5772 = vpack.c.b16 %v5762, %v5761
        %v5773 = vpack.c.b16 %v5764, %v5763
        %v5774 = vpack.c.b16 %v5766, %v5765
        %5783 = vmatpush.bf16.msra.mxu0 %v5774
        %5784 = vmatpush.bf16.msra.mxu0 %v5773
        %5785 = vmatpush.bf16.msra.mxu0 %v5772
        %5786 = vmatpush.bf16.msra.mxu0 %v5771
        %5787 = vmatpush.bf16.msra.mxu0 %v5770
        %5788 = vmatpush.bf16.msra.mxu0 %v5769
        %5789 = vmatpush.bf16.msra.mxu0 %v5768
        %5790 = vmatpush.bf16.msra.mxu0 %v5767
        %5791 = vmatmul.bf16.gmra.mxu0 %v5437
        %v5792 = vpop.f32.mrf.mxu0
        %v5793 = vadd.f32 %v5656, %v5792
        %v5794 = vpop.f32.mrf.mxu0
        %v5795 = vadd.f32 %v5658, %v5794
        %5796 = vmatmul.bf16.gmra.mxu0 %v5438
        %v5797 = vpop.f32.mrf.mxu0
        %v5798 = vadd.f32 %v5661, %v5797
        %v5799 = vpop.f32.mrf.mxu0
        %v5800 = vadd.f32 %v5663, %v5799
        %5801 = vmatmul.bf16.gmra.mxu0 %v5439
        %v5802 = vpop.f32.mrf.mxu0
        %v5803 = vadd.f32 %v5666, %v5802
        %v5804 = vpop.f32.mrf.mxu0
        %v5805 = vadd.f32 %v5668, %v5804
        %5806 = vmatmul.bf16.gmra.mxu0 %v5440
        %v5807 = vpop.f32.mrf.mxu0
        %v5808 = vadd.f32 %v5671, %v5807
        %v5809 = vpop.f32.mrf.mxu0
        %v5810 = vadd.f32 %v5673, %v5809
        %5811 = vmatmul.bf16.gmra.mxu0 %v5441
        %v5812 = vpop.f32.mrf.mxu0
        %v5813 = vadd.f32 %v5676, %v5812
        %v5814 = vpop.f32.mrf.mxu0
        %v5815 = vadd.f32 %v5678, %v5814
        %5816 = vmatmul.bf16.gmra.mxu0 %v5442
        %v5817 = vpop.f32.mrf.mxu0
        %v5818 = vadd.f32 %v5681, %v5817
        %v5819 = vpop.f32.mrf.mxu0
        %v5820 = vadd.f32 %v5683, %v5819
        %5821 = vmatmul.bf16.gmra.mxu0 %v5443
        %v5822 = vpop.f32.mrf.mxu0
        %v5823 = vadd.f32 %v5686, %v5822
        %v5824 = vpop.f32.mrf.mxu0
        %v5825 = vadd.f32 %v5688, %v5824
        %5826 = vmatmul.bf16.gmra.mxu0 %v5444
        %v5827 = vpop.f32.mrf.mxu0
        %v5828 = vadd.f32 %v5691, %v5827
        %v5829 = vpop.f32.mrf.mxu0
        %v5830 = vadd.f32 %v5693, %v5829
        %5831 = vmatmul.bf16.gmra.mxu0 %v5445
        %v5832 = vpop.f32.mrf.mxu0
        %v5833 = vadd.f32 %v5696, %v5832
        %v5834 = vpop.f32.mrf.mxu0
        %v5835 = vadd.f32 %v5698, %v5834
        %5836 = vmatmul.bf16.gmra.mxu0 %v5446
        %v5837 = vpop.f32.mrf.mxu0
        %v5838 = vadd.f32 %v5701, %v5837
        %v5839 = vpop.f32.mrf.mxu0
        %v5840 = vadd.f32 %v5703, %v5839
        %5841 = vmatmul.bf16.gmra.mxu0 %v5447
        %v5842 = vpop.f32.mrf.mxu0
        %v5843 = vadd.f32 %v5706, %v5842
        %v5844 = vpop.f32.mrf.mxu0
        %v5845 = vadd.f32 %v5708, %v5844
        %5846 = vmatmul.bf16.gmra.mxu0 %v5448
        %v5847 = vpop.f32.mrf.mxu0
        %v5848 = vadd.f32 %v5711, %v5847
        %v5849 = vpop.f32.mrf.mxu0
        %v5850 = vadd.f32 %v5713, %v5849
        %5851 = vmatmul.bf16.gmra.mxu0 %v5449
        %v5852 = vpop.f32.mrf.mxu0
        %v5853 = vadd.f32 %v5716, %v5852
        %v5854 = vpop.f32.mrf.mxu0
        %v5855 = vadd.f32 %v5718, %v5854
        %5856 = vmatmul.bf16.gmra.mxu0 %v5450
        %v5857 = vpop.f32.mrf.mxu0
        %v5858 = vadd.f32 %v5721, %v5857
        %v5859 = vpop.f32.mrf.mxu0
        %v5860 = vadd.f32 %v5723, %v5859
        %5861 = vmatmul.bf16.gmra.mxu0 %v5451
        %v5862 = vpop.f32.mrf.mxu0
        %v5863 = vadd.f32 %v5726, %v5862
        %v5864 = vpop.f32.mrf.mxu0
        %v5865 = vadd.f32 %v5728, %v5864
        %5866 = vmatmul.bf16.gmra.mxu0 %v5452
        %v5867 = vpop.f32.mrf.mxu0
        %v5868 = vadd.f32 %v5731, %v5867
        %v5869 = vpop.f32.mrf.mxu0
        %v5870 = vadd.f32 %v5733, %v5869
        %5871 = vdwg.mxu0
        %v5872 = vrot.slane %v5405, 7
        %v5873 = vrot.slane %v5406, 7
        %v5874 = vrot.slane %v5407, 7
        %v5875 = vrot.slane %v5408, 7
        %v5876 = vrot.slane %v5409, 7
        %v5877 = vrot.slane %v5410, 7
        %v5878 = vrot.slane %v5411, 7
        %v5879 = vrot.slane %v5412, 7
        %v5880 = vrot.slane %v5413, 7
        %v5881 = vrot.slane %v5414, 7
        %v5882 = vrot.slane %v5415, 7
        %v5883 = vrot.slane %v5416, 7
        %v5884 = vrot.slane %v5417, 7
        %v5885 = vrot.slane %v5418, 7
        %v5886 = vrot.slane %v5419, 7
        %v5887 = vrot.slane %v5420, 7
        %v5888 = vrot.slane %v5421, 7
        %v5889 = vrot.slane %v5422, 7
        %v5890 = vrot.slane %v5423, 7
        %v5891 = vrot.slane %v5424, 7
        %v5892 = vrot.slane %v5425, 7
        %v5893 = vrot.slane %v5426, 7
        %v5894 = vrot.slane %v5427, 7
        %v5895 = vrot.slane %v5428, 7
        %v5896 = vrot.slane %v5429, 7
        %v5897 = vrot.slane %v5430, 7
        %v5898 = vrot.slane %v5431, 7
        %v5899 = vrot.slane %v5432, 7
        %v5900 = vrot.slane %v5433, 7
        %v5901 = vrot.slane %v5434, 7
        %v5902 = vrot.slane %v5435, 7
        %v5903 = vrot.slane %v5436, 7
        %v5904 = vsel %vm1134, %v5902, %v5903
        %v5905 = vsel %vm1134, %v5901, %v5902
        %v5906 = vsel %vm1134, %v5900, %v5901
        %v5907 = vsel %vm1134, %v5899, %v5900
        %v5908 = vsel %vm1134, %v5898, %v5899
        %v5909 = vsel %vm1134, %v5897, %v5898
        %v5910 = vsel %vm1134, %v5896, %v5897
        %v5911 = vsel %vm1134, %v5895, %v5896
        %v5912 = vsel %vm1134, %v5894, %v5895
        %v5913 = vsel %vm1134, %v5893, %v5894
        %v5914 = vsel %vm1134, %v5892, %v5893
        %v5915 = vsel %vm1134, %v5891, %v5892
        %v5916 = vsel %vm1134, %v5890, %v5891
        %v5917 = vsel %vm1134, %v5889, %v5890
        %v5918 = vsel %vm1134, %v5888, %v5889
        %v5919 = vsel %vm1134, %v5887, %v5888
        %v5920 = vsel %vm1134, %v5886, %v5887
        %v5921 = vsel %vm1134, %v5885, %v5886
        %v5922 = vsel %vm1134, %v5884, %v5885
        %v5923 = vsel %vm1134, %v5883, %v5884
        %v5924 = vsel %vm1134, %v5882, %v5883
        %v5925 = vsel %vm1134, %v5881, %v5882
        %v5926 = vsel %vm1134, %v5880, %v5881
        %v5927 = vsel %vm1134, %v5879, %v5880
        %v5928 = vsel %vm1134, %v5878, %v5879
        %v5929 = vsel %vm1134, %v5877, %v5878
        %v5930 = vsel %vm1134, %v5876, %v5877
        %v5931 = vsel %vm1134, %v5875, %v5876
        %v5932 = vsel %vm1134, %v5874, %v5875
        %v5933 = vsel %vm1134, %v5873, %v5874
        %v5934 = vsel %vm1134, %v5872, %v5873
        %v5935 = vsel %vm1134, %v5903, %v5872
        %v5936 = vsel %vm1327, %v5935, 0.0
        %v5937 = vsel %vm1328, %v5934, 0.0
        %v5938 = vsel %vm1329, %v5933, 0.0
        %v5939 = vsel %vm1330, %v5932, 0.0
        %v5940 = vsel %vm1331, %v5931, 0.0
        %v5941 = vsel %vm1332, %v5930, 0.0
        %v5942 = vsel %vm1333, %v5929, 0.0
        %v5943 = vsel %vm1334, %v5928, 0.0
        %v5944 = vsel %vm1335, %v5927, 0.0
        %v5945 = vsel %vm1336, %v5926, 0.0
        %v5946 = vsel %vm1337, %v5925, 0.0
        %v5947 = vsel %vm1338, %v5924, 0.0
        %v5948 = vsel %vm1339, %v5923, 0.0
        %v5949 = vsel %vm1340, %v5922, 0.0
        %v5950 = vsel %vm1341, %v5921, 0.0
        %v5951 = vsel %vm1342, %v5920, 0.0
        %v5952 = vsel %vm1343, %v5919, 0.0
        %v5953 = vsel %vm1344, %v5918, 0.0
        %v5954 = vsel %vm1345, %v5917, 0.0
        %v5955 = vsel %vm1346, %v5916, 0.0
        %v5956 = vsel %vm1347, %v5915, 0.0
        %v5957 = vsel %vm1348, %v5914, 0.0
        %v5958 = vsel %vm1349, %v5913, 0.0
        %v5959 = vsel %vm1350, %v5912, 0.0
        %v5960 = vsel %vm1351, %v5911, 0.0
        %v5961 = vsel %vm1352, %v5910, 0.0
        %v5962 = vsel %vm1353, %v5909, 0.0
        %v5963 = vsel %vm1354, %v5908, 0.0
        %v5964 = vsel %vm1355, %v5907, 0.0
        %v5965 = vsel %vm1356, %v5906, 0.0
        %v5966 = vsel %vm1357, %v5905, 0.0
        %v5967 = vsel %vm1358, %v5904, 0.0
        %v5968 = vpack.c.bf16 %v5937, %v5936
        %v5969 = vpack.c.bf16 %v5939, %v5938
        %v5970 = vpack.c.bf16 %v5941, %v5940
        %v5971 = vpack.c.bf16 %v5943, %v5942
        %v5972 = vpack.c.bf16 %v5945, %v5944
        %v5973 = vpack.c.bf16 %v5947, %v5946
        %v5974 = vpack.c.bf16 %v5949, %v5948
        %v5975 = vpack.c.bf16 %v5951, %v5950
        %v5976 = vpack.c.bf16 %v5953, %v5952
        %v5977 = vpack.c.bf16 %v5955, %v5954
        %v5978 = vpack.c.bf16 %v5957, %v5956
        %v5979 = vpack.c.bf16 %v5959, %v5958
        %v5980 = vpack.c.bf16 %v5961, %v5960
        %v5981 = vpack.c.bf16 %v5963, %v5962
        %v5982 = vpack.c.bf16 %v5965, %v5964
        %v5983 = vpack.c.bf16 %v5967, %v5966
        %s5984 = scalar_lea.vmem [#allocation2], 64
        %v5985 = vld [vmem:[%s5984] sm:$0xf]
        %v5986 = vld [vmem:[%s5984 + $0x4] sm:$0xf]
        %v5987 = vld [vmem:[%s5984 + $0x8] sm:$0xf]
        %v5988 = vld [vmem:[%s5984 + $0xc] sm:$0xf]
        %v5989 = vld [vmem:[%s5984 + $0x10] sm:$0xf]
        %v5990 = vld [vmem:[%s5984 + $0x14] sm:$0xf]
        %v5991 = vld [vmem:[%s5984 + $0x18] sm:$0xf]
        %v5992 = vld [vmem:[%s5984 + $0x1c] sm:$0xf]
        %v5993 = vld [vmem:[%s5984 + $0x20] sm:$0xf]
        %v5994 = vld [vmem:[%s5984 + $0x24] sm:$0xf]
        %v5995 = vld [vmem:[%s5984 + $0x28] sm:$0xf]
        %v5996 = vld [vmem:[%s5984 + $0x2c] sm:$0xf]
        %v5997 = vld [vmem:[%s5984 + $0x30] sm:$0xf]
        %v5998 = vld [vmem:[%s5984 + $0x34] sm:$0xf]
        %v5999 = vld [vmem:[%s5984 + $0x38] sm:$0xf]
        %v6000 = vld [vmem:[%s5984 + $0x3c] sm:$0xf]
        %v6017 = vunpack.c.l.b16 %v5985
        %v6018 = vunpack.c.l.b16 %v5986
        %v6019 = vunpack.c.l.b16 %v5987
        %v6020 = vunpack.c.l.b16 %v5988
        %v6021 = vunpack.c.l.b16 %v5989
        %v6022 = vunpack.c.l.b16 %v5990
        %v6023 = vunpack.c.l.b16 %v5991
        %v6024 = vunpack.c.l.b16 %v5992
        %v6025 = vunpack.c.l.b16 %v5993
        %v6026 = vunpack.c.l.b16 %v5994
        %v6027 = vunpack.c.l.b16 %v5995
        %v6028 = vunpack.c.l.b16 %v5996
        %v6029 = vunpack.c.l.b16 %v5997
        %v6030 = vunpack.c.l.b16 %v5998
        %v6031 = vunpack.c.l.b16 %v5999
        %v6032 = vunpack.c.l.b16 %v6000
        %v6033 = vpack.c.b16 %v6018, %v6017
        %v6034 = vpack.c.b16 %v6020, %v6019
        %v6035 = vpack.c.b16 %v6022, %v6021
        %v6036 = vpack.c.b16 %v6024, %v6023
        %v6037 = vpack.c.b16 %v6026, %v6025
        %v6038 = vpack.c.b16 %v6028, %v6027
        %v6039 = vpack.c.b16 %v6030, %v6029
        %v6040 = vpack.c.b16 %v6032, %v6031
        %6049 = vmatpush.bf16.msra.mxu0 %v6040
        %6050 = vmatpush.bf16.msra.mxu0 %v6039
        %6051 = vmatpush.bf16.msra.mxu0 %v6038
        %6052 = vmatpush.bf16.msra.mxu0 %v6037
        %6053 = vmatpush.bf16.msra.mxu0 %v6036
        %6054 = vmatpush.bf16.msra.mxu0 %v6035
        %6055 = vmatpush.bf16.msra.mxu0 %v6034
        %6056 = vmatpush.bf16.msra.mxu0 %v6033
        %6057 = vmatmul.bf16.gmra.mxu0 %v5968
        %v6058 = vpop.f32.mrf.mxu0
        %v6059 = vadd.f32 0.0, %v6058
        %v6060 = vpop.f32.mrf.mxu0
        %v6061 = vadd.f32 0.0, %v6060
        %6062 = vmatmul.bf16.gmra.mxu0 %v5969
        %v6063 = vpop.f32.mrf.mxu0
        %v6064 = vadd.f32 0.0, %v6063
        %v6065 = vpop.f32.mrf.mxu0
        %v6066 = vadd.f32 0.0, %v6065
        %6067 = vmatmul.bf16.gmra.mxu0 %v5970
        %v6068 = vpop.f32.mrf.mxu0
        %v6069 = vadd.f32 0.0, %v6068
        %v6070 = vpop.f32.mrf.mxu0
        %v6071 = vadd.f32 0.0, %v6070
        %6072 = vmatmul.bf16.gmra.mxu0 %v5971
        %v6073 = vpop.f32.mrf.mxu0
        %v6074 = vadd.f32 0.0, %v6073
        %v6075 = vpop.f32.mrf.mxu0
        %v6076 = vadd.f32 0.0, %v6075
        %6077 = vmatmul.bf16.gmra.mxu0 %v5972
        %v6078 = vpop.f32.mrf.mxu0
        %v6079 = vadd.f32 0.0, %v6078
        %v6080 = vpop.f32.mrf.mxu0
        %v6081 = vadd.f32 0.0, %v6080
        %6082 = vmatmul.bf16.gmra.mxu0 %v5973
        %v6083 = vpop.f32.mrf.mxu0
        %v6084 = vadd.f32 0.0, %v6083
        %v6085 = vpop.f32.mrf.mxu0
        %v6086 = vadd.f32 0.0, %v6085
        %6087 = vmatmul.bf16.gmra.mxu0 %v5974
        %v6088 = vpop.f32.mrf.mxu0
        %v6089 = vadd.f32 0.0, %v6088
        %v6090 = vpop.f32.mrf.mxu0
        %v6091 = vadd.f32 0.0, %v6090
        %6092 = vmatmul.bf16.gmra.mxu0 %v5975
        %v6093 = vpop.f32.mrf.mxu0
        %v6094 = vadd.f32 0.0, %v6093
        %v6095 = vpop.f32.mrf.mxu0
        %v6096 = vadd.f32 0.0, %v6095
        %6097 = vmatmul.bf16.gmra.mxu0 %v5976
        %v6098 = vpop.f32.mrf.mxu0
        %v6099 = vadd.f32 0.0, %v6098
        %v6100 = vpop.f32.mrf.mxu0
        %v6101 = vadd.f32 0.0, %v6100
        %6102 = vmatmul.bf16.gmra.mxu0 %v5977
        %v6103 = vpop.f32.mrf.mxu0
        %v6104 = vadd.f32 0.0, %v6103
        %v6105 = vpop.f32.mrf.mxu0
        %v6106 = vadd.f32 0.0, %v6105
        %6107 = vmatmul.bf16.gmra.mxu0 %v5978
        %v6108 = vpop.f32.mrf.mxu0
        %v6109 = vadd.f32 0.0, %v6108
        %v6110 = vpop.f32.mrf.mxu0
        %v6111 = vadd.f32 0.0, %v6110
        %6112 = vmatmul.bf16.gmra.mxu0 %v5979
        %v6113 = vpop.f32.mrf.mxu0
        %v6114 = vadd.f32 0.0, %v6113
        %v6115 = vpop.f32.mrf.mxu0
        %v6116 = vadd.f32 0.0, %v6115
        %6117 = vmatmul.bf16.gmra.mxu0 %v5980
        %v6118 = vpop.f32.mrf.mxu0
        %v6119 = vadd.f32 0.0, %v6118
        %v6120 = vpop.f32.mrf.mxu0
        %v6121 = vadd.f32 0.0, %v6120
        %6122 = vmatmul.bf16.gmra.mxu0 %v5981
        %v6123 = vpop.f32.mrf.mxu0
        %v6124 = vadd.f32 0.0, %v6123
        %v6125 = vpop.f32.mrf.mxu0
        %v6126 = vadd.f32 0.0, %v6125
        %6127 = vmatmul.bf16.gmra.mxu0 %v5982
        %v6128 = vpop.f32.mrf.mxu0
        %v6129 = vadd.f32 0.0, %v6128
        %v6130 = vpop.f32.mrf.mxu0
        %v6131 = vadd.f32 0.0, %v6130
        %6132 = vmatmul.bf16.gmra.mxu0 %v5983
        %v6133 = vpop.f32.mrf.mxu0
        %v6134 = vadd.f32 0.0, %v6133
        %v6135 = vpop.f32.mrf.mxu0
        %v6136 = vadd.f32 0.0, %v6135
        %6137 = vdwg.mxu0
        %v6138 = vadd.f32 %v5793, %v6059
        %v6139 = vadd.f32 %v5795, %v6061
        %v6140 = vadd.f32 %v5798, %v6064
        %v6141 = vadd.f32 %v5800, %v6066
        %v6142 = vadd.f32 %v5803, %v6069
        %v6143 = vadd.f32 %v5805, %v6071
        %v6144 = vadd.f32 %v5808, %v6074
        %v6145 = vadd.f32 %v5810, %v6076
        %v6146 = vadd.f32 %v5813, %v6079
        %v6147 = vadd.f32 %v5815, %v6081
        %v6148 = vadd.f32 %v5818, %v6084
        %v6149 = vadd.f32 %v5820, %v6086
        %v6150 = vadd.f32 %v5823, %v6089
        %v6151 = vadd.f32 %v5825, %v6091
        %v6152 = vadd.f32 %v5828, %v6094
        %v6153 = vadd.f32 %v5830, %v6096
        %v6154 = vadd.f32 %v5833, %v6099
        %v6155 = vadd.f32 %v5835, %v6101
        %v6156 = vadd.f32 %v5838, %v6104
        %v6157 = vadd.f32 %v5840, %v6106
        %v6158 = vadd.f32 %v5843, %v6109
        %v6159 = vadd.f32 %v5845, %v6111
        %v6160 = vadd.f32 %v5848, %v6114
        %v6161 = vadd.f32 %v5850, %v6116
        %v6162 = vadd.f32 %v5853, %v6119
        %v6163 = vadd.f32 %v5855, %v6121
        %v6164 = vadd.f32 %v5858, %v6124
        %v6165 = vadd.f32 %v5860, %v6126
        %v6166 = vadd.f32 %v5863, %v6129
        %v6167 = vadd.f32 %v5865, %v6131
        %v6168 = vadd.f32 %v5868, %v6134
        %v6169 = vadd.f32 %v5870, %v6136
        %v6170 = vrot.slane %v5405, 1
        %v6171 = vrot.slane %v5406, 1
        %v6172 = vrot.slane %v5407, 1
        %v6173 = vrot.slane %v5408, 1
        %v6174 = vrot.slane %v5409, 1
        %v6175 = vrot.slane %v5410, 1
        %v6176 = vrot.slane %v5411, 1
        %v6177 = vrot.slane %v5412, 1
        %v6178 = vrot.slane %v5413, 1
        %v6179 = vrot.slane %v5414, 1
        %v6180 = vrot.slane %v5415, 1
        %v6181 = vrot.slane %v5416, 1
        %v6182 = vrot.slane %v5417, 1
        %v6183 = vrot.slane %v5418, 1
        %v6184 = vrot.slane %v5419, 1
        %v6185 = vrot.slane %v5420, 1
        %v6186 = vrot.slane %v5421, 1
        %v6187 = vrot.slane %v5422, 1
        %v6188 = vrot.slane %v5423, 1
        %v6189 = vrot.slane %v5424, 1
        %v6190 = vrot.slane %v5425, 1
        %v6191 = vrot.slane %v5426, 1
        %v6192 = vrot.slane %v5427, 1
        %v6193 = vrot.slane %v5428, 1
        %v6194 = vrot.slane %v5429, 1
        %v6195 = vrot.slane %v5430, 1
        %v6196 = vrot.slane %v5431, 1
        %v6197 = vrot.slane %v5432, 1
        %v6198 = vrot.slane %v5433, 1
        %v6199 = vrot.slane %v5434, 1
        %v6200 = vrot.slane %v5435, 1
        %v6201 = vrot.slane %v5436, 1
        %v6202 = vsel %vm1625, %v6200, %v6201
        %v6203 = vsel %vm1625, %v6199, %v6200
        %v6204 = vsel %vm1625, %v6198, %v6199
        %v6205 = vsel %vm1625, %v6197, %v6198
        %v6206 = vsel %vm1625, %v6196, %v6197
        %v6207 = vsel %vm1625, %v6195, %v6196
        %v6208 = vsel %vm1625, %v6194, %v6195
        %v6209 = vsel %vm1625, %v6193, %v6194
        %v6210 = vsel %vm1625, %v6192, %v6193
        %v6211 = vsel %vm1625, %v6191, %v6192
        %v6212 = vsel %vm1625, %v6190, %v6191
        %v6213 = vsel %vm1625, %v6189, %v6190
        %v6214 = vsel %vm1625, %v6188, %v6189
        %v6215 = vsel %vm1625, %v6187, %v6188
        %v6216 = vsel %vm1625, %v6186, %v6187
        %v6217 = vsel %vm1625, %v6185, %v6186
        %v6218 = vsel %vm1625, %v6184, %v6185
        %v6219 = vsel %vm1625, %v6183, %v6184
        %v6220 = vsel %vm1625, %v6182, %v6183
        %v6221 = vsel %vm1625, %v6181, %v6182
        %v6222 = vsel %vm1625, %v6180, %v6181
        %v6223 = vsel %vm1625, %v6179, %v6180
        %v6224 = vsel %vm1625, %v6178, %v6179
        %v6225 = vsel %vm1625, %v6177, %v6178
        %v6226 = vsel %vm1625, %v6176, %v6177
        %v6227 = vsel %vm1625, %v6175, %v6176
        %v6228 = vsel %vm1625, %v6174, %v6175
        %v6229 = vsel %vm1625, %v6173, %v6174
        %v6230 = vsel %vm1625, %v6172, %v6173
        %v6231 = vsel %vm1625, %v6171, %v6172
        %v6232 = vsel %vm1625, %v6170, %v6171
        %v6233 = vsel %vm1625, %v6201, %v6170
        %v6234 = vsel %vm1818, %v6232, 0.0
        %v6235 = vsel %vm1819, %v6231, 0.0
        %v6236 = vsel %vm1820, %v6230, 0.0
        %v6237 = vsel %vm1821, %v6229, 0.0
        %v6238 = vsel %vm1822, %v6228, 0.0
        %v6239 = vsel %vm1823, %v6227, 0.0
        %v6240 = vsel %vm1824, %v6226, 0.0
        %v6241 = vsel %vm1825, %v6225, 0.0
        %v6242 = vsel %vm1826, %v6224, 0.0
        %v6243 = vsel %vm1827, %v6223, 0.0
        %v6244 = vsel %vm1828, %v6222, 0.0
        %v6245 = vsel %vm1829, %v6221, 0.0
        %v6246 = vsel %vm1830, %v6220, 0.0
        %v6247 = vsel %vm1831, %v6219, 0.0
        %v6248 = vsel %vm1832, %v6218, 0.0
        %v6249 = vsel %vm1833, %v6217, 0.0
        %v6250 = vsel %vm1834, %v6216, 0.0
        %v6251 = vsel %vm1835, %v6215, 0.0
        %v6252 = vsel %vm1836, %v6214, 0.0
        %v6253 = vsel %vm1837, %v6213, 0.0
        %v6254 = vsel %vm1838, %v6212, 0.0
        %v6255 = vsel %vm1839, %v6211, 0.0
        %v6256 = vsel %vm1840, %v6210, 0.0
        %v6257 = vsel %vm1841, %v6209, 0.0
        %v6258 = vsel %vm1842, %v6208, 0.0
        %v6259 = vsel %vm1843, %v6207, 0.0
        %v6260 = vsel %vm1844, %v6206, 0.0
        %v6261 = vsel %vm1845, %v6205, 0.0
        %v6262 = vsel %vm1846, %v6204, 0.0
        %v6263 = vsel %vm1847, %v6203, 0.0
        %v6264 = vsel %vm1848, %v6202, 0.0
        %v6265 = vsel %vm1849, %v6233, 0.0
        %v6266 = vpack.c.bf16 %v6235, %v6234
        %v6267 = vpack.c.bf16 %v6237, %v6236
        %v6268 = vpack.c.bf16 %v6239, %v6238
        %v6269 = vpack.c.bf16 %v6241, %v6240
        %v6270 = vpack.c.bf16 %v6243, %v6242
        %v6271 = vpack.c.bf16 %v6245, %v6244
        %v6272 = vpack.c.bf16 %v6247, %v6246
        %v6273 = vpack.c.bf16 %v6249, %v6248
        %v6274 = vpack.c.bf16 %v6251, %v6250
        %v6275 = vpack.c.bf16 %v6253, %v6252
        %v6276 = vpack.c.bf16 %v6255, %v6254
        %v6277 = vpack.c.bf16 %v6257, %v6256
        %v6278 = vpack.c.bf16 %v6259, %v6258
        %v6279 = vpack.c.bf16 %v6261, %v6260
        %v6280 = vpack.c.bf16 %v6263, %v6262
        %v6281 = vpack.c.bf16 %v6265, %v6264
        %s6282 = scalar_lea.vmem [#allocation2], 192
        %v6283 = vld [vmem:[%s6282] sm:$0xf]
        %v6284 = vld [vmem:[%s6282 + $0x4] sm:$0xf]
        %v6285 = vld [vmem:[%s6282 + $0x8] sm:$0xf]
        %v6286 = vld [vmem:[%s6282 + $0xc] sm:$0xf]
        %v6287 = vld [vmem:[%s6282 + $0x10] sm:$0xf]
        %v6288 = vld [vmem:[%s6282 + $0x14] sm:$0xf]
        %v6289 = vld [vmem:[%s6282 + $0x18] sm:$0xf]
        %v6290 = vld [vmem:[%s6282 + $0x1c] sm:$0xf]
        %v6291 = vld [vmem:[%s6282 + $0x20] sm:$0xf]
        %v6292 = vld [vmem:[%s6282 + $0x24] sm:$0xf]
        %v6293 = vld [vmem:[%s6282 + $0x28] sm:$0xf]
        %v6294 = vld [vmem:[%s6282 + $0x2c] sm:$0xf]
        %v6295 = vld [vmem:[%s6282 + $0x30] sm:$0xf]
        %v6296 = vld [vmem:[%s6282 + $0x34] sm:$0xf]
        %v6297 = vld [vmem:[%s6282 + $0x38] sm:$0xf]
        %v6298 = vld [vmem:[%s6282 + $0x3c] sm:$0xf]
        %v6315 = vunpack.c.l.b16 %v6283
        %v6316 = vunpack.c.l.b16 %v6284
        %v6317 = vunpack.c.l.b16 %v6285
        %v6318 = vunpack.c.l.b16 %v6286
        %v6319 = vunpack.c.l.b16 %v6287
        %v6320 = vunpack.c.l.b16 %v6288
        %v6321 = vunpack.c.l.b16 %v6289
        %v6322 = vunpack.c.l.b16 %v6290
        %v6323 = vunpack.c.l.b16 %v6291
        %v6324 = vunpack.c.l.b16 %v6292
        %v6325 = vunpack.c.l.b16 %v6293
        %v6326 = vunpack.c.l.b16 %v6294
        %v6327 = vunpack.c.l.b16 %v6295
        %v6328 = vunpack.c.l.b16 %v6296
        %v6329 = vunpack.c.l.b16 %v6297
        %v6330 = vunpack.c.l.b16 %v6298
        %v6331 = vpack.c.b16 %v6316, %v6315
        %v6332 = vpack.c.b16 %v6318, %v6317
        %v6333 = vpack.c.b16 %v6320, %v6319
        %v6334 = vpack.c.b16 %v6322, %v6321
        %v6335 = vpack.c.b16 %v6324, %v6323
        %v6336 = vpack.c.b16 %v6326, %v6325
        %v6337 = vpack.c.b16 %v6328, %v6327
        %v6338 = vpack.c.b16 %v6330, %v6329
        %6347 = vmatpush.bf16.msra.mxu0 %v6338
        %6348 = vmatpush.bf16.msra.mxu0 %v6337
        %6349 = vmatpush.bf16.msra.mxu0 %v6336
        %6350 = vmatpush.bf16.msra.mxu0 %v6335
        %6351 = vmatpush.bf16.msra.mxu0 %v6334
        %6352 = vmatpush.bf16.msra.mxu0 %v6333
        %6353 = vmatpush.bf16.msra.mxu0 %v6332
        %6354 = vmatpush.bf16.msra.mxu0 %v6331
        %6355 = vmatmul.bf16.gmra.mxu0 %v6266
        %v6356 = vpop.f32.mrf.mxu0
        %v6357 = vadd.f32 0.0, %v6356
        %v6358 = vpop.f32.mrf.mxu0
        %v6359 = vadd.f32 0.0, %v6358
        %6360 = vmatmul.bf16.gmra.mxu0 %v6267
        %v6361 = vpop.f32.mrf.mxu0
        %v6362 = vadd.f32 0.0, %v6361
        %v6363 = vpop.f32.mrf.mxu0
        %v6364 = vadd.f32 0.0, %v6363
        %6365 = vmatmul.bf16.gmra.mxu0 %v6268
        %v6366 = vpop.f32.mrf.mxu0
        %v6367 = vadd.f32 0.0, %v6366
        %v6368 = vpop.f32.mrf.mxu0
        %v6369 = vadd.f32 0.0, %v6368
        %6370 = vmatmul.bf16.gmra.mxu0 %v6269
        %v6371 = vpop.f32.mrf.mxu0
        %v6372 = vadd.f32 0.0, %v6371
        %v6373 = vpop.f32.mrf.mxu0
        %v6374 = vadd.f32 0.0, %v6373
        %6375 = vmatmul.bf16.gmra.mxu0 %v6270
        %v6376 = vpop.f32.mrf.mxu0
        %v6377 = vadd.f32 0.0, %v6376
        %v6378 = vpop.f32.mrf.mxu0
        %v6379 = vadd.f32 0.0, %v6378
        %6380 = vmatmul.bf16.gmra.mxu0 %v6271
        %v6381 = vpop.f32.mrf.mxu0
        %v6382 = vadd.f32 0.0, %v6381
        %v6383 = vpop.f32.mrf.mxu0
        %v6384 = vadd.f32 0.0, %v6383
        %6385 = vmatmul.bf16.gmra.mxu0 %v6272
        %v6386 = vpop.f32.mrf.mxu0
        %v6387 = vadd.f32 0.0, %v6386
        %v6388 = vpop.f32.mrf.mxu0
        %v6389 = vadd.f32 0.0, %v6388
        %6390 = vmatmul.bf16.gmra.mxu0 %v6273
        %v6391 = vpop.f32.mrf.mxu0
        %v6392 = vadd.f32 0.0, %v6391
        %v6393 = vpop.f32.mrf.mxu0
        %v6394 = vadd.f32 0.0, %v6393
        %6395 = vmatmul.bf16.gmra.mxu0 %v6274
        %v6396 = vpop.f32.mrf.mxu0
        %v6397 = vadd.f32 0.0, %v6396
        %v6398 = vpop.f32.mrf.mxu0
        %v6399 = vadd.f32 0.0, %v6398
        %6400 = vmatmul.bf16.gmra.mxu0 %v6275
        %v6401 = vpop.f32.mrf.mxu0
        %v6402 = vadd.f32 0.0, %v6401
        %v6403 = vpop.f32.mrf.mxu0
        %v6404 = vadd.f32 0.0, %v6403
        %6405 = vmatmul.bf16.gmra.mxu0 %v6276
        %v6406 = vpop.f32.mrf.mxu0
        %v6407 = vadd.f32 0.0, %v6406
        %v6408 = vpop.f32.mrf.mxu0
        %v6409 = vadd.f32 0.0, %v6408
        %6410 = vmatmul.bf16.gmra.mxu0 %v6277
        %v6411 = vpop.f32.mrf.mxu0
        %v6412 = vadd.f32 0.0, %v6411
        %v6413 = vpop.f32.mrf.mxu0
        %v6414 = vadd.f32 0.0, %v6413
        %6415 = vmatmul.bf16.gmra.mxu0 %v6278
        %v6416 = vpop.f32.mrf.mxu0
        %v6417 = vadd.f32 0.0, %v6416
        %v6418 = vpop.f32.mrf.mxu0
        %v6419 = vadd.f32 0.0, %v6418
        %6420 = vmatmul.bf16.gmra.mxu0 %v6279
        %v6421 = vpop.f32.mrf.mxu0
        %v6422 = vadd.f32 0.0, %v6421
        %v6423 = vpop.f32.mrf.mxu0
        %v6424 = vadd.f32 0.0, %v6423
        %6425 = vmatmul.bf16.gmra.mxu0 %v6280
        %v6426 = vpop.f32.mrf.mxu0
        %v6427 = vadd.f32 0.0, %v6426
        %v6428 = vpop.f32.mrf.mxu0
        %v6429 = vadd.f32 0.0, %v6428
        %6430 = vmatmul.bf16.gmra.mxu0 %v6281
        %v6431 = vpop.f32.mrf.mxu0
        %v6432 = vadd.f32 0.0, %v6431
        %v6433 = vpop.f32.mrf.mxu0
        %v6434 = vadd.f32 0.0, %v6433
        %6435 = vdwg.mxu0
        %v6436 = vadd.f32 %v6138, %v6357
        %v6437 = vadd.f32 %v6139, %v6359
        %v6438 = vadd.f32 %v6140, %v6362
        %v6439 = vadd.f32 %v6141, %v6364
        %v6440 = vadd.f32 %v6142, %v6367
        %v6441 = vadd.f32 %v6143, %v6369
        %v6442 = vadd.f32 %v6144, %v6372
        %v6443 = vadd.f32 %v6145, %v6374
        %v6444 = vadd.f32 %v6146, %v6377
        %v6445 = vadd.f32 %v6147, %v6379
        %v6446 = vadd.f32 %v6148, %v6382
        %v6447 = vadd.f32 %v6149, %v6384
        %v6448 = vadd.f32 %v6150, %v6387
        %v6449 = vadd.f32 %v6151, %v6389
        %v6450 = vadd.f32 %v6152, %v6392
        %v6451 = vadd.f32 %v6153, %v6394
        %v6452 = vadd.f32 %v6154, %v6397
        %v6453 = vadd.f32 %v6155, %v6399
        %v6454 = vadd.f32 %v6156, %v6402
        %v6455 = vadd.f32 %v6157, %v6404
        %v6456 = vadd.f32 %v6158, %v6407
        %v6457 = vadd.f32 %v6159, %v6409
        %v6458 = vadd.f32 %v6160, %v6412
        %v6459 = vadd.f32 %v6161, %v6414
        %v6460 = vadd.f32 %v6162, %v6417
        %v6461 = vadd.f32 %v6163, %v6419
        %v6462 = vadd.f32 %v6164, %v6422
        %v6463 = vadd.f32 %v6165, %v6424
        %v6464 = vadd.f32 %v6166, %v6427
        %v6465 = vadd.f32 %v6167, %v6429
        %v6466 = vadd.f32 %v6168, %v6432
        %v6467 = vadd.f32 %v6169, %v6434
        %v6468 = vrot.slane %v5405, 2
        %v6469 = vrot.slane %v5406, 2
        %v6470 = vrot.slane %v5407, 2
        %v6471 = vrot.slane %v5408, 2
        %v6472 = vrot.slane %v5409, 2
        %v6473 = vrot.slane %v5410, 2
        %v6474 = vrot.slane %v5411, 2
        %v6475 = vrot.slane %v5412, 2
        %v6476 = vrot.slane %v5413, 2
        %v6477 = vrot.slane %v5414, 2
        %v6478 = vrot.slane %v5415, 2
        %v6479 = vrot.slane %v5416, 2
        %v6480 = vrot.slane %v5417, 2
        %v6481 = vrot.slane %v5418, 2
        %v6482 = vrot.slane %v5419, 2
        %v6483 = vrot.slane %v5420, 2
        %v6484 = vrot.slane %v5421, 2
        %v6485 = vrot.slane %v5422, 2
        %v6486 = vrot.slane %v5423, 2
        %v6487 = vrot.slane %v5424, 2
        %v6488 = vrot.slane %v5425, 2
        %v6489 = vrot.slane %v5426, 2
        %v6490 = vrot.slane %v5427, 2
        %v6491 = vrot.slane %v5428, 2
        %v6492 = vrot.slane %v5429, 2
        %v6493 = vrot.slane %v5430, 2
        %v6494 = vrot.slane %v5431, 2
        %v6495 = vrot.slane %v5432, 2
        %v6496 = vrot.slane %v5433, 2
        %v6497 = vrot.slane %v5434, 2
        %v6498 = vrot.slane %v5435, 2
        %v6499 = vrot.slane %v5436, 2
        %v6500 = vsel %vm2116, %v6498, %v6499
        %v6501 = vsel %vm2116, %v6497, %v6498
        %v6502 = vsel %vm2116, %v6496, %v6497
        %v6503 = vsel %vm2116, %v6495, %v6496
        %v6504 = vsel %vm2116, %v6494, %v6495
        %v6505 = vsel %vm2116, %v6493, %v6494
        %v6506 = vsel %vm2116, %v6492, %v6493
        %v6507 = vsel %vm2116, %v6491, %v6492
        %v6508 = vsel %vm2116, %v6490, %v6491
        %v6509 = vsel %vm2116, %v6489, %v6490
        %v6510 = vsel %vm2116, %v6488, %v6489
        %v6511 = vsel %vm2116, %v6487, %v6488
        %v6512 = vsel %vm2116, %v6486, %v6487
        %v6513 = vsel %vm2116, %v6485, %v6486
        %v6514 = vsel %vm2116, %v6484, %v6485
        %v6515 = vsel %vm2116, %v6483, %v6484
        %v6516 = vsel %vm2116, %v6482, %v6483
        %v6517 = vsel %vm2116, %v6481, %v6482
        %v6518 = vsel %vm2116, %v6480, %v6481
        %v6519 = vsel %vm2116, %v6479, %v6480
        %v6520 = vsel %vm2116, %v6478, %v6479
        %v6521 = vsel %vm2116, %v6477, %v6478
        %v6522 = vsel %vm2116, %v6476, %v6477
        %v6523 = vsel %vm2116, %v6475, %v6476
        %v6524 = vsel %vm2116, %v6474, %v6475
        %v6525 = vsel %vm2116, %v6473, %v6474
        %v6526 = vsel %vm2116, %v6472, %v6473
        %v6527 = vsel %vm2116, %v6471, %v6472
        %v6528 = vsel %vm2116, %v6470, %v6471
        %v6529 = vsel %vm2116, %v6469, %v6470
        %v6530 = vsel %vm2116, %v6468, %v6469
        %v6531 = vsel %vm2116, %v6499, %v6468
        %v6532 = vsel %vm2309, %v6530, 0.0
        %v6533 = vsel %vm2310, %v6529, 0.0
        %v6534 = vsel %vm2311, %v6528, 0.0
        %v6535 = vsel %vm2312, %v6527, 0.0
        %v6536 = vsel %vm2313, %v6526, 0.0
        %v6537 = vsel %vm2314, %v6525, 0.0
        %v6538 = vsel %vm2315, %v6524, 0.0
        %v6539 = vsel %vm2316, %v6523, 0.0
        %v6540 = vsel %vm2317, %v6522, 0.0
        %v6541 = vsel %vm2318, %v6521, 0.0
        %v6542 = vsel %vm2319, %v6520, 0.0
        %v6543 = vsel %vm2320, %v6519, 0.0
        %v6544 = vsel %vm2321, %v6518, 0.0
        %v6545 = vsel %vm2322, %v6517, 0.0
        %v6546 = vsel %vm2323, %v6516, 0.0
        %v6547 = vsel %vm2324, %v6515, 0.0
        %v6548 = vsel %vm2325, %v6514, 0.0
        %v6549 = vsel %vm2326, %v6513, 0.0
        %v6550 = vsel %vm2327, %v6512, 0.0
        %v6551 = vsel %vm2328, %v6511, 0.0
        %v6552 = vsel %vm2329, %v6510, 0.0
        %v6553 = vsel %vm2330, %v6509, 0.0
        %v6554 = vsel %vm2331, %v6508, 0.0
        %v6555 = vsel %vm2332, %v6507, 0.0
        %v6556 = vsel %vm2333, %v6506, 0.0
        %v6557 = vsel %vm2334, %v6505, 0.0
        %v6558 = vsel %vm2335, %v6504, 0.0
        %v6559 = vsel %vm2336, %v6503, 0.0
        %v6560 = vsel %vm2337, %v6502, 0.0
        %v6561 = vsel %vm2338, %v6501, 0.0
        %v6562 = vsel %vm2339, %v6500, 0.0
        %v6563 = vsel %vm2340, %v6531, 0.0
        %v6564 = vpack.c.bf16 %v6533, %v6532
        %v6565 = vpack.c.bf16 %v6535, %v6534
        %v6566 = vpack.c.bf16 %v6537, %v6536
        %v6567 = vpack.c.bf16 %v6539, %v6538
        %v6568 = vpack.c.bf16 %v6541, %v6540
        %v6569 = vpack.c.bf16 %v6543, %v6542
        %v6570 = vpack.c.bf16 %v6545, %v6544
        %v6571 = vpack.c.bf16 %v6547, %v6546
        %v6572 = vpack.c.bf16 %v6549, %v6548
        %v6573 = vpack.c.bf16 %v6551, %v6550
        %v6574 = vpack.c.bf16 %v6553, %v6552
        %v6575 = vpack.c.bf16 %v6555, %v6554
        %v6576 = vpack.c.bf16 %v6557, %v6556
        %v6577 = vpack.c.bf16 %v6559, %v6558
        %v6578 = vpack.c.bf16 %v6561, %v6560
        %v6579 = vpack.c.bf16 %v6563, %v6562
        %s6580 = scalar_lea.vmem [#allocation2], 256
        %v6581 = vld [vmem:[%s6580] sm:$0xf]
        %v6582 = vld [vmem:[%s6580 + $0x4] sm:$0xf]
        %v6583 = vld [vmem:[%s6580 + $0x8] sm:$0xf]
        %v6584 = vld [vmem:[%s6580 + $0xc] sm:$0xf]
        %v6585 = vld [vmem:[%s6580 + $0x10] sm:$0xf]
        %v6586 = vld [vmem:[%s6580 + $0x14] sm:$0xf]
        %v6587 = vld [vmem:[%s6580 + $0x18] sm:$0xf]
        %v6588 = vld [vmem:[%s6580 + $0x1c] sm:$0xf]
        %v6589 = vld [vmem:[%s6580 + $0x20] sm:$0xf]
        %v6590 = vld [vmem:[%s6580 + $0x24] sm:$0xf]
        %v6591 = vld [vmem:[%s6580 + $0x28] sm:$0xf]
        %v6592 = vld [vmem:[%s6580 + $0x2c] sm:$0xf]
        %v6593 = vld [vmem:[%s6580 + $0x30] sm:$0xf]
        %v6594 = vld [vmem:[%s6580 + $0x34] sm:$0xf]
        %v6595 = vld [vmem:[%s6580 + $0x38] sm:$0xf]
        %v6596 = vld [vmem:[%s6580 + $0x3c] sm:$0xf]
        %v6613 = vunpack.c.l.b16 %v6581
        %v6614 = vunpack.c.l.b16 %v6582
        %v6615 = vunpack.c.l.b16 %v6583
        %v6616 = vunpack.c.l.b16 %v6584
        %v6617 = vunpack.c.l.b16 %v6585
        %v6618 = vunpack.c.l.b16 %v6586
        %v6619 = vunpack.c.l.b16 %v6587
        %v6620 = vunpack.c.l.b16 %v6588
        %v6621 = vunpack.c.l.b16 %v6589
        %v6622 = vunpack.c.l.b16 %v6590
        %v6623 = vunpack.c.l.b16 %v6591
        %v6624 = vunpack.c.l.b16 %v6592
        %v6625 = vunpack.c.l.b16 %v6593
        %v6626 = vunpack.c.l.b16 %v6594
        %v6627 = vunpack.c.l.b16 %v6595
        %v6628 = vunpack.c.l.b16 %v6596
        %v6629 = vpack.c.b16 %v6614, %v6613
        %v6630 = vpack.c.b16 %v6616, %v6615
        %v6631 = vpack.c.b16 %v6618, %v6617
        %v6632 = vpack.c.b16 %v6620, %v6619
        %v6633 = vpack.c.b16 %v6622, %v6621
        %v6634 = vpack.c.b16 %v6624, %v6623
        %v6635 = vpack.c.b16 %v6626, %v6625
        %v6636 = vpack.c.b16 %v6628, %v6627
        %6645 = vmatpush.bf16.msra.mxu0 %v6636
        %6646 = vmatpush.bf16.msra.mxu0 %v6635
        %6647 = vmatpush.bf16.msra.mxu0 %v6634
        %6648 = vmatpush.bf16.msra.mxu0 %v6633
        %6649 = vmatpush.bf16.msra.mxu0 %v6632
        %6650 = vmatpush.bf16.msra.mxu0 %v6631
        %6651 = vmatpush.bf16.msra.mxu0 %v6630
        %6652 = vmatpush.bf16.msra.mxu0 %v6629
        %6653 = vmatmul.bf16.gmra.mxu0 %v6564
        %v6654 = vpop.f32.mrf.mxu0
        %v6655 = vadd.f32 0.0, %v6654
        %v6656 = vpop.f32.mrf.mxu0
        %v6657 = vadd.f32 0.0, %v6656
        %6658 = vmatmul.bf16.gmra.mxu0 %v6565
        %v6659 = vpop.f32.mrf.mxu0
        %v6660 = vadd.f32 0.0, %v6659
        %v6661 = vpop.f32.mrf.mxu0
        %v6662 = vadd.f32 0.0, %v6661
        %6663 = vmatmul.bf16.gmra.mxu0 %v6566
        %v6664 = vpop.f32.mrf.mxu0
        %v6665 = vadd.f32 0.0, %v6664
        %v6666 = vpop.f32.mrf.mxu0
        %v6667 = vadd.f32 0.0, %v6666
        %6668 = vmatmul.bf16.gmra.mxu0 %v6567
        %v6669 = vpop.f32.mrf.mxu0
        %v6670 = vadd.f32 0.0, %v6669
        %v6671 = vpop.f32.mrf.mxu0
        %v6672 = vadd.f32 0.0, %v6671
        %6673 = vmatmul.bf16.gmra.mxu0 %v6568
        %v6674 = vpop.f32.mrf.mxu0
        %v6675 = vadd.f32 0.0, %v6674
        %v6676 = vpop.f32.mrf.mxu0
        %v6677 = vadd.f32 0.0, %v6676
        %6678 = vmatmul.bf16.gmra.mxu0 %v6569
        %v6679 = vpop.f32.mrf.mxu0
        %v6680 = vadd.f32 0.0, %v6679
        %v6681 = vpop.f32.mrf.mxu0
        %v6682 = vadd.f32 0.0, %v6681
        %6683 = vmatmul.bf16.gmra.mxu0 %v6570
        %v6684 = vpop.f32.mrf.mxu0
        %v6685 = vadd.f32 0.0, %v6684
        %v6686 = vpop.f32.mrf.mxu0
        %v6687 = vadd.f32 0.0, %v6686
        %6688 = vmatmul.bf16.gmra.mxu0 %v6571
        %v6689 = vpop.f32.mrf.mxu0
        %v6690 = vadd.f32 0.0, %v6689
        %v6691 = vpop.f32.mrf.mxu0
        %v6692 = vadd.f32 0.0, %v6691
        %6693 = vmatmul.bf16.gmra.mxu0 %v6572
        %v6694 = vpop.f32.mrf.mxu0
        %v6695 = vadd.f32 0.0, %v6694
        %v6696 = vpop.f32.mrf.mxu0
        %v6697 = vadd.f32 0.0, %v6696
        %6698 = vmatmul.bf16.gmra.mxu0 %v6573
        %v6699 = vpop.f32.mrf.mxu0
        %v6700 = vadd.f32 0.0, %v6699
        %v6701 = vpop.f32.mrf.mxu0
        %v6702 = vadd.f32 0.0, %v6701
        %6703 = vmatmul.bf16.gmra.mxu0 %v6574
        %v6704 = vpop.f32.mrf.mxu0
        %v6705 = vadd.f32 0.0, %v6704
        %v6706 = vpop.f32.mrf.mxu0
        %v6707 = vadd.f32 0.0, %v6706
        %6708 = vmatmul.bf16.gmra.mxu0 %v6575
        %v6709 = vpop.f32.mrf.mxu0
        %v6710 = vadd.f32 0.0, %v6709
        %v6711 = vpop.f32.mrf.mxu0
        %v6712 = vadd.f32 0.0, %v6711
        %6713 = vmatmul.bf16.gmra.mxu0 %v6576
        %v6714 = vpop.f32.mrf.mxu0
        %v6715 = vadd.f32 0.0, %v6714
        %v6716 = vpop.f32.mrf.mxu0
        %v6717 = vadd.f32 0.0, %v6716
        %6718 = vmatmul.bf16.gmra.mxu0 %v6577
        %v6719 = vpop.f32.mrf.mxu0
        %v6720 = vadd.f32 0.0, %v6719
        %v6721 = vpop.f32.mrf.mxu0
        %v6722 = vadd.f32 0.0, %v6721
        %6723 = vmatmul.bf16.gmra.mxu0 %v6578
        %v6724 = vpop.f32.mrf.mxu0
        %v6725 = vadd.f32 0.0, %v6724
        %v6726 = vpop.f32.mrf.mxu0
        %v6727 = vadd.f32 0.0, %v6726
        %6728 = vmatmul.bf16.gmra.mxu0 %v6579
        %v6729 = vpop.f32.mrf.mxu0
        %v6730 = vadd.f32 0.0, %v6729
        %v6731 = vpop.f32.mrf.mxu0
        %v6732 = vadd.f32 0.0, %v6731
        %6733 = vdwg.mxu0
        %v6734 = vadd.f32 %v6436, %v6655
        %v6735 = vadd.f32 %v6437, %v6657
        %v6736 = vadd.f32 %v6438, %v6660
        %v6737 = vadd.f32 %v6439, %v6662
        %v6738 = vadd.f32 %v6440, %v6665
        %v6739 = vadd.f32 %v6441, %v6667
        %v6740 = vadd.f32 %v6442, %v6670
        %v6741 = vadd.f32 %v6443, %v6672
        %v6742 = vadd.f32 %v6444, %v6675
        %v6743 = vadd.f32 %v6445, %v6677
        %v6744 = vadd.f32 %v6446, %v6680
        %v6745 = vadd.f32 %v6447, %v6682
        %v6746 = vadd.f32 %v6448, %v6685
        %v6747 = vadd.f32 %v6449, %v6687
        %v6748 = vadd.f32 %v6450, %v6690
        %v6749 = vadd.f32 %v6451, %v6692
        %v6750 = vadd.f32 %v6452, %v6695
        %v6751 = vadd.f32 %v6453, %v6697
        %v6752 = vadd.f32 %v6454, %v6700
        %v6753 = vadd.f32 %v6455, %v6702
        %v6754 = vadd.f32 %v6456, %v6705
        %v6755 = vadd.f32 %v6457, %v6707
        %v6756 = vadd.f32 %v6458, %v6710
        %v6757 = vadd.f32 %v6459, %v6712
        %v6758 = vadd.f32 %v6460, %v6715
        %v6759 = vadd.f32 %v6461, %v6717
        %v6760 = vadd.f32 %v6462, %v6720
        %v6761 = vadd.f32 %v6463, %v6722
        %v6762 = vadd.f32 %v6464, %v6725
        %v6763 = vadd.f32 %v6465, %v6727
        %v6764 = vadd.f32 %v6466, %v6730
        %v6765 = vadd.f32 %v6467, %v6732
        %v6766 = vld [vmem:[%s8] sm:$0x1]
        %v6768 = vperm.slane %v6766, 0
        %v6770 = vadd.f32 %v6734, %v6768
        %v6771 = vadd.f32 %v6735, %v6768
        %v6772 = vadd.f32 %v6736, %v6768
        %v6773 = vadd.f32 %v6737, %v6768
        %v6774 = vadd.f32 %v6738, %v6768
        %v6775 = vadd.f32 %v6739, %v6768
        %v6776 = vadd.f32 %v6740, %v6768
        %v6777 = vadd.f32 %v6741, %v6768
        %v6778 = vadd.f32 %v6742, %v6768
        %v6779 = vadd.f32 %v6743, %v6768
        %v6780 = vadd.f32 %v6744, %v6768
        %v6781 = vadd.f32 %v6745, %v6768
        %v6782 = vadd.f32 %v6746, %v6768
        %v6783 = vadd.f32 %v6747, %v6768
        %v6784 = vadd.f32 %v6748, %v6768
        %v6785 = vadd.f32 %v6749, %v6768
        %v6786 = vadd.f32 %v6750, %v6768
        %v6787 = vadd.f32 %v6751, %v6768
        %v6788 = vadd.f32 %v6752, %v6768
        %v6789 = vadd.f32 %v6753, %v6768
        %v6790 = vadd.f32 %v6754, %v6768
        %v6791 = vadd.f32 %v6755, %v6768
        %v6792 = vadd.f32 %v6756, %v6768
        %v6793 = vadd.f32 %v6757, %v6768
        %v6794 = vadd.f32 %v6758, %v6768
        %v6795 = vadd.f32 %v6759, %v6768
        %v6796 = vadd.f32 %v6760, %v6768
        %v6797 = vadd.f32 %v6761, %v6768
        %v6798 = vadd.f32 %v6762, %v6768
        %v6799 = vadd.f32 %v6763, %v6768
        %v6800 = vadd.f32 %v6764, %v6768
        %v6801 = vadd.f32 %v6765, %v6768
        %v6802 = vtanh.pop %v6770
        %v6803 = vtanh.pop %v6771
        %v6804 = vtanh.pop %v6772
        %v6805 = vtanh.pop %v6773
        %v6806 = vtanh.pop %v6774
        %v6807 = vtanh.pop %v6775
        %v6808 = vtanh.pop %v6776
        %v6809 = vtanh.pop %v6777
        %v6810 = vtanh.pop %v6778
        %v6811 = vtanh.pop %v6779
        %v6812 = vtanh.pop %v6780
        %v6813 = vtanh.pop %v6781
        %v6814 = vtanh.pop %v6782
        %v6815 = vtanh.pop %v6783
        %v6816 = vtanh.pop %v6784
        %v6817 = vtanh.pop %v6785
        %v6818 = vtanh.pop %v6786
        %v6819 = vtanh.pop %v6787
        %v6820 = vtanh.pop %v6788
        %v6821 = vtanh.pop %v6789
        %v6822 = vtanh.pop %v6790
        %v6823 = vtanh.pop %v6791
        %v6824 = vtanh.pop %v6792
        %v6825 = vtanh.pop %v6793
        %v6826 = vtanh.pop %v6794
        %v6827 = vtanh.pop %v6795
        %v6828 = vtanh.pop %v6796
        %v6829 = vtanh.pop %v6797
        %v6830 = vtanh.pop %v6798
        %v6831 = vtanh.pop %v6799
        %v6832 = vtanh.pop %v6800
        %v6833 = vtanh.pop %v6801
        %v6834 = vpack.c.bf16 %v6803, %v6802
        %v6835 = vpack.c.bf16 %v6805, %v6804
        %v6836 = vpack.c.bf16 %v6807, %v6806
        %v6837 = vpack.c.bf16 %v6809, %v6808
        %v6838 = vpack.c.bf16 %v6811, %v6810
        %v6839 = vpack.c.bf16 %v6813, %v6812
        %v6840 = vpack.c.bf16 %v6815, %v6814
        %v6841 = vpack.c.bf16 %v6817, %v6816
        %v6842 = vpack.c.bf16 %v6819, %v6818
        %v6843 = vpack.c.bf16 %v6821, %v6820
        %v6844 = vpack.c.bf16 %v6823, %v6822
        %v6845 = vpack.c.bf16 %v6825, %v6824
        %v6846 = vpack.c.bf16 %v6827, %v6826
        %v6847 = vpack.c.bf16 %v6829, %v6828
        %v6848 = vpack.c.bf16 %v6831, %v6830
        %v6849 = vpack.c.bf16 %v6833, %v6832
        %s6850 = scalar_lea.vmem %s9, 128
        %v6851 = vld [vmem:[%s6850] sm:$0xf]
        %v6852 = vld [vmem:[%s6850 + $0x4] sm:$0xf]
        %v6853 = vld [vmem:[%s6850 + $0x8] sm:$0xf]
        %v6854 = vld [vmem:[%s6850 + $0xc] sm:$0xf]
        %v6855 = vld [vmem:[%s6850 + $0x10] sm:$0xf]
        %v6856 = vld [vmem:[%s6850 + $0x14] sm:$0xf]
        %v6857 = vld [vmem:[%s6850 + $0x18] sm:$0xf]
        %v6858 = vld [vmem:[%s6850 + $0x1c] sm:$0xf]
        %v6859 = vld [vmem:[%s6850 + $0x20] sm:$0xf]
        %v6860 = vld [vmem:[%s6850 + $0x24] sm:$0xf]
        %v6861 = vld [vmem:[%s6850 + $0x28] sm:$0xf]
        %v6862 = vld [vmem:[%s6850 + $0x2c] sm:$0xf]
        %v6863 = vld [vmem:[%s6850 + $0x30] sm:$0xf]
        %v6864 = vld [vmem:[%s6850 + $0x34] sm:$0xf]
        %v6865 = vld [vmem:[%s6850 + $0x38] sm:$0xf]
        %v6866 = vld [vmem:[%s6850 + $0x3c] sm:$0xf]
        %v6867 = vrot.slane %v6802, 6
        %v6868 = vrot.slane %v6803, 6
        %v6869 = vrot.slane %v6804, 6
        %v6870 = vrot.slane %v6805, 6
        %v6871 = vrot.slane %v6806, 6
        %v6872 = vrot.slane %v6807, 6
        %v6873 = vrot.slane %v6808, 6
        %v6874 = vrot.slane %v6809, 6
        %v6875 = vrot.slane %v6810, 6
        %v6876 = vrot.slane %v6811, 6
        %v6877 = vrot.slane %v6812, 6
        %v6878 = vrot.slane %v6813, 6
        %v6879 = vrot.slane %v6814, 6
        %v6880 = vrot.slane %v6815, 6
        %v6881 = vrot.slane %v6816, 6
        %v6882 = vrot.slane %v6817, 6
        %v6883 = vrot.slane %v6818, 6
        %v6884 = vrot.slane %v6819, 6
        %v6885 = vrot.slane %v6820, 6
        %v6886 = vrot.slane %v6821, 6
        %v6887 = vrot.slane %v6822, 6
        %v6888 = vrot.slane %v6823, 6
        %v6889 = vrot.slane %v6824, 6
        %v6890 = vrot.slane %v6825, 6
        %v6891 = vrot.slane %v6826, 6
        %v6892 = vrot.slane %v6827, 6
        %v6893 = vrot.slane %v6828, 6
        %v6894 = vrot.slane %v6829, 6
        %v6895 = vrot.slane %v6830, 6
        %v6896 = vrot.slane %v6831, 6
        %v6897 = vrot.slane %v6832, 6
        %v6898 = vrot.slane %v6833, 6
        %v6899 = vsel %vm526, %v6897, %v6898
        %v6900 = vsel %vm526, %v6896, %v6897
        %v6901 = vsel %vm526, %v6895, %v6896
        %v6902 = vsel %vm526, %v6894, %v6895
        %v6903 = vsel %vm526, %v6893, %v6894
        %v6904 = vsel %vm526, %v6892, %v6893
        %v6905 = vsel %vm526, %v6891, %v6892
        %v6906 = vsel %vm526, %v6890, %v6891
        %v6907 = vsel %vm526, %v6889, %v6890
        %v6908 = vsel %vm526, %v6888, %v6889
        %v6909 = vsel %vm526, %v6887, %v6888
        %v6910 = vsel %vm526, %v6886, %v6887
        %v6911 = vsel %vm526, %v6885, %v6886
        %v6912 = vsel %vm526, %v6884, %v6885
        %v6913 = vsel %vm526, %v6883, %v6884
        %v6914 = vsel %vm526, %v6882, %v6883
        %v6915 = vsel %vm526, %v6881, %v6882
        %v6916 = vsel %vm526, %v6880, %v6881
        %v6917 = vsel %vm526, %v6879, %v6880
        %v6918 = vsel %vm526, %v6878, %v6879
        %v6919 = vsel %vm526, %v6877, %v6878
        %v6920 = vsel %vm526, %v6876, %v6877
        %v6921 = vsel %vm526, %v6875, %v6876
        %v6922 = vsel %vm526, %v6874, %v6875
        %v6923 = vsel %vm526, %v6873, %v6874
        %v6924 = vsel %vm526, %v6872, %v6873
        %v6925 = vsel %vm526, %v6871, %v6872
        %v6926 = vsel %vm526, %v6870, %v6871
        %v6927 = vsel %vm526, %v6869, %v6870
        %v6928 = vsel %vm526, %v6868, %v6869
        %v6929 = vsel %vm526, %v6867, %v6868
        %v6930 = vsel %vm526, %v6898, %v6867
        %v6931 = vsel %vm719, %v6930, 0.0
        %v6932 = vsel %vm720, %v6929, 0.0
        %v6933 = vsel %vm721, %v6928, 0.0
        %v6934 = vsel %vm722, %v6927, 0.0
        %v6935 = vsel %vm723, %v6926, 0.0
        %v6936 = vsel %vm724, %v6925, 0.0
        %v6937 = vsel %vm725, %v6924, 0.0
        %v6938 = vsel %vm726, %v6923, 0.0
        %v6939 = vsel %vm727, %v6922, 0.0
        %v6940 = vsel %vm728, %v6921, 0.0
        %v6941 = vsel %vm729, %v6920, 0.0
        %v6942 = vsel %vm730, %v6919, 0.0
        %v6943 = vsel %vm731, %v6918, 0.0
        %v6944 = vsel %vm732, %v6917, 0.0
        %v6945 = vsel %vm733, %v6916, 0.0
        %v6946 = vsel %vm734, %v6915, 0.0
        %v6947 = vsel %vm735, %v6914, 0.0
        %v6948 = vsel %vm736, %v6913, 0.0
        %v6949 = vsel %vm737, %v6912, 0.0
        %v6950 = vsel %vm738, %v6911, 0.0
        %v6951 = vsel %vm739, %v6910, 0.0
        %v6952 = vsel %vm740, %v6909, 0.0
        %v6953 = vsel %vm741, %v6908, 0.0
        %v6954 = vsel %vm742, %v6907, 0.0
        %v6955 = vsel %vm743, %v6906, 0.0
        %v6956 = vsel %vm744, %v6905, 0.0
        %v6957 = vsel %vm745, %v6904, 0.0
        %v6958 = vsel %vm746, %v6903, 0.0
        %v6959 = vsel %vm747, %v6902, 0.0
        %v6960 = vsel %vm748, %v6901, 0.0
        %v6961 = vsel %vm749, %v6900, 0.0
        %v6962 = vsel %vm750, %v6899, 0.0
        %v6963 = vpack.c.bf16 %v6932, %v6931
        %v6964 = vpack.c.bf16 %v6934, %v6933
        %v6965 = vpack.c.bf16 %v6936, %v6935
        %v6966 = vpack.c.bf16 %v6938, %v6937
        %v6967 = vpack.c.bf16 %v6940, %v6939
        %v6968 = vpack.c.bf16 %v6942, %v6941
        %v6969 = vpack.c.bf16 %v6944, %v6943
        %v6970 = vpack.c.bf16 %v6946, %v6945
        %v6971 = vpack.c.bf16 %v6948, %v6947
        %v6972 = vpack.c.bf16 %v6950, %v6949
        %v6973 = vpack.c.bf16 %v6952, %v6951
        %v6974 = vpack.c.bf16 %v6954, %v6953
        %v6975 = vpack.c.bf16 %v6956, %v6955
        %v6976 = vpack.c.bf16 %v6958, %v6957
        %v6977 = vpack.c.bf16 %v6960, %v6959
        %v6978 = vpack.c.bf16 %v6962, %v6961
        %v6979 = vld [vmem:[%s9] sm:$0xf]
        %v6980 = vld [vmem:[%s9 + $0x4] sm:$0xf]
        %v6981 = vld [vmem:[%s9 + $0x8] sm:$0xf]
        %v6982 = vld [vmem:[%s9 + $0xc] sm:$0xf]
        %v6983 = vld [vmem:[%s9 + $0x10] sm:$0xf]
        %v6984 = vld [vmem:[%s9 + $0x14] sm:$0xf]
        %v6985 = vld [vmem:[%s9 + $0x18] sm:$0xf]
        %v6986 = vld [vmem:[%s9 + $0x1c] sm:$0xf]
        %v6987 = vld [vmem:[%s9 + $0x20] sm:$0xf]
        %v6988 = vld [vmem:[%s9 + $0x24] sm:$0xf]
        %v6989 = vld [vmem:[%s9 + $0x28] sm:$0xf]
        %v6990 = vld [vmem:[%s9 + $0x2c] sm:$0xf]
        %v6991 = vld [vmem:[%s9 + $0x30] sm:$0xf]
        %v6992 = vld [vmem:[%s9 + $0x34] sm:$0xf]
        %v6993 = vld [vmem:[%s9 + $0x38] sm:$0xf]
        %v6994 = vld [vmem:[%s9 + $0x3c] sm:$0xf]
        %v7011 = vunpack.c.l.b16 %v6979
        %v7012 = vunpack.c.l.b16 %v6980
        %v7013 = vunpack.c.l.b16 %v6981
        %v7014 = vunpack.c.l.b16 %v6982
        %v7015 = vunpack.c.l.b16 %v6983
        %v7016 = vunpack.c.l.b16 %v6984
        %v7017 = vunpack.c.l.b16 %v6985
        %v7018 = vunpack.c.l.b16 %v6986
        %v7019 = vunpack.c.l.b16 %v6987
        %v7020 = vunpack.c.l.b16 %v6988
        %v7021 = vunpack.c.l.b16 %v6989
        %v7022 = vunpack.c.l.b16 %v6990
        %v7023 = vunpack.c.l.b16 %v6991
        %v7024 = vunpack.c.l.b16 %v6992
        %v7025 = vunpack.c.l.b16 %v6993
        %v7026 = vunpack.c.l.b16 %v6994
        %v7027 = vpack.c.b16 %v7012, %v7011
        %v7028 = vpack.c.b16 %v7014, %v7013
        %v7029 = vpack.c.b16 %v7016, %v7015
        %v7030 = vpack.c.b16 %v7018, %v7017
        %v7031 = vpack.c.b16 %v7020, %v7019
        %v7032 = vpack.c.b16 %v7022, %v7021
        %v7033 = vpack.c.b16 %v7024, %v7023
        %v7034 = vpack.c.b16 %v7026, %v7025
        %7043 = vmatpush.bf16.msra.mxu0 %v7034
        %7044 = vmatpush.bf16.msra.mxu0 %v7033
        %7045 = vmatpush.bf16.msra.mxu0 %v7032
        %7046 = vmatpush.bf16.msra.mxu0 %v7031
        %7047 = vmatpush.bf16.msra.mxu0 %v7030
        %7048 = vmatpush.bf16.msra.mxu0 %v7029
        %7049 = vmatpush.bf16.msra.mxu0 %v7028
        %7050 = vmatpush.bf16.msra.mxu0 %v7027
        %7051 = vmatmul.bf16.gmra.mxu0 %v6963
        %v7052 = vpop.f32.mrf.mxu0
        %v7053 = vadd.f32 0.0, %v7052
        %v7054 = vpop.f32.mrf.mxu0
        %v7055 = vadd.f32 0.0, %v7054
        %7056 = vmatmul.bf16.gmra.mxu0 %v6964
        %v7057 = vpop.f32.mrf.mxu0
        %v7058 = vadd.f32 0.0, %v7057
        %v7059 = vpop.f32.mrf.mxu0
        %v7060 = vadd.f32 0.0, %v7059
        %7061 = vmatmul.bf16.gmra.mxu0 %v6965
        %v7062 = vpop.f32.mrf.mxu0
        %v7063 = vadd.f32 0.0, %v7062
        %v7064 = vpop.f32.mrf.mxu0
        %v7065 = vadd.f32 0.0, %v7064
        %7066 = vmatmul.bf16.gmra.mxu0 %v6966
        %v7067 = vpop.f32.mrf.mxu0
        %v7068 = vadd.f32 0.0, %v7067
        %v7069 = vpop.f32.mrf.mxu0
        %v7070 = vadd.f32 0.0, %v7069
        %7071 = vmatmul.bf16.gmra.mxu0 %v6967
        %v7072 = vpop.f32.mrf.mxu0
        %v7073 = vadd.f32 0.0, %v7072
        %v7074 = vpop.f32.mrf.mxu0
        %v7075 = vadd.f32 0.0, %v7074
        %7076 = vmatmul.bf16.gmra.mxu0 %v6968
        %v7077 = vpop.f32.mrf.mxu0
        %v7078 = vadd.f32 0.0, %v7077
        %v7079 = vpop.f32.mrf.mxu0
        %v7080 = vadd.f32 0.0, %v7079
        %7081 = vmatmul.bf16.gmra.mxu0 %v6969
        %v7082 = vpop.f32.mrf.mxu0
        %v7083 = vadd.f32 0.0, %v7082
        %v7084 = vpop.f32.mrf.mxu0
        %v7085 = vadd.f32 0.0, %v7084
        %7086 = vmatmul.bf16.gmra.mxu0 %v6970
        %v7087 = vpop.f32.mrf.mxu0
        %v7088 = vadd.f32 0.0, %v7087
        %v7089 = vpop.f32.mrf.mxu0
        %v7090 = vadd.f32 0.0, %v7089
        %7091 = vmatmul.bf16.gmra.mxu0 %v6971
        %v7092 = vpop.f32.mrf.mxu0
        %v7093 = vadd.f32 0.0, %v7092
        %v7094 = vpop.f32.mrf.mxu0
        %v7095 = vadd.f32 0.0, %v7094
        %7096 = vmatmul.bf16.gmra.mxu0 %v6972
        %v7097 = vpop.f32.mrf.mxu0
        %v7098 = vadd.f32 0.0, %v7097
        %v7099 = vpop.f32.mrf.mxu0
        %v7100 = vadd.f32 0.0, %v7099
        %7101 = vmatmul.bf16.gmra.mxu0 %v6973
        %v7102 = vpop.f32.mrf.mxu0
        %v7103 = vadd.f32 0.0, %v7102
        %v7104 = vpop.f32.mrf.mxu0
        %v7105 = vadd.f32 0.0, %v7104
        %7106 = vmatmul.bf16.gmra.mxu0 %v6974
        %v7107 = vpop.f32.mrf.mxu0
        %v7108 = vadd.f32 0.0, %v7107
        %v7109 = vpop.f32.mrf.mxu0
        %v7110 = vadd.f32 0.0, %v7109
        %7111 = vmatmul.bf16.gmra.mxu0 %v6975
        %v7112 = vpop.f32.mrf.mxu0
        %v7113 = vadd.f32 0.0, %v7112
        %v7114 = vpop.f32.mrf.mxu0
        %v7115 = vadd.f32 0.0, %v7114
        %7116 = vmatmul.bf16.gmra.mxu0 %v6976
        %v7117 = vpop.f32.mrf.mxu0
        %v7118 = vadd.f32 0.0, %v7117
        %v7119 = vpop.f32.mrf.mxu0
        %v7120 = vadd.f32 0.0, %v7119
        %7121 = vmatmul.bf16.gmra.mxu0 %v6977
        %v7122 = vpop.f32.mrf.mxu0
        %v7123 = vadd.f32 0.0, %v7122
        %v7124 = vpop.f32.mrf.mxu0
        %v7125 = vadd.f32 0.0, %v7124
        %7126 = vmatmul.bf16.gmra.mxu0 %v6978
        %v7127 = vpop.f32.mrf.mxu0
        %v7128 = vadd.f32 0.0, %v7127
        %v7129 = vpop.f32.mrf.mxu0
        %v7130 = vadd.f32 0.0, %v7129
        %7131 = vdwg.mxu0
        %v7148 = vunpack.c.l.b16 %v6851
        %v7149 = vunpack.c.l.b16 %v6852
        %v7150 = vunpack.c.l.b16 %v6853
        %v7151 = vunpack.c.l.b16 %v6854
        %v7152 = vunpack.c.l.b16 %v6855
        %v7153 = vunpack.c.l.b16 %v6856
        %v7154 = vunpack.c.l.b16 %v6857
        %v7155 = vunpack.c.l.b16 %v6858
        %v7156 = vunpack.c.l.b16 %v6859
        %v7157 = vunpack.c.l.b16 %v6860
        %v7158 = vunpack.c.l.b16 %v6861
        %v7159 = vunpack.c.l.b16 %v6862
        %v7160 = vunpack.c.l.b16 %v6863
        %v7161 = vunpack.c.l.b16 %v6864
        %v7162 = vunpack.c.l.b16 %v6865
        %v7163 = vunpack.c.l.b16 %v6866
        %v7164 = vpack.c.b16 %v7149, %v7148
        %v7165 = vpack.c.b16 %v7151, %v7150
        %v7166 = vpack.c.b16 %v7153, %v7152
        %v7167 = vpack.c.b16 %v7155, %v7154
        %v7168 = vpack.c.b16 %v7157, %v7156
        %v7169 = vpack.c.b16 %v7159, %v7158
        %v7170 = vpack.c.b16 %v7161, %v7160
        %v7171 = vpack.c.b16 %v7163, %v7162
        %7180 = vmatpush.bf16.msra.mxu0 %v7171
        %7181 = vmatpush.bf16.msra.mxu0 %v7170
        %7182 = vmatpush.bf16.msra.mxu0 %v7169
        %7183 = vmatpush.bf16.msra.mxu0 %v7168
        %7184 = vmatpush.bf16.msra.mxu0 %v7167
        %7185 = vmatpush.bf16.msra.mxu0 %v7166
        %7186 = vmatpush.bf16.msra.mxu0 %v7165
        %7187 = vmatpush.bf16.msra.mxu0 %v7164
        %7188 = vmatmul.bf16.gmra.mxu0 %v6834
        %v7189 = vpop.f32.mrf.mxu0
        %v7190 = vadd.f32 %v7053, %v7189
        %v7191 = vpop.f32.mrf.mxu0
        %v7192 = vadd.f32 %v7055, %v7191
        %7193 = vmatmul.bf16.gmra.mxu0 %v6835
        %v7194 = vpop.f32.mrf.mxu0
        %v7195 = vadd.f32 %v7058, %v7194
        %v7196 = vpop.f32.mrf.mxu0
        %v7197 = vadd.f32 %v7060, %v7196
        %7198 = vmatmul.bf16.gmra.mxu0 %v6836
        %v7199 = vpop.f32.mrf.mxu0
        %v7200 = vadd.f32 %v7063, %v7199
        %v7201 = vpop.f32.mrf.mxu0
        %v7202 = vadd.f32 %v7065, %v7201
        %7203 = vmatmul.bf16.gmra.mxu0 %v6837
        %v7204 = vpop.f32.mrf.mxu0
        %v7205 = vadd.f32 %v7068, %v7204
        %v7206 = vpop.f32.mrf.mxu0
        %v7207 = vadd.f32 %v7070, %v7206
        %7208 = vmatmul.bf16.gmra.mxu0 %v6838
        %v7209 = vpop.f32.mrf.mxu0
        %v7210 = vadd.f32 %v7073, %v7209
        %v7211 = vpop.f32.mrf.mxu0
        %v7212 = vadd.f32 %v7075, %v7211
        %7213 = vmatmul.bf16.gmra.mxu0 %v6839
        %v7214 = vpop.f32.mrf.mxu0
        %v7215 = vadd.f32 %v7078, %v7214
        %v7216 = vpop.f32.mrf.mxu0
        %v7217 = vadd.f32 %v7080, %v7216
        %7218 = vmatmul.bf16.gmra.mxu0 %v6840
        %v7219 = vpop.f32.mrf.mxu0
        %v7220 = vadd.f32 %v7083, %v7219
        %v7221 = vpop.f32.mrf.mxu0
        %v7222 = vadd.f32 %v7085, %v7221
        %7223 = vmatmul.bf16.gmra.mxu0 %v6841
        %v7224 = vpop.f32.mrf.mxu0
        %v7225 = vadd.f32 %v7088, %v7224
        %v7226 = vpop.f32.mrf.mxu0
        %v7227 = vadd.f32 %v7090, %v7226
        %7228 = vmatmul.bf16.gmra.mxu0 %v6842
        %v7229 = vpop.f32.mrf.mxu0
        %v7230 = vadd.f32 %v7093, %v7229
        %v7231 = vpop.f32.mrf.mxu0
        %v7232 = vadd.f32 %v7095, %v7231
        %7233 = vmatmul.bf16.gmra.mxu0 %v6843
        %v7234 = vpop.f32.mrf.mxu0
        %v7235 = vadd.f32 %v7098, %v7234
        %v7236 = vpop.f32.mrf.mxu0
        %v7237 = vadd.f32 %v7100, %v7236
        %7238 = vmatmul.bf16.gmra.mxu0 %v6844
        %v7239 = vpop.f32.mrf.mxu0
        %v7240 = vadd.f32 %v7103, %v7239
        %v7241 = vpop.f32.mrf.mxu0
        %v7242 = vadd.f32 %v7105, %v7241
        %7243 = vmatmul.bf16.gmra.mxu0 %v6845
        %v7244 = vpop.f32.mrf.mxu0
        %v7245 = vadd.f32 %v7108, %v7244
        %v7246 = vpop.f32.mrf.mxu0
        %v7247 = vadd.f32 %v7110, %v7246
        %7248 = vmatmul.bf16.gmra.mxu0 %v6846
        %v7249 = vpop.f32.mrf.mxu0
        %v7250 = vadd.f32 %v7113, %v7249
        %v7251 = vpop.f32.mrf.mxu0
        %v7252 = vadd.f32 %v7115, %v7251
        %7253 = vmatmul.bf16.gmra.mxu0 %v6847
        %v7254 = vpop.f32.mrf.mxu0
        %v7255 = vadd.f32 %v7118, %v7254
        %v7256 = vpop.f32.mrf.mxu0
        %v7257 = vadd.f32 %v7120, %v7256
        %7258 = vmatmul.bf16.gmra.mxu0 %v6848
        %v7259 = vpop.f32.mrf.mxu0
        %v7260 = vadd.f32 %v7123, %v7259
        %v7261 = vpop.f32.mrf.mxu0
        %v7262 = vadd.f32 %v7125, %v7261
        %7263 = vmatmul.bf16.gmra.mxu0 %v6849
        %v7264 = vpop.f32.mrf.mxu0
        %v7265 = vadd.f32 %v7128, %v7264
        %v7266 = vpop.f32.mrf.mxu0
        %v7267 = vadd.f32 %v7130, %v7266
        %7268 = vdwg.mxu0
        %v7269 = vrot.slane %v6802, 7
        %v7270 = vrot.slane %v6803, 7
        %v7271 = vrot.slane %v6804, 7
        %v7272 = vrot.slane %v6805, 7
        %v7273 = vrot.slane %v6806, 7
        %v7274 = vrot.slane %v6807, 7
        %v7275 = vrot.slane %v6808, 7
        %v7276 = vrot.slane %v6809, 7
        %v7277 = vrot.slane %v6810, 7
        %v7278 = vrot.slane %v6811, 7
        %v7279 = vrot.slane %v6812, 7
        %v7280 = vrot.slane %v6813, 7
        %v7281 = vrot.slane %v6814, 7
        %v7282 = vrot.slane %v6815, 7
        %v7283 = vrot.slane %v6816, 7
        %v7284 = vrot.slane %v6817, 7
        %v7285 = vrot.slane %v6818, 7
        %v7286 = vrot.slane %v6819, 7
        %v7287 = vrot.slane %v6820, 7
        %v7288 = vrot.slane %v6821, 7
        %v7289 = vrot.slane %v6822, 7
        %v7290 = vrot.slane %v6823, 7
        %v7291 = vrot.slane %v6824, 7
        %v7292 = vrot.slane %v6825, 7
        %v7293 = vrot.slane %v6826, 7
        %v7294 = vrot.slane %v6827, 7
        %v7295 = vrot.slane %v6828, 7
        %v7296 = vrot.slane %v6829, 7
        %v7297 = vrot.slane %v6830, 7
        %v7298 = vrot.slane %v6831, 7
        %v7299 = vrot.slane %v6832, 7
        %v7300 = vrot.slane %v6833, 7
        %v7301 = vsel %vm1134, %v7299, %v7300
        %v7302 = vsel %vm1134, %v7298, %v7299
        %v7303 = vsel %vm1134, %v7297, %v7298
        %v7304 = vsel %vm1134, %v7296, %v7297
        %v7305 = vsel %vm1134, %v7295, %v7296
        %v7306 = vsel %vm1134, %v7294, %v7295
        %v7307 = vsel %vm1134, %v7293, %v7294
        %v7308 = vsel %vm1134, %v7292, %v7293
        %v7309 = vsel %vm1134, %v7291, %v7292
        %v7310 = vsel %vm1134, %v7290, %v7291
        %v7311 = vsel %vm1134, %v7289, %v7290
        %v7312 = vsel %vm1134, %v7288, %v7289
        %v7313 = vsel %vm1134, %v7287, %v7288
        %v7314 = vsel %vm1134, %v7286, %v7287
        %v7315 = vsel %vm1134, %v7285, %v7286
        %v7316 = vsel %vm1134, %v7284, %v7285
        %v7317 = vsel %vm1134, %v7283, %v7284
        %v7318 = vsel %vm1134, %v7282, %v7283
        %v7319 = vsel %vm1134, %v7281, %v7282
        %v7320 = vsel %vm1134, %v7280, %v7281
        %v7321 = vsel %vm1134, %v7279, %v7280
        %v7322 = vsel %vm1134, %v7278, %v7279
        %v7323 = vsel %vm1134, %v7277, %v7278
        %v7324 = vsel %vm1134, %v7276, %v7277
        %v7325 = vsel %vm1134, %v7275, %v7276
        %v7326 = vsel %vm1134, %v7274, %v7275
        %v7327 = vsel %vm1134, %v7273, %v7274
        %v7328 = vsel %vm1134, %v7272, %v7273
        %v7329 = vsel %vm1134, %v7271, %v7272
        %v7330 = vsel %vm1134, %v7270, %v7271
        %v7331 = vsel %vm1134, %v7269, %v7270
        %v7332 = vsel %vm1134, %v7300, %v7269
        %v7333 = vsel %vm1327, %v7332, 0.0
        %v7334 = vsel %vm1328, %v7331, 0.0
        %v7335 = vsel %vm1329, %v7330, 0.0
        %v7336 = vsel %vm1330, %v7329, 0.0
        %v7337 = vsel %vm1331, %v7328, 0.0
        %v7338 = vsel %vm1332, %v7327, 0.0
        %v7339 = vsel %vm1333, %v7326, 0.0
        %v7340 = vsel %vm1334, %v7325, 0.0
        %v7341 = vsel %vm1335, %v7324, 0.0
        %v7342 = vsel %vm1336, %v7323, 0.0
        %v7343 = vsel %vm1337, %v7322, 0.0
        %v7344 = vsel %vm1338, %v7321, 0.0
        %v7345 = vsel %vm1339, %v7320, 0.0
        %v7346 = vsel %vm1340, %v7319, 0.0
        %v7347 = vsel %vm1341, %v7318, 0.0
        %v7348 = vsel %vm1342, %v7317, 0.0
        %v7349 = vsel %vm1343, %v7316, 0.0
        %v7350 = vsel %vm1344, %v7315, 0.0
        %v7351 = vsel %vm1345, %v7314, 0.0
        %v7352 = vsel %vm1346, %v7313, 0.0
        %v7353 = vsel %vm1347, %v7312, 0.0
        %v7354 = vsel %vm1348, %v7311, 0.0
        %v7355 = vsel %vm1349, %v7310, 0.0
        %v7356 = vsel %vm1350, %v7309, 0.0
        %v7357 = vsel %vm1351, %v7308, 0.0
        %v7358 = vsel %vm1352, %v7307, 0.0
        %v7359 = vsel %vm1353, %v7306, 0.0
        %v7360 = vsel %vm1354, %v7305, 0.0
        %v7361 = vsel %vm1355, %v7304, 0.0
        %v7362 = vsel %vm1356, %v7303, 0.0
        %v7363 = vsel %vm1357, %v7302, 0.0
        %v7364 = vsel %vm1358, %v7301, 0.0
        %v7365 = vpack.c.bf16 %v7334, %v7333
        %v7366 = vpack.c.bf16 %v7336, %v7335
        %v7367 = vpack.c.bf16 %v7338, %v7337
        %v7368 = vpack.c.bf16 %v7340, %v7339
        %v7369 = vpack.c.bf16 %v7342, %v7341
        %v7370 = vpack.c.bf16 %v7344, %v7343
        %v7371 = vpack.c.bf16 %v7346, %v7345
        %v7372 = vpack.c.bf16 %v7348, %v7347
        %v7373 = vpack.c.bf16 %v7350, %v7349
        %v7374 = vpack.c.bf16 %v7352, %v7351
        %v7375 = vpack.c.bf16 %v7354, %v7353
        %v7376 = vpack.c.bf16 %v7356, %v7355
        %v7377 = vpack.c.bf16 %v7358, %v7357
        %v7378 = vpack.c.bf16 %v7360, %v7359
        %v7379 = vpack.c.bf16 %v7362, %v7361
        %v7380 = vpack.c.bf16 %v7364, %v7363
        %s7381 = scalar_lea.vmem %s9, 64
        %v7382 = vld [vmem:[%s7381] sm:$0xf]
        %v7383 = vld [vmem:[%s7381 + $0x4] sm:$0xf]
        %v7384 = vld [vmem:[%s7381 + $0x8] sm:$0xf]
        %v7385 = vld [vmem:[%s7381 + $0xc] sm:$0xf]
        %v7386 = vld [vmem:[%s7381 + $0x10] sm:$0xf]
        %v7387 = vld [vmem:[%s7381 + $0x14] sm:$0xf]
        %v7388 = vld [vmem:[%s7381 + $0x18] sm:$0xf]
        %v7389 = vld [vmem:[%s7381 + $0x1c] sm:$0xf]
        %v7390 = vld [vmem:[%s7381 + $0x20] sm:$0xf]
        %v7391 = vld [vmem:[%s7381 + $0x24] sm:$0xf]
        %v7392 = vld [vmem:[%s7381 + $0x28] sm:$0xf]
        %v7393 = vld [vmem:[%s7381 + $0x2c] sm:$0xf]
        %v7394 = vld [vmem:[%s7381 + $0x30] sm:$0xf]
        %v7395 = vld [vmem:[%s7381 + $0x34] sm:$0xf]
        %v7396 = vld [vmem:[%s7381 + $0x38] sm:$0xf]
        %v7397 = vld [vmem:[%s7381 + $0x3c] sm:$0xf]
        %v7414 = vunpack.c.l.b16 %v7382
        %v7415 = vunpack.c.l.b16 %v7383
        %v7416 = vunpack.c.l.b16 %v7384
        %v7417 = vunpack.c.l.b16 %v7385
        %v7418 = vunpack.c.l.b16 %v7386
        %v7419 = vunpack.c.l.b16 %v7387
        %v7420 = vunpack.c.l.b16 %v7388
        %v7421 = vunpack.c.l.b16 %v7389
        %v7422 = vunpack.c.l.b16 %v7390
        %v7423 = vunpack.c.l.b16 %v7391
        %v7424 = vunpack.c.l.b16 %v7392
        %v7425 = vunpack.c.l.b16 %v7393
        %v7426 = vunpack.c.l.b16 %v7394
        %v7427 = vunpack.c.l.b16 %v7395
        %v7428 = vunpack.c.l.b16 %v7396
        %v7429 = vunpack.c.l.b16 %v7397
        %v7430 = vpack.c.b16 %v7415, %v7414
        %v7431 = vpack.c.b16 %v7417, %v7416
        %v7432 = vpack.c.b16 %v7419, %v7418
        %v7433 = vpack.c.b16 %v7421, %v7420
        %v7434 = vpack.c.b16 %v7423, %v7422
        %v7435 = vpack.c.b16 %v7425, %v7424
        %v7436 = vpack.c.b16 %v7427, %v7426
        %v7437 = vpack.c.b16 %v7429, %v7428
        %7446 = vmatpush.bf16.msra.mxu0 %v7437
        %7447 = vmatpush.bf16.msra.mxu0 %v7436
        %7448 = vmatpush.bf16.msra.mxu0 %v7435
        %7449 = vmatpush.bf16.msra.mxu0 %v7434
        %7450 = vmatpush.bf16.msra.mxu0 %v7433
        %7451 = vmatpush.bf16.msra.mxu0 %v7432
        %7452 = vmatpush.bf16.msra.mxu0 %v7431
        %7453 = vmatpush.bf16.msra.mxu0 %v7430
        %7454 = vmatmul.bf16.gmra.mxu0 %v7365
        %v7455 = vpop.f32.mrf.mxu0
        %v7456 = vadd.f32 0.0, %v7455
        %v7457 = vpop.f32.mrf.mxu0
        %v7458 = vadd.f32 0.0, %v7457
        %7459 = vmatmul.bf16.gmra.mxu0 %v7366
        %v7460 = vpop.f32.mrf.mxu0
        %v7461 = vadd.f32 0.0, %v7460
        %v7462 = vpop.f32.mrf.mxu0
        %v7463 = vadd.f32 0.0, %v7462
        %7464 = vmatmul.bf16.gmra.mxu0 %v7367
        %v7465 = vpop.f32.mrf.mxu0
        %v7466 = vadd.f32 0.0, %v7465
        %v7467 = vpop.f32.mrf.mxu0
        %v7468 = vadd.f32 0.0, %v7467
        %7469 = vmatmul.bf16.gmra.mxu0 %v7368
        %v7470 = vpop.f32.mrf.mxu0
        %v7471 = vadd.f32 0.0, %v7470
        %v7472 = vpop.f32.mrf.mxu0
        %v7473 = vadd.f32 0.0, %v7472
        %7474 = vmatmul.bf16.gmra.mxu0 %v7369
        %v7475 = vpop.f32.mrf.mxu0
        %v7476 = vadd.f32 0.0, %v7475
        %v7477 = vpop.f32.mrf.mxu0
        %v7478 = vadd.f32 0.0, %v7477
        %7479 = vmatmul.bf16.gmra.mxu0 %v7370
        %v7480 = vpop.f32.mrf.mxu0
        %v7481 = vadd.f32 0.0, %v7480
        %v7482 = vpop.f32.mrf.mxu0
        %v7483 = vadd.f32 0.0, %v7482
        %7484 = vmatmul.bf16.gmra.mxu0 %v7371
        %v7485 = vpop.f32.mrf.mxu0
        %v7486 = vadd.f32 0.0, %v7485
        %v7487 = vpop.f32.mrf.mxu0
        %v7488 = vadd.f32 0.0, %v7487
        %7489 = vmatmul.bf16.gmra.mxu0 %v7372
        %v7490 = vpop.f32.mrf.mxu0
        %v7491 = vadd.f32 0.0, %v7490
        %v7492 = vpop.f32.mrf.mxu0
        %v7493 = vadd.f32 0.0, %v7492
        %7494 = vmatmul.bf16.gmra.mxu0 %v7373
        %v7495 = vpop.f32.mrf.mxu0
        %v7496 = vadd.f32 0.0, %v7495
        %v7497 = vpop.f32.mrf.mxu0
        %v7498 = vadd.f32 0.0, %v7497
        %7499 = vmatmul.bf16.gmra.mxu0 %v7374
        %v7500 = vpop.f32.mrf.mxu0
        %v7501 = vadd.f32 0.0, %v7500
        %v7502 = vpop.f32.mrf.mxu0
        %v7503 = vadd.f32 0.0, %v7502
        %7504 = vmatmul.bf16.gmra.mxu0 %v7375
        %v7505 = vpop.f32.mrf.mxu0
        %v7506 = vadd.f32 0.0, %v7505
        %v7507 = vpop.f32.mrf.mxu0
        %v7508 = vadd.f32 0.0, %v7507
        %7509 = vmatmul.bf16.gmra.mxu0 %v7376
        %v7510 = vpop.f32.mrf.mxu0
        %v7511 = vadd.f32 0.0, %v7510
        %v7512 = vpop.f32.mrf.mxu0
        %v7513 = vadd.f32 0.0, %v7512
        %7514 = vmatmul.bf16.gmra.mxu0 %v7377
        %v7515 = vpop.f32.mrf.mxu0
        %v7516 = vadd.f32 0.0, %v7515
        %v7517 = vpop.f32.mrf.mxu0
        %v7518 = vadd.f32 0.0, %v7517
        %7519 = vmatmul.bf16.gmra.mxu0 %v7378
        %v7520 = vpop.f32.mrf.mxu0
        %v7521 = vadd.f32 0.0, %v7520
        %v7522 = vpop.f32.mrf.mxu0
        %v7523 = vadd.f32 0.0, %v7522
        %7524 = vmatmul.bf16.gmra.mxu0 %v7379
        %v7525 = vpop.f32.mrf.mxu0
        %v7526 = vadd.f32 0.0, %v7525
        %v7527 = vpop.f32.mrf.mxu0
        %v7528 = vadd.f32 0.0, %v7527
        %7529 = vmatmul.bf16.gmra.mxu0 %v7380
        %v7530 = vpop.f32.mrf.mxu0
        %v7531 = vadd.f32 0.0, %v7530
        %v7532 = vpop.f32.mrf.mxu0
        %v7533 = vadd.f32 0.0, %v7532
        %7534 = vdwg.mxu0
        %v7535 = vadd.f32 %v7190, %v7456
        %v7536 = vadd.f32 %v7192, %v7458
        %v7537 = vadd.f32 %v7195, %v7461
        %v7538 = vadd.f32 %v7197, %v7463
        %v7539 = vadd.f32 %v7200, %v7466
        %v7540 = vadd.f32 %v7202, %v7468
        %v7541 = vadd.f32 %v7205, %v7471
        %v7542 = vadd.f32 %v7207, %v7473
        %v7543 = vadd.f32 %v7210, %v7476
        %v7544 = vadd.f32 %v7212, %v7478
        %v7545 = vadd.f32 %v7215, %v7481
        %v7546 = vadd.f32 %v7217, %v7483
        %v7547 = vadd.f32 %v7220, %v7486
        %v7548 = vadd.f32 %v7222, %v7488
        %v7549 = vadd.f32 %v7225, %v7491
        %v7550 = vadd.f32 %v7227, %v7493
        %v7551 = vadd.f32 %v7230, %v7496
        %v7552 = vadd.f32 %v7232, %v7498
        %v7553 = vadd.f32 %v7235, %v7501
        %v7554 = vadd.f32 %v7237, %v7503
        %v7555 = vadd.f32 %v7240, %v7506
        %v7556 = vadd.f32 %v7242, %v7508
        %v7557 = vadd.f32 %v7245, %v7511
        %v7558 = vadd.f32 %v7247, %v7513
        %v7559 = vadd.f32 %v7250, %v7516
        %v7560 = vadd.f32 %v7252, %v7518
        %v7561 = vadd.f32 %v7255, %v7521
        %v7562 = vadd.f32 %v7257, %v7523
        %v7563 = vadd.f32 %v7260, %v7526
        %v7564 = vadd.f32 %v7262, %v7528
        %v7565 = vadd.f32 %v7265, %v7531
        %v7566 = vadd.f32 %v7267, %v7533
        %v7567 = vrot.slane %v6802, 1
        %v7568 = vrot.slane %v6803, 1
        %v7569 = vrot.slane %v6804, 1
        %v7570 = vrot.slane %v6805, 1
        %v7571 = vrot.slane %v6806, 1
        %v7572 = vrot.slane %v6807, 1
        %v7573 = vrot.slane %v6808, 1
        %v7574 = vrot.slane %v6809, 1
        %v7575 = vrot.slane %v6810, 1
        %v7576 = vrot.slane %v6811, 1
        %v7577 = vrot.slane %v6812, 1
        %v7578 = vrot.slane %v6813, 1
        %v7579 = vrot.slane %v6814, 1
        %v7580 = vrot.slane %v6815, 1
        %v7581 = vrot.slane %v6816, 1
        %v7582 = vrot.slane %v6817, 1
        %v7583 = vrot.slane %v6818, 1
        %v7584 = vrot.slane %v6819, 1
        %v7585 = vrot.slane %v6820, 1
        %v7586 = vrot.slane %v6821, 1
        %v7587 = vrot.slane %v6822, 1
        %v7588 = vrot.slane %v6823, 1
        %v7589 = vrot.slane %v6824, 1
        %v7590 = vrot.slane %v6825, 1
        %v7591 = vrot.slane %v6826, 1
        %v7592 = vrot.slane %v6827, 1
        %v7593 = vrot.slane %v6828, 1
        %v7594 = vrot.slane %v6829, 1
        %v7595 = vrot.slane %v6830, 1
        %v7596 = vrot.slane %v6831, 1
        %v7597 = vrot.slane %v6832, 1
        %v7598 = vrot.slane %v6833, 1
        %v7599 = vsel %vm1625, %v7597, %v7598
        %v7600 = vsel %vm1625, %v7596, %v7597
        %v7601 = vsel %vm1625, %v7595, %v7596
        %v7602 = vsel %vm1625, %v7594, %v7595
        %v7603 = vsel %vm1625, %v7593, %v7594
        %v7604 = vsel %vm1625, %v7592, %v7593
        %v7605 = vsel %vm1625, %v7591, %v7592
        %v7606 = vsel %vm1625, %v7590, %v7591
        %v7607 = vsel %vm1625, %v7589, %v7590
        %v7608 = vsel %vm1625, %v7588, %v7589
        %v7609 = vsel %vm1625, %v7587, %v7588
        %v7610 = vsel %vm1625, %v7586, %v7587
        %v7611 = vsel %vm1625, %v7585, %v7586
        %v7612 = vsel %vm1625, %v7584, %v7585
        %v7613 = vsel %vm1625, %v7583, %v7584
        %v7614 = vsel %vm1625, %v7582, %v7583
        %v7615 = vsel %vm1625, %v7581, %v7582
        %v7616 = vsel %vm1625, %v7580, %v7581
        %v7617 = vsel %vm1625, %v7579, %v7580
        %v7618 = vsel %vm1625, %v7578, %v7579
        %v7619 = vsel %vm1625, %v7577, %v7578
        %v7620 = vsel %vm1625, %v7576, %v7577
        %v7621 = vsel %vm1625, %v7575, %v7576
        %v7622 = vsel %vm1625, %v7574, %v7575
        %v7623 = vsel %vm1625, %v7573, %v7574
        %v7624 = vsel %vm1625, %v7572, %v7573
        %v7625 = vsel %vm1625, %v7571, %v7572
        %v7626 = vsel %vm1625, %v7570, %v7571
        %v7627 = vsel %vm1625, %v7569, %v7570
        %v7628 = vsel %vm1625, %v7568, %v7569
        %v7629 = vsel %vm1625, %v7567, %v7568
        %v7630 = vsel %vm1625, %v7598, %v7567
        %v7631 = vsel %vm1818, %v7629, 0.0
        %v7632 = vsel %vm1819, %v7628, 0.0
        %v7633 = vsel %vm1820, %v7627, 0.0
        %v7634 = vsel %vm1821, %v7626, 0.0
        %v7635 = vsel %vm1822, %v7625, 0.0
        %v7636 = vsel %vm1823, %v7624, 0.0
        %v7637 = vsel %vm1824, %v7623, 0.0
        %v7638 = vsel %vm1825, %v7622, 0.0
        %v7639 = vsel %vm1826, %v7621, 0.0
        %v7640 = vsel %vm1827, %v7620, 0.0
        %v7641 = vsel %vm1828, %v7619, 0.0
        %v7642 = vsel %vm1829, %v7618, 0.0
        %v7643 = vsel %vm1830, %v7617, 0.0
        %v7644 = vsel %vm1831, %v7616, 0.0
        %v7645 = vsel %vm1832, %v7615, 0.0
        %v7646 = vsel %vm1833, %v7614, 0.0
        %v7647 = vsel %vm1834, %v7613, 0.0
        %v7648 = vsel %vm1835, %v7612, 0.0
        %v7649 = vsel %vm1836, %v7611, 0.0
        %v7650 = vsel %vm1837, %v7610, 0.0
        %v7651 = vsel %vm1838, %v7609, 0.0
        %v7652 = vsel %vm1839, %v7608, 0.0
        %v7653 = vsel %vm1840, %v7607, 0.0
        %v7654 = vsel %vm1841, %v7606, 0.0
        %v7655 = vsel %vm1842, %v7605, 0.0
        %v7656 = vsel %vm1843, %v7604, 0.0
        %v7657 = vsel %vm1844, %v7603, 0.0
        %v7658 = vsel %vm1845, %v7602, 0.0
        %v7659 = vsel %vm1846, %v7601, 0.0
        %v7660 = vsel %vm1847, %v7600, 0.0
        %v7661 = vsel %vm1848, %v7599, 0.0
        %v7662 = vsel %vm1849, %v7630, 0.0
        %v7663 = vpack.c.bf16 %v7632, %v7631
        %v7664 = vpack.c.bf16 %v7634, %v7633
        %v7665 = vpack.c.bf16 %v7636, %v7635
        %v7666 = vpack.c.bf16 %v7638, %v7637
        %v7667 = vpack.c.bf16 %v7640, %v7639
        %v7668 = vpack.c.bf16 %v7642, %v7641
        %v7669 = vpack.c.bf16 %v7644, %v7643
        %v7670 = vpack.c.bf16 %v7646, %v7645
        %v7671 = vpack.c.bf16 %v7648, %v7647
        %v7672 = vpack.c.bf16 %v7650, %v7649
        %v7673 = vpack.c.bf16 %v7652, %v7651
        %v7674 = vpack.c.bf16 %v7654, %v7653
        %v7675 = vpack.c.bf16 %v7656, %v7655
        %v7676 = vpack.c.bf16 %v7658, %v7657
        %v7677 = vpack.c.bf16 %v7660, %v7659
        %v7678 = vpack.c.bf16 %v7662, %v7661
        %s7679 = scalar_lea.vmem %s9, 192
        %v7680 = vld [vmem:[%s7679] sm:$0xf]
        %v7681 = vld [vmem:[%s7679 + $0x4] sm:$0xf]
        %v7682 = vld [vmem:[%s7679 + $0x8] sm:$0xf]
        %v7683 = vld [vmem:[%s7679 + $0xc] sm:$0xf]
        %v7684 = vld [vmem:[%s7679 + $0x10] sm:$0xf]
        %v7685 = vld [vmem:[%s7679 + $0x14] sm:$0xf]
        %v7686 = vld [vmem:[%s7679 + $0x18] sm:$0xf]
        %v7687 = vld [vmem:[%s7679 + $0x1c] sm:$0xf]
        %v7688 = vld [vmem:[%s7679 + $0x20] sm:$0xf]
        %v7689 = vld [vmem:[%s7679 + $0x24] sm:$0xf]
        %v7690 = vld [vmem:[%s7679 + $0x28] sm:$0xf]
        %v7691 = vld [vmem:[%s7679 + $0x2c] sm:$0xf]
        %v7692 = vld [vmem:[%s7679 + $0x30] sm:$0xf]
        %v7693 = vld [vmem:[%s7679 + $0x34] sm:$0xf]
        %v7694 = vld [vmem:[%s7679 + $0x38] sm:$0xf]
        %v7695 = vld [vmem:[%s7679 + $0x3c] sm:$0xf]
        %v7712 = vunpack.c.l.b16 %v7680
        %v7713 = vunpack.c.l.b16 %v7681
        %v7714 = vunpack.c.l.b16 %v7682
        %v7715 = vunpack.c.l.b16 %v7683
        %v7716 = vunpack.c.l.b16 %v7684
        %v7717 = vunpack.c.l.b16 %v7685
        %v7718 = vunpack.c.l.b16 %v7686
        %v7719 = vunpack.c.l.b16 %v7687
        %v7720 = vunpack.c.l.b16 %v7688
        %v7721 = vunpack.c.l.b16 %v7689
        %v7722 = vunpack.c.l.b16 %v7690
        %v7723 = vunpack.c.l.b16 %v7691
        %v7724 = vunpack.c.l.b16 %v7692
        %v7725 = vunpack.c.l.b16 %v7693
        %v7726 = vunpack.c.l.b16 %v7694
        %v7727 = vunpack.c.l.b16 %v7695
        %v7728 = vpack.c.b16 %v7713, %v7712
        %v7729 = vpack.c.b16 %v7715, %v7714
        %v7730 = vpack.c.b16 %v7717, %v7716
        %v7731 = vpack.c.b16 %v7719, %v7718
        %v7732 = vpack.c.b16 %v7721, %v7720
        %v7733 = vpack.c.b16 %v7723, %v7722
        %v7734 = vpack.c.b16 %v7725, %v7724
        %v7735 = vpack.c.b16 %v7727, %v7726
        %7744 = vmatpush.bf16.msra.mxu0 %v7735
        %7745 = vmatpush.bf16.msra.mxu0 %v7734
        %7746 = vmatpush.bf16.msra.mxu0 %v7733
        %7747 = vmatpush.bf16.msra.mxu0 %v7732
        %7748 = vmatpush.bf16.msra.mxu0 %v7731
        %7749 = vmatpush.bf16.msra.mxu0 %v7730
        %7750 = vmatpush.bf16.msra.mxu0 %v7729
        %7751 = vmatpush.bf16.msra.mxu0 %v7728
        %7752 = vmatmul.bf16.gmra.mxu0 %v7663
        %v7753 = vpop.f32.mrf.mxu0
        %v7754 = vadd.f32 0.0, %v7753
        %v7755 = vpop.f32.mrf.mxu0
        %v7756 = vadd.f32 0.0, %v7755
        %7757 = vmatmul.bf16.gmra.mxu0 %v7664
        %v7758 = vpop.f32.mrf.mxu0
        %v7759 = vadd.f32 0.0, %v7758
        %v7760 = vpop.f32.mrf.mxu0
        %v7761 = vadd.f32 0.0, %v7760
        %7762 = vmatmul.bf16.gmra.mxu0 %v7665
        %v7763 = vpop.f32.mrf.mxu0
        %v7764 = vadd.f32 0.0, %v7763
        %v7765 = vpop.f32.mrf.mxu0
        %v7766 = vadd.f32 0.0, %v7765
        %7767 = vmatmul.bf16.gmra.mxu0 %v7666
        %v7768 = vpop.f32.mrf.mxu0
        %v7769 = vadd.f32 0.0, %v7768
        %v7770 = vpop.f32.mrf.mxu0
        %v7771 = vadd.f32 0.0, %v7770
        %7772 = vmatmul.bf16.gmra.mxu0 %v7667
        %v7773 = vpop.f32.mrf.mxu0
        %v7774 = vadd.f32 0.0, %v7773
        %v7775 = vpop.f32.mrf.mxu0
        %v7776 = vadd.f32 0.0, %v7775
        %7777 = vmatmul.bf16.gmra.mxu0 %v7668
        %v7778 = vpop.f32.mrf.mxu0
        %v7779 = vadd.f32 0.0, %v7778
        %v7780 = vpop.f32.mrf.mxu0
        %v7781 = vadd.f32 0.0, %v7780
        %7782 = vmatmul.bf16.gmra.mxu0 %v7669
        %v7783 = vpop.f32.mrf.mxu0
        %v7784 = vadd.f32 0.0, %v7783
        %v7785 = vpop.f32.mrf.mxu0
        %v7786 = vadd.f32 0.0, %v7785
        %7787 = vmatmul.bf16.gmra.mxu0 %v7670
        %v7788 = vpop.f32.mrf.mxu0
        %v7789 = vadd.f32 0.0, %v7788
        %v7790 = vpop.f32.mrf.mxu0
        %v7791 = vadd.f32 0.0, %v7790
        %7792 = vmatmul.bf16.gmra.mxu0 %v7671
        %v7793 = vpop.f32.mrf.mxu0
        %v7794 = vadd.f32 0.0, %v7793
        %v7795 = vpop.f32.mrf.mxu0
        %v7796 = vadd.f32 0.0, %v7795
        %7797 = vmatmul.bf16.gmra.mxu0 %v7672
        %v7798 = vpop.f32.mrf.mxu0
        %v7799 = vadd.f32 0.0, %v7798
        %v7800 = vpop.f32.mrf.mxu0
        %v7801 = vadd.f32 0.0, %v7800
        %7802 = vmatmul.bf16.gmra.mxu0 %v7673
        %v7803 = vpop.f32.mrf.mxu0
        %v7804 = vadd.f32 0.0, %v7803
        %v7805 = vpop.f32.mrf.mxu0
        %v7806 = vadd.f32 0.0, %v7805
        %7807 = vmatmul.bf16.gmra.mxu0 %v7674
        %v7808 = vpop.f32.mrf.mxu0
        %v7809 = vadd.f32 0.0, %v7808
        %v7810 = vpop.f32.mrf.mxu0
        %v7811 = vadd.f32 0.0, %v7810
        %7812 = vmatmul.bf16.gmra.mxu0 %v7675
        %v7813 = vpop.f32.mrf.mxu0
        %v7814 = vadd.f32 0.0, %v7813
        %v7815 = vpop.f32.mrf.mxu0
        %v7816 = vadd.f32 0.0, %v7815
        %7817 = vmatmul.bf16.gmra.mxu0 %v7676
        %v7818 = vpop.f32.mrf.mxu0
        %v7819 = vadd.f32 0.0, %v7818
        %v7820 = vpop.f32.mrf.mxu0
        %v7821 = vadd.f32 0.0, %v7820
        %7822 = vmatmul.bf16.gmra.mxu0 %v7677
        %v7823 = vpop.f32.mrf.mxu0
        %v7824 = vadd.f32 0.0, %v7823
        %v7825 = vpop.f32.mrf.mxu0
        %v7826 = vadd.f32 0.0, %v7825
        %7827 = vmatmul.bf16.gmra.mxu0 %v7678
        %v7828 = vpop.f32.mrf.mxu0
        %v7829 = vadd.f32 0.0, %v7828
        %v7830 = vpop.f32.mrf.mxu0
        %v7831 = vadd.f32 0.0, %v7830
        %7832 = vdwg.mxu0
        %v7833 = vadd.f32 %v7535, %v7754
        %v7834 = vadd.f32 %v7536, %v7756
        %v7835 = vadd.f32 %v7537, %v7759
        %v7836 = vadd.f32 %v7538, %v7761
        %v7837 = vadd.f32 %v7539, %v7764
        %v7838 = vadd.f32 %v7540, %v7766
        %v7839 = vadd.f32 %v7541, %v7769
        %v7840 = vadd.f32 %v7542, %v7771
        %v7841 = vadd.f32 %v7543, %v7774
        %v7842 = vadd.f32 %v7544, %v7776
        %v7843 = vadd.f32 %v7545, %v7779
        %v7844 = vadd.f32 %v7546, %v7781
        %v7845 = vadd.f32 %v7547, %v7784
        %v7846 = vadd.f32 %v7548, %v7786
        %v7847 = vadd.f32 %v7549, %v7789
        %v7848 = vadd.f32 %v7550, %v7791
        %v7849 = vadd.f32 %v7551, %v7794
        %v7850 = vadd.f32 %v7552, %v7796
        %v7851 = vadd.f32 %v7553, %v7799
        %v7852 = vadd.f32 %v7554, %v7801
        %v7853 = vadd.f32 %v7555, %v7804
        %v7854 = vadd.f32 %v7556, %v7806
        %v7855 = vadd.f32 %v7557, %v7809
        %v7856 = vadd.f32 %v7558, %v7811
        %v7857 = vadd.f32 %v7559, %v7814
        %v7858 = vadd.f32 %v7560, %v7816
        %v7859 = vadd.f32 %v7561, %v7819
        %v7860 = vadd.f32 %v7562, %v7821
        %v7861 = vadd.f32 %v7563, %v7824
        %v7862 = vadd.f32 %v7564, %v7826
        %v7863 = vadd.f32 %v7565, %v7829
        %v7864 = vadd.f32 %v7566, %v7831
        %v7865 = vrot.slane %v6802, 2
        %v7866 = vrot.slane %v6803, 2
        %v7867 = vrot.slane %v6804, 2
        %v7868 = vrot.slane %v6805, 2
        %v7869 = vrot.slane %v6806, 2
        %v7870 = vrot.slane %v6807, 2
        %v7871 = vrot.slane %v6808, 2
        %v7872 = vrot.slane %v6809, 2
        %v7873 = vrot.slane %v6810, 2
        %v7874 = vrot.slane %v6811, 2
        %v7875 = vrot.slane %v6812, 2
        %v7876 = vrot.slane %v6813, 2
        %v7877 = vrot.slane %v6814, 2
        %v7878 = vrot.slane %v6815, 2
        %v7879 = vrot.slane %v6816, 2
        %v7880 = vrot.slane %v6817, 2
        %v7881 = vrot.slane %v6818, 2
        %v7882 = vrot.slane %v6819, 2
        %v7883 = vrot.slane %v6820, 2
        %v7884 = vrot.slane %v6821, 2
        %v7885 = vrot.slane %v6822, 2
        %v7886 = vrot.slane %v6823, 2
        %v7887 = vrot.slane %v6824, 2
        %v7888 = vrot.slane %v6825, 2
        %v7889 = vrot.slane %v6826, 2
        %v7890 = vrot.slane %v6827, 2
        %v7891 = vrot.slane %v6828, 2
        %v7892 = vrot.slane %v6829, 2
        %v7893 = vrot.slane %v6830, 2
        %v7894 = vrot.slane %v6831, 2
        %v7895 = vrot.slane %v6832, 2
        %v7896 = vrot.slane %v6833, 2
        %v7897 = vsel %vm2116, %v7895, %v7896
        %v7898 = vsel %vm2116, %v7894, %v7895
        %v7899 = vsel %vm2116, %v7893, %v7894
        %v7900 = vsel %vm2116, %v7892, %v7893
        %v7901 = vsel %vm2116, %v7891, %v7892
        %v7902 = vsel %vm2116, %v7890, %v7891
        %v7903 = vsel %vm2116, %v7889, %v7890
        %v7904 = vsel %vm2116, %v7888, %v7889
        %v7905 = vsel %vm2116, %v7887, %v7888
        %v7906 = vsel %vm2116, %v7886, %v7887
        %v7907 = vsel %vm2116, %v7885, %v7886
        %v7908 = vsel %vm2116, %v7884, %v7885
        %v7909 = vsel %vm2116, %v7883, %v7884
        %v7910 = vsel %vm2116, %v7882, %v7883
        %v7911 = vsel %vm2116, %v7881, %v7882
        %v7912 = vsel %vm2116, %v7880, %v7881
        %v7913 = vsel %vm2116, %v7879, %v7880
        %v7914 = vsel %vm2116, %v7878, %v7879
        %v7915 = vsel %vm2116, %v7877, %v7878
        %v7916 = vsel %vm2116, %v7876, %v7877
        %v7917 = vsel %vm2116, %v7875, %v7876
        %v7918 = vsel %vm2116, %v7874, %v7875
        %v7919 = vsel %vm2116, %v7873, %v7874
        %v7920 = vsel %vm2116, %v7872, %v7873
        %v7921 = vsel %vm2116, %v7871, %v7872
        %v7922 = vsel %vm2116, %v7870, %v7871
        %v7923 = vsel %vm2116, %v7869, %v7870
        %v7924 = vsel %vm2116, %v7868, %v7869
        %v7925 = vsel %vm2116, %v7867, %v7868
        %v7926 = vsel %vm2116, %v7866, %v7867
        %v7927 = vsel %vm2116, %v7865, %v7866
        %v7928 = vsel %vm2116, %v7896, %v7865
        %v7929 = vsel %vm2309, %v7927, 0.0
        %v7930 = vsel %vm2310, %v7926, 0.0
        %v7931 = vsel %vm2311, %v7925, 0.0
        %v7932 = vsel %vm2312, %v7924, 0.0
        %v7933 = vsel %vm2313, %v7923, 0.0
        %v7934 = vsel %vm2314, %v7922, 0.0
        %v7935 = vsel %vm2315, %v7921, 0.0
        %v7936 = vsel %vm2316, %v7920, 0.0
        %v7937 = vsel %vm2317, %v7919, 0.0
        %v7938 = vsel %vm2318, %v7918, 0.0
        %v7939 = vsel %vm2319, %v7917, 0.0
        %v7940 = vsel %vm2320, %v7916, 0.0
        %v7941 = vsel %vm2321, %v7915, 0.0
        %v7942 = vsel %vm2322, %v7914, 0.0
        %v7943 = vsel %vm2323, %v7913, 0.0
        %v7944 = vsel %vm2324, %v7912, 0.0
        %v7945 = vsel %vm2325, %v7911, 0.0
        %v7946 = vsel %vm2326, %v7910, 0.0
        %v7947 = vsel %vm2327, %v7909, 0.0
        %v7948 = vsel %vm2328, %v7908, 0.0
        %v7949 = vsel %vm2329, %v7907, 0.0
        %v7950 = vsel %vm2330, %v7906, 0.0
        %v7951 = vsel %vm2331, %v7905, 0.0
        %v7952 = vsel %vm2332, %v7904, 0.0
        %v7953 = vsel %vm2333, %v7903, 0.0
        %v7954 = vsel %vm2334, %v7902, 0.0
        %v7955 = vsel %vm2335, %v7901, 0.0
        %v7956 = vsel %vm2336, %v7900, 0.0
        %v7957 = vsel %vm2337, %v7899, 0.0
        %v7958 = vsel %vm2338, %v7898, 0.0
        %v7959 = vsel %vm2339, %v7897, 0.0
        %v7960 = vsel %vm2340, %v7928, 0.0
        %v7961 = vpack.c.bf16 %v7930, %v7929
        %v7962 = vpack.c.bf16 %v7932, %v7931
        %v7963 = vpack.c.bf16 %v7934, %v7933
        %v7964 = vpack.c.bf16 %v7936, %v7935
        %v7965 = vpack.c.bf16 %v7938, %v7937
        %v7966 = vpack.c.bf16 %v7940, %v7939
        %v7967 = vpack.c.bf16 %v7942, %v7941
        %v7968 = vpack.c.bf16 %v7944, %v7943
        %v7969 = vpack.c.bf16 %v7946, %v7945
        %v7970 = vpack.c.bf16 %v7948, %v7947
        %v7971 = vpack.c.bf16 %v7950, %v7949
        %v7972 = vpack.c.bf16 %v7952, %v7951
        %v7973 = vpack.c.bf16 %v7954, %v7953
        %v7974 = vpack.c.bf16 %v7956, %v7955
        %v7975 = vpack.c.bf16 %v7958, %v7957
        %v7976 = vpack.c.bf16 %v7960, %v7959
        %s7977 = scalar_lea.vmem %s9, 256
        %v7978 = vld [vmem:[%s7977] sm:$0xf]
        %v7979 = vld [vmem:[%s7977 + $0x4] sm:$0xf]
        %v7980 = vld [vmem:[%s7977 + $0x8] sm:$0xf]
        %v7981 = vld [vmem:[%s7977 + $0xc] sm:$0xf]
        %v7982 = vld [vmem:[%s7977 + $0x10] sm:$0xf]
        %v7983 = vld [vmem:[%s7977 + $0x14] sm:$0xf]
        %v7984 = vld [vmem:[%s7977 + $0x18] sm:$0xf]
        %v7985 = vld [vmem:[%s7977 + $0x1c] sm:$0xf]
        %v7986 = vld [vmem:[%s7977 + $0x20] sm:$0xf]
        %v7987 = vld [vmem:[%s7977 + $0x24] sm:$0xf]
        %v7988 = vld [vmem:[%s7977 + $0x28] sm:$0xf]
        %v7989 = vld [vmem:[%s7977 + $0x2c] sm:$0xf]
        %v7990 = vld [vmem:[%s7977 + $0x30] sm:$0xf]
        %v7991 = vld [vmem:[%s7977 + $0x34] sm:$0xf]
        %v7992 = vld [vmem:[%s7977 + $0x38] sm:$0xf]
        %v7993 = vld [vmem:[%s7977 + $0x3c] sm:$0xf]
        %v8010 = vunpack.c.l.b16 %v7978
        %v8011 = vunpack.c.l.b16 %v7979
        %v8012 = vunpack.c.l.b16 %v7980
        %v8013 = vunpack.c.l.b16 %v7981
        %v8014 = vunpack.c.l.b16 %v7982
        %v8015 = vunpack.c.l.b16 %v7983
        %v8016 = vunpack.c.l.b16 %v7984
        %v8017 = vunpack.c.l.b16 %v7985
        %v8018 = vunpack.c.l.b16 %v7986
        %v8019 = vunpack.c.l.b16 %v7987
        %v8020 = vunpack.c.l.b16 %v7988
        %v8021 = vunpack.c.l.b16 %v7989
        %v8022 = vunpack.c.l.b16 %v7990
        %v8023 = vunpack.c.l.b16 %v7991
        %v8024 = vunpack.c.l.b16 %v7992
        %v8025 = vunpack.c.l.b16 %v7993
        %v8026 = vpack.c.b16 %v8011, %v8010
        %v8027 = vpack.c.b16 %v8013, %v8012
        %v8028 = vpack.c.b16 %v8015, %v8014
        %v8029 = vpack.c.b16 %v8017, %v8016
        %v8030 = vpack.c.b16 %v8019, %v8018
        %v8031 = vpack.c.b16 %v8021, %v8020
        %v8032 = vpack.c.b16 %v8023, %v8022
        %v8033 = vpack.c.b16 %v8025, %v8024
        %8042 = vmatpush.bf16.msra.mxu0 %v8033
        %8043 = vmatpush.bf16.msra.mxu0 %v8032
        %8044 = vmatpush.bf16.msra.mxu0 %v8031
        %8045 = vmatpush.bf16.msra.mxu0 %v8030
        %8046 = vmatpush.bf16.msra.mxu0 %v8029
        %8047 = vmatpush.bf16.msra.mxu0 %v8028
        %8048 = vmatpush.bf16.msra.mxu0 %v8027
        %8049 = vmatpush.bf16.msra.mxu0 %v8026
        %8050 = vmatmul.bf16.gmra.mxu0 %v7961
        %v8051 = vpop.f32.mrf.mxu0
        %v8052 = vadd.f32 0.0, %v8051
        %v8053 = vpop.f32.mrf.mxu0
        %v8054 = vadd.f32 0.0, %v8053
        %8055 = vmatmul.bf16.gmra.mxu0 %v7962
        %v8056 = vpop.f32.mrf.mxu0
        %v8057 = vadd.f32 0.0, %v8056
        %v8058 = vpop.f32.mrf.mxu0
        %v8059 = vadd.f32 0.0, %v8058
        %8060 = vmatmul.bf16.gmra.mxu0 %v7963
        %v8061 = vpop.f32.mrf.mxu0
        %v8062 = vadd.f32 0.0, %v8061
        %v8063 = vpop.f32.mrf.mxu0
        %v8064 = vadd.f32 0.0, %v8063
        %8065 = vmatmul.bf16.gmra.mxu0 %v7964
        %v8066 = vpop.f32.mrf.mxu0
        %v8067 = vadd.f32 0.0, %v8066
        %v8068 = vpop.f32.mrf.mxu0
        %v8069 = vadd.f32 0.0, %v8068
        %8070 = vmatmul.bf16.gmra.mxu0 %v7965
        %v8071 = vpop.f32.mrf.mxu0
        %v8072 = vadd.f32 0.0, %v8071
        %v8073 = vpop.f32.mrf.mxu0
        %v8074 = vadd.f32 0.0, %v8073
        %8075 = vmatmul.bf16.gmra.mxu0 %v7966
        %v8076 = vpop.f32.mrf.mxu0
        %v8077 = vadd.f32 0.0, %v8076
        %v8078 = vpop.f32.mrf.mxu0
        %v8079 = vadd.f32 0.0, %v8078
        %8080 = vmatmul.bf16.gmra.mxu0 %v7967
        %v8081 = vpop.f32.mrf.mxu0
        %v8082 = vadd.f32 0.0, %v8081
        %v8083 = vpop.f32.mrf.mxu0
        %v8084 = vadd.f32 0.0, %v8083
        %8085 = vmatmul.bf16.gmra.mxu0 %v7968
        %v8086 = vpop.f32.mrf.mxu0
        %v8087 = vadd.f32 0.0, %v8086
        %v8088 = vpop.f32.mrf.mxu0
        %v8089 = vadd.f32 0.0, %v8088
        %8090 = vmatmul.bf16.gmra.mxu0 %v7969
        %v8091 = vpop.f32.mrf.mxu0
        %v8092 = vadd.f32 0.0, %v8091
        %v8093 = vpop.f32.mrf.mxu0
        %v8094 = vadd.f32 0.0, %v8093
        %8095 = vmatmul.bf16.gmra.mxu0 %v7970
        %v8096 = vpop.f32.mrf.mxu0
        %v8097 = vadd.f32 0.0, %v8096
        %v8098 = vpop.f32.mrf.mxu0
        %v8099 = vadd.f32 0.0, %v8098
        %8100 = vmatmul.bf16.gmra.mxu0 %v7971
        %v8101 = vpop.f32.mrf.mxu0
        %v8102 = vadd.f32 0.0, %v8101
        %v8103 = vpop.f32.mrf.mxu0
        %v8104 = vadd.f32 0.0, %v8103
        %8105 = vmatmul.bf16.gmra.mxu0 %v7972
        %v8106 = vpop.f32.mrf.mxu0
        %v8107 = vadd.f32 0.0, %v8106
        %v8108 = vpop.f32.mrf.mxu0
        %v8109 = vadd.f32 0.0, %v8108
        %8110 = vmatmul.bf16.gmra.mxu0 %v7973
        %v8111 = vpop.f32.mrf.mxu0
        %v8112 = vadd.f32 0.0, %v8111
        %v8113 = vpop.f32.mrf.mxu0
        %v8114 = vadd.f32 0.0, %v8113
        %8115 = vmatmul.bf16.gmra.mxu0 %v7974
        %v8116 = vpop.f32.mrf.mxu0
        %v8117 = vadd.f32 0.0, %v8116
        %v8118 = vpop.f32.mrf.mxu0
        %v8119 = vadd.f32 0.0, %v8118
        %8120 = vmatmul.bf16.gmra.mxu0 %v7975
        %v8121 = vpop.f32.mrf.mxu0
        %v8122 = vadd.f32 0.0, %v8121
        %v8123 = vpop.f32.mrf.mxu0
        %v8124 = vadd.f32 0.0, %v8123
        %8125 = vmatmul.bf16.gmra.mxu0 %v7976
        %v8126 = vpop.f32.mrf.mxu0
        %v8127 = vadd.f32 0.0, %v8126
        %v8128 = vpop.f32.mrf.mxu0
        %v8129 = vadd.f32 0.0, %v8128
        %8130 = vdwg.mxu0
        %v8131 = vadd.f32 %v7833, %v8052
        %v8132 = vadd.f32 %v7834, %v8054
        %v8133 = vadd.f32 %v7835, %v8057
        %v8134 = vadd.f32 %v7836, %v8059
        %v8135 = vadd.f32 %v7837, %v8062
        %v8136 = vadd.f32 %v7838, %v8064
        %v8137 = vadd.f32 %v7839, %v8067
        %v8138 = vadd.f32 %v7840, %v8069
        %v8139 = vadd.f32 %v7841, %v8072
        %v8140 = vadd.f32 %v7842, %v8074
        %v8141 = vadd.f32 %v7843, %v8077
        %v8142 = vadd.f32 %v7844, %v8079
        %v8143 = vadd.f32 %v7845, %v8082
        %v8144 = vadd.f32 %v7846, %v8084
        %v8145 = vadd.f32 %v7847, %v8087
        %v8146 = vadd.f32 %v7848, %v8089
        %v8147 = vadd.f32 %v7849, %v8092
        %v8148 = vadd.f32 %v7850, %v8094
        %v8149 = vadd.f32 %v7851, %v8097
        %v8150 = vadd.f32 %v7852, %v8099
        %v8151 = vadd.f32 %v7853, %v8102
        %v8152 = vadd.f32 %v7854, %v8104
        %v8153 = vadd.f32 %v7855, %v8107
        %v8154 = vadd.f32 %v7856, %v8109
        %v8155 = vadd.f32 %v7857, %v8112
        %v8156 = vadd.f32 %v7858, %v8114
        %v8157 = vadd.f32 %v7859, %v8117
        %v8158 = vadd.f32 %v7860, %v8119
        %v8159 = vadd.f32 %v7861, %v8122
        %v8160 = vadd.f32 %v7862, %v8124
        %v8161 = vadd.f32 %v7863, %v8127
        %v8162 = vadd.f32 %v7864, %v8129
        %v8163 = vld [vmem:[%s10] sm:$0x1]
        %v8165 = vperm.slane %v8163, 0
        %v8167 = vadd.f32 %v8131, %v8165
        %v8168 = vadd.f32 %v8132, %v8165
        %v8169 = vadd.f32 %v8133, %v8165
        %v8170 = vadd.f32 %v8134, %v8165
        %v8171 = vadd.f32 %v8135, %v8165
        %v8172 = vadd.f32 %v8136, %v8165
        %v8173 = vadd.f32 %v8137, %v8165
        %v8174 = vadd.f32 %v8138, %v8165
        %v8175 = vadd.f32 %v8139, %v8165
        %v8176 = vadd.f32 %v8140, %v8165
        %v8177 = vadd.f32 %v8141, %v8165
        %v8178 = vadd.f32 %v8142, %v8165
        %v8179 = vadd.f32 %v8143, %v8165
        %v8180 = vadd.f32 %v8144, %v8165
        %v8181 = vadd.f32 %v8145, %v8165
        %v8182 = vadd.f32 %v8146, %v8165
        %v8183 = vadd.f32 %v8147, %v8165
        %v8184 = vadd.f32 %v8148, %v8165
        %v8185 = vadd.f32 %v8149, %v8165
        %v8186 = vadd.f32 %v8150, %v8165
        %v8187 = vadd.f32 %v8151, %v8165
        %v8188 = vadd.f32 %v8152, %v8165
        %v8189 = vadd.f32 %v8153, %v8165
        %v8190 = vadd.f32 %v8154, %v8165
        %v8191 = vadd.f32 %v8155, %v8165
        %v8192 = vadd.f32 %v8156, %v8165
        %v8193 = vadd.f32 %v8157, %v8165
        %v8194 = vadd.f32 %v8158, %v8165
        %v8195 = vadd.f32 %v8159, %v8165
        %v8196 = vadd.f32 %v8160, %v8165
        %v8197 = vadd.f32 %v8161, %v8165
        %v8198 = vadd.f32 %v8162, %v8165
        %v8199 = vadd.f32 %v441, %v8167
        %v8200 = vadd.f32 %v442, %v8168
        %v8201 = vadd.f32 %v443, %v8169
        %v8202 = vadd.f32 %v444, %v8170
        %v8203 = vadd.f32 %v445, %v8171
        %v8204 = vadd.f32 %v446, %v8172
        %v8205 = vadd.f32 %v447, %v8173
        %v8206 = vadd.f32 %v448, %v8174
        %v8207 = vadd.f32 %v449, %v8175
        %v8208 = vadd.f32 %v450, %v8176
        %v8209 = vadd.f32 %v451, %v8177
        %v8210 = vadd.f32 %v452, %v8178
        %v8211 = vadd.f32 %v453, %v8179
        %v8212 = vadd.f32 %v454, %v8180
        %v8213 = vadd.f32 %v455, %v8181
        %v8214 = vadd.f32 %v456, %v8182
        %v8215 = vadd.f32 %v457, %v8183
        %v8216 = vadd.f32 %v458, %v8184
        %v8217 = vadd.f32 %v459, %v8185
        %v8218 = vadd.f32 %v460, %v8186
        %v8219 = vadd.f32 %v461, %v8187
        %v8220 = vadd.f32 %v462, %v8188
        %v8221 = vadd.f32 %v463, %v8189
        %v8222 = vadd.f32 %v464, %v8190
        %v8223 = vadd.f32 %v465, %v8191
        %v8224 = vadd.f32 %v466, %v8192
        %v8225 = vadd.f32 %v467, %v8193
        %v8226 = vadd.f32 %v468, %v8194
        %v8227 = vadd.f32 %v469, %v8195
        %v8228 = vadd.f32 %v470, %v8196
        %v8229 = vadd.f32 %v471, %v8197
        %v8230 = vadd.f32 %v472, %v8198
        %8231 = vst.msk [vmem:[%s405] sm:$0xff] %vm815, %v8199
        %8232 = vst.msk [vmem:[%s405 + $0x8] sm:$0xff] %vm815, %v8200
        %8233 = vst.msk [vmem:[%s405 + $0x10] sm:$0xff] %vm815, %v8201
        %8234 = vst.msk [vmem:[%s405 + $0x18] sm:$0xff] %vm815, %v8202
        %8235 = vst.msk [vmem:[%s405 + $0x20] sm:$0xff] %vm815, %v8203
        %8236 = vst.msk [vmem:[%s405 + $0x28] sm:$0xff] %vm815, %v8204
        %8237 = vst.msk [vmem:[%s405 + $0x30] sm:$0xff] %vm815, %v8205
        %8238 = vst.msk [vmem:[%s405 + $0x38] sm:$0xff] %vm815, %v8206
        %8239 = vst.msk [vmem:[%s405 + $0x40] sm:$0xff] %vm815, %v8207
        %8240 = vst.msk [vmem:[%s405 + $0x48] sm:$0xff] %vm815, %v8208
        %8241 = vst.msk [vmem:[%s405 + $0x50] sm:$0xff] %vm815, %v8209
        %8242 = vst.msk [vmem:[%s405 + $0x58] sm:$0xff] %vm815, %v8210
        %8243 = vst.msk [vmem:[%s405 + $0x60] sm:$0xff] %vm815, %v8211
        %8244 = vst.msk [vmem:[%s405 + $0x68] sm:$0xff] %vm815, %v8212
        %8245 = vst.msk [vmem:[%s405 + $0x70] sm:$0xff] %vm815, %v8213
        %8246 = vst.msk [vmem:[%s405 + $0x78] sm:$0xff] %vm815, %v8214
        %8247 = vst.msk [vmem:[%s405 + $0x80] sm:$0xff] %vm815, %v8215
        %8248 = vst.msk [vmem:[%s405 + $0x88] sm:$0xff] %vm815, %v8216
        %8249 = vst.msk [vmem:[%s405 + $0x90] sm:$0xff] %vm815, %v8217
        %8250 = vst.msk [vmem:[%s405 + $0x98] sm:$0xff] %vm815, %v8218
        %8251 = vst.msk [vmem:[%s405 + $0xa0] sm:$0xff] %vm815, %v8219
        %8252 = vst.msk [vmem:[%s405 + $0xa8] sm:$0xff] %vm815, %v8220
        %8253 = vst.msk [vmem:[%s405 + $0xb0] sm:$0xff] %vm815, %v8221
        %8254 = vst.msk [vmem:[%s405 + $0xb8] sm:$0xff] %vm815, %v8222
        %8255 = vst.msk [vmem:[%s405 + $0xc0] sm:$0xff] %vm815, %v8223
        %8256 = vst.msk [vmem:[%s405 + $0xc8] sm:$0xff] %vm815, %v8224
        %8257 = vst.msk [vmem:[%s405 + $0xd0] sm:$0xff] %vm815, %v8225
        %8258 = vst.msk [vmem:[%s405 + $0xd8] sm:$0xff] %vm815, %v8226
        %8259 = vst.msk [vmem:[%s405 + $0xe0] sm:$0xff] %vm815, %v8227
        %8260 = vst.msk [vmem:[%s405 + $0xe8] sm:$0xff] %vm815, %v8228
        %8261 = vst.msk [vmem:[%s405 + $0xf0] sm:$0xff] %vm815, %v8229
        %8262 = vst.msk [vmem:[%s405 + $0xf8] sm:$0xff] %vm815, %v8230
        %s8263 = smul.u32 32, %s23
        %p8264 = scmp.lt.s32.totalorder %s8263, 63
        %s8265 = scalar_select %p8264, %s8263, 63
        %s8266 = smul.addr %s8265, 8
        %s8267 = scalar_lea.vmem %s11, %s8266
        // Predicated region
        $region69: #{postnet_forward.1} parent=63 // pred_check
          %p8268 = pneg %p277
        $region70: #{postnet_forward.1} parent=63 // pred_check_branch
          %8270 = sbr.rel (%p8268) target = $region72
        $region71: #{postnet_forward.1} parent=63 // pred_region
          %s8271 = smul.u32 32, %s23
        $region72: #{postnet_forward.1} parent=63 // pred_fallthru
          _
      $region64: #{postnet_forward.1} parent=5 // pred_fallthru
        _
      %p8272 = scmp.le.s32.totalorder 2, %s18
      // Predicated region
      $region73: #{postnet_forward.1} parent=5 // pred_check
        %p8273 = pneg %p8272
      $region74: #{postnet_forward.1} parent=5 // pred_check_branch
        %8275 = sbr.rel (%p8273) target = $region76
      $region75: #{postnet_forward.1} parent=5 // pred_region
        %s8276 = ssub.s32 %s18, 2
        // Predicated region
        $region77: #{postnet_forward.1} parent=75 // pred_check
          %p8277 = pneg %p283
        $region78: #{postnet_forward.1} parent=75 // pred_check_branch
          %8279 = sbr.rel (%p8277) target = $region80
        $region79: #{postnet_forward.1} parent=75 // pred_region
          %s8280 = smul.u32 32, %s24
          %p8281 = scmp.lt.s32.totalorder %s8280, 63
          %s8282 = scalar_select %p8281, %s8280, 63
          %s8283 = smul.addr %s8282, 8
          %s8284 = scalar_lea.vmem %s11, %s8283
        $region80: #{postnet_forward.1} parent=75 // pred_fallthru
          _
      $region76: #{postnet_forward.1} parent=5 // pred_fallthru
        _
    $region6: #{postnet_forward.1} parent=1 // loop_footer
      %s22 = sadd.s32 1, %s18
    $region7: #{postnet_forward.1} parent=1 // loop_footer_branch
      %17 = sbr.rel target = $region3
    $region8: #{postnet_forward.1} parent=1 // loop_exit
      _
    %8285 = vsyncpa [#allocation3], 1
    %s8286 = scalar_lea.sflag [#allocation3], 1
    %8287 = vsyncpa %s8286, 1

</llo_original>
